<compile_context>
chip_gen: v7x
topology: tpu7x:2x2x1
jax: 0.10.0
libtpu: 0.0.40
codegen_flags: <defaults>
</compile_context>

<pallas_src>
import functools

import jax
import jax.numpy as jnp
from jax.experimental import pallas as pl
from jax.experimental.pallas import tpu as pltpu


def _tpu_vmem_bytes():
    """Per-core VMEM capacity; conservative fallback if the query fails."""
    try:
        return int(pltpu.get_tpu_info().vmem_capacity_bytes)
    except Exception:  # noqa: BLE001 - fall back to the smallest current part (v7x)
        return 64 << 20


def _pick_ti(s, vmem_bytes):
    """Largest power-of-two row-block dividing S, sized per VMEM generation."""
    if vmem_bytes >= (100 << 20):      # v5e / v6e: 128 MiB physical
        max_ti = 32
    elif s <= 128:                     # v7x: 64 MiB physical
        max_ti = 16
    else:
        max_ti = 8
    ti = 1
    for cand in (2, 4, 8, 16, 32):
        if cand <= max_ti and s % cand == 0:
            ti = cand
    return ti


def _pick_a_split(n, num_ib):
    """Split the a-axis across cores only when the batch axis can't (v7x, N odd)."""
    if n % 2 != 0 and num_ib % 2 == 0:
        return 2
    return 1


def _vmem_limit_bytes(s, ti, vmem_bytes):
    """Explicit scoped-VMEM budget: double-buffered blocks + scratch + slab temps."""
    resident = 2 * (3 * s * s * 4 + 5 * s * s * 4)    # clf/mask maps + pred geometry
    streamed = 2 * ti * s * 128 * 4                   # gt-geo block (5 lanes pad to 128)
    scratch = 2 * s * s * 4 + 2 * s * 128 * 4         # reg_acc, area_pred, cos/sin col sums
    interm = 6 * ti * s * s * 4                       # live (TI, S, S) slab temporaries
    need = resident + streamed + scratch + interm + (8 << 20)   # compiler headroom
    return int(min(max(need, 32 << 20), int(vmem_bytes * 0.8)))


def _detection_loss_kernel(
    tclf_ref, pclf_ref, mask_ref, treg_ref, preg_ref,   # inputs
    out_ref,                                            # (1, 1, 128) per-(n,p) partials
    reg_acc, area_pred_c, cos_acc, sin_acc,             # VMEM scratch
    *, lam_theta, a_count,
):
    ib = pl.program_id(2)
    last_ib = pl.num_programs(2) - 1

    # Predicted geometry (per-batch resident): (S, S) each, indexed [b, c].
    top_p = preg_ref[0, 0]
    right_p = preg_ref[0, 1]
    bottom_p = preg_ref[0, 2]
    left_p = preg_ref[0, 3]

    @pl.when(ib == 0)
    def _init():
        reg_acc[...] = jnp.zeros_like(reg_acc)
        cos_acc[...] = jnp.zeros_like(cos_acc)
        sin_acc[...] = jnp.zeros_like(sin_acc)
        # Cached once per batch; reused by every ib step and at finalize.
        area_pred_c[...] = (top_p + bottom_p) * (right_p + left_p)

    # Streamed gt geometry rows a for this block: (TI, S, 5) indexed [a, b, ch].
    treg = treg_ref[0]
    top_gt = treg[:, :, 0:1]          # (TI, S, 1) -> broadcasts over c (lanes)
    right_gt = treg[:, :, 1:2]
    bottom_gt = treg[:, :, 2:3]
    left_gt = treg[:, :, 3:4]
    theta_gt = treg[:, :, 4:5]

    # Angle term is separable in a: only O(TI*S) transcendental/accumulate work.
    cos_acc[...] += jnp.sum(jnp.cos(theta_gt), axis=0)   # (S, 1), indexed [b]
    sin_acc[...] += jnp.sum(jnp.sin(theta_gt), axis=0)

    # IOU term on the (TI, S, S) slab — fused, unweighted (weight applied at finalize).
    area_gt = (top_gt + bottom_gt) * (right_gt + left_gt)               # (TI, S, 1)
    area_int = ((jnp.minimum(right_gt, right_p[None]) + jnp.minimum(left_gt, left_p[None]))
                * (jnp.minimum(top_gt, top_p[None]) + jnp.minimum(bottom_gt, bottom_p[None])))
    # -log((i+1)/(1+u)) == log(1+u) - log(1+i); union folded into the log argument.
    iou = (jnp.log(1.0 + area_gt + area_pred_c[...][None] - area_int)
           - jnp.log(1.0 + area_int))                                   # (TI, S, S)
    reg_acc[...] += jnp.sum(iou, axis=0)                                # (S, S)

    @pl.when(ib == last_ib)
    def _finalize():
        clf_t = tclf_ref[0, 0]
        msk = mask_ref[0, 0]
        clf_p = pclf_ref[0, 0]
        weight = clf_t * msk
        theta_p = preg_ref[0, 4]
        cos_p = jnp.cos(theta_p)
        sin_p = jnp.sin(theta_p)
        # sum_a (1 - cos(theta_p - theta_g)) = a_count - cos_p*C[b] - sin_p*D[b]
        angle_map = a_count - cos_p * cos_acc[...] - sin_p * sin_acc[...]
        reg_sum = jnp.sum(weight * (reg_acc[...] + lam_theta * angle_map))
        inter = jnp.sum(weight * clf_p)
        t_sum = jnp.sum(weight)
        p_sum = jnp.sum(clf_p * msk)
        lane = jax.lax.broadcasted_iota(jnp.int32, (1, out_ref.shape[2]), 1)
        out_ref[0] = (jnp.where(lane == 0, reg_sum, 0.0)
                      + jnp.where(lane == 1, inter, 0.0)
                      + jnp.where(lane == 2, t_sum, 0.0)
                      + jnp.where(lane == 3, p_sum, 0.0))


def detection_loss(y_true_clf, y_pred_clf, y_true_reg, y_pred_reg, training_mask,
                   *, lam_theta, lam_reg, ti=None, a_split=None):
    N, _, S, S2 = y_true_clf.shape
    assert S == S2, "PyTorch broadcast in this loss requires H == W"
    assert y_true_reg.shape == (N, S, S, 5)
    assert y_pred_reg.shape == (N, 5, S, S)

    vmem_bytes = _tpu_vmem_bytes()
    if ti is None:
        ti = _pick_ti(S, vmem_bytes)
    assert S % ti == 0
    num_ib_total = S // ti
    if a_split is None:
        a_split = _pick_a_split(N, num_ib_total)
    assert num_ib_total % a_split == 0
    P = a_split
    nib = num_ib_total // P           # ib steps per (n, p) slice
    a_count = float(ti * nib)         # gt rows handled per (n, p) slice

    kernel = functools.partial(_detection_loss_kernel,
                               lam_theta=float(lam_theta), a_count=a_count)

    partials = pl.pallas_call(
        kernel,
        out_shape=jax.ShapeDtypeStruct((N * P, 1, 128), jnp.float32),
        grid_spec=pltpu.PrefetchScalarGridSpec(
            num_scalar_prefetch=0,
            grid=(N, P, nib),
            in_specs=[
                pl.BlockSpec((1, 1, S, S), lambda n, p, ib: (n, 0, 0, 0)),   # y_true_clf
                pl.BlockSpec((1, 1, S, S), lambda n, p, ib: (n, 0, 0, 0)),   # y_pred_clf
                pl.BlockSpec((1, 1, S, S), lambda n, p, ib: (n, 0, 0, 0)),   # training_mask
                # y_true_reg streamed in (TI, S, 5) row blocks (no resident lane-padded block).
                pl.BlockSpec((1, ti, S, 5), lambda n, p, ib: (n, p * nib + ib, 0, 0)),
                pl.BlockSpec((1, 5, S, S), lambda n, p, ib: (n, 0, 0, 0)),   # y_pred_reg
            ],
            out_specs=pl.BlockSpec((1, 1, 128), lambda n, p, ib: (n * P + p, 0, 0)),
            scratch_shapes=[
                pltpu.VMEM((S, S), jnp.float32),   # unweighted IOU column-sum accumulator
                pltpu.VMEM((S, S), jnp.float32),   # cached area_pred
                pltpu.VMEM((S, 1), jnp.float32),   # sum_a cos(theta_gt)
                pltpu.VMEM((S, 1), jnp.float32),   # sum_a sin(theta_gt)
            ],
        ),
        compiler_params=pltpu.CompilerParams(
            dimension_semantics=("parallel", "parallel", "arbitrary"),
            vmem_limit_bytes=_vmem_limit_bytes(S, ti, vmem_bytes)),
    )(y_true_clf, y_pred_clf, training_mask, y_true_reg, y_pred_reg)

    # Tiny final combine in plain JAX. The clf sums are duplicated P times
    # (each a-slice sees the full (S, S) maps), so divide by P.
    reg_sum = jnp.sum(partials[:, 0, 0])
    inter = jnp.sum(partials[:, 0, 1]) / P
    t_sum = jnp.sum(partials[:, 0, 2]) / P
    p_sum = jnp.sum(partials[:, 0, 3]) / P
    eps = 1e-05
    clf_loss = (1.0 - 2.0 * inter / (t_sum + p_sum + eps)) * 0.01
    reg_mean = reg_sum / float(N * S * S * S)   # elements of the (N,S,S,S) broadcast
    return clf_loss + lam_reg * reg_mean


def detection_loss_ref(y_true_clf, y_pred_clf, y_true_reg, y_pred_reg, training_mask,
                       *, lam_theta, lam_reg):
    """Pure-JAX reference with the exact PyTorch broadcasting semantics."""
    eps = 1e-05
    inter = jnp.sum(y_true_clf * y_pred_clf * training_mask)
    union = (jnp.sum(y_true_clf * training_mask)
             + jnp.sum(y_pred_clf * training_mask) + eps)
    clf_loss = (1.0 - 2.0 * inter / union) * 0.01
    top_gt, right_gt, bottom_gt, left_gt, theta_gt = jnp.split(y_true_reg, 5, axis=3)
    top_p, right_p, bottom_p, left_p, theta_p = jnp.split(y_pred_reg, 5, axis=1)
    area_gt = (top_gt + bottom_gt) * (right_gt + left_gt)
    area_pred = (top_p + bottom_p) * (right_p + left_p)
    w_int = jnp.minimum(right_gt, right_p) + jnp.minimum(left_gt, left_p)
    h_int = jnp.minimum(top_gt, top_p) + jnp.minimum(bottom_gt, bottom_p)
    area_int = w_int * h_int
    area_union = area_gt + area_pred - area_int
    iou_loss = -jnp.log((area_int + 1.0) / (1.0 + area_union))
    angle_loss = 1.0 - jnp.cos(theta_p - theta_gt)
    regression_loss = iou_loss + lam_theta * angle_loss
    regression_loss = jnp.mean(regression_loss * y_true_clf * training_mask)
    return clf_loss + lam_reg * regression_loss


if __name__ == "__main__":
    # FOTS hyperparameters
    lam_theta, lam_reg = 10.0, 1.0

    def make_inputs(key, n, s):
        k1, k2, k3, k4, k5 = jax.random.split(key, 5)
        y_true_clf = (jax.random.uniform(k1, (n, 1, s, s)) < 0.5).astype(jnp.float32)
        y_pred_clf = jax.random.uniform(k2, (n, 1, s, s), dtype=jnp.float32)
        training_mask = (jax.random.uniform(k3, (n, 1, s, s)) < 0.8).astype(jnp.float32)
        y_true_reg = jax.random.uniform(k4, (n, s, s, 5), dtype=jnp.float32,
                                        minval=0.1, maxval=4.0)
        y_pred_reg = jax.random.uniform(k5, (n, 5, s, s), dtype=jnp.float32,
                                        minval=0.1, maxval=4.0)
        return y_true_clf, y_pred_clf, y_true_reg, y_pred_reg, training_mask

    key = jax.random.PRNGKey(0)
    k_a, k_b = jax.random.split(key)

    # Case 1: default tiling path (N=2, S=16).
    args = make_inputs(k_a, 2, 16)
    out = detection_loss(*args, lam_theta=lam_theta, lam_reg=lam_reg)
    out = jax.block_until_ready(out)
    ref = detection_loss_ref(*args, lam_theta=lam_theta, lam_reg=lam_reg)
    assert jnp.allclose(out, ref, rtol=5e-3, atol=5e-3), (out, ref)

    # Case 2: streamed gt blocks + parallel a-axis split (N=1, S=32, TI=8 -> P=2).
    args = make_inputs(k_b, 1, 32)
    out = detection_loss(*args, lam_theta=lam_theta, lam_reg=lam_reg, ti=8)
    out = jax.block_until_ready(out)
    ref = detection_loss_ref(*args, lam_theta=lam_theta, lam_reg=lam_reg)
    assert jnp.allclose(out, ref, rtol=5e-3, atol=5e-3), (out, ref)

    print("KERNEL_OK")
</pallas_src>

<mosaic_0001>
module attributes {stable_mosaic.version = 11 : i64} {
  func.func @_detection_loss_kernel(%arg0: i32, %arg1: i32, %arg2: i32, %arg3: memref<1x1x16x16xf32, #tpu.memory_space<vmem>>, %arg4: memref<1x1x16x16xf32, #tpu.memory_space<vmem>>, %arg5: memref<1x1x16x16xf32, #tpu.memory_space<vmem>>, %arg6: memref<1x16x16x5xf32, #tpu.memory_space<vmem>>, %arg7: memref<1x5x16x16xf32, #tpu.memory_space<vmem>>, %arg8: memref<1x1x128xf32, #tpu.memory_space<vmem>>, %arg9: memref<16x16xf32, #tpu.memory_space<vmem>>, %arg10: memref<16x16xf32, #tpu.memory_space<vmem>>, %arg11: memref<16x1xf32, #tpu.memory_space<vmem>>, %arg12: memref<16x1xf32, #tpu.memory_space<vmem>>) attributes {dimension_semantics = [#tpu.dimension_semantics<parallel>, #tpu.dimension_semantics<parallel>, #tpu.dimension_semantics<arbitrary>], iteration_bounds = array<i64: 2, 1, 1>, scalar_prefetch = 0 : i64, scratch_operands = 4 : i64, tpu.core_type = #tpu.core_type<tc>, window_params = [{transform_indices = @transform_0, window_bounds = array<i64: 1, 1, 16, 16>}, {transform_indices = @transform_1, window_bounds = array<i64: 1, 1, 16, 16>}, {transform_indices = @transform_2, window_bounds = array<i64: 1, 1, 16, 16>}, {transform_indices = @transform_3, window_bounds = array<i64: 1, 16, 16, 5>}, {transform_indices = @transform_4, window_bounds = array<i64: 1, 5, 16, 16>}, {transform_indices = @transform_5, window_bounds = array<i64: 1, 1, 128>}]} {
    %c0 = arith.constant 0 : index
    %c0_0 = arith.constant 0 : index
    %c0_1 = arith.constant 0 : index
    %c0_2 = arith.constant 0 : index
    %0 = vector.load %arg7[%c0, %c0_0, %c0_1, %c0_2] : memref<1x5x16x16xf32, #tpu.memory_space<vmem>>, vector<1x1x16x16xf32>
    %1 = vector.shape_cast %0 : vector<1x1x16x16xf32> to vector<16x16xf32>
    %c0_3 = arith.constant 0 : index
    %c1 = arith.constant 1 : index
    %c0_4 = arith.constant 0 : index
    %c0_5 = arith.constant 0 : index
    %2 = vector.load %arg7[%c0_3, %c1, %c0_4, %c0_5] : memref<1x5x16x16xf32, #tpu.memory_space<vmem>>, vector<1x1x16x16xf32>
    %3 = vector.shape_cast %2 : vector<1x1x16x16xf32> to vector<16x16xf32>
    %c0_6 = arith.constant 0 : index
    %c2 = arith.constant 2 : index
    %c0_7 = arith.constant 0 : index
    %c0_8 = arith.constant 0 : index
    %4 = vector.load %arg7[%c0_6, %c2, %c0_7, %c0_8] : memref<1x5x16x16xf32, #tpu.memory_space<vmem>>, vector<1x1x16x16xf32>
    %5 = vector.shape_cast %4 : vector<1x1x16x16xf32> to vector<16x16xf32>
    %c0_9 = arith.constant 0 : index
    %c3 = arith.constant 3 : index
    %c0_10 = arith.constant 0 : index
    %c0_11 = arith.constant 0 : index
    %6 = vector.load %arg7[%c0_9, %c3, %c0_10, %c0_11] : memref<1x5x16x16xf32, #tpu.memory_space<vmem>>, vector<1x1x16x16xf32>
    %7 = vector.shape_cast %6 : vector<1x1x16x16xf32> to vector<16x16xf32>
    %c0_i32 = arith.constant 0 : i32
    %8 = arith.cmpi eq, %arg2, %c0_i32 : i32
    %9 = arith.extui %8 : i1 to i32
    %c0_i32_12 = arith.constant 0 : i32
    %10 = arith.cmpi ne, %9, %c0_i32_12 : i32
    scf.if %10 {
      %cst_37 = arith.constant 0.000000e+00 : f32
      %70 = vector.broadcast %cst_37 : f32 to vector<16x16xf32>
      %c0_38 = arith.constant 0 : index
      %c0_39 = arith.constant 0 : index
      %71 = vector.load %arg9[%c0_38, %c0_39] : memref<16x16xf32, #tpu.memory_space<vmem>>, vector<16x16xf32>
      tpu.vector_store %arg9[%c0_38, %c0_39], %70 {strides = array<i32>} : memref<16x16xf32, #tpu.memory_space<vmem>>, vector<16x16xf32>,
      %cst_40 = arith.constant 0.000000e+00 : f32
      %72 = vector.broadcast %cst_40 : f32 to vector<16x1xf32>
      %c0_41 = arith.constant 0 : index
      %c0_42 = arith.constant 0 : index
      %73 = vector.load %arg11[%c0_41, %c0_42] : memref<16x1xf32, #tpu.memory_space<vmem>>, vector<16x1xf32>
      tpu.vector_store %arg11[%c0_41, %c0_42], %72 {strides = array<i32>} : memref<16x1xf32, #tpu.memory_space<vmem>>, vector<16x1xf32>,
      %cst_43 = arith.constant 0.000000e+00 : f32
      %74 = vector.broadcast %cst_43 : f32 to vector<16x1xf32>
      %c0_44 = arith.constant 0 : index
      %c0_45 = arith.constant 0 : index
      %75 = vector.load %arg12[%c0_44, %c0_45] : memref<16x1xf32, #tpu.memory_space<vmem>>, vector<16x1xf32>
      tpu.vector_store %arg12[%c0_44, %c0_45], %74 {strides = array<i32>} : memref<16x1xf32, #tpu.memory_space<vmem>>, vector<16x1xf32>,
      %76 = arith.addf %1, %5 : vector<16x16xf32>
      %77 = arith.addf %3, %7 : vector<16x16xf32>
      %78 = arith.mulf %76, %77 : vector<16x16xf32>
      %c0_46 = arith.constant 0 : index
      %c0_47 = arith.constant 0 : index
      %79 = vector.load %arg10[%c0_46, %c0_47] : memref<16x16xf32, #tpu.memory_space<vmem>>, vector<16x16xf32>
      tpu.vector_store %arg10[%c0_46, %c0_47], %78 {strides = array<i32>} : memref<16x16xf32, #tpu.memory_space<vmem>>, vector<16x16xf32>,
    } else {
    }
    %c0_13 = arith.constant 0 : index
    %c0_14 = arith.constant 0 : index
    %c0_15 = arith.constant 0 : index
    %c0_16 = arith.constant 0 : index
    %11 = vector.load %arg6[%c0_13, %c0_14, %c0_15, %c0_16] : memref<1x16x16x5xf32, #tpu.memory_space<vmem>>, vector<1x16x16x5xf32>
    %12 = vector.shape_cast %11 : vector<1x16x16x5xf32> to vector<16x16x5xf32>
    %13 = vector.extract_strided_slice %12 {offsets = [0, 0, 0], sizes = [16, 16, 1], strides = [1, 1, 1]} : vector<16x16x5xf32> to vector<16x16x1xf32>
    %14 = vector.extract_strided_slice %12 {offsets = [0, 0, 1], sizes = [16, 16, 1], strides = [1, 1, 1]} : vector<16x16x5xf32> to vector<16x16x1xf32>
    %15 = vector.extract_strided_slice %12 {offsets = [0, 0, 2], sizes = [16, 16, 1], strides = [1, 1, 1]} : vector<16x16x5xf32> to vector<16x16x1xf32>
    %16 = vector.extract_strided_slice %12 {offsets = [0, 0, 3], sizes = [16, 16, 1], strides = [1, 1, 1]} : vector<16x16x5xf32> to vector<16x16x1xf32>
    %17 = vector.extract_strided_slice %12 {offsets = [0, 0, 4], sizes = [16, 16, 1], strides = [1, 1, 1]} : vector<16x16x5xf32> to vector<16x16x1xf32>
    %c0_17 = arith.constant 0 : index
    %c0_18 = arith.constant 0 : index
    %18 = vector.load %arg11[%c0_17, %c0_18] : memref<16x1xf32, #tpu.memory_space<vmem>>, vector<16x1xf32>
    %19 = math.cos %17 : vector<16x16x1xf32>
    %cst = arith.constant dense<0.000000e+00> : vector<16x1xf32>
    %20 = vector.multi_reduction <add>, %19, %cst [0] : vector<16x16x1xf32> to vector<16x1xf32>
    %21 = arith.addf %18, %20 : vector<16x1xf32>
    %c0_19 = arith.constant 0 : index
    %c0_20 = arith.constant 0 : index
    %22 = vector.load %arg11[%c0_19, %c0_20] : memref<16x1xf32, #tpu.memory_space<vmem>>, vector<16x1xf32>
    tpu.vector_store %arg11[%c0_19, %c0_20], %21 {strides = array<i32>} : memref<16x1xf32, #tpu.memory_space<vmem>>, vector<16x1xf32>,
    %c0_21 = arith.constant 0 : index
    %c0_22 = arith.constant 0 : index
    %23 = vector.load %arg12[%c0_21, %c0_22] : memref<16x1xf32, #tpu.memory_space<vmem>>, vector<16x1xf32>
    %24 = math.sin %17 : vector<16x16x1xf32>
    %cst_23 = arith.constant dense<0.000000e+00> : vector<16x1xf32>
    %25 = vector.multi_reduction <add>, %24, %cst_23 [0] : vector<16x16x1xf32> to vector<16x1xf32>
    %26 = arith.addf %23, %25 : vector<16x1xf32>
    %c0_24 = arith.constant 0 : index
    %c0_25 = arith.constant 0 : index
    %27 = vector.load %arg12[%c0_24, %c0_25] : memref<16x1xf32, #tpu.memory_space<vmem>>, vector<16x1xf32>
    tpu.vector_store %arg12[%c0_24, %c0_25], %26 {strides = array<i32>} : memref<16x1xf32, #tpu.memory_space<vmem>>, vector<16x1xf32>,
    %28 = arith.addf %13, %15 : vector<16x16x1xf32>
    %29 = arith.addf %14, %16 : vector<16x16x1xf32>
    %30 = arith.mulf %28, %29 : vector<16x16x1xf32>
    %31 = vector.shape_cast %3 : vector<16x16xf32> to vector<1x16x16xf32>
    %32 = vector.broadcast %14 : vector<16x16x1xf32> to vector<16x16x16xf32>
    %33 = vector.broadcast %31 : vector<1x16x16xf32> to vector<16x16x16xf32>
    %34 = arith.minimumf %32, %33 : vector<16x16x16xf32>
    %35 = vector.shape_cast %7 : vector<16x16xf32> to vector<1x16x16xf32>
    %36 = vector.broadcast %16 : vector<16x16x1xf32> to vector<16x16x16xf32>
    %37 = vector.broadcast %35 : vector<1x16x16xf32> to vector<16x16x16xf32>
    %38 = arith.minimumf %36, %37 : vector<16x16x16xf32>
    %39 = arith.addf %34, %38 : vector<16x16x16xf32>
    %40 = vector.shape_cast %1 : vector<16x16xf32> to vector<1x16x16xf32>
    %41 = vector.broadcast %13 : vector<16x16x1xf32> to vector<16x16x16xf32>
    %42 = vector.broadcast %40 : vector<1x16x16xf32> to vector<16x16x16xf32>
    %43 = arith.minimumf %41, %42 : vector<16x16x16xf32>
    %44 = vector.shape_cast %5 : vector<16x16xf32> to vector<1x16x16xf32>
    %45 = vector.broadcast %15 : vector<16x16x1xf32> to vector<16x16x16xf32>
    %46 = vector.broadcast %44 : vector<1x16x16xf32> to vector<16x16x16xf32>
    %47 = arith.minimumf %45, %46 : vector<16x16x16xf32>
    %48 = arith.addf %43, %47 : vector<16x16x16xf32>
    %49 = arith.mulf %39, %48 : vector<16x16x16xf32>
    %cst_26 = arith.constant 1.000000e+00 : f32
    %50 = vector.broadcast %cst_26 : f32 to vector<16x16x1xf32>
    %51 = arith.addf %50, %30 : vector<16x16x1xf32>
    %c0_27 = arith.constant 0 : index
    %c0_28 = arith.constant 0 : index
    %52 = vector.load %arg10[%c0_27, %c0_28] : memref<16x16xf32, #tpu.memory_space<vmem>>, vector<16x16xf32>
    %53 = vector.shape_cast %52 : vector<16x16xf32> to vector<1x16x16xf32>
    %54 = vector.broadcast %51 : vector<16x16x1xf32> to vector<16x16x16xf32>
    %55 = vector.broadcast %53 : vector<1x16x16xf32> to vector<16x16x16xf32>
    %56 = arith.addf %54, %55 : vector<16x16x16xf32>
    %57 = arith.subf %56, %49 : vector<16x16x16xf32>
    %58 = math.log %57 : vector<16x16x16xf32>
    %cst_29 = arith.constant 1.000000e+00 : f32
    %59 = vector.broadcast %cst_29 : f32 to vector<16x16x16xf32>
    %60 = arith.addf %59, %49 : vector<16x16x16xf32>
    %61 = math.log %60 : vector<16x16x16xf32>
    %62 = arith.subf %58, %61 : vector<16x16x16xf32>
    %c0_30 = arith.constant 0 : index
    %c0_31 = arith.constant 0 : index
    %63 = vector.load %arg9[%c0_30, %c0_31] : memref<16x16xf32, #tpu.memory_space<vmem>>, vector<16x16xf32>
    %cst_32 = arith.constant dense<0.000000e+00> : vector<16x16xf32>
    %64 = vector.multi_reduction <add>, %62, %cst_32 [0] : vector<16x16x16xf32> to vector<16x16xf32>
    %65 = arith.addf %63, %64 : vector<16x16xf32>
    %c0_33 = arith.constant 0 : index
    %c0_34 = arith.constant 0 : index
    %66 = vector.load %arg9[%c0_33, %c0_34] : memref<16x16xf32, #tpu.memory_space<vmem>>, vector<16x16xf32>
    tpu.vector_store %arg9[%c0_33, %c0_34], %65 {strides = array<i32>} : memref<16x16xf32, #tpu.memory_space<vmem>>, vector<16x16xf32>,
    %c0_i32_35 = arith.constant 0 : i32
    %67 = arith.cmpi eq, %arg2, %c0_i32_35 : i32
    %68 = arith.extui %67 : i1 to i32
    %c0_i32_36 = arith.constant 0 : i32
    %69 = arith.cmpi ne, %68, %c0_i32_36 : i32
    scf.if %69 {
      %c0_37 = arith.constant 0 : index
      %c0_38 = arith.constant 0 : index
      %c0_39 = arith.constant 0 : index
      %c0_40 = arith.constant 0 : index
      %70 = vector.load %arg3[%c0_37, %c0_38, %c0_39, %c0_40] : memref<1x1x16x16xf32, #tpu.memory_space<vmem>>, vector<1x1x16x16xf32>
      %71 = vector.shape_cast %70 : vector<1x1x16x16xf32> to vector<16x16xf32>
      %c0_41 = arith.constant 0 : index
      %c0_42 = arith.constant 0 : index
      %c0_43 = arith.constant 0 : index
      %c0_44 = arith.constant 0 : index
      %72 = vector.load %arg5[%c0_41, %c0_42, %c0_43, %c0_44] : memref<1x1x16x16xf32, #tpu.memory_space<vmem>>, vector<1x1x16x16xf32>
      %73 = vector.shape_cast %72 : vector<1x1x16x16xf32> to vector<16x16xf32>
      %c0_45 = arith.constant 0 : index
      %c0_46 = arith.constant 0 : index
      %c0_47 = arith.constant 0 : index
      %c0_48 = arith.constant 0 : index
      %74 = vector.load %arg4[%c0_45, %c0_46, %c0_47, %c0_48] : memref<1x1x16x16xf32, #tpu.memory_space<vmem>>, vector<1x1x16x16xf32>
      %75 = vector.shape_cast %74 : vector<1x1x16x16xf32> to vector<16x16xf32>
      %76 = arith.mulf %71, %73 : vector<16x16xf32>
      %c0_49 = arith.constant 0 : index
      %c4 = arith.constant 4 : index
      %c0_50 = arith.constant 0 : index
      %c0_51 = arith.constant 0 : index
      %77 = vector.load %arg7[%c0_49, %c4, %c0_50, %c0_51] : memref<1x5x16x16xf32, #tpu.memory_space<vmem>>, vector<1x1x16x16xf32>
      %78 = vector.shape_cast %77 : vector<1x1x16x16xf32> to vector<16x16xf32>
      %79 = math.cos %78 : vector<16x16xf32>
      %80 = math.sin %78 : vector<16x16xf32>
      %c0_52 = arith.constant 0 : index
      %c0_53 = arith.constant 0 : index
      %81 = vector.load %arg11[%c0_52, %c0_53] : memref<16x1xf32, #tpu.memory_space<vmem>>, vector<16x1xf32>
      %82 = vector.broadcast %81 : vector<16x1xf32> to vector<16x16xf32>
      %83 = arith.mulf %79, %82 : vector<16x16xf32>
      %cst_54 = arith.constant 1.600000e+01 : f32
      %84 = vector.broadcast %cst_54 : f32 to vector<16x16xf32>
      %85 = arith.subf %84, %83 : vector<16x16xf32>
      %c0_55 = arith.constant 0 : index
      %c0_56 = arith.constant 0 : index
      %86 = vector.load %arg12[%c0_55, %c0_56] : memref<16x1xf32, #tpu.memory_space<vmem>>, vector<16x1xf32>
      %87 = vector.broadcast %86 : vector<16x1xf32> to vector<16x16xf32>
      %88 = arith.mulf %80, %87 : vector<16x16xf32>
      %89 = arith.subf %85, %88 : vector<16x16xf32>
      %c0_57 = arith.constant 0 : index
      %c0_58 = arith.constant 0 : index
      %90 = vector.load %arg9[%c0_57, %c0_58] : memref<16x16xf32, #tpu.memory_space<vmem>>, vector<16x16xf32>
      %cst_59 = arith.constant 1.000000e+01 : f32
      %91 = vector.broadcast %cst_59 : f32 to vector<16x16xf32>
      %92 = arith.mulf %91, %89 : vector<16x16xf32>
      %93 = arith.addf %90, %92 : vector<16x16xf32>
      %94 = arith.mulf %76, %93 : vector<16x16xf32>
      %95 = vector.shape_cast %94 : vector<16x16xf32> to vector<1x16x16xf32>
      %cst_60 = arith.constant dense<0.000000e+00> : vector<1xf32>
      %96 = vector.multi_reduction <add>, %95, %cst_60 [1, 2] : vector<1x16x16xf32> to vector<1xf32>
      %97 = vector.shape_cast %96 : vector<1xf32> to vector<1x1x1xf32>
      %98 = vector.extract %97[0, 0, 0] : f32 from vector<1x1x1xf32>
      %99 = arith.mulf %76, %75 : vector<16x16xf32>
      %100 = vector.shape_cast %99 : vector<16x16xf32> to vector<1x16x16xf32>
      %cst_61 = arith.constant dense<0.000000e+00> : vector<1xf32>
      %101 = vector.multi_reduction <add>, %100, %cst_61 [1, 2] : vector<1x16x16xf32> to vector<1xf32>
      %102 = vector.shape_cast %101 : vector<1xf32> to vector<1x1x1xf32>
      %103 = vector.extract %102[0, 0, 0] : f32 from vector<1x1x1xf32>
      %104 = vector.shape_cast %76 : vector<16x16xf32> to vector<1x16x16xf32>
      %cst_62 = arith.constant dense<0.000000e+00> : vector<1xf32>
      %105 = vector.multi_reduction <add>, %104, %cst_62 [1, 2] : vector<1x16x16xf32> to vector<1xf32>
      %106 = vector.shape_cast %105 : vector<1xf32> to vector<1x1x1xf32>
      %107 = vector.extract %106[0, 0, 0] : f32 from vector<1x1x1xf32>
      %108 = arith.mulf %75, %73 : vector<16x16xf32>
      %109 = vector.shape_cast %108 : vector<16x16xf32> to vector<1x16x16xf32>
      %cst_63 = arith.constant dense<0.000000e+00> : vector<1xf32>
      %110 = vector.multi_reduction <add>, %109, %cst_63 [1, 2] : vector<1x16x16xf32> to vector<1xf32>
      %111 = vector.shape_cast %110 : vector<1xf32> to vector<1x1x1xf32>
      %112 = vector.extract %111[0, 0, 0] : f32 from vector<1x1x1xf32>
      %113 = tpu.iota {dimensions = array<i32: 1>} : vector<1x128xi32>
      %c0_i32_64 = arith.constant 0 : i32
      %114 = vector.broadcast %c0_i32_64 : i32 to vector<1x128xi32>
      %115 = arith.cmpi eq, %113, %114 : vector<1x128xi32>
      %cst_65 = arith.constant 0.000000e+00 : f32
      %116 = vector.broadcast %98 : f32 to vector<1x128xf32>
      %117 = vector.broadcast %cst_65 : f32 to vector<1x128xf32>
      %118 = arith.select %115, %116, %117 : vector<1x128xi1>, vector<1x128xf32>
      %c1_i32 = arith.constant 1 : i32
      %119 = vector.broadcast %c1_i32 : i32 to vector<1x128xi32>
      %120 = arith.cmpi eq, %113, %119 : vector<1x128xi32>
      %cst_66 = arith.constant 0.000000e+00 : f32
      %121 = vector.broadcast %103 : f32 to vector<1x128xf32>
      %122 = vector.broadcast %cst_66 : f32 to vector<1x128xf32>
      %123 = arith.select %120, %121, %122 : vector<1x128xi1>, vector<1x128xf32>
      %124 = arith.addf %118, %123 : vector<1x128xf32>
      %c2_i32 = arith.constant 2 : i32
      %125 = vector.broadcast %c2_i32 : i32 to vector<1x128xi32>
      %126 = arith.cmpi eq, %113, %125 : vector<1x128xi32>
      %cst_67 = arith.constant 0.000000e+00 : f32
      %127 = vector.broadcast %107 : f32 to vector<1x128xf32>
      %128 = vector.broadcast %cst_67 : f32 to vector<1x128xf32>
      %129 = arith.select %126, %127, %128 : vector<1x128xi1>, vector<1x128xf32>
      %130 = arith.addf %124, %129 : vector<1x128xf32>
      %c3_i32 = arith.constant 3 : i32
      %131 = vector.broadcast %c3_i32 : i32 to vector<1x128xi32>
      %132 = arith.cmpi eq, %113, %131 : vector<1x128xi32>
      %cst_68 = arith.constant 0.000000e+00 : f32
      %133 = vector.broadcast %112 : f32 to vector<1x128xf32>
      %134 = vector.broadcast %cst_68 : f32 to vector<1x128xf32>
      %135 = arith.select %132, %133, %134 : vector<1x128xi1>, vector<1x128xf32>
      %136 = arith.addf %130, %135 : vector<1x128xf32>
      %c0_69 = arith.constant 0 : index
      %c0_70 = arith.constant 0 : index
      %c0_71 = arith.constant 0 : index
      %137 = vector.load %arg8[%c0_69, %c0_70, %c0_71] : memref<1x1x128xf32, #tpu.memory_space<vmem>>, vector<1x1x128xf32>
      %138 = vector.shape_cast %137 : vector<1x1x128xf32> to vector<1x128xf32>
      %139 = vector.shape_cast %136 : vector<1x128xf32> to vector<1x1x128xf32>
      tpu.vector_store %arg8[%c0_69, %c0_70, %c0_71], %139 {strides = array<i32>} : memref<1x1x128xf32, #tpu.memory_space<vmem>>, vector<1x1x128xf32>,
    } else {
    }
    return
  }
  func.func @transform_0(%arg0: i32, %arg1: i32, %arg2: i32) -> (i32, i32, i32, i32) {
    %c0_i32 = arith.constant 0 : i32
    %c0_i32_0 = arith.constant 0 : i32
    %c0_i32_1 = arith.constant 0 : i32
    %c0_i32_2 = arith.constant 0 : i32
    return %arg0, %c0_i32, %c0_i32_0, %c0_i32_1 : i32, i32, i32, i32
  }
  func.func @transform_1(%arg0: i32, %arg1: i32, %arg2: i32) -> (i32, i32, i32, i32) {
    %c0_i32 = arith.constant 0 : i32
    %c0_i32_0 = arith.constant 0 : i32
    %c0_i32_1 = arith.constant 0 : i32
    %c0_i32_2 = arith.constant 0 : i32
    return %arg0, %c0_i32, %c0_i32_0, %c0_i32_1 : i32, i32, i32, i32
  }
  func.func @transform_2(%arg0: i32, %arg1: i32, %arg2: i32) -> (i32, i32, i32, i32) {
    %c0_i32 = arith.constant 0 : i32
    %c0_i32_0 = arith.constant 0 : i32
    %c0_i32_1 = arith.constant 0 : i32
    %c0_i32_2 = arith.constant 0 : i32
    return %arg0, %c0_i32, %c0_i32_0, %c0_i32_1 : i32, i32, i32, i32
  }
  func.func @transform_3(%arg0: i32, %arg1: i32, %arg2: i32) -> (i32, i32, i32, i32) {
    %c1_i32 = arith.constant 1 : i32
    %0 = arith.muli %arg1, %c1_i32 : i32
    %1 = arith.addi %0, %arg2 : i32
    %c0_i32 = arith.constant 0 : i32
    %c0_i32_0 = arith.constant 0 : i32
    %c0_i32_1 = arith.constant 0 : i32
    return %arg0, %1, %c0_i32, %c0_i32_0 : i32, i32, i32, i32
  }
  func.func @transform_4(%arg0: i32, %arg1: i32, %arg2: i32) -> (i32, i32, i32, i32) {
    %c0_i32 = arith.constant 0 : i32
    %c0_i32_0 = arith.constant 0 : i32
    %c0_i32_1 = arith.constant 0 : i32
    %c0_i32_2 = arith.constant 0 : i32
    return %arg0, %c0_i32, %c0_i32_0, %c0_i32_1 : i32, i32, i32, i32
  }
  func.func @transform_5(%arg0: i32, %arg1: i32, %arg2: i32) -> (i32, i32, i32) {
    %c1_i32 = arith.constant 1 : i32
    %0 = arith.muli %arg0, %c1_i32 : i32
    %1 = arith.addi %0, %arg1 : i32
    %c0_i32 = arith.constant 0 : i32
    %c0_i32_0 = arith.constant 0 : i32
    %c0_i32_1 = arith.constant 0 : i32
    return %1, %c0_i32, %c0_i32_0 : i32, i32, i32
  }
}

</mosaic_0001>

<llo_original>
// kernel: tpu_custom_call.1
$region0: #{tpu_custom_call.1}
  #allocation0 [shape = 'u32[]', space=smem, size = 0x4, offset = 0x4, fixed_abs, tag = 'smem constant byte address 0x4 - core index']
  #allocation1 [shape = 'u32[144,128]{1,0:T(1,128)}', space=vmem, size = 0x12000, scoped, tag = 'internal scratch']
  #allocation2 [shape = 'f32[16,16]{1,0:T(8,128)}', space=vmem, size = 0x2000, scoped, tag = 'scratch operand']
  #allocation3 [shape = 'f32[16,16]{1,0:T(8,128)}', space=vmem, size = 0x2000, scoped, tag = 'scratch operand']
  #allocation4 [shape = 'f32[16,1]{1,0:T(8,128)}', space=vmem, size = 0x2000, scoped, tag = 'scratch operand']
  #allocation5 [shape = 'f32[16,1]{1,0:T(8,128)}', space=vmem, size = 0x2000, scoped, tag = 'scratch operand']
  %s0 = inlined_call_operand.vmem [shape: f32[2,1,16,16], index: 0, kind: input, shape index: {}]
  %s1 = inlined_call_operand.vmem [shape: f32[2,1,16,16], index: 1, kind: input, shape index: {}]
  %s2 = inlined_call_operand.vmem [shape: f32[2,1,16,16], index: 2, kind: input, shape index: {}]
  %s3 = inlined_call_operand.vmem [shape: f32[2,16,16,5], index: 3, kind: input, shape index: {}]
  %s4 = inlined_call_operand.vmem [shape: f32[2,5,16,16], index: 4, kind: input, shape index: {}]
  %s5 = inlined_call_operand.hbm [shape: f32[2,1,128], index: 5, kind: output, shape index: {}]
  %s6 = sld [smem:[#allocation0]]
  $region61: #{tpu_custom_call.1} parent=0
    _
  %s8 = ssub.s32 1, %s6
  %s9 = scalar_select 0, %s8, %s6
  $region1: #{tpu_custom_call.1} parent=0
    #allocation6 [shape = 'u8[1024]{0}', space=vmem, size = 0x400, scoped, tag = 'output window, operand 0']
    #allocation7 [shape = 's32[2]{0}', space=sflag, size = 0x8, scoped, tag = 'scoped memory for tpu_custom_call.1']
    %10 = vsyncpa [#allocation7], 0
    %s11 = scalar_lea.sflag [#allocation7], 1
    %12 = vsyncpa %s11, 0
    loop: start=0, step=1, limit=4
    $region2: #{tpu_custom_call.1} parent=1 // loop_pre_header
      _
    $region3: #{tpu_custom_call.1} parent=1 // loop_header
      %s14 = sphi 0, %s18
      %p15 = scmp.ge.s32.totalorder %s14, 4
      %s21 = sphi 0, %s40
      %s22 = sphi 0, %s36
      %s23 = sphi 0, %s32
      %s24 = sphi 0, %s21
      %s25 = sphi 0, %s22
      %s26 = sphi 0, %s23
      %s27 = sphi 0, %s24
      %s28 = sphi 0, %s25
      %s29 = sphi 0, %s26
      %s43 = sphi 0, %s45
      %s46 = sphi 0, %s43
      %s47 = sphi 0, %s46
      %s63 = sphi 0, %s47
      %s69 = sphi 0, %s71
      %s72 = sphi 0, %s69
      %s73 = sphi 0, %s72
      %s89 = sphi 0, %s73
      %s95 = sphi 0, %s97
      %s98 = sphi 0, %s95
      %s99 = sphi 0, %s98
      %s115 = sphi 0, %s99
      %s125 = sphi 0, %s127
      %s128 = sphi 0, %s125
      %s129 = sphi 0, %s128
      %s145 = sphi 0, %s129
      %s151 = sphi 0, %s153
      %s154 = sphi 0, %s151
      %s155 = sphi 0, %s154
      %s171 = sphi 0, %s155
      %s179 = sphi 0, %s181
      %s182 = sphi 0, %s179
      %s183 = sphi 0, %s182
      %s199 = sphi 0, %s183
    $region4: #{tpu_custom_call.1} parent=1 // loop_header_branch
      %17 = sbr.rel (%p15) target = $region8
    $region5: #{tpu_custom_call.1} parent=1 // loop_body
      %s19 = ssub.s32 %s14, 1
      %s20 = ssub.s32 %s14, 2
      %s30 = sadd.s32 1, %s23
      %p31 = scmp.ge.s32.totalorder %s30, 1
      %s32 = scalar_select %p31, 0, %s30
      %s33 = sadd.s32 1, %s22
      %s34 = scalar_select %p31, %s33, %s22
      %p35 = scmp.ge.s32.totalorder %s34, 1
      %s36 = scalar_select %p35, 0, %s34
      %s37 = sadd.s32 1, %s21
      %s38 = scalar_select %p35, %s37, %s21
      %p39 = scmp.ge.s32.totalorder %s38, 2
      %s40 = scalar_select %p39, 0, %s38
      %s41 = ssub.s32 %s21, %s40
      %p42 = scmp.eq.s32.totalorder %s41, 0
      %s44 = sadd.s32 %s43, 1
      %s45 = scalar_select %p42, %s43, %s44
      %p48 = pneg %p42
      %p49 = scmp.eq.s32.totalorder %s14, 1
      %p50 = por %p48, %p49
      %p51 = scmp.ne.s32.totalorder %s43, %s46
      %p52 = scmp.eq.s32.totalorder %s14, 0
      %p53 = por %p51, %p52
      %p54 = scmp.ne.s32.totalorder %s43, %s46
      %p55 = scmp.eq.s32.totalorder %s19, 1
      %p56 = por %p54, %p55
      %p57 = scmp.ne.s32.totalorder %s46, %s47
      %p58 = scmp.eq.s32.totalorder %s19, 0
      %p59 = por %p57, %p58
      %p60 = scmp.ne.s32.totalorder %s46, %s47
      %p61 = scmp.eq.s32.totalorder %s20, 1
      %p62 = por %p60, %p61
      %p64 = scmp.ne.s32.totalorder %s47, %s63
      %p65 = scmp.eq.s32.totalorder %s20, 0
      %p66 = por %p64, %p65
      %s67 = ssub.s32 %s21, %s40
      %p68 = scmp.eq.s32.totalorder %s67, 0
      %s70 = sadd.s32 %s69, 1
      %s71 = scalar_select %p68, %s69, %s70
      %p74 = pneg %p68
      %p75 = scmp.eq.s32.totalorder %s14, 1
      %p76 = por %p74, %p75
      %p77 = scmp.ne.s32.totalorder %s69, %s72
      %p78 = scmp.eq.s32.totalorder %s14, 0
      %p79 = por %p77, %p78
      %p80 = scmp.ne.s32.totalorder %s69, %s72
      %p81 = scmp.eq.s32.totalorder %s19, 1
      %p82 = por %p80, %p81
      %p83 = scmp.ne.s32.totalorder %s72, %s73
      %p84 = scmp.eq.s32.totalorder %s19, 0
      %p85 = por %p83, %p84
      %p86 = scmp.ne.s32.totalorder %s72, %s73
      %p87 = scmp.eq.s32.totalorder %s20, 1
      %p88 = por %p86, %p87
      %p90 = scmp.ne.s32.totalorder %s73, %s89
      %p91 = scmp.eq.s32.totalorder %s20, 0
      %p92 = por %p90, %p91
      %s93 = ssub.s32 %s21, %s40
      %p94 = scmp.eq.s32.totalorder %s93, 0
      %s96 = sadd.s32 %s95, 1
      %s97 = scalar_select %p94, %s95, %s96
      %p100 = pneg %p94
      %p101 = scmp.eq.s32.totalorder %s14, 1
      %p102 = por %p100, %p101
      %p103 = scmp.ne.s32.totalorder %s95, %s98
      %p104 = scmp.eq.s32.totalorder %s14, 0
      %p105 = por %p103, %p104
      %p106 = scmp.ne.s32.totalorder %s95, %s98
      %p107 = scmp.eq.s32.totalorder %s19, 1
      %p108 = por %p106, %p107
      %p109 = scmp.ne.s32.totalorder %s98, %s99
      %p110 = scmp.eq.s32.totalorder %s19, 0
      %p111 = por %p109, %p110
      %p112 = scmp.ne.s32.totalorder %s98, %s99
      %p113 = scmp.eq.s32.totalorder %s20, 1
      %p114 = por %p112, %p113
      %p116 = scmp.ne.s32.totalorder %s99, %s115
      %p117 = scmp.eq.s32.totalorder %s20, 0
      %p118 = por %p116, %p117
      %s119 = sadd.s32 %s22, %s23
      %s120 = sadd.s32 %s36, %s32
      %s121 = ssub.s32 %s21, %s40
      %s122 = ssub.s32 %s119, %s120
      %s123 = sor.u32 %s121, %s122
      %p124 = scmp.eq.s32.totalorder %s123, 0
      %s126 = sadd.s32 %s125, 1
      %s127 = scalar_select %p124, %s125, %s126
      %p130 = pneg %p124
      %p131 = scmp.eq.s32.totalorder %s14, 1
      %p132 = por %p130, %p131
      %p133 = scmp.ne.s32.totalorder %s125, %s128
      %p134 = scmp.eq.s32.totalorder %s14, 0
      %p135 = por %p133, %p134
      %p136 = scmp.ne.s32.totalorder %s125, %s128
      %p137 = scmp.eq.s32.totalorder %s19, 1
      %p138 = por %p136, %p137
      %p139 = scmp.ne.s32.totalorder %s128, %s129
      %p140 = scmp.eq.s32.totalorder %s19, 0
      %p141 = por %p139, %p140
      %p142 = scmp.ne.s32.totalorder %s128, %s129
      %p143 = scmp.eq.s32.totalorder %s20, 1
      %p144 = por %p142, %p143
      %p146 = scmp.ne.s32.totalorder %s129, %s145
      %p147 = scmp.eq.s32.totalorder %s20, 0
      %p148 = por %p146, %p147
      %s149 = ssub.s32 %s21, %s40
      %p150 = scmp.eq.s32.totalorder %s149, 0
      %s152 = sadd.s32 %s151, 1
      %s153 = scalar_select %p150, %s151, %s152
      %p156 = pneg %p150
      %p157 = scmp.eq.s32.totalorder %s14, 1
      %p158 = por %p156, %p157
      %p159 = scmp.ne.s32.totalorder %s151, %s154
      %p160 = scmp.eq.s32.totalorder %s14, 0
      %p161 = por %p159, %p160
      %p162 = scmp.ne.s32.totalorder %s151, %s154
      %p163 = scmp.eq.s32.totalorder %s19, 1
      %p164 = por %p162, %p163
      %p165 = scmp.ne.s32.totalorder %s154, %s155
      %p166 = scmp.eq.s32.totalorder %s19, 0
      %p167 = por %p165, %p166
      %p168 = scmp.ne.s32.totalorder %s154, %s155
      %p169 = scmp.eq.s32.totalorder %s20, 1
      %p170 = por %p168, %p169
      %p172 = scmp.ne.s32.totalorder %s155, %s171
      %p173 = scmp.eq.s32.totalorder %s20, 0
      %p174 = por %p172, %p173
      %s175 = sadd.s32 %s21, %s22
      %s176 = sadd.s32 %s40, %s36
      %s177 = ssub.s32 %s175, %s176
      %p178 = scmp.eq.s32.totalorder %s177, 0
      %s180 = sadd.s32 %s179, 1
      %s181 = scalar_select %p178, %s179, %s180
      %p184 = pneg %p178
      %p185 = scmp.eq.s32.totalorder %s14, 1
      %p186 = por %p184, %p185
      %p187 = scmp.ne.s32.totalorder %s179, %s182
      %p188 = scmp.eq.s32.totalorder %s14, 0
      %p189 = por %p187, %p188
      %p190 = scmp.ne.s32.totalorder %s179, %s182
      %p191 = scmp.eq.s32.totalorder %s19, 1
      %p192 = por %p190, %p191
      %p193 = scmp.ne.s32.totalorder %s182, %s183
      %p194 = scmp.eq.s32.totalorder %s19, 0
      %p195 = por %p193, %p194
      %p196 = scmp.ne.s32.totalorder %s182, %s183
      %p197 = scmp.eq.s32.totalorder %s20, 1
      %p198 = por %p196, %p197
      %p200 = scmp.ne.s32.totalorder %s183, %s199
      %p201 = scmp.eq.s32.totalorder %s20, 0
      %p202 = por %p200, %p201
      %p203 = scmp.le.s32.totalorder 1, %s14
      %p204 = scmp.lt.s32.totalorder %s14, 3
      %p205 = pnand %p203, %p204
      %p206 = pneg %p205
      // Predicated region
      $region9: #{tpu_custom_call.1} parent=5 // pred_check
        _
      $region10: #{tpu_custom_call.1} parent=5 // pred_check_branch
        %208 = sbr.rel (%p205) target = $region12
      $region11: #{tpu_custom_call.1} parent=5 // pred_region
        %s209 = ssub.s32 %s14, 1
      $region12: #{tpu_custom_call.1} parent=5 // pred_fallthru
        _
      %p210 = scmp.lt.s32.totalorder %s14, 2
      // Predicated region
      $region13: #{tpu_custom_call.1} parent=5 // pred_check
        %p211 = pneg %p210
      $region14: #{tpu_custom_call.1} parent=5 // pred_check_branch
        %213 = sbr.rel (%p211) target = $region16
      $region15: #{tpu_custom_call.1} parent=5 // pred_region
        // Predicated region
        $region17: #{tpu_custom_call.1} parent=15 // pred_check
          %p214 = pneg %p53
        $region18: #{tpu_custom_call.1} parent=15 // pred_check_branch
          %216 = sbr.rel (%p214) target = $region20
        $region19: #{tpu_custom_call.1} parent=15 // pred_region
          %p217 = scmp.lt.s32.totalorder %s21, 1
          %s218 = scalar_select %p217, %s21, 1
          %s219 = smul.addr %s218, 2
          %s220 = smul.addr %s219, 8
          %s221 = scalar_lea.vmem %s0, %s220
        $region20: #{tpu_custom_call.1} parent=15 // pred_fallthru
          _
        // Predicated region
        $region21: #{tpu_custom_call.1} parent=15 // pred_check
          %p222 = pneg %p79
        $region22: #{tpu_custom_call.1} parent=15 // pred_check_branch
          %224 = sbr.rel (%p222) target = $region24
        $region23: #{tpu_custom_call.1} parent=15 // pred_region
          %p225 = scmp.lt.s32.totalorder %s21, 1
          %s226 = scalar_select %p225, %s21, 1
          %s227 = smul.addr %s226, 2
          %s228 = smul.addr %s227, 8
          %s229 = scalar_lea.vmem %s1, %s228
        $region24: #{tpu_custom_call.1} parent=15 // pred_fallthru
          _
        // Predicated region
        $region25: #{tpu_custom_call.1} parent=15 // pred_check
          %p230 = pneg %p105
        $region26: #{tpu_custom_call.1} parent=15 // pred_check_branch
          %232 = sbr.rel (%p230) target = $region28
        $region27: #{tpu_custom_call.1} parent=15 // pred_region
          %p233 = scmp.lt.s32.totalorder %s21, 1
          %s234 = scalar_select %p233, %s21, 1
          %s235 = smul.addr %s234, 2
          %s236 = smul.addr %s235, 8
          %s237 = scalar_lea.vmem %s2, %s236
        $region28: #{tpu_custom_call.1} parent=15 // pred_fallthru
          _
        // Predicated region
        $region29: #{tpu_custom_call.1} parent=15 // pred_check
          %p238 = pneg %p135
        $region30: #{tpu_custom_call.1} parent=15 // pred_check_branch
          %240 = sbr.rel (%p238) target = $region32
        $region31: #{tpu_custom_call.1} parent=15 // pred_region
          %s241 = sadd.s32 %s22, %s23
          %s242 = smul.u32 16, %s241
          %p243 = scmp.lt.s32.totalorder %s21, 1
          %s244 = scalar_select %p243, %s21, 1
          %p245 = scmp.lt.s32.totalorder %s242, 15
          %s246 = scalar_select %p245, %s242, 15
          %s247 = smul.addr %s246, 2
          %s248 = smul.addr %s244, 32
          %s249 = sadd.s32 %s247, %s248
          %s250 = smul.addr %s249, 8
          %s251 = scalar_lea.vmem %s3, %s250
          %s252 = sadd.s32 %s22, %s23
          %s253 = smul.u32 16, %s252
        $region32: #{tpu_custom_call.1} parent=15 // pred_fallthru
          _
        // Predicated region
        $region33: #{tpu_custom_call.1} parent=15 // pred_check
          %p254 = pneg %p161
        $region34: #{tpu_custom_call.1} parent=15 // pred_check_branch
          %256 = sbr.rel (%p254) target = $region36
        $region35: #{tpu_custom_call.1} parent=15 // pred_region
          %p257 = scmp.lt.s32.totalorder %s21, 1
          %s258 = scalar_select %p257, %s21, 1
          %s259 = smul.addr %s258, 10
          %s260 = smul.addr %s259, 8
          %s261 = scalar_lea.vmem %s4, %s260
        $region36: #{tpu_custom_call.1} parent=15 // pred_fallthru
          _
      $region16: #{tpu_custom_call.1} parent=5 // pred_fallthru
        _
      %p262 = scmp.le.s32.totalorder 1, %s14
      %p263 = scmp.lt.s32.totalorder %s14, 3
      %p264 = pnand %p262, %p263
      %p265 = pneg %p264
      // Predicated region
      $region37: #{tpu_custom_call.1} parent=5 // pred_check
        _
      $region38: #{tpu_custom_call.1} parent=5 // pred_check_branch
        %267 = sbr.rel (%p264) target = $region40
      $region39: #{tpu_custom_call.1} parent=5 // pred_region
        %s268 = ssub.s32 %s14, 1
        %p269 = scmp.lt.s32.totalorder %s24, 1
        %s270 = scalar_select %p269, %s24, 1
        %s271 = smul.addr %s270, 2
        %s272 = smul.addr %s271, 8
        %s273 = scalar_lea.vmem %s0, %s272
        %p274 = pneg %p59
        %p275 = pneg %p56
        %p276 = scmp.lt.s32.totalorder %s24, 1
        %s277 = scalar_select %p276, %s24, 1
        %s278 = smul.addr %s277, 2
        %s279 = smul.addr %s278, 8
        %s280 = scalar_lea.vmem %s1, %s279
        %p281 = pneg %p85
        %p282 = pneg %p82
        %p283 = scmp.lt.s32.totalorder %s24, 1
        %s284 = scalar_select %p283, %s24, 1
        %s285 = smul.addr %s284, 2
        %s286 = smul.addr %s285, 8
        %s287 = scalar_lea.vmem %s2, %s286
        %p288 = pneg %p111
        %p289 = pneg %p108
        %s290 = sadd.s32 %s25, %s26
        %s291 = smul.u32 16, %s290
        %p292 = scmp.lt.s32.totalorder %s24, 1
        %s293 = scalar_select %p292, %s24, 1
        %p294 = scmp.lt.s32.totalorder %s291, 15
        %s295 = scalar_select %p294, %s291, 15
        %s296 = smul.addr %s295, 2
        %s297 = smul.addr %s293, 32
        %s298 = sadd.s32 %s296, %s297
        %s299 = smul.addr %s298, 8
        %s300 = scalar_lea.vmem %s3, %s299
        %p301 = pneg %p141
        %p302 = pneg %p138
        %p303 = scmp.lt.s32.totalorder %s24, 1
        %s304 = scalar_select %p303, %s24, 1
        %s305 = smul.addr %s304, 10
        %s306 = smul.addr %s305, 8
        %s307 = scalar_lea.vmem %s4, %s306
        %p308 = pneg %p167
        %p309 = pneg %p164
        %p310 = pneg %p195
        %p311 = pneg %p192
        %s312 = sand.u32 %s182, 1
        %s313 = scalar_lea.sflag [#allocation7], %s312
        %s314 = sand.u32 %s182, 1
        %s315 = scalar_lea.vmem [#allocation6], %s314
        %p316 = scmp.lt.s32.totalorder %s24, 1
        %s317 = scalar_select %p316, %s24, 1
        %s318 = smul.addr %s317, 2
        %s319 = smul.addr %s318, 8
        %s320 = scalar_lea.vmem %s0, %s319
        %p321 = scmp.lt.s32.totalorder %s24, 1
        %s322 = scalar_select %p321, %s24, 1
        %s323 = smul.addr %s322, 2
        %s324 = smul.addr %s323, 8
        %s325 = scalar_lea.vmem %s1, %s324
        %p326 = scmp.lt.s32.totalorder %s24, 1
        %s327 = scalar_select %p326, %s24, 1
        %s328 = smul.addr %s327, 2
        %s329 = smul.addr %s328, 8
        %s330 = scalar_lea.vmem %s2, %s329
        %s331 = sadd.s32 %s25, %s26
        %s332 = smul.u32 16, %s331
        %p333 = scmp.lt.s32.totalorder %s24, 1
        %s334 = scalar_select %p333, %s24, 1
        %p335 = scmp.lt.s32.totalorder %s332, 15
        %s336 = scalar_select %p335, %s332, 15
        %s337 = smul.addr %s336, 2
        %s338 = smul.addr %s334, 32
        %s339 = sadd.s32 %s337, %s338
        %s340 = smul.addr %s339, 8
        %s341 = scalar_lea.vmem %s3, %s340
        %s342 = sadd.s32 %s25, %s26
        %s343 = smul.u32 16, %s342
        %p344 = scmp.lt.s32.totalorder %s24, 1
        %s345 = scalar_select %p344, %s24, 1
        %s346 = smul.addr %s345, 10
        %s347 = smul.addr %s346, 8
        %s348 = scalar_lea.vmem %s4, %s347
        %s349 = sadd.s32 %s24, %s25
        %v350 = vld [vmem:[%s348] sm:$0xff]
        %v351 = vld [vmem:[%s348 + $0x8] sm:$0xff]
        %s352 = scalar_lea.vmem %s348, 16
        %v353 = vld [vmem:[%s352] sm:$0xff]
        %v354 = vld [vmem:[%s352 + $0x8] sm:$0xff]
        %s355 = scalar_lea.vmem %s348, 32
        %v356 = vld [vmem:[%s355] sm:$0xff]
        %v357 = vld [vmem:[%s355 + $0x8] sm:$0xff]
        %s358 = scalar_lea.vmem %s348, 48
        %v359 = vld [vmem:[%s358] sm:$0xff]
        %v360 = vld [vmem:[%s358 + $0x8] sm:$0xff]
        %p361 = scmp.eq.s32.totalorder %s26, 0
        // Predicated region
        $region41: #{tpu_custom_call.1} parent=39 // pred_check
          %p362 = pneg %p361
        $region42: #{tpu_custom_call.1} parent=39 // pred_check_branch
          %364 = sbr.rel (%p362) target = $region44
        $region43: #{tpu_custom_call.1} parent=39 // pred_region
          %vm365 = vcmask 130048
          %366 = vst.msk [vmem:[#allocation2] sm:$0xff] %vm365, 0.0
          %367 = vst.msk [vmem:[#allocation2 + $0x8] sm:$0xff] %vm365, 0.0
          %vm368 = vcmask 7168
          %369 = vst.msk [vmem:[#allocation4] sm:$0xff] %vm368, 0.0
          %370 = vst.msk [vmem:[#allocation4 + $0x8] sm:$0xff] %vm368, 0.0
          %371 = vst.msk [vmem:[#allocation5] sm:$0xff] %vm368, 0.0
          %372 = vst.msk [vmem:[#allocation5 + $0x8] sm:$0xff] %vm368, 0.0
          %v373 = vadd.f32 %v350, %v356
          %v374 = vadd.f32 %v351, %v357
          %v375 = vadd.f32 %v353, %v359
          %v376 = vadd.f32 %v354, %v360
          %v377 = vmul.f32 %v373, %v375
          %v378 = vmul.f32 %v374, %v376
          %379 = vst.msk [vmem:[#allocation3] sm:$0xff] %vm365, %v377
          %380 = vst.msk [vmem:[#allocation3 + $0x8] sm:$0xff] %vm365, %v378
        $region44: #{tpu_custom_call.1} parent=39 // pred_fallthru
          _
        %v381 = vld [vmem:[%s341] sm:$0xff]
        %v382 = vld [vmem:[%s341 + $0x8] sm:$0xff]
        %v383 = vld [vmem:[%s341 + $0x10] sm:$0xff]
        %v384 = vld [vmem:[%s341 + $0x18] sm:$0xff]
        %v385 = vld [vmem:[%s341 + $0x20] sm:$0xff]
        %v386 = vld [vmem:[%s341 + $0x28] sm:$0xff]
        %v387 = vld [vmem:[%s341 + $0x30] sm:$0xff]
        %v388 = vld [vmem:[%s341 + $0x38] sm:$0xff]
        %v389 = vld [vmem:[%s341 + $0x40] sm:$0xff]
        %v390 = vld [vmem:[%s341 + $0x48] sm:$0xff]
        %v391 = vld [vmem:[%s341 + $0x50] sm:$0xff]
        %v392 = vld [vmem:[%s341 + $0x58] sm:$0xff]
        %v393 = vld [vmem:[%s341 + $0x60] sm:$0xff]
        %v394 = vld [vmem:[%s341 + $0x68] sm:$0xff]
        %v395 = vld [vmem:[%s341 + $0x70] sm:$0xff]
        %v396 = vld [vmem:[%s341 + $0x78] sm:$0xff]
        %v397 = vld [vmem:[%s341 + $0x80] sm:$0xff]
        %v398 = vld [vmem:[%s341 + $0x88] sm:$0xff]
        %v399 = vld [vmem:[%s341 + $0x90] sm:$0xff]
        %v400 = vld [vmem:[%s341 + $0x98] sm:$0xff]
        %v401 = vld [vmem:[%s341 + $0xa0] sm:$0xff]
        %v402 = vld [vmem:[%s341 + $0xa8] sm:$0xff]
        %v403 = vld [vmem:[%s341 + $0xb0] sm:$0xff]
        %v404 = vld [vmem:[%s341 + $0xb8] sm:$0xff]
        %v405 = vld [vmem:[%s341 + $0xc0] sm:$0xff]
        %v406 = vld [vmem:[%s341 + $0xc8] sm:$0xff]
        %v407 = vld [vmem:[%s341 + $0xd0] sm:$0xff]
        %v408 = vld [vmem:[%s341 + $0xd8] sm:$0xff]
        %v409 = vld [vmem:[%s341 + $0xe0] sm:$0xff]
        %v410 = vld [vmem:[%s341 + $0xe8] sm:$0xff]
        %v411 = vld [vmem:[%s341 + $0xf0] sm:$0xff]
        %v412 = vld [vmem:[%s341 + $0xf8] sm:$0xff]
        %v413 = vld [vmem:[#allocation4] sm:$0xff]
        %v414 = vld [vmem:[#allocation4 + $0x8] sm:$0xff]
        %v415 = vand.u32 2147483647, %v381
        %vm416 = vcmp.le.f32.partialorder %v415, 0.7853982
        %vm417 = vcmp.lt.s32.totalorder %v381, 0
        %v418 = vand.u32 %v381, 2139095040
        %v419 = vshrl.u32 %v418, 23
        %v420 = vsub.s32 %v419, 127
        %v421 = vand.u32 2147483647, %v381
        %v422 = vand.u32 %v421, 8388607
        %v423 = vor.u32 %v422, 8388608
        %v424 = vsub.s32 0, %v423
        %v425 = vadd.s32 %v420, 1
        %vm426 = vcmp.gt.s32.totalorder %v425, 0
        %v427 = vsel %vm426, %v425, 0
        %v428 = vshrl.u32 %v427, 5
        %v429 = vand.u32 %v427, 31
        %v430 = vsub.s32 32, %v429
        %v431 = vshrl.u32 683565275, %v430
        %v432 = vshll.u32 683565275, %v429
        %v433 = vshrl.u32 2475754826, %v430
        %v434 = vor.u32 %v432, %v433
        %v435 = vshll.u32 2475754826, %v429
        %v436 = vshrl.u32 2131351028, %v430
        %v437 = vor.u32 %v435, %v436
        %v438 = vshll.u32 2131351028, %v429
        %v439 = vshrl.u32 2102212464, %v430
        %v440 = vor.u32 %v438, %v439
        %v441 = vshll.u32 2102212464, %v429
        %v442 = vshrl.u32 920167782, %v430
        %v443 = vor.u32 %v441, %v442
        %v444 = vshll.u32 920167782, %v429
        %v445 = vshrl.u32 1326507024, %v430
        %v446 = vor.u32 %v444, %v445
        %vm447 = vcmp.lt.s32.totalorder %v428, 1
        %vm448 = vcmp.lt.s32.totalorder %v428, 2
        %vm449 = vcmp.lt.s32.totalorder %v428, 3
        %vm450 = vcmp.lt.s32.totalorder %v428, 4
        %v451 = vsel %vm447, %v431, %v434
        %v452 = vsel %vm450, %v440, 2102212464
        %v453 = vsel %vm449, %v437, %v452
        %v454 = vsel %vm448, %v451, %v453
        %v455 = vsel %vm447, %v434, %v437
        %v456 = vsel %vm450, %v443, 920167782
        %v457 = vsel %vm449, %v440, %v456
        %v458 = vsel %vm448, %v455, %v457
        %v459 = vsel %vm447, %v437, %v440
        %v460 = vsel %vm450, %v446, 1326507024
        %v461 = vsel %vm449, %v443, %v460
        %v462 = vsel %vm448, %v459, %v461
        %v463 = vshll.u32 %v423, 8
        %v464 = vmul.u32.u64.compose %v463, %v462
        %v465 = vextract.low.u32 %v464
        %v466 = vextract.high.u32 %v464
        %v467 = vmul.u32.u64.compose %v463, %v458
        %v468 = vextract.low.u32 %v467
        %v469 = vextract.high.u32 %v467
        %v470 = vmul.u32 %v463, %v454
        %v471 = vadd.s32 %v466, %v468
        %vm472 = vc.u32 %v466, %v468
        %v473 = vadd.s32 %v469, 1
        %v474 = vsel %vm472, %v473, %v469
        %v475 = vadd.s32 %v470, %v474
        %v476 = vadd.s32 %v475, 536870912
        %v477 = vshrl.u32 %v476, 30
        %v478 = vshll.u32 %v477, 30
        %v479 = vsub.s32 %v475, %v478
        %vm480 = vcmp.lt.s32.totalorder %v479, 0
        %v481 = vsub.s32 0, %v479
        %v482 = vsel %vm480, %v481, %v479
        %v483 = vclz %v482
        %v484 = vsub.s32 %v483, 2
        %vm485 = vcmp.gt.s32.totalorder 0, %v484
        %v486 = vsel %vm485, 0, %v484
        %v487 = vsub.s32 32, %v486
        %v488 = vshll.u32 %v479, %v486
        %v489 = vshrl.u32 %v471, %v487
        %v490 = vor.u32 %v488, %v489
        %v491 = vsub.s32 4294967266, %v486
        %v492 = vadd.s32 %v491, 127
        %v493 = vshll.u32 %v492, 23
        %v494 = vor.u32 4788187, %v493
        %v495 = vand.u32 2147483647, %v494
        %v497 = vcvt.s32.f32 %v490
        %v498 = vmul.f32 %v497, %v495
        %v499 = vxor.u32 %v498, 2147483648
        %v500 = vsel %vm417, %v499, %v498
        %v501 = vsub.s32 4, %v477
        %v502 = vsel %vm417, %v501, %v477
        %v503 = vsel %vm416, %v381, %v500
        %v504 = vsel %vm416, 0, %v502
        %v505 = vcosq.f32.pop %v503
        %v506 = vsinq.f32.pop %v503
        %vm507 = vweird.f32 %v381
        %v508 = vand.u32 %v504, 3
        %vm509 = vcmp.lt.s32.totalorder %v508, 2
        %vm510 = vcmp.eq.s32.totalorder %v508, 0
        %v511 = vxor.u32 %v506, 2147483648
        %v512 = vsel %vm510, %v505, %v511
        %vm513 = vcmp.eq.s32.totalorder %v508, 2
        %v514 = vxor.u32 %v505, 2147483648
        %v515 = vsel %vm513, %v514, %v506
        %v516 = vsel %vm509, %v512, %v515
        %v517 = vsel %vm507, nan, %v516
        %v518 = vand.u32 2147483647, %v382
        %vm519 = vcmp.le.f32.partialorder %v518, 0.7853982
        %vm520 = vcmp.lt.s32.totalorder %v382, 0
        %v521 = vand.u32 %v382, 2139095040
        %v522 = vshrl.u32 %v521, 23
        %v523 = vsub.s32 %v522, 127
        %v524 = vand.u32 2147483647, %v382
        %v525 = vand.u32 %v524, 8388607
        %v526 = vor.u32 %v525, 8388608
        %v527 = vsub.s32 0, %v526
        %v528 = vadd.s32 %v523, 1
        %vm529 = vcmp.gt.s32.totalorder %v528, 0
        %v530 = vsel %vm529, %v528, 0
        %v531 = vshrl.u32 %v530, 5
        %v532 = vand.u32 %v530, 31
        %v533 = vsub.s32 32, %v532
        %v534 = vshrl.u32 683565275, %v533
        %v535 = vshll.u32 683565275, %v532
        %v536 = vshrl.u32 2475754826, %v533
        %v537 = vor.u32 %v535, %v536
        %v538 = vshll.u32 2475754826, %v532
        %v539 = vshrl.u32 2131351028, %v533
        %v540 = vor.u32 %v538, %v539
        %v541 = vshll.u32 2131351028, %v532
        %v542 = vshrl.u32 2102212464, %v533
        %v543 = vor.u32 %v541, %v542
        %v544 = vshll.u32 2102212464, %v532
        %v545 = vshrl.u32 920167782, %v533
        %v546 = vor.u32 %v544, %v545
        %v547 = vshll.u32 920167782, %v532
        %v548 = vshrl.u32 1326507024, %v533
        %v549 = vor.u32 %v547, %v548
        %vm550 = vcmp.lt.s32.totalorder %v531, 1
        %vm551 = vcmp.lt.s32.totalorder %v531, 2
        %vm552 = vcmp.lt.s32.totalorder %v531, 3
        %vm553 = vcmp.lt.s32.totalorder %v531, 4
        %v554 = vsel %vm550, %v534, %v537
        %v555 = vsel %vm553, %v543, 2102212464
        %v556 = vsel %vm552, %v540, %v555
        %v557 = vsel %vm551, %v554, %v556
        %v558 = vsel %vm550, %v537, %v540
        %v559 = vsel %vm553, %v546, 920167782
        %v560 = vsel %vm552, %v543, %v559
        %v561 = vsel %vm551, %v558, %v560
        %v562 = vsel %vm550, %v540, %v543
        %v563 = vsel %vm553, %v549, 1326507024
        %v564 = vsel %vm552, %v546, %v563
        %v565 = vsel %vm551, %v562, %v564
        %v566 = vshll.u32 %v526, 8
        %v567 = vmul.u32.u64.compose %v566, %v565
        %v568 = vextract.low.u32 %v567
        %v569 = vextract.high.u32 %v567
        %v570 = vmul.u32.u64.compose %v566, %v561
        %v571 = vextract.low.u32 %v570
        %v572 = vextract.high.u32 %v570
        %v573 = vmul.u32 %v566, %v557
        %v574 = vadd.s32 %v569, %v571
        %vm575 = vc.u32 %v569, %v571
        %v576 = vadd.s32 %v572, 1
        %v577 = vsel %vm575, %v576, %v572
        %v578 = vadd.s32 %v573, %v577
        %v579 = vadd.s32 %v578, 536870912
        %v580 = vshrl.u32 %v579, 30
        %v581 = vshll.u32 %v580, 30
        %v582 = vsub.s32 %v578, %v581
        %vm583 = vcmp.lt.s32.totalorder %v582, 0
        %v584 = vsub.s32 0, %v582
        %v585 = vsel %vm583, %v584, %v582
        %v586 = vclz %v585
        %v587 = vsub.s32 %v586, 2
        %vm588 = vcmp.gt.s32.totalorder 0, %v587
        %v589 = vsel %vm588, 0, %v587
        %v590 = vsub.s32 32, %v589
        %v591 = vshll.u32 %v582, %v589
        %v592 = vshrl.u32 %v574, %v590
        %v593 = vor.u32 %v591, %v592
        %v594 = vsub.s32 4294967266, %v589
        %v595 = vadd.s32 %v594, 127
        %v596 = vshll.u32 %v595, 23
        %v597 = vor.u32 4788187, %v596
        %v598 = vand.u32 2147483647, %v597
        %v600 = vcvt.s32.f32 %v593
        %v601 = vmul.f32 %v600, %v598
        %v602 = vxor.u32 %v601, 2147483648
        %v603 = vsel %vm520, %v602, %v601
        %v604 = vsub.s32 4, %v580
        %v605 = vsel %vm520, %v604, %v580
        %v606 = vsel %vm519, %v382, %v603
        %v607 = vsel %vm519, 0, %v605
        %v608 = vcosq.f32.pop %v606
        %v609 = vsinq.f32.pop %v606
        %vm610 = vweird.f32 %v382
        %v611 = vand.u32 %v607, 3
        %vm612 = vcmp.lt.s32.totalorder %v611, 2
        %vm613 = vcmp.eq.s32.totalorder %v611, 0
        %v614 = vxor.u32 %v609, 2147483648
        %v615 = vsel %vm613, %v608, %v614
        %vm616 = vcmp.eq.s32.totalorder %v611, 2
        %v617 = vxor.u32 %v608, 2147483648
        %v618 = vsel %vm616, %v617, %v609
        %v619 = vsel %vm612, %v615, %v618
        %v620 = vsel %vm610, nan, %v619
        %v621 = vand.u32 2147483647, %v383
        %vm622 = vcmp.le.f32.partialorder %v621, 0.7853982
        %vm623 = vcmp.lt.s32.totalorder %v383, 0
        %v624 = vand.u32 %v383, 2139095040
        %v625 = vshrl.u32 %v624, 23
        %v626 = vsub.s32 %v625, 127
        %v627 = vand.u32 2147483647, %v383
        %v628 = vand.u32 %v627, 8388607
        %v629 = vor.u32 %v628, 8388608
        %v630 = vsub.s32 0, %v629
        %v631 = vadd.s32 %v626, 1
        %vm632 = vcmp.gt.s32.totalorder %v631, 0
        %v633 = vsel %vm632, %v631, 0
        %v634 = vshrl.u32 %v633, 5
        %v635 = vand.u32 %v633, 31
        %v636 = vsub.s32 32, %v635
        %v637 = vshrl.u32 683565275, %v636
        %v638 = vshll.u32 683565275, %v635
        %v639 = vshrl.u32 2475754826, %v636
        %v640 = vor.u32 %v638, %v639
        %v641 = vshll.u32 2475754826, %v635
        %v642 = vshrl.u32 2131351028, %v636
        %v643 = vor.u32 %v641, %v642
        %v644 = vshll.u32 2131351028, %v635
        %v645 = vshrl.u32 2102212464, %v636
        %v646 = vor.u32 %v644, %v645
        %v647 = vshll.u32 2102212464, %v635
        %v648 = vshrl.u32 920167782, %v636
        %v649 = vor.u32 %v647, %v648
        %v650 = vshll.u32 920167782, %v635
        %v651 = vshrl.u32 1326507024, %v636
        %v652 = vor.u32 %v650, %v651
        %vm653 = vcmp.lt.s32.totalorder %v634, 1
        %vm654 = vcmp.lt.s32.totalorder %v634, 2
        %vm655 = vcmp.lt.s32.totalorder %v634, 3
        %vm656 = vcmp.lt.s32.totalorder %v634, 4
        %v657 = vsel %vm653, %v637, %v640
        %v658 = vsel %vm656, %v646, 2102212464
        %v659 = vsel %vm655, %v643, %v658
        %v660 = vsel %vm654, %v657, %v659
        %v661 = vsel %vm653, %v640, %v643
        %v662 = vsel %vm656, %v649, 920167782
        %v663 = vsel %vm655, %v646, %v662
        %v664 = vsel %vm654, %v661, %v663
        %v665 = vsel %vm653, %v643, %v646
        %v666 = vsel %vm656, %v652, 1326507024
        %v667 = vsel %vm655, %v649, %v666
        %v668 = vsel %vm654, %v665, %v667
        %v669 = vshll.u32 %v629, 8
        %v670 = vmul.u32.u64.compose %v669, %v668
        %v671 = vextract.low.u32 %v670
        %v672 = vextract.high.u32 %v670
        %v673 = vmul.u32.u64.compose %v669, %v664
        %v674 = vextract.low.u32 %v673
        %v675 = vextract.high.u32 %v673
        %v676 = vmul.u32 %v669, %v660
        %v677 = vadd.s32 %v672, %v674
        %vm678 = vc.u32 %v672, %v674
        %v679 = vadd.s32 %v675, 1
        %v680 = vsel %vm678, %v679, %v675
        %v681 = vadd.s32 %v676, %v680
        %v682 = vadd.s32 %v681, 536870912
        %v683 = vshrl.u32 %v682, 30
        %v684 = vshll.u32 %v683, 30
        %v685 = vsub.s32 %v681, %v684
        %vm686 = vcmp.lt.s32.totalorder %v685, 0
        %v687 = vsub.s32 0, %v685
        %v688 = vsel %vm686, %v687, %v685
        %v689 = vclz %v688
        %v690 = vsub.s32 %v689, 2
        %vm691 = vcmp.gt.s32.totalorder 0, %v690
        %v692 = vsel %vm691, 0, %v690
        %v693 = vsub.s32 32, %v692
        %v694 = vshll.u32 %v685, %v692
        %v695 = vshrl.u32 %v677, %v693
        %v696 = vor.u32 %v694, %v695
        %v697 = vsub.s32 4294967266, %v692
        %v698 = vadd.s32 %v697, 127
        %v699 = vshll.u32 %v698, 23
        %v700 = vor.u32 4788187, %v699
        %v701 = vand.u32 2147483647, %v700
        %v703 = vcvt.s32.f32 %v696
        %v704 = vmul.f32 %v703, %v701
        %v705 = vxor.u32 %v704, 2147483648
        %v706 = vsel %vm623, %v705, %v704
        %v707 = vsub.s32 4, %v683
        %v708 = vsel %vm623, %v707, %v683
        %v709 = vsel %vm622, %v383, %v706
        %v710 = vsel %vm622, 0, %v708
        %v711 = vcosq.f32.pop %v709
        %v712 = vsinq.f32.pop %v709
        %vm713 = vweird.f32 %v383
        %v714 = vand.u32 %v710, 3
        %vm715 = vcmp.lt.s32.totalorder %v714, 2
        %vm716 = vcmp.eq.s32.totalorder %v714, 0
        %v717 = vxor.u32 %v712, 2147483648
        %v718 = vsel %vm716, %v711, %v717
        %vm719 = vcmp.eq.s32.totalorder %v714, 2
        %v720 = vxor.u32 %v711, 2147483648
        %v721 = vsel %vm719, %v720, %v712
        %v722 = vsel %vm715, %v718, %v721
        %v723 = vsel %vm713, nan, %v722
        %v724 = vand.u32 2147483647, %v384
        %vm725 = vcmp.le.f32.partialorder %v724, 0.7853982
        %vm726 = vcmp.lt.s32.totalorder %v384, 0
        %v727 = vand.u32 %v384, 2139095040
        %v728 = vshrl.u32 %v727, 23
        %v729 = vsub.s32 %v728, 127
        %v730 = vand.u32 2147483647, %v384
        %v731 = vand.u32 %v730, 8388607
        %v732 = vor.u32 %v731, 8388608
        %v733 = vsub.s32 0, %v732
        %v734 = vadd.s32 %v729, 1
        %vm735 = vcmp.gt.s32.totalorder %v734, 0
        %v736 = vsel %vm735, %v734, 0
        %v737 = vshrl.u32 %v736, 5
        %v738 = vand.u32 %v736, 31
        %v739 = vsub.s32 32, %v738
        %v740 = vshrl.u32 683565275, %v739
        %v741 = vshll.u32 683565275, %v738
        %v742 = vshrl.u32 2475754826, %v739
        %v743 = vor.u32 %v741, %v742
        %v744 = vshll.u32 2475754826, %v738
        %v745 = vshrl.u32 2131351028, %v739
        %v746 = vor.u32 %v744, %v745
        %v747 = vshll.u32 2131351028, %v738
        %v748 = vshrl.u32 2102212464, %v739
        %v749 = vor.u32 %v747, %v748
        %v750 = vshll.u32 2102212464, %v738
        %v751 = vshrl.u32 920167782, %v739
        %v752 = vor.u32 %v750, %v751
        %v753 = vshll.u32 920167782, %v738
        %v754 = vshrl.u32 1326507024, %v739
        %v755 = vor.u32 %v753, %v754
        %vm756 = vcmp.lt.s32.totalorder %v737, 1
        %vm757 = vcmp.lt.s32.totalorder %v737, 2
        %vm758 = vcmp.lt.s32.totalorder %v737, 3
        %vm759 = vcmp.lt.s32.totalorder %v737, 4
        %v760 = vsel %vm756, %v740, %v743
        %v761 = vsel %vm759, %v749, 2102212464
        %v762 = vsel %vm758, %v746, %v761
        %v763 = vsel %vm757, %v760, %v762
        %v764 = vsel %vm756, %v743, %v746
        %v765 = vsel %vm759, %v752, 920167782
        %v766 = vsel %vm758, %v749, %v765
        %v767 = vsel %vm757, %v764, %v766
        %v768 = vsel %vm756, %v746, %v749
        %v769 = vsel %vm759, %v755, 1326507024
        %v770 = vsel %vm758, %v752, %v769
        %v771 = vsel %vm757, %v768, %v770
        %v772 = vshll.u32 %v732, 8
        %v773 = vmul.u32.u64.compose %v772, %v771
        %v774 = vextract.low.u32 %v773
        %v775 = vextract.high.u32 %v773
        %v776 = vmul.u32.u64.compose %v772, %v767
        %v777 = vextract.low.u32 %v776
        %v778 = vextract.high.u32 %v776
        %v779 = vmul.u32 %v772, %v763
        %v780 = vadd.s32 %v775, %v777
        %vm781 = vc.u32 %v775, %v777
        %v782 = vadd.s32 %v778, 1
        %v783 = vsel %vm781, %v782, %v778
        %v784 = vadd.s32 %v779, %v783
        %v785 = vadd.s32 %v784, 536870912
        %v786 = vshrl.u32 %v785, 30
        %v787 = vshll.u32 %v786, 30
        %v788 = vsub.s32 %v784, %v787
        %vm789 = vcmp.lt.s32.totalorder %v788, 0
        %v790 = vsub.s32 0, %v788
        %v791 = vsel %vm789, %v790, %v788
        %v792 = vclz %v791
        %v793 = vsub.s32 %v792, 2
        %vm794 = vcmp.gt.s32.totalorder 0, %v793
        %v795 = vsel %vm794, 0, %v793
        %v796 = vsub.s32 32, %v795
        %v797 = vshll.u32 %v788, %v795
        %v798 = vshrl.u32 %v780, %v796
        %v799 = vor.u32 %v797, %v798
        %v800 = vsub.s32 4294967266, %v795
        %v801 = vadd.s32 %v800, 127
        %v802 = vshll.u32 %v801, 23
        %v803 = vor.u32 4788187, %v802
        %v804 = vand.u32 2147483647, %v803
        %v806 = vcvt.s32.f32 %v799
        %v807 = vmul.f32 %v806, %v804
        %v808 = vxor.u32 %v807, 2147483648
        %v809 = vsel %vm726, %v808, %v807
        %v810 = vsub.s32 4, %v786
        %v811 = vsel %vm726, %v810, %v786
        %v812 = vsel %vm725, %v384, %v809
        %v813 = vsel %vm725, 0, %v811
        %v814 = vcosq.f32.pop %v812
        %v815 = vsinq.f32.pop %v812
        %vm816 = vweird.f32 %v384
        %v817 = vand.u32 %v813, 3
        %vm818 = vcmp.lt.s32.totalorder %v817, 2
        %vm819 = vcmp.eq.s32.totalorder %v817, 0
        %v820 = vxor.u32 %v815, 2147483648
        %v821 = vsel %vm819, %v814, %v820
        %vm822 = vcmp.eq.s32.totalorder %v817, 2
        %v823 = vxor.u32 %v814, 2147483648
        %v824 = vsel %vm822, %v823, %v815
        %v825 = vsel %vm818, %v821, %v824
        %v826 = vsel %vm816, nan, %v825
        %v827 = vand.u32 2147483647, %v385
        %vm828 = vcmp.le.f32.partialorder %v827, 0.7853982
        %vm829 = vcmp.lt.s32.totalorder %v385, 0
        %v830 = vand.u32 %v385, 2139095040
        %v831 = vshrl.u32 %v830, 23
        %v832 = vsub.s32 %v831, 127
        %v833 = vand.u32 2147483647, %v385
        %v834 = vand.u32 %v833, 8388607
        %v835 = vor.u32 %v834, 8388608
        %v836 = vsub.s32 0, %v835
        %v837 = vadd.s32 %v832, 1
        %vm838 = vcmp.gt.s32.totalorder %v837, 0
        %v839 = vsel %vm838, %v837, 0
        %v840 = vshrl.u32 %v839, 5
        %v841 = vand.u32 %v839, 31
        %v842 = vsub.s32 32, %v841
        %v843 = vshrl.u32 683565275, %v842
        %v844 = vshll.u32 683565275, %v841
        %v845 = vshrl.u32 2475754826, %v842
        %v846 = vor.u32 %v844, %v845
        %v847 = vshll.u32 2475754826, %v841
        %v848 = vshrl.u32 2131351028, %v842
        %v849 = vor.u32 %v847, %v848
        %v850 = vshll.u32 2131351028, %v841
        %v851 = vshrl.u32 2102212464, %v842
        %v852 = vor.u32 %v850, %v851
        %v853 = vshll.u32 2102212464, %v841
        %v854 = vshrl.u32 920167782, %v842
        %v855 = vor.u32 %v853, %v854
        %v856 = vshll.u32 920167782, %v841
        %v857 = vshrl.u32 1326507024, %v842
        %v858 = vor.u32 %v856, %v857
        %vm859 = vcmp.lt.s32.totalorder %v840, 1
        %vm860 = vcmp.lt.s32.totalorder %v840, 2
        %vm861 = vcmp.lt.s32.totalorder %v840, 3
        %vm862 = vcmp.lt.s32.totalorder %v840, 4
        %v863 = vsel %vm859, %v843, %v846
        %v864 = vsel %vm862, %v852, 2102212464
        %v865 = vsel %vm861, %v849, %v864
        %v866 = vsel %vm860, %v863, %v865
        %v867 = vsel %vm859, %v846, %v849
        %v868 = vsel %vm862, %v855, 920167782
        %v869 = vsel %vm861, %v852, %v868
        %v870 = vsel %vm860, %v867, %v869
        %v871 = vsel %vm859, %v849, %v852
        %v872 = vsel %vm862, %v858, 1326507024
        %v873 = vsel %vm861, %v855, %v872
        %v874 = vsel %vm860, %v871, %v873
        %v875 = vshll.u32 %v835, 8
        %v876 = vmul.u32.u64.compose %v875, %v874
        %v877 = vextract.low.u32 %v876
        %v878 = vextract.high.u32 %v876
        %v879 = vmul.u32.u64.compose %v875, %v870
        %v880 = vextract.low.u32 %v879
        %v881 = vextract.high.u32 %v879
        %v882 = vmul.u32 %v875, %v866
        %v883 = vadd.s32 %v878, %v880
        %vm884 = vc.u32 %v878, %v880
        %v885 = vadd.s32 %v881, 1
        %v886 = vsel %vm884, %v885, %v881
        %v887 = vadd.s32 %v882, %v886
        %v888 = vadd.s32 %v887, 536870912
        %v889 = vshrl.u32 %v888, 30
        %v890 = vshll.u32 %v889, 30
        %v891 = vsub.s32 %v887, %v890
        %vm892 = vcmp.lt.s32.totalorder %v891, 0
        %v893 = vsub.s32 0, %v891
        %v894 = vsel %vm892, %v893, %v891
        %v895 = vclz %v894
        %v896 = vsub.s32 %v895, 2
        %vm897 = vcmp.gt.s32.totalorder 0, %v896
        %v898 = vsel %vm897, 0, %v896
        %v899 = vsub.s32 32, %v898
        %v900 = vshll.u32 %v891, %v898
        %v901 = vshrl.u32 %v883, %v899
        %v902 = vor.u32 %v900, %v901
        %v903 = vsub.s32 4294967266, %v898
        %v904 = vadd.s32 %v903, 127
        %v905 = vshll.u32 %v904, 23
        %v906 = vor.u32 4788187, %v905
        %v907 = vand.u32 2147483647, %v906
        %v909 = vcvt.s32.f32 %v902
        %v910 = vmul.f32 %v909, %v907
        %v911 = vxor.u32 %v910, 2147483648
        %v912 = vsel %vm829, %v911, %v910
        %v913 = vsub.s32 4, %v889
        %v914 = vsel %vm829, %v913, %v889
        %v915 = vsel %vm828, %v385, %v912
        %v916 = vsel %vm828, 0, %v914
        %v917 = vcosq.f32.pop %v915
        %v918 = vsinq.f32.pop %v915
        %vm919 = vweird.f32 %v385
        %v920 = vand.u32 %v916, 3
        %vm921 = vcmp.lt.s32.totalorder %v920, 2
        %vm922 = vcmp.eq.s32.totalorder %v920, 0
        %v923 = vxor.u32 %v918, 2147483648
        %v924 = vsel %vm922, %v917, %v923
        %vm925 = vcmp.eq.s32.totalorder %v920, 2
        %v926 = vxor.u32 %v917, 2147483648
        %v927 = vsel %vm925, %v926, %v918
        %v928 = vsel %vm921, %v924, %v927
        %v929 = vsel %vm919, nan, %v928
        %v930 = vand.u32 2147483647, %v386
        %vm931 = vcmp.le.f32.partialorder %v930, 0.7853982
        %vm932 = vcmp.lt.s32.totalorder %v386, 0
        %v933 = vand.u32 %v386, 2139095040
        %v934 = vshrl.u32 %v933, 23
        %v935 = vsub.s32 %v934, 127
        %v936 = vand.u32 2147483647, %v386
        %v937 = vand.u32 %v936, 8388607
        %v938 = vor.u32 %v937, 8388608
        %v939 = vsub.s32 0, %v938
        %v940 = vadd.s32 %v935, 1
        %vm941 = vcmp.gt.s32.totalorder %v940, 0
        %v942 = vsel %vm941, %v940, 0
        %v943 = vshrl.u32 %v942, 5
        %v944 = vand.u32 %v942, 31
        %v945 = vsub.s32 32, %v944
        %v946 = vshrl.u32 683565275, %v945
        %v947 = vshll.u32 683565275, %v944
        %v948 = vshrl.u32 2475754826, %v945
        %v949 = vor.u32 %v947, %v948
        %v950 = vshll.u32 2475754826, %v944
        %v951 = vshrl.u32 2131351028, %v945
        %v952 = vor.u32 %v950, %v951
        %v953 = vshll.u32 2131351028, %v944
        %v954 = vshrl.u32 2102212464, %v945
        %v955 = vor.u32 %v953, %v954
        %v956 = vshll.u32 2102212464, %v944
        %v957 = vshrl.u32 920167782, %v945
        %v958 = vor.u32 %v956, %v957
        %v959 = vshll.u32 920167782, %v944
        %v960 = vshrl.u32 1326507024, %v945
        %v961 = vor.u32 %v959, %v960
        %vm962 = vcmp.lt.s32.totalorder %v943, 1
        %vm963 = vcmp.lt.s32.totalorder %v943, 2
        %vm964 = vcmp.lt.s32.totalorder %v943, 3
        %vm965 = vcmp.lt.s32.totalorder %v943, 4
        %v966 = vsel %vm962, %v946, %v949
        %v967 = vsel %vm965, %v955, 2102212464
        %v968 = vsel %vm964, %v952, %v967
        %v969 = vsel %vm963, %v966, %v968
        %v970 = vsel %vm962, %v949, %v952
        %v971 = vsel %vm965, %v958, 920167782
        %v972 = vsel %vm964, %v955, %v971
        %v973 = vsel %vm963, %v970, %v972
        %v974 = vsel %vm962, %v952, %v955
        %v975 = vsel %vm965, %v961, 1326507024
        %v976 = vsel %vm964, %v958, %v975
        %v977 = vsel %vm963, %v974, %v976
        %v978 = vshll.u32 %v938, 8
        %v979 = vmul.u32.u64.compose %v978, %v977
        %v980 = vextract.low.u32 %v979
        %v981 = vextract.high.u32 %v979
        %v982 = vmul.u32.u64.compose %v978, %v973
        %v983 = vextract.low.u32 %v982
        %v984 = vextract.high.u32 %v982
        %v985 = vmul.u32 %v978, %v969
        %v986 = vadd.s32 %v981, %v983
        %vm987 = vc.u32 %v981, %v983
        %v988 = vadd.s32 %v984, 1
        %v989 = vsel %vm987, %v988, %v984
        %v990 = vadd.s32 %v985, %v989
        %v991 = vadd.s32 %v990, 536870912
        %v992 = vshrl.u32 %v991, 30
        %v993 = vshll.u32 %v992, 30
        %v994 = vsub.s32 %v990, %v993
        %vm995 = vcmp.lt.s32.totalorder %v994, 0
        %v996 = vsub.s32 0, %v994
        %v997 = vsel %vm995, %v996, %v994
        %v998 = vclz %v997
        %v999 = vsub.s32 %v998, 2
        %vm1000 = vcmp.gt.s32.totalorder 0, %v999
        %v1001 = vsel %vm1000, 0, %v999
        %v1002 = vsub.s32 32, %v1001
        %v1003 = vshll.u32 %v994, %v1001
        %v1004 = vshrl.u32 %v986, %v1002
        %v1005 = vor.u32 %v1003, %v1004
        %v1006 = vsub.s32 4294967266, %v1001
        %v1007 = vadd.s32 %v1006, 127
        %v1008 = vshll.u32 %v1007, 23
        %v1009 = vor.u32 4788187, %v1008
        %v1010 = vand.u32 2147483647, %v1009
        %v1012 = vcvt.s32.f32 %v1005
        %v1013 = vmul.f32 %v1012, %v1010
        %v1014 = vxor.u32 %v1013, 2147483648
        %v1015 = vsel %vm932, %v1014, %v1013
        %v1016 = vsub.s32 4, %v992
        %v1017 = vsel %vm932, %v1016, %v992
        %v1018 = vsel %vm931, %v386, %v1015
        %v1019 = vsel %vm931, 0, %v1017
        %v1020 = vcosq.f32.pop %v1018
        %v1021 = vsinq.f32.pop %v1018
        %vm1022 = vweird.f32 %v386
        %v1023 = vand.u32 %v1019, 3
        %vm1024 = vcmp.lt.s32.totalorder %v1023, 2
        %vm1025 = vcmp.eq.s32.totalorder %v1023, 0
        %v1026 = vxor.u32 %v1021, 2147483648
        %v1027 = vsel %vm1025, %v1020, %v1026
        %vm1028 = vcmp.eq.s32.totalorder %v1023, 2
        %v1029 = vxor.u32 %v1020, 2147483648
        %v1030 = vsel %vm1028, %v1029, %v1021
        %v1031 = vsel %vm1024, %v1027, %v1030
        %v1032 = vsel %vm1022, nan, %v1031
        %v1033 = vand.u32 2147483647, %v387
        %vm1034 = vcmp.le.f32.partialorder %v1033, 0.7853982
        %vm1035 = vcmp.lt.s32.totalorder %v387, 0
        %v1036 = vand.u32 %v387, 2139095040
        %v1037 = vshrl.u32 %v1036, 23
        %v1038 = vsub.s32 %v1037, 127
        %v1039 = vand.u32 2147483647, %v387
        %v1040 = vand.u32 %v1039, 8388607
        %v1041 = vor.u32 %v1040, 8388608
        %v1042 = vsub.s32 0, %v1041
        %v1043 = vadd.s32 %v1038, 1
        %vm1044 = vcmp.gt.s32.totalorder %v1043, 0
        %v1045 = vsel %vm1044, %v1043, 0
        %v1046 = vshrl.u32 %v1045, 5
        %v1047 = vand.u32 %v1045, 31
        %v1048 = vsub.s32 32, %v1047
        %v1049 = vshrl.u32 683565275, %v1048
        %v1050 = vshll.u32 683565275, %v1047
        %v1051 = vshrl.u32 2475754826, %v1048
        %v1052 = vor.u32 %v1050, %v1051
        %v1053 = vshll.u32 2475754826, %v1047
        %v1054 = vshrl.u32 2131351028, %v1048
        %v1055 = vor.u32 %v1053, %v1054
        %v1056 = vshll.u32 2131351028, %v1047
        %v1057 = vshrl.u32 2102212464, %v1048
        %v1058 = vor.u32 %v1056, %v1057
        %v1059 = vshll.u32 2102212464, %v1047
        %v1060 = vshrl.u32 920167782, %v1048
        %v1061 = vor.u32 %v1059, %v1060
        %v1062 = vshll.u32 920167782, %v1047
        %v1063 = vshrl.u32 1326507024, %v1048
        %v1064 = vor.u32 %v1062, %v1063
        %vm1065 = vcmp.lt.s32.totalorder %v1046, 1
        %vm1066 = vcmp.lt.s32.totalorder %v1046, 2
        %vm1067 = vcmp.lt.s32.totalorder %v1046, 3
        %vm1068 = vcmp.lt.s32.totalorder %v1046, 4
        %v1069 = vsel %vm1065, %v1049, %v1052
        %v1070 = vsel %vm1068, %v1058, 2102212464
        %v1071 = vsel %vm1067, %v1055, %v1070
        %v1072 = vsel %vm1066, %v1069, %v1071
        %v1073 = vsel %vm1065, %v1052, %v1055
        %v1074 = vsel %vm1068, %v1061, 920167782
        %v1075 = vsel %vm1067, %v1058, %v1074
        %v1076 = vsel %vm1066, %v1073, %v1075
        %v1077 = vsel %vm1065, %v1055, %v1058
        %v1078 = vsel %vm1068, %v1064, 1326507024
        %v1079 = vsel %vm1067, %v1061, %v1078
        %v1080 = vsel %vm1066, %v1077, %v1079
        %v1081 = vshll.u32 %v1041, 8
        %v1082 = vmul.u32.u64.compose %v1081, %v1080
        %v1083 = vextract.low.u32 %v1082
        %v1084 = vextract.high.u32 %v1082
        %v1085 = vmul.u32.u64.compose %v1081, %v1076
        %v1086 = vextract.low.u32 %v1085
        %v1087 = vextract.high.u32 %v1085
        %v1088 = vmul.u32 %v1081, %v1072
        %v1089 = vadd.s32 %v1084, %v1086
        %vm1090 = vc.u32 %v1084, %v1086
        %v1091 = vadd.s32 %v1087, 1
        %v1092 = vsel %vm1090, %v1091, %v1087
        %v1093 = vadd.s32 %v1088, %v1092
        %v1094 = vadd.s32 %v1093, 536870912
        %v1095 = vshrl.u32 %v1094, 30
        %v1096 = vshll.u32 %v1095, 30
        %v1097 = vsub.s32 %v1093, %v1096
        %vm1098 = vcmp.lt.s32.totalorder %v1097, 0
        %v1099 = vsub.s32 0, %v1097
        %v1100 = vsel %vm1098, %v1099, %v1097
        %v1101 = vclz %v1100
        %v1102 = vsub.s32 %v1101, 2
        %vm1103 = vcmp.gt.s32.totalorder 0, %v1102
        %v1104 = vsel %vm1103, 0, %v1102
        %v1105 = vsub.s32 32, %v1104
        %v1106 = vshll.u32 %v1097, %v1104
        %v1107 = vshrl.u32 %v1089, %v1105
        %v1108 = vor.u32 %v1106, %v1107
        %v1109 = vsub.s32 4294967266, %v1104
        %v1110 = vadd.s32 %v1109, 127
        %v1111 = vshll.u32 %v1110, 23
        %v1112 = vor.u32 4788187, %v1111
        %v1113 = vand.u32 2147483647, %v1112
        %v1115 = vcvt.s32.f32 %v1108
        %v1116 = vmul.f32 %v1115, %v1113
        %v1117 = vxor.u32 %v1116, 2147483648
        %v1118 = vsel %vm1035, %v1117, %v1116
        %v1119 = vsub.s32 4, %v1095
        %v1120 = vsel %vm1035, %v1119, %v1095
        %v1121 = vsel %vm1034, %v387, %v1118
        %v1122 = vsel %vm1034, 0, %v1120
        %v1123 = vcosq.f32.pop %v1121
        %v1124 = vsinq.f32.pop %v1121
        %vm1125 = vweird.f32 %v387
        %v1126 = vand.u32 %v1122, 3
        %vm1127 = vcmp.lt.s32.totalorder %v1126, 2
        %vm1128 = vcmp.eq.s32.totalorder %v1126, 0
        %v1129 = vxor.u32 %v1124, 2147483648
        %v1130 = vsel %vm1128, %v1123, %v1129
        %vm1131 = vcmp.eq.s32.totalorder %v1126, 2
        %v1132 = vxor.u32 %v1123, 2147483648
        %v1133 = vsel %vm1131, %v1132, %v1124
        %v1134 = vsel %vm1127, %v1130, %v1133
        %v1135 = vsel %vm1125, nan, %v1134
        %v1136 = vand.u32 2147483647, %v388
        %vm1137 = vcmp.le.f32.partialorder %v1136, 0.7853982
        %vm1138 = vcmp.lt.s32.totalorder %v388, 0
        %v1139 = vand.u32 %v388, 2139095040
        %v1140 = vshrl.u32 %v1139, 23
        %v1141 = vsub.s32 %v1140, 127
        %v1142 = vand.u32 2147483647, %v388
        %v1143 = vand.u32 %v1142, 8388607
        %v1144 = vor.u32 %v1143, 8388608
        %v1145 = vsub.s32 0, %v1144
        %v1146 = vadd.s32 %v1141, 1
        %vm1147 = vcmp.gt.s32.totalorder %v1146, 0
        %v1148 = vsel %vm1147, %v1146, 0
        %v1149 = vshrl.u32 %v1148, 5
        %v1150 = vand.u32 %v1148, 31
        %v1151 = vsub.s32 32, %v1150
        %v1152 = vshrl.u32 683565275, %v1151
        %v1153 = vshll.u32 683565275, %v1150
        %v1154 = vshrl.u32 2475754826, %v1151
        %v1155 = vor.u32 %v1153, %v1154
        %v1156 = vshll.u32 2475754826, %v1150
        %v1157 = vshrl.u32 2131351028, %v1151
        %v1158 = vor.u32 %v1156, %v1157
        %v1159 = vshll.u32 2131351028, %v1150
        %v1160 = vshrl.u32 2102212464, %v1151
        %v1161 = vor.u32 %v1159, %v1160
        %v1162 = vshll.u32 2102212464, %v1150
        %v1163 = vshrl.u32 920167782, %v1151
        %v1164 = vor.u32 %v1162, %v1163
        %v1165 = vshll.u32 920167782, %v1150
        %v1166 = vshrl.u32 1326507024, %v1151
        %v1167 = vor.u32 %v1165, %v1166
        %vm1168 = vcmp.lt.s32.totalorder %v1149, 1
        %vm1169 = vcmp.lt.s32.totalorder %v1149, 2
        %vm1170 = vcmp.lt.s32.totalorder %v1149, 3
        %vm1171 = vcmp.lt.s32.totalorder %v1149, 4
        %v1172 = vsel %vm1168, %v1152, %v1155
        %v1173 = vsel %vm1171, %v1161, 2102212464
        %v1174 = vsel %vm1170, %v1158, %v1173
        %v1175 = vsel %vm1169, %v1172, %v1174
        %v1176 = vsel %vm1168, %v1155, %v1158
        %v1177 = vsel %vm1171, %v1164, 920167782
        %v1178 = vsel %vm1170, %v1161, %v1177
        %v1179 = vsel %vm1169, %v1176, %v1178
        %v1180 = vsel %vm1168, %v1158, %v1161
        %v1181 = vsel %vm1171, %v1167, 1326507024
        %v1182 = vsel %vm1170, %v1164, %v1181
        %v1183 = vsel %vm1169, %v1180, %v1182
        %v1184 = vshll.u32 %v1144, 8
        %v1185 = vmul.u32.u64.compose %v1184, %v1183
        %v1186 = vextract.low.u32 %v1185
        %v1187 = vextract.high.u32 %v1185
        %v1188 = vmul.u32.u64.compose %v1184, %v1179
        %v1189 = vextract.low.u32 %v1188
        %v1190 = vextract.high.u32 %v1188
        %v1191 = vmul.u32 %v1184, %v1175
        %v1192 = vadd.s32 %v1187, %v1189
        %vm1193 = vc.u32 %v1187, %v1189
        %v1194 = vadd.s32 %v1190, 1
        %v1195 = vsel %vm1193, %v1194, %v1190
        %v1196 = vadd.s32 %v1191, %v1195
        %v1197 = vadd.s32 %v1196, 536870912
        %v1198 = vshrl.u32 %v1197, 30
        %v1199 = vshll.u32 %v1198, 30
        %v1200 = vsub.s32 %v1196, %v1199
        %vm1201 = vcmp.lt.s32.totalorder %v1200, 0
        %v1202 = vsub.s32 0, %v1200
        %v1203 = vsel %vm1201, %v1202, %v1200
        %v1204 = vclz %v1203
        %v1205 = vsub.s32 %v1204, 2
        %vm1206 = vcmp.gt.s32.totalorder 0, %v1205
        %v1207 = vsel %vm1206, 0, %v1205
        %v1208 = vsub.s32 32, %v1207
        %v1209 = vshll.u32 %v1200, %v1207
        %v1210 = vshrl.u32 %v1192, %v1208
        %v1211 = vor.u32 %v1209, %v1210
        %v1212 = vsub.s32 4294967266, %v1207
        %v1213 = vadd.s32 %v1212, 127
        %v1214 = vshll.u32 %v1213, 23
        %v1215 = vor.u32 4788187, %v1214
        %v1216 = vand.u32 2147483647, %v1215
        %v1218 = vcvt.s32.f32 %v1211
        %v1219 = vmul.f32 %v1218, %v1216
        %v1220 = vxor.u32 %v1219, 2147483648
        %v1221 = vsel %vm1138, %v1220, %v1219
        %v1222 = vsub.s32 4, %v1198
        %v1223 = vsel %vm1138, %v1222, %v1198
        %v1224 = vsel %vm1137, %v388, %v1221
        %v1225 = vsel %vm1137, 0, %v1223
        %v1226 = vcosq.f32.pop %v1224
        %v1227 = vsinq.f32.pop %v1224
        %vm1228 = vweird.f32 %v388
        %v1229 = vand.u32 %v1225, 3
        %vm1230 = vcmp.lt.s32.totalorder %v1229, 2
        %vm1231 = vcmp.eq.s32.totalorder %v1229, 0
        %v1232 = vxor.u32 %v1227, 2147483648
        %v1233 = vsel %vm1231, %v1226, %v1232
        %vm1234 = vcmp.eq.s32.totalorder %v1229, 2
        %v1235 = vxor.u32 %v1226, 2147483648
        %v1236 = vsel %vm1234, %v1235, %v1227
        %v1237 = vsel %vm1230, %v1233, %v1236
        %v1238 = vsel %vm1228, nan, %v1237
        %v1239 = vand.u32 2147483647, %v389
        %vm1240 = vcmp.le.f32.partialorder %v1239, 0.7853982
        %vm1241 = vcmp.lt.s32.totalorder %v389, 0
        %v1242 = vand.u32 %v389, 2139095040
        %v1243 = vshrl.u32 %v1242, 23
        %v1244 = vsub.s32 %v1243, 127
        %v1245 = vand.u32 2147483647, %v389
        %v1246 = vand.u32 %v1245, 8388607
        %v1247 = vor.u32 %v1246, 8388608
        %v1248 = vsub.s32 0, %v1247
        %v1249 = vadd.s32 %v1244, 1
        %vm1250 = vcmp.gt.s32.totalorder %v1249, 0
        %v1251 = vsel %vm1250, %v1249, 0
        %v1252 = vshrl.u32 %v1251, 5
        %v1253 = vand.u32 %v1251, 31
        %v1254 = vsub.s32 32, %v1253
        %v1255 = vshrl.u32 683565275, %v1254
        %v1256 = vshll.u32 683565275, %v1253
        %v1257 = vshrl.u32 2475754826, %v1254
        %v1258 = vor.u32 %v1256, %v1257
        %v1259 = vshll.u32 2475754826, %v1253
        %v1260 = vshrl.u32 2131351028, %v1254
        %v1261 = vor.u32 %v1259, %v1260
        %v1262 = vshll.u32 2131351028, %v1253
        %v1263 = vshrl.u32 2102212464, %v1254
        %v1264 = vor.u32 %v1262, %v1263
        %v1265 = vshll.u32 2102212464, %v1253
        %v1266 = vshrl.u32 920167782, %v1254
        %v1267 = vor.u32 %v1265, %v1266
        %v1268 = vshll.u32 920167782, %v1253
        %v1269 = vshrl.u32 1326507024, %v1254
        %v1270 = vor.u32 %v1268, %v1269
        %vm1271 = vcmp.lt.s32.totalorder %v1252, 1
        %vm1272 = vcmp.lt.s32.totalorder %v1252, 2
        %vm1273 = vcmp.lt.s32.totalorder %v1252, 3
        %vm1274 = vcmp.lt.s32.totalorder %v1252, 4
        %v1275 = vsel %vm1271, %v1255, %v1258
        %v1276 = vsel %vm1274, %v1264, 2102212464
        %v1277 = vsel %vm1273, %v1261, %v1276
        %v1278 = vsel %vm1272, %v1275, %v1277
        %v1279 = vsel %vm1271, %v1258, %v1261
        %v1280 = vsel %vm1274, %v1267, 920167782
        %v1281 = vsel %vm1273, %v1264, %v1280
        %v1282 = vsel %vm1272, %v1279, %v1281
        %v1283 = vsel %vm1271, %v1261, %v1264
        %v1284 = vsel %vm1274, %v1270, 1326507024
        %v1285 = vsel %vm1273, %v1267, %v1284
        %v1286 = vsel %vm1272, %v1283, %v1285
        %v1287 = vshll.u32 %v1247, 8
        %v1288 = vmul.u32.u64.compose %v1287, %v1286
        %v1289 = vextract.low.u32 %v1288
        %v1290 = vextract.high.u32 %v1288
        %v1291 = vmul.u32.u64.compose %v1287, %v1282
        %v1292 = vextract.low.u32 %v1291
        %v1293 = vextract.high.u32 %v1291
        %v1294 = vmul.u32 %v1287, %v1278
        %v1295 = vadd.s32 %v1290, %v1292
        %vm1296 = vc.u32 %v1290, %v1292
        %v1297 = vadd.s32 %v1293, 1
        %v1298 = vsel %vm1296, %v1297, %v1293
        %v1299 = vadd.s32 %v1294, %v1298
        %v1300 = vadd.s32 %v1299, 536870912
        %v1301 = vshrl.u32 %v1300, 30
        %v1302 = vshll.u32 %v1301, 30
        %v1303 = vsub.s32 %v1299, %v1302
        %vm1304 = vcmp.lt.s32.totalorder %v1303, 0
        %v1305 = vsub.s32 0, %v1303
        %v1306 = vsel %vm1304, %v1305, %v1303
        %v1307 = vclz %v1306
        %v1308 = vsub.s32 %v1307, 2
        %vm1309 = vcmp.gt.s32.totalorder 0, %v1308
        %v1310 = vsel %vm1309, 0, %v1308
        %v1311 = vsub.s32 32, %v1310
        %v1312 = vshll.u32 %v1303, %v1310
        %v1313 = vshrl.u32 %v1295, %v1311
        %v1314 = vor.u32 %v1312, %v1313
        %v1315 = vsub.s32 4294967266, %v1310
        %v1316 = vadd.s32 %v1315, 127
        %v1317 = vshll.u32 %v1316, 23
        %v1318 = vor.u32 4788187, %v1317
        %v1319 = vand.u32 2147483647, %v1318
        %v1321 = vcvt.s32.f32 %v1314
        %v1322 = vmul.f32 %v1321, %v1319
        %v1323 = vxor.u32 %v1322, 2147483648
        %v1324 = vsel %vm1241, %v1323, %v1322
        %v1325 = vsub.s32 4, %v1301
        %v1326 = vsel %vm1241, %v1325, %v1301
        %v1327 = vsel %vm1240, %v389, %v1324
        %v1328 = vsel %vm1240, 0, %v1326
        %v1329 = vcosq.f32.pop %v1327
        %v1330 = vsinq.f32.pop %v1327
        %vm1331 = vweird.f32 %v389
        %v1332 = vand.u32 %v1328, 3
        %vm1333 = vcmp.lt.s32.totalorder %v1332, 2
        %vm1334 = vcmp.eq.s32.totalorder %v1332, 0
        %v1335 = vxor.u32 %v1330, 2147483648
        %v1336 = vsel %vm1334, %v1329, %v1335
        %vm1337 = vcmp.eq.s32.totalorder %v1332, 2
        %v1338 = vxor.u32 %v1329, 2147483648
        %v1339 = vsel %vm1337, %v1338, %v1330
        %v1340 = vsel %vm1333, %v1336, %v1339
        %v1341 = vsel %vm1331, nan, %v1340
        %v1342 = vand.u32 2147483647, %v390
        %vm1343 = vcmp.le.f32.partialorder %v1342, 0.7853982
        %vm1344 = vcmp.lt.s32.totalorder %v390, 0
        %v1345 = vand.u32 %v390, 2139095040
        %v1346 = vshrl.u32 %v1345, 23
        %v1347 = vsub.s32 %v1346, 127
        %v1348 = vand.u32 2147483647, %v390
        %v1349 = vand.u32 %v1348, 8388607
        %v1350 = vor.u32 %v1349, 8388608
        %v1351 = vsub.s32 0, %v1350
        %v1352 = vadd.s32 %v1347, 1
        %vm1353 = vcmp.gt.s32.totalorder %v1352, 0
        %v1354 = vsel %vm1353, %v1352, 0
        %v1355 = vshrl.u32 %v1354, 5
        %v1356 = vand.u32 %v1354, 31
        %v1357 = vsub.s32 32, %v1356
        %v1358 = vshrl.u32 683565275, %v1357
        %v1359 = vshll.u32 683565275, %v1356
        %v1360 = vshrl.u32 2475754826, %v1357
        %v1361 = vor.u32 %v1359, %v1360
        %v1362 = vshll.u32 2475754826, %v1356
        %v1363 = vshrl.u32 2131351028, %v1357
        %v1364 = vor.u32 %v1362, %v1363
        %v1365 = vshll.u32 2131351028, %v1356
        %v1366 = vshrl.u32 2102212464, %v1357
        %v1367 = vor.u32 %v1365, %v1366
        %v1368 = vshll.u32 2102212464, %v1356
        %v1369 = vshrl.u32 920167782, %v1357
        %v1370 = vor.u32 %v1368, %v1369
        %v1371 = vshll.u32 920167782, %v1356
        %v1372 = vshrl.u32 1326507024, %v1357
        %v1373 = vor.u32 %v1371, %v1372
        %vm1374 = vcmp.lt.s32.totalorder %v1355, 1
        %vm1375 = vcmp.lt.s32.totalorder %v1355, 2
        %vm1376 = vcmp.lt.s32.totalorder %v1355, 3
        %vm1377 = vcmp.lt.s32.totalorder %v1355, 4
        %v1378 = vsel %vm1374, %v1358, %v1361
        %v1379 = vsel %vm1377, %v1367, 2102212464
        %v1380 = vsel %vm1376, %v1364, %v1379
        %v1381 = vsel %vm1375, %v1378, %v1380
        %v1382 = vsel %vm1374, %v1361, %v1364
        %v1383 = vsel %vm1377, %v1370, 920167782
        %v1384 = vsel %vm1376, %v1367, %v1383
        %v1385 = vsel %vm1375, %v1382, %v1384
        %v1386 = vsel %vm1374, %v1364, %v1367
        %v1387 = vsel %vm1377, %v1373, 1326507024
        %v1388 = vsel %vm1376, %v1370, %v1387
        %v1389 = vsel %vm1375, %v1386, %v1388
        %v1390 = vshll.u32 %v1350, 8
        %v1391 = vmul.u32.u64.compose %v1390, %v1389
        %v1392 = vextract.low.u32 %v1391
        %v1393 = vextract.high.u32 %v1391
        %v1394 = vmul.u32.u64.compose %v1390, %v1385
        %v1395 = vextract.low.u32 %v1394
        %v1396 = vextract.high.u32 %v1394
        %v1397 = vmul.u32 %v1390, %v1381
        %v1398 = vadd.s32 %v1393, %v1395
        %vm1399 = vc.u32 %v1393, %v1395
        %v1400 = vadd.s32 %v1396, 1
        %v1401 = vsel %vm1399, %v1400, %v1396
        %v1402 = vadd.s32 %v1397, %v1401
        %v1403 = vadd.s32 %v1402, 536870912
        %v1404 = vshrl.u32 %v1403, 30
        %v1405 = vshll.u32 %v1404, 30
        %v1406 = vsub.s32 %v1402, %v1405
        %vm1407 = vcmp.lt.s32.totalorder %v1406, 0
        %v1408 = vsub.s32 0, %v1406
        %v1409 = vsel %vm1407, %v1408, %v1406
        %v1410 = vclz %v1409
        %v1411 = vsub.s32 %v1410, 2
        %vm1412 = vcmp.gt.s32.totalorder 0, %v1411
        %v1413 = vsel %vm1412, 0, %v1411
        %v1414 = vsub.s32 32, %v1413
        %v1415 = vshll.u32 %v1406, %v1413
        %v1416 = vshrl.u32 %v1398, %v1414
        %v1417 = vor.u32 %v1415, %v1416
        %v1418 = vsub.s32 4294967266, %v1413
        %v1419 = vadd.s32 %v1418, 127
        %v1420 = vshll.u32 %v1419, 23
        %v1421 = vor.u32 4788187, %v1420
        %v1422 = vand.u32 2147483647, %v1421
        %v1424 = vcvt.s32.f32 %v1417
        %v1425 = vmul.f32 %v1424, %v1422
        %v1426 = vxor.u32 %v1425, 2147483648
        %v1427 = vsel %vm1344, %v1426, %v1425
        %v1428 = vsub.s32 4, %v1404
        %v1429 = vsel %vm1344, %v1428, %v1404
        %v1430 = vsel %vm1343, %v390, %v1427
        %v1431 = vsel %vm1343, 0, %v1429
        %v1432 = vcosq.f32.pop %v1430
        %v1433 = vsinq.f32.pop %v1430
        %vm1434 = vweird.f32 %v390
        %v1435 = vand.u32 %v1431, 3
        %vm1436 = vcmp.lt.s32.totalorder %v1435, 2
        %vm1437 = vcmp.eq.s32.totalorder %v1435, 0
        %v1438 = vxor.u32 %v1433, 2147483648
        %v1439 = vsel %vm1437, %v1432, %v1438
        %vm1440 = vcmp.eq.s32.totalorder %v1435, 2
        %v1441 = vxor.u32 %v1432, 2147483648
        %v1442 = vsel %vm1440, %v1441, %v1433
        %v1443 = vsel %vm1436, %v1439, %v1442
        %v1444 = vsel %vm1434, nan, %v1443
        %v1445 = vand.u32 2147483647, %v391
        %vm1446 = vcmp.le.f32.partialorder %v1445, 0.7853982
        %vm1447 = vcmp.lt.s32.totalorder %v391, 0
        %v1448 = vand.u32 %v391, 2139095040
        %v1449 = vshrl.u32 %v1448, 23
        %v1450 = vsub.s32 %v1449, 127
        %v1451 = vand.u32 2147483647, %v391
        %v1452 = vand.u32 %v1451, 8388607
        %v1453 = vor.u32 %v1452, 8388608
        %v1454 = vsub.s32 0, %v1453
        %v1455 = vadd.s32 %v1450, 1
        %vm1456 = vcmp.gt.s32.totalorder %v1455, 0
        %v1457 = vsel %vm1456, %v1455, 0
        %v1458 = vshrl.u32 %v1457, 5
        %v1459 = vand.u32 %v1457, 31
        %v1460 = vsub.s32 32, %v1459
        %v1461 = vshrl.u32 683565275, %v1460
        %v1462 = vshll.u32 683565275, %v1459
        %v1463 = vshrl.u32 2475754826, %v1460
        %v1464 = vor.u32 %v1462, %v1463
        %v1465 = vshll.u32 2475754826, %v1459
        %v1466 = vshrl.u32 2131351028, %v1460
        %v1467 = vor.u32 %v1465, %v1466
        %v1468 = vshll.u32 2131351028, %v1459
        %v1469 = vshrl.u32 2102212464, %v1460
        %v1470 = vor.u32 %v1468, %v1469
        %v1471 = vshll.u32 2102212464, %v1459
        %v1472 = vshrl.u32 920167782, %v1460
        %v1473 = vor.u32 %v1471, %v1472
        %v1474 = vshll.u32 920167782, %v1459
        %v1475 = vshrl.u32 1326507024, %v1460
        %v1476 = vor.u32 %v1474, %v1475
        %vm1477 = vcmp.lt.s32.totalorder %v1458, 1
        %vm1478 = vcmp.lt.s32.totalorder %v1458, 2
        %vm1479 = vcmp.lt.s32.totalorder %v1458, 3
        %vm1480 = vcmp.lt.s32.totalorder %v1458, 4
        %v1481 = vsel %vm1477, %v1461, %v1464
        %v1482 = vsel %vm1480, %v1470, 2102212464
        %v1483 = vsel %vm1479, %v1467, %v1482
        %v1484 = vsel %vm1478, %v1481, %v1483
        %v1485 = vsel %vm1477, %v1464, %v1467
        %v1486 = vsel %vm1480, %v1473, 920167782
        %v1487 = vsel %vm1479, %v1470, %v1486
        %v1488 = vsel %vm1478, %v1485, %v1487
        %v1489 = vsel %vm1477, %v1467, %v1470
        %v1490 = vsel %vm1480, %v1476, 1326507024
        %v1491 = vsel %vm1479, %v1473, %v1490
        %v1492 = vsel %vm1478, %v1489, %v1491
        %v1493 = vshll.u32 %v1453, 8
        %v1494 = vmul.u32.u64.compose %v1493, %v1492
        %v1495 = vextract.low.u32 %v1494
        %v1496 = vextract.high.u32 %v1494
        %v1497 = vmul.u32.u64.compose %v1493, %v1488
        %v1498 = vextract.low.u32 %v1497
        %v1499 = vextract.high.u32 %v1497
        %v1500 = vmul.u32 %v1493, %v1484
        %v1501 = vadd.s32 %v1496, %v1498
        %vm1502 = vc.u32 %v1496, %v1498
        %v1503 = vadd.s32 %v1499, 1
        %v1504 = vsel %vm1502, %v1503, %v1499
        %v1505 = vadd.s32 %v1500, %v1504
        %v1506 = vadd.s32 %v1505, 536870912
        %v1507 = vshrl.u32 %v1506, 30
        %v1508 = vshll.u32 %v1507, 30
        %v1509 = vsub.s32 %v1505, %v1508
        %vm1510 = vcmp.lt.s32.totalorder %v1509, 0
        %v1511 = vsub.s32 0, %v1509
        %v1512 = vsel %vm1510, %v1511, %v1509
        %v1513 = vclz %v1512
        %v1514 = vsub.s32 %v1513, 2
        %vm1515 = vcmp.gt.s32.totalorder 0, %v1514
        %v1516 = vsel %vm1515, 0, %v1514
        %v1517 = vsub.s32 32, %v1516
        %v1518 = vshll.u32 %v1509, %v1516
        %v1519 = vshrl.u32 %v1501, %v1517
        %v1520 = vor.u32 %v1518, %v1519
        %v1521 = vsub.s32 4294967266, %v1516
        %v1522 = vadd.s32 %v1521, 127
        %v1523 = vshll.u32 %v1522, 23
        %v1524 = vor.u32 4788187, %v1523
        %v1525 = vand.u32 2147483647, %v1524
        %v1527 = vcvt.s32.f32 %v1520
        %v1528 = vmul.f32 %v1527, %v1525
        %v1529 = vxor.u32 %v1528, 2147483648
        %v1530 = vsel %vm1447, %v1529, %v1528
        %v1531 = vsub.s32 4, %v1507
        %v1532 = vsel %vm1447, %v1531, %v1507
        %v1533 = vsel %vm1446, %v391, %v1530
        %v1534 = vsel %vm1446, 0, %v1532
        %v1535 = vcosq.f32.pop %v1533
        %v1536 = vsinq.f32.pop %v1533
        %vm1537 = vweird.f32 %v391
        %v1538 = vand.u32 %v1534, 3
        %vm1539 = vcmp.lt.s32.totalorder %v1538, 2
        %vm1540 = vcmp.eq.s32.totalorder %v1538, 0
        %v1541 = vxor.u32 %v1536, 2147483648
        %v1542 = vsel %vm1540, %v1535, %v1541
        %vm1543 = vcmp.eq.s32.totalorder %v1538, 2
        %v1544 = vxor.u32 %v1535, 2147483648
        %v1545 = vsel %vm1543, %v1544, %v1536
        %v1546 = vsel %vm1539, %v1542, %v1545
        %v1547 = vsel %vm1537, nan, %v1546
        %v1548 = vand.u32 2147483647, %v392
        %vm1549 = vcmp.le.f32.partialorder %v1548, 0.7853982
        %vm1550 = vcmp.lt.s32.totalorder %v392, 0
        %v1551 = vand.u32 %v392, 2139095040
        %v1552 = vshrl.u32 %v1551, 23
        %v1553 = vsub.s32 %v1552, 127
        %v1554 = vand.u32 2147483647, %v392
        %v1555 = vand.u32 %v1554, 8388607
        %v1556 = vor.u32 %v1555, 8388608
        %v1557 = vsub.s32 0, %v1556
        %v1558 = vadd.s32 %v1553, 1
        %vm1559 = vcmp.gt.s32.totalorder %v1558, 0
        %v1560 = vsel %vm1559, %v1558, 0
        %v1561 = vshrl.u32 %v1560, 5
        %v1562 = vand.u32 %v1560, 31
        %v1563 = vsub.s32 32, %v1562
        %v1564 = vshrl.u32 683565275, %v1563
        %v1565 = vshll.u32 683565275, %v1562
        %v1566 = vshrl.u32 2475754826, %v1563
        %v1567 = vor.u32 %v1565, %v1566
        %v1568 = vshll.u32 2475754826, %v1562
        %v1569 = vshrl.u32 2131351028, %v1563
        %v1570 = vor.u32 %v1568, %v1569
        %v1571 = vshll.u32 2131351028, %v1562
        %v1572 = vshrl.u32 2102212464, %v1563
        %v1573 = vor.u32 %v1571, %v1572
        %v1574 = vshll.u32 2102212464, %v1562
        %v1575 = vshrl.u32 920167782, %v1563
        %v1576 = vor.u32 %v1574, %v1575
        %v1577 = vshll.u32 920167782, %v1562
        %v1578 = vshrl.u32 1326507024, %v1563
        %v1579 = vor.u32 %v1577, %v1578
        %vm1580 = vcmp.lt.s32.totalorder %v1561, 1
        %vm1581 = vcmp.lt.s32.totalorder %v1561, 2
        %vm1582 = vcmp.lt.s32.totalorder %v1561, 3
        %vm1583 = vcmp.lt.s32.totalorder %v1561, 4
        %v1584 = vsel %vm1580, %v1564, %v1567
        %v1585 = vsel %vm1583, %v1573, 2102212464
        %v1586 = vsel %vm1582, %v1570, %v1585
        %v1587 = vsel %vm1581, %v1584, %v1586
        %v1588 = vsel %vm1580, %v1567, %v1570
        %v1589 = vsel %vm1583, %v1576, 920167782
        %v1590 = vsel %vm1582, %v1573, %v1589
        %v1591 = vsel %vm1581, %v1588, %v1590
        %v1592 = vsel %vm1580, %v1570, %v1573
        %v1593 = vsel %vm1583, %v1579, 1326507024
        %v1594 = vsel %vm1582, %v1576, %v1593
        %v1595 = vsel %vm1581, %v1592, %v1594
        %v1596 = vshll.u32 %v1556, 8
        %v1597 = vmul.u32.u64.compose %v1596, %v1595
        %v1598 = vextract.low.u32 %v1597
        %v1599 = vextract.high.u32 %v1597
        %v1600 = vmul.u32.u64.compose %v1596, %v1591
        %v1601 = vextract.low.u32 %v1600
        %v1602 = vextract.high.u32 %v1600
        %v1603 = vmul.u32 %v1596, %v1587
        %v1604 = vadd.s32 %v1599, %v1601
        %vm1605 = vc.u32 %v1599, %v1601
        %v1606 = vadd.s32 %v1602, 1
        %v1607 = vsel %vm1605, %v1606, %v1602
        %v1608 = vadd.s32 %v1603, %v1607
        %v1609 = vadd.s32 %v1608, 536870912
        %v1610 = vshrl.u32 %v1609, 30
        %v1611 = vshll.u32 %v1610, 30
        %v1612 = vsub.s32 %v1608, %v1611
        %vm1613 = vcmp.lt.s32.totalorder %v1612, 0
        %v1614 = vsub.s32 0, %v1612
        %v1615 = vsel %vm1613, %v1614, %v1612
        %v1616 = vclz %v1615
        %v1617 = vsub.s32 %v1616, 2
        %vm1618 = vcmp.gt.s32.totalorder 0, %v1617
        %v1619 = vsel %vm1618, 0, %v1617
        %v1620 = vsub.s32 32, %v1619
        %v1621 = vshll.u32 %v1612, %v1619
        %v1622 = vshrl.u32 %v1604, %v1620
        %v1623 = vor.u32 %v1621, %v1622
        %v1624 = vsub.s32 4294967266, %v1619
        %v1625 = vadd.s32 %v1624, 127
        %v1626 = vshll.u32 %v1625, 23
        %v1627 = vor.u32 4788187, %v1626
        %v1628 = vand.u32 2147483647, %v1627
        %v1630 = vcvt.s32.f32 %v1623
        %v1631 = vmul.f32 %v1630, %v1628
        %v1632 = vxor.u32 %v1631, 2147483648
        %v1633 = vsel %vm1550, %v1632, %v1631
        %v1634 = vsub.s32 4, %v1610
        %v1635 = vsel %vm1550, %v1634, %v1610
        %v1636 = vsel %vm1549, %v392, %v1633
        %v1637 = vsel %vm1549, 0, %v1635
        %v1638 = vcosq.f32.pop %v1636
        %v1639 = vsinq.f32.pop %v1636
        %vm1640 = vweird.f32 %v392
        %v1641 = vand.u32 %v1637, 3
        %vm1642 = vcmp.lt.s32.totalorder %v1641, 2
        %vm1643 = vcmp.eq.s32.totalorder %v1641, 0
        %v1644 = vxor.u32 %v1639, 2147483648
        %v1645 = vsel %vm1643, %v1638, %v1644
        %vm1646 = vcmp.eq.s32.totalorder %v1641, 2
        %v1647 = vxor.u32 %v1638, 2147483648
        %v1648 = vsel %vm1646, %v1647, %v1639
        %v1649 = vsel %vm1642, %v1645, %v1648
        %v1650 = vsel %vm1640, nan, %v1649
        %v1651 = vand.u32 2147483647, %v393
        %vm1652 = vcmp.le.f32.partialorder %v1651, 0.7853982
        %vm1653 = vcmp.lt.s32.totalorder %v393, 0
        %v1654 = vand.u32 %v393, 2139095040
        %v1655 = vshrl.u32 %v1654, 23
        %v1656 = vsub.s32 %v1655, 127
        %v1657 = vand.u32 2147483647, %v393
        %v1658 = vand.u32 %v1657, 8388607
        %v1659 = vor.u32 %v1658, 8388608
        %v1660 = vsub.s32 0, %v1659
        %v1661 = vadd.s32 %v1656, 1
        %vm1662 = vcmp.gt.s32.totalorder %v1661, 0
        %v1663 = vsel %vm1662, %v1661, 0
        %v1664 = vshrl.u32 %v1663, 5
        %v1665 = vand.u32 %v1663, 31
        %v1666 = vsub.s32 32, %v1665
        %v1667 = vshrl.u32 683565275, %v1666
        %v1668 = vshll.u32 683565275, %v1665
        %v1669 = vshrl.u32 2475754826, %v1666
        %v1670 = vor.u32 %v1668, %v1669
        %v1671 = vshll.u32 2475754826, %v1665
        %v1672 = vshrl.u32 2131351028, %v1666
        %v1673 = vor.u32 %v1671, %v1672
        %v1674 = vshll.u32 2131351028, %v1665
        %v1675 = vshrl.u32 2102212464, %v1666
        %v1676 = vor.u32 %v1674, %v1675
        %v1677 = vshll.u32 2102212464, %v1665
        %v1678 = vshrl.u32 920167782, %v1666
        %v1679 = vor.u32 %v1677, %v1678
        %v1680 = vshll.u32 920167782, %v1665
        %v1681 = vshrl.u32 1326507024, %v1666
        %v1682 = vor.u32 %v1680, %v1681
        %vm1683 = vcmp.lt.s32.totalorder %v1664, 1
        %vm1684 = vcmp.lt.s32.totalorder %v1664, 2
        %vm1685 = vcmp.lt.s32.totalorder %v1664, 3
        %vm1686 = vcmp.lt.s32.totalorder %v1664, 4
        %v1687 = vsel %vm1683, %v1667, %v1670
        %v1688 = vsel %vm1686, %v1676, 2102212464
        %v1689 = vsel %vm1685, %v1673, %v1688
        %v1690 = vsel %vm1684, %v1687, %v1689
        %v1691 = vsel %vm1683, %v1670, %v1673
        %v1692 = vsel %vm1686, %v1679, 920167782
        %v1693 = vsel %vm1685, %v1676, %v1692
        %v1694 = vsel %vm1684, %v1691, %v1693
        %v1695 = vsel %vm1683, %v1673, %v1676
        %v1696 = vsel %vm1686, %v1682, 1326507024
        %v1697 = vsel %vm1685, %v1679, %v1696
        %v1698 = vsel %vm1684, %v1695, %v1697
        %v1699 = vshll.u32 %v1659, 8
        %v1700 = vmul.u32.u64.compose %v1699, %v1698
        %v1701 = vextract.low.u32 %v1700
        %v1702 = vextract.high.u32 %v1700
        %v1703 = vmul.u32.u64.compose %v1699, %v1694
        %v1704 = vextract.low.u32 %v1703
        %v1705 = vextract.high.u32 %v1703
        %v1706 = vmul.u32 %v1699, %v1690
        %v1707 = vadd.s32 %v1702, %v1704
        %vm1708 = vc.u32 %v1702, %v1704
        %v1709 = vadd.s32 %v1705, 1
        %v1710 = vsel %vm1708, %v1709, %v1705
        %v1711 = vadd.s32 %v1706, %v1710
        %v1712 = vadd.s32 %v1711, 536870912
        %v1713 = vshrl.u32 %v1712, 30
        %v1714 = vshll.u32 %v1713, 30
        %v1715 = vsub.s32 %v1711, %v1714
        %vm1716 = vcmp.lt.s32.totalorder %v1715, 0
        %v1717 = vsub.s32 0, %v1715
        %v1718 = vsel %vm1716, %v1717, %v1715
        %v1719 = vclz %v1718
        %v1720 = vsub.s32 %v1719, 2
        %vm1721 = vcmp.gt.s32.totalorder 0, %v1720
        %v1722 = vsel %vm1721, 0, %v1720
        %v1723 = vsub.s32 32, %v1722
        %v1724 = vshll.u32 %v1715, %v1722
        %v1725 = vshrl.u32 %v1707, %v1723
        %v1726 = vor.u32 %v1724, %v1725
        %v1727 = vsub.s32 4294967266, %v1722
        %v1728 = vadd.s32 %v1727, 127
        %v1729 = vshll.u32 %v1728, 23
        %v1730 = vor.u32 4788187, %v1729
        %v1731 = vand.u32 2147483647, %v1730
        %v1733 = vcvt.s32.f32 %v1726
        %v1734 = vmul.f32 %v1733, %v1731
        %v1735 = vxor.u32 %v1734, 2147483648
        %v1736 = vsel %vm1653, %v1735, %v1734
        %v1737 = vsub.s32 4, %v1713
        %v1738 = vsel %vm1653, %v1737, %v1713
        %v1739 = vsel %vm1652, %v393, %v1736
        %v1740 = vsel %vm1652, 0, %v1738
        %v1741 = vcosq.f32.pop %v1739
        %v1742 = vsinq.f32.pop %v1739
        %vm1743 = vweird.f32 %v393
        %v1744 = vand.u32 %v1740, 3
        %vm1745 = vcmp.lt.s32.totalorder %v1744, 2
        %vm1746 = vcmp.eq.s32.totalorder %v1744, 0
        %v1747 = vxor.u32 %v1742, 2147483648
        %v1748 = vsel %vm1746, %v1741, %v1747
        %vm1749 = vcmp.eq.s32.totalorder %v1744, 2
        %v1750 = vxor.u32 %v1741, 2147483648
        %v1751 = vsel %vm1749, %v1750, %v1742
        %v1752 = vsel %vm1745, %v1748, %v1751
        %v1753 = vsel %vm1743, nan, %v1752
        %v1754 = vand.u32 2147483647, %v394
        %vm1755 = vcmp.le.f32.partialorder %v1754, 0.7853982
        %vm1756 = vcmp.lt.s32.totalorder %v394, 0
        %v1757 = vand.u32 %v394, 2139095040
        %v1758 = vshrl.u32 %v1757, 23
        %v1759 = vsub.s32 %v1758, 127
        %v1760 = vand.u32 2147483647, %v394
        %v1761 = vand.u32 %v1760, 8388607
        %v1762 = vor.u32 %v1761, 8388608
        %v1763 = vsub.s32 0, %v1762
        %v1764 = vadd.s32 %v1759, 1
        %vm1765 = vcmp.gt.s32.totalorder %v1764, 0
        %v1766 = vsel %vm1765, %v1764, 0
        %v1767 = vshrl.u32 %v1766, 5
        %v1768 = vand.u32 %v1766, 31
        %v1769 = vsub.s32 32, %v1768
        %v1770 = vshrl.u32 683565275, %v1769
        %v1771 = vshll.u32 683565275, %v1768
        %v1772 = vshrl.u32 2475754826, %v1769
        %v1773 = vor.u32 %v1771, %v1772
        %v1774 = vshll.u32 2475754826, %v1768
        %v1775 = vshrl.u32 2131351028, %v1769
        %v1776 = vor.u32 %v1774, %v1775
        %v1777 = vshll.u32 2131351028, %v1768
        %v1778 = vshrl.u32 2102212464, %v1769
        %v1779 = vor.u32 %v1777, %v1778
        %v1780 = vshll.u32 2102212464, %v1768
        %v1781 = vshrl.u32 920167782, %v1769
        %v1782 = vor.u32 %v1780, %v1781
        %v1783 = vshll.u32 920167782, %v1768
        %v1784 = vshrl.u32 1326507024, %v1769
        %v1785 = vor.u32 %v1783, %v1784
        %vm1786 = vcmp.lt.s32.totalorder %v1767, 1
        %vm1787 = vcmp.lt.s32.totalorder %v1767, 2
        %vm1788 = vcmp.lt.s32.totalorder %v1767, 3
        %vm1789 = vcmp.lt.s32.totalorder %v1767, 4
        %v1790 = vsel %vm1786, %v1770, %v1773
        %v1791 = vsel %vm1789, %v1779, 2102212464
        %v1792 = vsel %vm1788, %v1776, %v1791
        %v1793 = vsel %vm1787, %v1790, %v1792
        %v1794 = vsel %vm1786, %v1773, %v1776
        %v1795 = vsel %vm1789, %v1782, 920167782
        %v1796 = vsel %vm1788, %v1779, %v1795
        %v1797 = vsel %vm1787, %v1794, %v1796
        %v1798 = vsel %vm1786, %v1776, %v1779
        %v1799 = vsel %vm1789, %v1785, 1326507024
        %v1800 = vsel %vm1788, %v1782, %v1799
        %v1801 = vsel %vm1787, %v1798, %v1800
        %v1802 = vshll.u32 %v1762, 8
        %v1803 = vmul.u32.u64.compose %v1802, %v1801
        %v1804 = vextract.low.u32 %v1803
        %v1805 = vextract.high.u32 %v1803
        %v1806 = vmul.u32.u64.compose %v1802, %v1797
        %v1807 = vextract.low.u32 %v1806
        %v1808 = vextract.high.u32 %v1806
        %v1809 = vmul.u32 %v1802, %v1793
        %v1810 = vadd.s32 %v1805, %v1807
        %vm1811 = vc.u32 %v1805, %v1807
        %v1812 = vadd.s32 %v1808, 1
        %v1813 = vsel %vm1811, %v1812, %v1808
        %v1814 = vadd.s32 %v1809, %v1813
        %v1815 = vadd.s32 %v1814, 536870912
        %v1816 = vshrl.u32 %v1815, 30
        %v1817 = vshll.u32 %v1816, 30
        %v1818 = vsub.s32 %v1814, %v1817
        %vm1819 = vcmp.lt.s32.totalorder %v1818, 0
        %v1820 = vsub.s32 0, %v1818
        %v1821 = vsel %vm1819, %v1820, %v1818
        %v1822 = vclz %v1821
        %v1823 = vsub.s32 %v1822, 2
        %vm1824 = vcmp.gt.s32.totalorder 0, %v1823
        %v1825 = vsel %vm1824, 0, %v1823
        %v1826 = vsub.s32 32, %v1825
        %v1827 = vshll.u32 %v1818, %v1825
        %v1828 = vshrl.u32 %v1810, %v1826
        %v1829 = vor.u32 %v1827, %v1828
        %v1830 = vsub.s32 4294967266, %v1825
        %v1831 = vadd.s32 %v1830, 127
        %v1832 = vshll.u32 %v1831, 23
        %v1833 = vor.u32 4788187, %v1832
        %v1834 = vand.u32 2147483647, %v1833
        %v1836 = vcvt.s32.f32 %v1829
        %v1837 = vmul.f32 %v1836, %v1834
        %v1838 = vxor.u32 %v1837, 2147483648
        %v1839 = vsel %vm1756, %v1838, %v1837
        %v1840 = vsub.s32 4, %v1816
        %v1841 = vsel %vm1756, %v1840, %v1816
        %v1842 = vsel %vm1755, %v394, %v1839
        %v1843 = vsel %vm1755, 0, %v1841
        %v1844 = vcosq.f32.pop %v1842
        %v1845 = vsinq.f32.pop %v1842
        %vm1846 = vweird.f32 %v394
        %v1847 = vand.u32 %v1843, 3
        %vm1848 = vcmp.lt.s32.totalorder %v1847, 2
        %vm1849 = vcmp.eq.s32.totalorder %v1847, 0
        %v1850 = vxor.u32 %v1845, 2147483648
        %v1851 = vsel %vm1849, %v1844, %v1850
        %vm1852 = vcmp.eq.s32.totalorder %v1847, 2
        %v1853 = vxor.u32 %v1844, 2147483648
        %v1854 = vsel %vm1852, %v1853, %v1845
        %v1855 = vsel %vm1848, %v1851, %v1854
        %v1856 = vsel %vm1846, nan, %v1855
        %v1857 = vand.u32 2147483647, %v395
        %vm1858 = vcmp.le.f32.partialorder %v1857, 0.7853982
        %vm1859 = vcmp.lt.s32.totalorder %v395, 0
        %v1860 = vand.u32 %v395, 2139095040
        %v1861 = vshrl.u32 %v1860, 23
        %v1862 = vsub.s32 %v1861, 127
        %v1863 = vand.u32 2147483647, %v395
        %v1864 = vand.u32 %v1863, 8388607
        %v1865 = vor.u32 %v1864, 8388608
        %v1866 = vsub.s32 0, %v1865
        %v1867 = vadd.s32 %v1862, 1
        %vm1868 = vcmp.gt.s32.totalorder %v1867, 0
        %v1869 = vsel %vm1868, %v1867, 0
        %v1870 = vshrl.u32 %v1869, 5
        %v1871 = vand.u32 %v1869, 31
        %v1872 = vsub.s32 32, %v1871
        %v1873 = vshrl.u32 683565275, %v1872
        %v1874 = vshll.u32 683565275, %v1871
        %v1875 = vshrl.u32 2475754826, %v1872
        %v1876 = vor.u32 %v1874, %v1875
        %v1877 = vshll.u32 2475754826, %v1871
        %v1878 = vshrl.u32 2131351028, %v1872
        %v1879 = vor.u32 %v1877, %v1878
        %v1880 = vshll.u32 2131351028, %v1871
        %v1881 = vshrl.u32 2102212464, %v1872
        %v1882 = vor.u32 %v1880, %v1881
        %v1883 = vshll.u32 2102212464, %v1871
        %v1884 = vshrl.u32 920167782, %v1872
        %v1885 = vor.u32 %v1883, %v1884
        %v1886 = vshll.u32 920167782, %v1871
        %v1887 = vshrl.u32 1326507024, %v1872
        %v1888 = vor.u32 %v1886, %v1887
        %vm1889 = vcmp.lt.s32.totalorder %v1870, 1
        %vm1890 = vcmp.lt.s32.totalorder %v1870, 2
        %vm1891 = vcmp.lt.s32.totalorder %v1870, 3
        %vm1892 = vcmp.lt.s32.totalorder %v1870, 4
        %v1893 = vsel %vm1889, %v1873, %v1876
        %v1894 = vsel %vm1892, %v1882, 2102212464
        %v1895 = vsel %vm1891, %v1879, %v1894
        %v1896 = vsel %vm1890, %v1893, %v1895
        %v1897 = vsel %vm1889, %v1876, %v1879
        %v1898 = vsel %vm1892, %v1885, 920167782
        %v1899 = vsel %vm1891, %v1882, %v1898
        %v1900 = vsel %vm1890, %v1897, %v1899
        %v1901 = vsel %vm1889, %v1879, %v1882
        %v1902 = vsel %vm1892, %v1888, 1326507024
        %v1903 = vsel %vm1891, %v1885, %v1902
        %v1904 = vsel %vm1890, %v1901, %v1903
        %v1905 = vshll.u32 %v1865, 8
        %v1906 = vmul.u32.u64.compose %v1905, %v1904
        %v1907 = vextract.low.u32 %v1906
        %v1908 = vextract.high.u32 %v1906
        %v1909 = vmul.u32.u64.compose %v1905, %v1900
        %v1910 = vextract.low.u32 %v1909
        %v1911 = vextract.high.u32 %v1909
        %v1912 = vmul.u32 %v1905, %v1896
        %v1913 = vadd.s32 %v1908, %v1910
        %vm1914 = vc.u32 %v1908, %v1910
        %v1915 = vadd.s32 %v1911, 1
        %v1916 = vsel %vm1914, %v1915, %v1911
        %v1917 = vadd.s32 %v1912, %v1916
        %v1918 = vadd.s32 %v1917, 536870912
        %v1919 = vshrl.u32 %v1918, 30
        %v1920 = vshll.u32 %v1919, 30
        %v1921 = vsub.s32 %v1917, %v1920
        %vm1922 = vcmp.lt.s32.totalorder %v1921, 0
        %v1923 = vsub.s32 0, %v1921
        %v1924 = vsel %vm1922, %v1923, %v1921
        %v1925 = vclz %v1924
        %v1926 = vsub.s32 %v1925, 2
        %vm1927 = vcmp.gt.s32.totalorder 0, %v1926
        %v1928 = vsel %vm1927, 0, %v1926
        %v1929 = vsub.s32 32, %v1928
        %v1930 = vshll.u32 %v1921, %v1928
        %v1931 = vshrl.u32 %v1913, %v1929
        %v1932 = vor.u32 %v1930, %v1931
        %v1933 = vsub.s32 4294967266, %v1928
        %v1934 = vadd.s32 %v1933, 127
        %v1935 = vshll.u32 %v1934, 23
        %v1936 = vor.u32 4788187, %v1935
        %v1937 = vand.u32 2147483647, %v1936
        %v1939 = vcvt.s32.f32 %v1932
        %v1940 = vmul.f32 %v1939, %v1937
        %v1941 = vxor.u32 %v1940, 2147483648
        %v1942 = vsel %vm1859, %v1941, %v1940
        %v1943 = vsub.s32 4, %v1919
        %v1944 = vsel %vm1859, %v1943, %v1919
        %v1945 = vsel %vm1858, %v395, %v1942
        %v1946 = vsel %vm1858, 0, %v1944
        %v1947 = vcosq.f32.pop %v1945
        %v1948 = vsinq.f32.pop %v1945
        %vm1949 = vweird.f32 %v395
        %v1950 = vand.u32 %v1946, 3
        %vm1951 = vcmp.lt.s32.totalorder %v1950, 2
        %vm1952 = vcmp.eq.s32.totalorder %v1950, 0
        %v1953 = vxor.u32 %v1948, 2147483648
        %v1954 = vsel %vm1952, %v1947, %v1953
        %vm1955 = vcmp.eq.s32.totalorder %v1950, 2
        %v1956 = vxor.u32 %v1947, 2147483648
        %v1957 = vsel %vm1955, %v1956, %v1948
        %v1958 = vsel %vm1951, %v1954, %v1957
        %v1959 = vsel %vm1949, nan, %v1958
        %v1960 = vand.u32 2147483647, %v396
        %vm1961 = vcmp.le.f32.partialorder %v1960, 0.7853982
        %vm1962 = vcmp.lt.s32.totalorder %v396, 0
        %v1963 = vand.u32 %v396, 2139095040
        %v1964 = vshrl.u32 %v1963, 23
        %v1965 = vsub.s32 %v1964, 127
        %v1966 = vand.u32 2147483647, %v396
        %v1967 = vand.u32 %v1966, 8388607
        %v1968 = vor.u32 %v1967, 8388608
        %v1969 = vsub.s32 0, %v1968
        %v1970 = vadd.s32 %v1965, 1
        %vm1971 = vcmp.gt.s32.totalorder %v1970, 0
        %v1972 = vsel %vm1971, %v1970, 0
        %v1973 = vshrl.u32 %v1972, 5
        %v1974 = vand.u32 %v1972, 31
        %v1975 = vsub.s32 32, %v1974
        %v1976 = vshrl.u32 683565275, %v1975
        %v1977 = vshll.u32 683565275, %v1974
        %v1978 = vshrl.u32 2475754826, %v1975
        %v1979 = vor.u32 %v1977, %v1978
        %v1980 = vshll.u32 2475754826, %v1974
        %v1981 = vshrl.u32 2131351028, %v1975
        %v1982 = vor.u32 %v1980, %v1981
        %v1983 = vshll.u32 2131351028, %v1974
        %v1984 = vshrl.u32 2102212464, %v1975
        %v1985 = vor.u32 %v1983, %v1984
        %v1986 = vshll.u32 2102212464, %v1974
        %v1987 = vshrl.u32 920167782, %v1975
        %v1988 = vor.u32 %v1986, %v1987
        %v1989 = vshll.u32 920167782, %v1974
        %v1990 = vshrl.u32 1326507024, %v1975
        %v1991 = vor.u32 %v1989, %v1990
        %vm1992 = vcmp.lt.s32.totalorder %v1973, 1
        %vm1993 = vcmp.lt.s32.totalorder %v1973, 2
        %vm1994 = vcmp.lt.s32.totalorder %v1973, 3
        %vm1995 = vcmp.lt.s32.totalorder %v1973, 4
        %v1996 = vsel %vm1992, %v1976, %v1979
        %v1997 = vsel %vm1995, %v1985, 2102212464
        %v1998 = vsel %vm1994, %v1982, %v1997
        %v1999 = vsel %vm1993, %v1996, %v1998
        %v2000 = vsel %vm1992, %v1979, %v1982
        %v2001 = vsel %vm1995, %v1988, 920167782
        %v2002 = vsel %vm1994, %v1985, %v2001
        %v2003 = vsel %vm1993, %v2000, %v2002
        %v2004 = vsel %vm1992, %v1982, %v1985
        %v2005 = vsel %vm1995, %v1991, 1326507024
        %v2006 = vsel %vm1994, %v1988, %v2005
        %v2007 = vsel %vm1993, %v2004, %v2006
        %v2008 = vshll.u32 %v1968, 8
        %v2009 = vmul.u32.u64.compose %v2008, %v2007
        %v2010 = vextract.low.u32 %v2009
        %v2011 = vextract.high.u32 %v2009
        %v2012 = vmul.u32.u64.compose %v2008, %v2003
        %v2013 = vextract.low.u32 %v2012
        %v2014 = vextract.high.u32 %v2012
        %v2015 = vmul.u32 %v2008, %v1999
        %v2016 = vadd.s32 %v2011, %v2013
        %vm2017 = vc.u32 %v2011, %v2013
        %v2018 = vadd.s32 %v2014, 1
        %v2019 = vsel %vm2017, %v2018, %v2014
        %v2020 = vadd.s32 %v2015, %v2019
        %v2021 = vadd.s32 %v2020, 536870912
        %v2022 = vshrl.u32 %v2021, 30
        %v2023 = vshll.u32 %v2022, 30
        %v2024 = vsub.s32 %v2020, %v2023
        %vm2025 = vcmp.lt.s32.totalorder %v2024, 0
        %v2026 = vsub.s32 0, %v2024
        %v2027 = vsel %vm2025, %v2026, %v2024
        %v2028 = vclz %v2027
        %v2029 = vsub.s32 %v2028, 2
        %vm2030 = vcmp.gt.s32.totalorder 0, %v2029
        %v2031 = vsel %vm2030, 0, %v2029
        %v2032 = vsub.s32 32, %v2031
        %v2033 = vshll.u32 %v2024, %v2031
        %v2034 = vshrl.u32 %v2016, %v2032
        %v2035 = vor.u32 %v2033, %v2034
        %v2036 = vsub.s32 4294967266, %v2031
        %v2037 = vadd.s32 %v2036, 127
        %v2038 = vshll.u32 %v2037, 23
        %v2039 = vor.u32 4788187, %v2038
        %v2040 = vand.u32 2147483647, %v2039
        %v2042 = vcvt.s32.f32 %v2035
        %v2043 = vmul.f32 %v2042, %v2040
        %v2044 = vxor.u32 %v2043, 2147483648
        %v2045 = vsel %vm1962, %v2044, %v2043
        %v2046 = vsub.s32 4, %v2022
        %v2047 = vsel %vm1962, %v2046, %v2022
        %v2048 = vsel %vm1961, %v396, %v2045
        %v2049 = vsel %vm1961, 0, %v2047
        %v2050 = vcosq.f32.pop %v2048
        %v2051 = vsinq.f32.pop %v2048
        %vm2052 = vweird.f32 %v396
        %v2053 = vand.u32 %v2049, 3
        %vm2054 = vcmp.lt.s32.totalorder %v2053, 2
        %vm2055 = vcmp.eq.s32.totalorder %v2053, 0
        %v2056 = vxor.u32 %v2051, 2147483648
        %v2057 = vsel %vm2055, %v2050, %v2056
        %vm2058 = vcmp.eq.s32.totalorder %v2053, 2
        %v2059 = vxor.u32 %v2050, 2147483648
        %v2060 = vsel %vm2058, %v2059, %v2051
        %v2061 = vsel %vm2054, %v2057, %v2060
        %v2062 = vsel %vm2052, nan, %v2061
        %v2063 = vand.u32 2147483647, %v397
        %vm2064 = vcmp.le.f32.partialorder %v2063, 0.7853982
        %vm2065 = vcmp.lt.s32.totalorder %v397, 0
        %v2066 = vand.u32 %v397, 2139095040
        %v2067 = vshrl.u32 %v2066, 23
        %v2068 = vsub.s32 %v2067, 127
        %v2069 = vand.u32 2147483647, %v397
        %v2070 = vand.u32 %v2069, 8388607
        %v2071 = vor.u32 %v2070, 8388608
        %v2072 = vsub.s32 0, %v2071
        %v2073 = vadd.s32 %v2068, 1
        %vm2074 = vcmp.gt.s32.totalorder %v2073, 0
        %v2075 = vsel %vm2074, %v2073, 0
        %v2076 = vshrl.u32 %v2075, 5
        %v2077 = vand.u32 %v2075, 31
        %v2078 = vsub.s32 32, %v2077
        %v2079 = vshrl.u32 683565275, %v2078
        %v2080 = vshll.u32 683565275, %v2077
        %v2081 = vshrl.u32 2475754826, %v2078
        %v2082 = vor.u32 %v2080, %v2081
        %v2083 = vshll.u32 2475754826, %v2077
        %v2084 = vshrl.u32 2131351028, %v2078
        %v2085 = vor.u32 %v2083, %v2084
        %v2086 = vshll.u32 2131351028, %v2077
        %v2087 = vshrl.u32 2102212464, %v2078
        %v2088 = vor.u32 %v2086, %v2087
        %v2089 = vshll.u32 2102212464, %v2077
        %v2090 = vshrl.u32 920167782, %v2078
        %v2091 = vor.u32 %v2089, %v2090
        %v2092 = vshll.u32 920167782, %v2077
        %v2093 = vshrl.u32 1326507024, %v2078
        %v2094 = vor.u32 %v2092, %v2093
        %vm2095 = vcmp.lt.s32.totalorder %v2076, 1
        %vm2096 = vcmp.lt.s32.totalorder %v2076, 2
        %vm2097 = vcmp.lt.s32.totalorder %v2076, 3
        %vm2098 = vcmp.lt.s32.totalorder %v2076, 4
        %v2099 = vsel %vm2095, %v2079, %v2082
        %v2100 = vsel %vm2098, %v2088, 2102212464
        %v2101 = vsel %vm2097, %v2085, %v2100
        %v2102 = vsel %vm2096, %v2099, %v2101
        %v2103 = vsel %vm2095, %v2082, %v2085
        %v2104 = vsel %vm2098, %v2091, 920167782
        %v2105 = vsel %vm2097, %v2088, %v2104
        %v2106 = vsel %vm2096, %v2103, %v2105
        %v2107 = vsel %vm2095, %v2085, %v2088
        %v2108 = vsel %vm2098, %v2094, 1326507024
        %v2109 = vsel %vm2097, %v2091, %v2108
        %v2110 = vsel %vm2096, %v2107, %v2109
        %v2111 = vshll.u32 %v2071, 8
        %v2112 = vmul.u32.u64.compose %v2111, %v2110
        %v2113 = vextract.low.u32 %v2112
        %v2114 = vextract.high.u32 %v2112
        %v2115 = vmul.u32.u64.compose %v2111, %v2106
        %v2116 = vextract.low.u32 %v2115
        %v2117 = vextract.high.u32 %v2115
        %v2118 = vmul.u32 %v2111, %v2102
        %v2119 = vadd.s32 %v2114, %v2116
        %vm2120 = vc.u32 %v2114, %v2116
        %v2121 = vadd.s32 %v2117, 1
        %v2122 = vsel %vm2120, %v2121, %v2117
        %v2123 = vadd.s32 %v2118, %v2122
        %v2124 = vadd.s32 %v2123, 536870912
        %v2125 = vshrl.u32 %v2124, 30
        %v2126 = vshll.u32 %v2125, 30
        %v2127 = vsub.s32 %v2123, %v2126
        %vm2128 = vcmp.lt.s32.totalorder %v2127, 0
        %v2129 = vsub.s32 0, %v2127
        %v2130 = vsel %vm2128, %v2129, %v2127
        %v2131 = vclz %v2130
        %v2132 = vsub.s32 %v2131, 2
        %vm2133 = vcmp.gt.s32.totalorder 0, %v2132
        %v2134 = vsel %vm2133, 0, %v2132
        %v2135 = vsub.s32 32, %v2134
        %v2136 = vshll.u32 %v2127, %v2134
        %v2137 = vshrl.u32 %v2119, %v2135
        %v2138 = vor.u32 %v2136, %v2137
        %v2139 = vsub.s32 4294967266, %v2134
        %v2140 = vadd.s32 %v2139, 127
        %v2141 = vshll.u32 %v2140, 23
        %v2142 = vor.u32 4788187, %v2141
        %v2143 = vand.u32 2147483647, %v2142
        %v2145 = vcvt.s32.f32 %v2138
        %v2146 = vmul.f32 %v2145, %v2143
        %v2147 = vxor.u32 %v2146, 2147483648
        %v2148 = vsel %vm2065, %v2147, %v2146
        %v2149 = vsub.s32 4, %v2125
        %v2150 = vsel %vm2065, %v2149, %v2125
        %v2151 = vsel %vm2064, %v397, %v2148
        %v2152 = vsel %vm2064, 0, %v2150
        %v2153 = vcosq.f32.pop %v2151
        %v2154 = vsinq.f32.pop %v2151
        %vm2155 = vweird.f32 %v397
        %v2156 = vand.u32 %v2152, 3
        %vm2157 = vcmp.lt.s32.totalorder %v2156, 2
        %vm2158 = vcmp.eq.s32.totalorder %v2156, 0
        %v2159 = vxor.u32 %v2154, 2147483648
        %v2160 = vsel %vm2158, %v2153, %v2159
        %vm2161 = vcmp.eq.s32.totalorder %v2156, 2
        %v2162 = vxor.u32 %v2153, 2147483648
        %v2163 = vsel %vm2161, %v2162, %v2154
        %v2164 = vsel %vm2157, %v2160, %v2163
        %v2165 = vsel %vm2155, nan, %v2164
        %v2166 = vand.u32 2147483647, %v398
        %vm2167 = vcmp.le.f32.partialorder %v2166, 0.7853982
        %vm2168 = vcmp.lt.s32.totalorder %v398, 0
        %v2169 = vand.u32 %v398, 2139095040
        %v2170 = vshrl.u32 %v2169, 23
        %v2171 = vsub.s32 %v2170, 127
        %v2172 = vand.u32 2147483647, %v398
        %v2173 = vand.u32 %v2172, 8388607
        %v2174 = vor.u32 %v2173, 8388608
        %v2175 = vsub.s32 0, %v2174
        %v2176 = vadd.s32 %v2171, 1
        %vm2177 = vcmp.gt.s32.totalorder %v2176, 0
        %v2178 = vsel %vm2177, %v2176, 0
        %v2179 = vshrl.u32 %v2178, 5
        %v2180 = vand.u32 %v2178, 31
        %v2181 = vsub.s32 32, %v2180
        %v2182 = vshrl.u32 683565275, %v2181
        %v2183 = vshll.u32 683565275, %v2180
        %v2184 = vshrl.u32 2475754826, %v2181
        %v2185 = vor.u32 %v2183, %v2184
        %v2186 = vshll.u32 2475754826, %v2180
        %v2187 = vshrl.u32 2131351028, %v2181
        %v2188 = vor.u32 %v2186, %v2187
        %v2189 = vshll.u32 2131351028, %v2180
        %v2190 = vshrl.u32 2102212464, %v2181
        %v2191 = vor.u32 %v2189, %v2190
        %v2192 = vshll.u32 2102212464, %v2180
        %v2193 = vshrl.u32 920167782, %v2181
        %v2194 = vor.u32 %v2192, %v2193
        %v2195 = vshll.u32 920167782, %v2180
        %v2196 = vshrl.u32 1326507024, %v2181
        %v2197 = vor.u32 %v2195, %v2196
        %vm2198 = vcmp.lt.s32.totalorder %v2179, 1
        %vm2199 = vcmp.lt.s32.totalorder %v2179, 2
        %vm2200 = vcmp.lt.s32.totalorder %v2179, 3
        %vm2201 = vcmp.lt.s32.totalorder %v2179, 4
        %v2202 = vsel %vm2198, %v2182, %v2185
        %v2203 = vsel %vm2201, %v2191, 2102212464
        %v2204 = vsel %vm2200, %v2188, %v2203
        %v2205 = vsel %vm2199, %v2202, %v2204
        %v2206 = vsel %vm2198, %v2185, %v2188
        %v2207 = vsel %vm2201, %v2194, 920167782
        %v2208 = vsel %vm2200, %v2191, %v2207
        %v2209 = vsel %vm2199, %v2206, %v2208
        %v2210 = vsel %vm2198, %v2188, %v2191
        %v2211 = vsel %vm2201, %v2197, 1326507024
        %v2212 = vsel %vm2200, %v2194, %v2211
        %v2213 = vsel %vm2199, %v2210, %v2212
        %v2214 = vshll.u32 %v2174, 8
        %v2215 = vmul.u32.u64.compose %v2214, %v2213
        %v2216 = vextract.low.u32 %v2215
        %v2217 = vextract.high.u32 %v2215
        %v2218 = vmul.u32.u64.compose %v2214, %v2209
        %v2219 = vextract.low.u32 %v2218
        %v2220 = vextract.high.u32 %v2218
        %v2221 = vmul.u32 %v2214, %v2205
        %v2222 = vadd.s32 %v2217, %v2219
        %vm2223 = vc.u32 %v2217, %v2219
        %v2224 = vadd.s32 %v2220, 1
        %v2225 = vsel %vm2223, %v2224, %v2220
        %v2226 = vadd.s32 %v2221, %v2225
        %v2227 = vadd.s32 %v2226, 536870912
        %v2228 = vshrl.u32 %v2227, 30
        %v2229 = vshll.u32 %v2228, 30
        %v2230 = vsub.s32 %v2226, %v2229
        %vm2231 = vcmp.lt.s32.totalorder %v2230, 0
        %v2232 = vsub.s32 0, %v2230
        %v2233 = vsel %vm2231, %v2232, %v2230
        %v2234 = vclz %v2233
        %v2235 = vsub.s32 %v2234, 2
        %vm2236 = vcmp.gt.s32.totalorder 0, %v2235
        %v2237 = vsel %vm2236, 0, %v2235
        %v2238 = vsub.s32 32, %v2237
        %v2239 = vshll.u32 %v2230, %v2237
        %v2240 = vshrl.u32 %v2222, %v2238
        %v2241 = vor.u32 %v2239, %v2240
        %v2242 = vsub.s32 4294967266, %v2237
        %v2243 = vadd.s32 %v2242, 127
        %v2244 = vshll.u32 %v2243, 23
        %v2245 = vor.u32 4788187, %v2244
        %v2246 = vand.u32 2147483647, %v2245
        %v2248 = vcvt.s32.f32 %v2241
        %v2249 = vmul.f32 %v2248, %v2246
        %v2250 = vxor.u32 %v2249, 2147483648
        %v2251 = vsel %vm2168, %v2250, %v2249
        %v2252 = vsub.s32 4, %v2228
        %v2253 = vsel %vm2168, %v2252, %v2228
        %v2254 = vsel %vm2167, %v398, %v2251
        %v2255 = vsel %vm2167, 0, %v2253
        %v2256 = vcosq.f32.pop %v2254
        %v2257 = vsinq.f32.pop %v2254
        %vm2258 = vweird.f32 %v398
        %v2259 = vand.u32 %v2255, 3
        %vm2260 = vcmp.lt.s32.totalorder %v2259, 2
        %vm2261 = vcmp.eq.s32.totalorder %v2259, 0
        %v2262 = vxor.u32 %v2257, 2147483648
        %v2263 = vsel %vm2261, %v2256, %v2262
        %vm2264 = vcmp.eq.s32.totalorder %v2259, 2
        %v2265 = vxor.u32 %v2256, 2147483648
        %v2266 = vsel %vm2264, %v2265, %v2257
        %v2267 = vsel %vm2260, %v2263, %v2266
        %v2268 = vsel %vm2258, nan, %v2267
        %v2269 = vand.u32 2147483647, %v399
        %vm2270 = vcmp.le.f32.partialorder %v2269, 0.7853982
        %vm2271 = vcmp.lt.s32.totalorder %v399, 0
        %v2272 = vand.u32 %v399, 2139095040
        %v2273 = vshrl.u32 %v2272, 23
        %v2274 = vsub.s32 %v2273, 127
        %v2275 = vand.u32 2147483647, %v399
        %v2276 = vand.u32 %v2275, 8388607
        %v2277 = vor.u32 %v2276, 8388608
        %v2278 = vsub.s32 0, %v2277
        %v2279 = vadd.s32 %v2274, 1
        %vm2280 = vcmp.gt.s32.totalorder %v2279, 0
        %v2281 = vsel %vm2280, %v2279, 0
        %v2282 = vshrl.u32 %v2281, 5
        %v2283 = vand.u32 %v2281, 31
        %v2284 = vsub.s32 32, %v2283
        %v2285 = vshrl.u32 683565275, %v2284
        %v2286 = vshll.u32 683565275, %v2283
        %v2287 = vshrl.u32 2475754826, %v2284
        %v2288 = vor.u32 %v2286, %v2287
        %v2289 = vshll.u32 2475754826, %v2283
        %v2290 = vshrl.u32 2131351028, %v2284
        %v2291 = vor.u32 %v2289, %v2290
        %v2292 = vshll.u32 2131351028, %v2283
        %v2293 = vshrl.u32 2102212464, %v2284
        %v2294 = vor.u32 %v2292, %v2293
        %v2295 = vshll.u32 2102212464, %v2283
        %v2296 = vshrl.u32 920167782, %v2284
        %v2297 = vor.u32 %v2295, %v2296
        %v2298 = vshll.u32 920167782, %v2283
        %v2299 = vshrl.u32 1326507024, %v2284
        %v2300 = vor.u32 %v2298, %v2299
        %vm2301 = vcmp.lt.s32.totalorder %v2282, 1
        %vm2302 = vcmp.lt.s32.totalorder %v2282, 2
        %vm2303 = vcmp.lt.s32.totalorder %v2282, 3
        %vm2304 = vcmp.lt.s32.totalorder %v2282, 4
        %v2305 = vsel %vm2301, %v2285, %v2288
        %v2306 = vsel %vm2304, %v2294, 2102212464
        %v2307 = vsel %vm2303, %v2291, %v2306
        %v2308 = vsel %vm2302, %v2305, %v2307
        %v2309 = vsel %vm2301, %v2288, %v2291
        %v2310 = vsel %vm2304, %v2297, 920167782
        %v2311 = vsel %vm2303, %v2294, %v2310
        %v2312 = vsel %vm2302, %v2309, %v2311
        %v2313 = vsel %vm2301, %v2291, %v2294
        %v2314 = vsel %vm2304, %v2300, 1326507024
        %v2315 = vsel %vm2303, %v2297, %v2314
        %v2316 = vsel %vm2302, %v2313, %v2315
        %v2317 = vshll.u32 %v2277, 8
        %v2318 = vmul.u32.u64.compose %v2317, %v2316
        %v2319 = vextract.low.u32 %v2318
        %v2320 = vextract.high.u32 %v2318
        %v2321 = vmul.u32.u64.compose %v2317, %v2312
        %v2322 = vextract.low.u32 %v2321
        %v2323 = vextract.high.u32 %v2321
        %v2324 = vmul.u32 %v2317, %v2308
        %v2325 = vadd.s32 %v2320, %v2322
        %vm2326 = vc.u32 %v2320, %v2322
        %v2327 = vadd.s32 %v2323, 1
        %v2328 = vsel %vm2326, %v2327, %v2323
        %v2329 = vadd.s32 %v2324, %v2328
        %v2330 = vadd.s32 %v2329, 536870912
        %v2331 = vshrl.u32 %v2330, 30
        %v2332 = vshll.u32 %v2331, 30
        %v2333 = vsub.s32 %v2329, %v2332
        %vm2334 = vcmp.lt.s32.totalorder %v2333, 0
        %v2335 = vsub.s32 0, %v2333
        %v2336 = vsel %vm2334, %v2335, %v2333
        %v2337 = vclz %v2336
        %v2338 = vsub.s32 %v2337, 2
        %vm2339 = vcmp.gt.s32.totalorder 0, %v2338
        %v2340 = vsel %vm2339, 0, %v2338
        %v2341 = vsub.s32 32, %v2340
        %v2342 = vshll.u32 %v2333, %v2340
        %v2343 = vshrl.u32 %v2325, %v2341
        %v2344 = vor.u32 %v2342, %v2343
        %v2345 = vsub.s32 4294967266, %v2340
        %v2346 = vadd.s32 %v2345, 127
        %v2347 = vshll.u32 %v2346, 23
        %v2348 = vor.u32 4788187, %v2347
        %v2349 = vand.u32 2147483647, %v2348
        %v2351 = vcvt.s32.f32 %v2344
        %v2352 = vmul.f32 %v2351, %v2349
        %v2353 = vxor.u32 %v2352, 2147483648
        %v2354 = vsel %vm2271, %v2353, %v2352
        %v2355 = vsub.s32 4, %v2331
        %v2356 = vsel %vm2271, %v2355, %v2331
        %v2357 = vsel %vm2270, %v399, %v2354
        %v2358 = vsel %vm2270, 0, %v2356
        %v2359 = vcosq.f32.pop %v2357
        %v2360 = vsinq.f32.pop %v2357
        %vm2361 = vweird.f32 %v399
        %v2362 = vand.u32 %v2358, 3
        %vm2363 = vcmp.lt.s32.totalorder %v2362, 2
        %vm2364 = vcmp.eq.s32.totalorder %v2362, 0
        %v2365 = vxor.u32 %v2360, 2147483648
        %v2366 = vsel %vm2364, %v2359, %v2365
        %vm2367 = vcmp.eq.s32.totalorder %v2362, 2
        %v2368 = vxor.u32 %v2359, 2147483648
        %v2369 = vsel %vm2367, %v2368, %v2360
        %v2370 = vsel %vm2363, %v2366, %v2369
        %v2371 = vsel %vm2361, nan, %v2370
        %v2372 = vand.u32 2147483647, %v400
        %vm2373 = vcmp.le.f32.partialorder %v2372, 0.7853982
        %vm2374 = vcmp.lt.s32.totalorder %v400, 0
        %v2375 = vand.u32 %v400, 2139095040
        %v2376 = vshrl.u32 %v2375, 23
        %v2377 = vsub.s32 %v2376, 127
        %v2378 = vand.u32 2147483647, %v400
        %v2379 = vand.u32 %v2378, 8388607
        %v2380 = vor.u32 %v2379, 8388608
        %v2381 = vsub.s32 0, %v2380
        %v2382 = vadd.s32 %v2377, 1
        %vm2383 = vcmp.gt.s32.totalorder %v2382, 0
        %v2384 = vsel %vm2383, %v2382, 0
        %v2385 = vshrl.u32 %v2384, 5
        %v2386 = vand.u32 %v2384, 31
        %v2387 = vsub.s32 32, %v2386
        %v2388 = vshrl.u32 683565275, %v2387
        %v2389 = vshll.u32 683565275, %v2386
        %v2390 = vshrl.u32 2475754826, %v2387
        %v2391 = vor.u32 %v2389, %v2390
        %v2392 = vshll.u32 2475754826, %v2386
        %v2393 = vshrl.u32 2131351028, %v2387
        %v2394 = vor.u32 %v2392, %v2393
        %v2395 = vshll.u32 2131351028, %v2386
        %v2396 = vshrl.u32 2102212464, %v2387
        %v2397 = vor.u32 %v2395, %v2396
        %v2398 = vshll.u32 2102212464, %v2386
        %v2399 = vshrl.u32 920167782, %v2387
        %v2400 = vor.u32 %v2398, %v2399
        %v2401 = vshll.u32 920167782, %v2386
        %v2402 = vshrl.u32 1326507024, %v2387
        %v2403 = vor.u32 %v2401, %v2402
        %vm2404 = vcmp.lt.s32.totalorder %v2385, 1
        %vm2405 = vcmp.lt.s32.totalorder %v2385, 2
        %vm2406 = vcmp.lt.s32.totalorder %v2385, 3
        %vm2407 = vcmp.lt.s32.totalorder %v2385, 4
        %v2408 = vsel %vm2404, %v2388, %v2391
        %v2409 = vsel %vm2407, %v2397, 2102212464
        %v2410 = vsel %vm2406, %v2394, %v2409
        %v2411 = vsel %vm2405, %v2408, %v2410
        %v2412 = vsel %vm2404, %v2391, %v2394
        %v2413 = vsel %vm2407, %v2400, 920167782
        %v2414 = vsel %vm2406, %v2397, %v2413
        %v2415 = vsel %vm2405, %v2412, %v2414
        %v2416 = vsel %vm2404, %v2394, %v2397
        %v2417 = vsel %vm2407, %v2403, 1326507024
        %v2418 = vsel %vm2406, %v2400, %v2417
        %v2419 = vsel %vm2405, %v2416, %v2418
        %v2420 = vshll.u32 %v2380, 8
        %v2421 = vmul.u32.u64.compose %v2420, %v2419
        %v2422 = vextract.low.u32 %v2421
        %v2423 = vextract.high.u32 %v2421
        %v2424 = vmul.u32.u64.compose %v2420, %v2415
        %v2425 = vextract.low.u32 %v2424
        %v2426 = vextract.high.u32 %v2424
        %v2427 = vmul.u32 %v2420, %v2411
        %v2428 = vadd.s32 %v2423, %v2425
        %vm2429 = vc.u32 %v2423, %v2425
        %v2430 = vadd.s32 %v2426, 1
        %v2431 = vsel %vm2429, %v2430, %v2426
        %v2432 = vadd.s32 %v2427, %v2431
        %v2433 = vadd.s32 %v2432, 536870912
        %v2434 = vshrl.u32 %v2433, 30
        %v2435 = vshll.u32 %v2434, 30
        %v2436 = vsub.s32 %v2432, %v2435
        %vm2437 = vcmp.lt.s32.totalorder %v2436, 0
        %v2438 = vsub.s32 0, %v2436
        %v2439 = vsel %vm2437, %v2438, %v2436
        %v2440 = vclz %v2439
        %v2441 = vsub.s32 %v2440, 2
        %vm2442 = vcmp.gt.s32.totalorder 0, %v2441
        %v2443 = vsel %vm2442, 0, %v2441
        %v2444 = vsub.s32 32, %v2443
        %v2445 = vshll.u32 %v2436, %v2443
        %v2446 = vshrl.u32 %v2428, %v2444
        %v2447 = vor.u32 %v2445, %v2446
        %v2448 = vsub.s32 4294967266, %v2443
        %v2449 = vadd.s32 %v2448, 127
        %v2450 = vshll.u32 %v2449, 23
        %v2451 = vor.u32 4788187, %v2450
        %v2452 = vand.u32 2147483647, %v2451
        %v2454 = vcvt.s32.f32 %v2447
        %v2455 = vmul.f32 %v2454, %v2452
        %v2456 = vxor.u32 %v2455, 2147483648
        %v2457 = vsel %vm2374, %v2456, %v2455
        %v2458 = vsub.s32 4, %v2434
        %v2459 = vsel %vm2374, %v2458, %v2434
        %v2460 = vsel %vm2373, %v400, %v2457
        %v2461 = vsel %vm2373, 0, %v2459
        %v2462 = vcosq.f32.pop %v2460
        %v2463 = vsinq.f32.pop %v2460
        %vm2464 = vweird.f32 %v400
        %v2465 = vand.u32 %v2461, 3
        %vm2466 = vcmp.lt.s32.totalorder %v2465, 2
        %vm2467 = vcmp.eq.s32.totalorder %v2465, 0
        %v2468 = vxor.u32 %v2463, 2147483648
        %v2469 = vsel %vm2467, %v2462, %v2468
        %vm2470 = vcmp.eq.s32.totalorder %v2465, 2
        %v2471 = vxor.u32 %v2462, 2147483648
        %v2472 = vsel %vm2470, %v2471, %v2463
        %v2473 = vsel %vm2466, %v2469, %v2472
        %v2474 = vsel %vm2464, nan, %v2473
        %v2475 = vand.u32 2147483647, %v401
        %vm2476 = vcmp.le.f32.partialorder %v2475, 0.7853982
        %vm2477 = vcmp.lt.s32.totalorder %v401, 0
        %v2478 = vand.u32 %v401, 2139095040
        %v2479 = vshrl.u32 %v2478, 23
        %v2480 = vsub.s32 %v2479, 127
        %v2481 = vand.u32 2147483647, %v401
        %v2482 = vand.u32 %v2481, 8388607
        %v2483 = vor.u32 %v2482, 8388608
        %v2484 = vsub.s32 0, %v2483
        %v2485 = vadd.s32 %v2480, 1
        %vm2486 = vcmp.gt.s32.totalorder %v2485, 0
        %v2487 = vsel %vm2486, %v2485, 0
        %v2488 = vshrl.u32 %v2487, 5
        %v2489 = vand.u32 %v2487, 31
        %v2490 = vsub.s32 32, %v2489
        %v2491 = vshrl.u32 683565275, %v2490
        %v2492 = vshll.u32 683565275, %v2489
        %v2493 = vshrl.u32 2475754826, %v2490
        %v2494 = vor.u32 %v2492, %v2493
        %v2495 = vshll.u32 2475754826, %v2489
        %v2496 = vshrl.u32 2131351028, %v2490
        %v2497 = vor.u32 %v2495, %v2496
        %v2498 = vshll.u32 2131351028, %v2489
        %v2499 = vshrl.u32 2102212464, %v2490
        %v2500 = vor.u32 %v2498, %v2499
        %v2501 = vshll.u32 2102212464, %v2489
        %v2502 = vshrl.u32 920167782, %v2490
        %v2503 = vor.u32 %v2501, %v2502
        %v2504 = vshll.u32 920167782, %v2489
        %v2505 = vshrl.u32 1326507024, %v2490
        %v2506 = vor.u32 %v2504, %v2505
        %vm2507 = vcmp.lt.s32.totalorder %v2488, 1
        %vm2508 = vcmp.lt.s32.totalorder %v2488, 2
        %vm2509 = vcmp.lt.s32.totalorder %v2488, 3
        %vm2510 = vcmp.lt.s32.totalorder %v2488, 4
        %v2511 = vsel %vm2507, %v2491, %v2494
        %v2512 = vsel %vm2510, %v2500, 2102212464
        %v2513 = vsel %vm2509, %v2497, %v2512
        %v2514 = vsel %vm2508, %v2511, %v2513
        %v2515 = vsel %vm2507, %v2494, %v2497
        %v2516 = vsel %vm2510, %v2503, 920167782
        %v2517 = vsel %vm2509, %v2500, %v2516
        %v2518 = vsel %vm2508, %v2515, %v2517
        %v2519 = vsel %vm2507, %v2497, %v2500
        %v2520 = vsel %vm2510, %v2506, 1326507024
        %v2521 = vsel %vm2509, %v2503, %v2520
        %v2522 = vsel %vm2508, %v2519, %v2521
        %v2523 = vshll.u32 %v2483, 8
        %v2524 = vmul.u32.u64.compose %v2523, %v2522
        %v2525 = vextract.low.u32 %v2524
        %v2526 = vextract.high.u32 %v2524
        %v2527 = vmul.u32.u64.compose %v2523, %v2518
        %v2528 = vextract.low.u32 %v2527
        %v2529 = vextract.high.u32 %v2527
        %v2530 = vmul.u32 %v2523, %v2514
        %v2531 = vadd.s32 %v2526, %v2528
        %vm2532 = vc.u32 %v2526, %v2528
        %v2533 = vadd.s32 %v2529, 1
        %v2534 = vsel %vm2532, %v2533, %v2529
        %v2535 = vadd.s32 %v2530, %v2534
        %v2536 = vadd.s32 %v2535, 536870912
        %v2537 = vshrl.u32 %v2536, 30
        %v2538 = vshll.u32 %v2537, 30
        %v2539 = vsub.s32 %v2535, %v2538
        %vm2540 = vcmp.lt.s32.totalorder %v2539, 0
        %v2541 = vsub.s32 0, %v2539
        %v2542 = vsel %vm2540, %v2541, %v2539
        %v2543 = vclz %v2542
        %v2544 = vsub.s32 %v2543, 2
        %vm2545 = vcmp.gt.s32.totalorder 0, %v2544
        %v2546 = vsel %vm2545, 0, %v2544
        %v2547 = vsub.s32 32, %v2546
        %v2548 = vshll.u32 %v2539, %v2546
        %v2549 = vshrl.u32 %v2531, %v2547
        %v2550 = vor.u32 %v2548, %v2549
        %v2551 = vsub.s32 4294967266, %v2546
        %v2552 = vadd.s32 %v2551, 127
        %v2553 = vshll.u32 %v2552, 23
        %v2554 = vor.u32 4788187, %v2553
        %v2555 = vand.u32 2147483647, %v2554
        %v2557 = vcvt.s32.f32 %v2550
        %v2558 = vmul.f32 %v2557, %v2555
        %v2559 = vxor.u32 %v2558, 2147483648
        %v2560 = vsel %vm2477, %v2559, %v2558
        %v2561 = vsub.s32 4, %v2537
        %v2562 = vsel %vm2477, %v2561, %v2537
        %v2563 = vsel %vm2476, %v401, %v2560
        %v2564 = vsel %vm2476, 0, %v2562
        %v2565 = vcosq.f32.pop %v2563
        %v2566 = vsinq.f32.pop %v2563
        %vm2567 = vweird.f32 %v401
        %v2568 = vand.u32 %v2564, 3
        %vm2569 = vcmp.lt.s32.totalorder %v2568, 2
        %vm2570 = vcmp.eq.s32.totalorder %v2568, 0
        %v2571 = vxor.u32 %v2566, 2147483648
        %v2572 = vsel %vm2570, %v2565, %v2571
        %vm2573 = vcmp.eq.s32.totalorder %v2568, 2
        %v2574 = vxor.u32 %v2565, 2147483648
        %v2575 = vsel %vm2573, %v2574, %v2566
        %v2576 = vsel %vm2569, %v2572, %v2575
        %v2577 = vsel %vm2567, nan, %v2576
        %v2578 = vand.u32 2147483647, %v402
        %vm2579 = vcmp.le.f32.partialorder %v2578, 0.7853982
        %vm2580 = vcmp.lt.s32.totalorder %v402, 0
        %v2581 = vand.u32 %v402, 2139095040
        %v2582 = vshrl.u32 %v2581, 23
        %v2583 = vsub.s32 %v2582, 127
        %v2584 = vand.u32 2147483647, %v402
        %v2585 = vand.u32 %v2584, 8388607
        %v2586 = vor.u32 %v2585, 8388608
        %v2587 = vsub.s32 0, %v2586
        %v2588 = vadd.s32 %v2583, 1
        %vm2589 = vcmp.gt.s32.totalorder %v2588, 0
        %v2590 = vsel %vm2589, %v2588, 0
        %v2591 = vshrl.u32 %v2590, 5
        %v2592 = vand.u32 %v2590, 31
        %v2593 = vsub.s32 32, %v2592
        %v2594 = vshrl.u32 683565275, %v2593
        %v2595 = vshll.u32 683565275, %v2592
        %v2596 = vshrl.u32 2475754826, %v2593
        %v2597 = vor.u32 %v2595, %v2596
        %v2598 = vshll.u32 2475754826, %v2592
        %v2599 = vshrl.u32 2131351028, %v2593
        %v2600 = vor.u32 %v2598, %v2599
        %v2601 = vshll.u32 2131351028, %v2592
        %v2602 = vshrl.u32 2102212464, %v2593
        %v2603 = vor.u32 %v2601, %v2602
        %v2604 = vshll.u32 2102212464, %v2592
        %v2605 = vshrl.u32 920167782, %v2593
        %v2606 = vor.u32 %v2604, %v2605
        %v2607 = vshll.u32 920167782, %v2592
        %v2608 = vshrl.u32 1326507024, %v2593
        %v2609 = vor.u32 %v2607, %v2608
        %vm2610 = vcmp.lt.s32.totalorder %v2591, 1
        %vm2611 = vcmp.lt.s32.totalorder %v2591, 2
        %vm2612 = vcmp.lt.s32.totalorder %v2591, 3
        %vm2613 = vcmp.lt.s32.totalorder %v2591, 4
        %v2614 = vsel %vm2610, %v2594, %v2597
        %v2615 = vsel %vm2613, %v2603, 2102212464
        %v2616 = vsel %vm2612, %v2600, %v2615
        %v2617 = vsel %vm2611, %v2614, %v2616
        %v2618 = vsel %vm2610, %v2597, %v2600
        %v2619 = vsel %vm2613, %v2606, 920167782
        %v2620 = vsel %vm2612, %v2603, %v2619
        %v2621 = vsel %vm2611, %v2618, %v2620
        %v2622 = vsel %vm2610, %v2600, %v2603
        %v2623 = vsel %vm2613, %v2609, 1326507024
        %v2624 = vsel %vm2612, %v2606, %v2623
        %v2625 = vsel %vm2611, %v2622, %v2624
        %v2626 = vshll.u32 %v2586, 8
        %v2627 = vmul.u32.u64.compose %v2626, %v2625
        %v2628 = vextract.low.u32 %v2627
        %v2629 = vextract.high.u32 %v2627
        %v2630 = vmul.u32.u64.compose %v2626, %v2621
        %v2631 = vextract.low.u32 %v2630
        %v2632 = vextract.high.u32 %v2630
        %v2633 = vmul.u32 %v2626, %v2617
        %v2634 = vadd.s32 %v2629, %v2631
        %vm2635 = vc.u32 %v2629, %v2631
        %v2636 = vadd.s32 %v2632, 1
        %v2637 = vsel %vm2635, %v2636, %v2632
        %v2638 = vadd.s32 %v2633, %v2637
        %v2639 = vadd.s32 %v2638, 536870912
        %v2640 = vshrl.u32 %v2639, 30
        %v2641 = vshll.u32 %v2640, 30
        %v2642 = vsub.s32 %v2638, %v2641
        %vm2643 = vcmp.lt.s32.totalorder %v2642, 0
        %v2644 = vsub.s32 0, %v2642
        %v2645 = vsel %vm2643, %v2644, %v2642
        %v2646 = vclz %v2645
        %v2647 = vsub.s32 %v2646, 2
        %vm2648 = vcmp.gt.s32.totalorder 0, %v2647
        %v2649 = vsel %vm2648, 0, %v2647
        %v2650 = vsub.s32 32, %v2649
        %v2651 = vshll.u32 %v2642, %v2649
        %v2652 = vshrl.u32 %v2634, %v2650
        %v2653 = vor.u32 %v2651, %v2652
        %v2654 = vsub.s32 4294967266, %v2649
        %v2655 = vadd.s32 %v2654, 127
        %v2656 = vshll.u32 %v2655, 23
        %v2657 = vor.u32 4788187, %v2656
        %v2658 = vand.u32 2147483647, %v2657
        %v2660 = vcvt.s32.f32 %v2653
        %v2661 = vmul.f32 %v2660, %v2658
        %v2662 = vxor.u32 %v2661, 2147483648
        %v2663 = vsel %vm2580, %v2662, %v2661
        %v2664 = vsub.s32 4, %v2640
        %v2665 = vsel %vm2580, %v2664, %v2640
        %v2666 = vsel %vm2579, %v402, %v2663
        %v2667 = vsel %vm2579, 0, %v2665
        %v2668 = vcosq.f32.pop %v2666
        %v2669 = vsinq.f32.pop %v2666
        %vm2670 = vweird.f32 %v402
        %v2671 = vand.u32 %v2667, 3
        %vm2672 = vcmp.lt.s32.totalorder %v2671, 2
        %vm2673 = vcmp.eq.s32.totalorder %v2671, 0
        %v2674 = vxor.u32 %v2669, 2147483648
        %v2675 = vsel %vm2673, %v2668, %v2674
        %vm2676 = vcmp.eq.s32.totalorder %v2671, 2
        %v2677 = vxor.u32 %v2668, 2147483648
        %v2678 = vsel %vm2676, %v2677, %v2669
        %v2679 = vsel %vm2672, %v2675, %v2678
        %v2680 = vsel %vm2670, nan, %v2679
        %v2681 = vand.u32 2147483647, %v403
        %vm2682 = vcmp.le.f32.partialorder %v2681, 0.7853982
        %vm2683 = vcmp.lt.s32.totalorder %v403, 0
        %v2684 = vand.u32 %v403, 2139095040
        %v2685 = vshrl.u32 %v2684, 23
        %v2686 = vsub.s32 %v2685, 127
        %v2687 = vand.u32 2147483647, %v403
        %v2688 = vand.u32 %v2687, 8388607
        %v2689 = vor.u32 %v2688, 8388608
        %v2690 = vsub.s32 0, %v2689
        %v2691 = vadd.s32 %v2686, 1
        %vm2692 = vcmp.gt.s32.totalorder %v2691, 0
        %v2693 = vsel %vm2692, %v2691, 0
        %v2694 = vshrl.u32 %v2693, 5
        %v2695 = vand.u32 %v2693, 31
        %v2696 = vsub.s32 32, %v2695
        %v2697 = vshrl.u32 683565275, %v2696
        %v2698 = vshll.u32 683565275, %v2695
        %v2699 = vshrl.u32 2475754826, %v2696
        %v2700 = vor.u32 %v2698, %v2699
        %v2701 = vshll.u32 2475754826, %v2695
        %v2702 = vshrl.u32 2131351028, %v2696
        %v2703 = vor.u32 %v2701, %v2702
        %v2704 = vshll.u32 2131351028, %v2695
        %v2705 = vshrl.u32 2102212464, %v2696
        %v2706 = vor.u32 %v2704, %v2705
        %v2707 = vshll.u32 2102212464, %v2695
        %v2708 = vshrl.u32 920167782, %v2696
        %v2709 = vor.u32 %v2707, %v2708
        %v2710 = vshll.u32 920167782, %v2695
        %v2711 = vshrl.u32 1326507024, %v2696
        %v2712 = vor.u32 %v2710, %v2711
        %vm2713 = vcmp.lt.s32.totalorder %v2694, 1
        %vm2714 = vcmp.lt.s32.totalorder %v2694, 2
        %vm2715 = vcmp.lt.s32.totalorder %v2694, 3
        %vm2716 = vcmp.lt.s32.totalorder %v2694, 4
        %v2717 = vsel %vm2713, %v2697, %v2700
        %v2718 = vsel %vm2716, %v2706, 2102212464
        %v2719 = vsel %vm2715, %v2703, %v2718
        %v2720 = vsel %vm2714, %v2717, %v2719
        %v2721 = vsel %vm2713, %v2700, %v2703
        %v2722 = vsel %vm2716, %v2709, 920167782
        %v2723 = vsel %vm2715, %v2706, %v2722
        %v2724 = vsel %vm2714, %v2721, %v2723
        %v2725 = vsel %vm2713, %v2703, %v2706
        %v2726 = vsel %vm2716, %v2712, 1326507024
        %v2727 = vsel %vm2715, %v2709, %v2726
        %v2728 = vsel %vm2714, %v2725, %v2727
        %v2729 = vshll.u32 %v2689, 8
        %v2730 = vmul.u32.u64.compose %v2729, %v2728
        %v2731 = vextract.low.u32 %v2730
        %v2732 = vextract.high.u32 %v2730
        %v2733 = vmul.u32.u64.compose %v2729, %v2724
        %v2734 = vextract.low.u32 %v2733
        %v2735 = vextract.high.u32 %v2733
        %v2736 = vmul.u32 %v2729, %v2720
        %v2737 = vadd.s32 %v2732, %v2734
        %vm2738 = vc.u32 %v2732, %v2734
        %v2739 = vadd.s32 %v2735, 1
        %v2740 = vsel %vm2738, %v2739, %v2735
        %v2741 = vadd.s32 %v2736, %v2740
        %v2742 = vadd.s32 %v2741, 536870912
        %v2743 = vshrl.u32 %v2742, 30
        %v2744 = vshll.u32 %v2743, 30
        %v2745 = vsub.s32 %v2741, %v2744
        %vm2746 = vcmp.lt.s32.totalorder %v2745, 0
        %v2747 = vsub.s32 0, %v2745
        %v2748 = vsel %vm2746, %v2747, %v2745
        %v2749 = vclz %v2748
        %v2750 = vsub.s32 %v2749, 2
        %vm2751 = vcmp.gt.s32.totalorder 0, %v2750
        %v2752 = vsel %vm2751, 0, %v2750
        %v2753 = vsub.s32 32, %v2752
        %v2754 = vshll.u32 %v2745, %v2752
        %v2755 = vshrl.u32 %v2737, %v2753
        %v2756 = vor.u32 %v2754, %v2755
        %v2757 = vsub.s32 4294967266, %v2752
        %v2758 = vadd.s32 %v2757, 127
        %v2759 = vshll.u32 %v2758, 23
        %v2760 = vor.u32 4788187, %v2759
        %v2761 = vand.u32 2147483647, %v2760
        %v2763 = vcvt.s32.f32 %v2756
        %v2764 = vmul.f32 %v2763, %v2761
        %v2765 = vxor.u32 %v2764, 2147483648
        %v2766 = vsel %vm2683, %v2765, %v2764
        %v2767 = vsub.s32 4, %v2743
        %v2768 = vsel %vm2683, %v2767, %v2743
        %v2769 = vsel %vm2682, %v403, %v2766
        %v2770 = vsel %vm2682, 0, %v2768
        %v2771 = vcosq.f32.pop %v2769
        %v2772 = vsinq.f32.pop %v2769
        %vm2773 = vweird.f32 %v403
        %v2774 = vand.u32 %v2770, 3
        %vm2775 = vcmp.lt.s32.totalorder %v2774, 2
        %vm2776 = vcmp.eq.s32.totalorder %v2774, 0
        %v2777 = vxor.u32 %v2772, 2147483648
        %v2778 = vsel %vm2776, %v2771, %v2777
        %vm2779 = vcmp.eq.s32.totalorder %v2774, 2
        %v2780 = vxor.u32 %v2771, 2147483648
        %v2781 = vsel %vm2779, %v2780, %v2772
        %v2782 = vsel %vm2775, %v2778, %v2781
        %v2783 = vsel %vm2773, nan, %v2782
        %v2784 = vand.u32 2147483647, %v404
        %vm2785 = vcmp.le.f32.partialorder %v2784, 0.7853982
        %vm2786 = vcmp.lt.s32.totalorder %v404, 0
        %v2787 = vand.u32 %v404, 2139095040
        %v2788 = vshrl.u32 %v2787, 23
        %v2789 = vsub.s32 %v2788, 127
        %v2790 = vand.u32 2147483647, %v404
        %v2791 = vand.u32 %v2790, 8388607
        %v2792 = vor.u32 %v2791, 8388608
        %v2793 = vsub.s32 0, %v2792
        %v2794 = vadd.s32 %v2789, 1
        %vm2795 = vcmp.gt.s32.totalorder %v2794, 0
        %v2796 = vsel %vm2795, %v2794, 0
        %v2797 = vshrl.u32 %v2796, 5
        %v2798 = vand.u32 %v2796, 31
        %v2799 = vsub.s32 32, %v2798
        %v2800 = vshrl.u32 683565275, %v2799
        %v2801 = vshll.u32 683565275, %v2798
        %v2802 = vshrl.u32 2475754826, %v2799
        %v2803 = vor.u32 %v2801, %v2802
        %v2804 = vshll.u32 2475754826, %v2798
        %v2805 = vshrl.u32 2131351028, %v2799
        %v2806 = vor.u32 %v2804, %v2805
        %v2807 = vshll.u32 2131351028, %v2798
        %v2808 = vshrl.u32 2102212464, %v2799
        %v2809 = vor.u32 %v2807, %v2808
        %v2810 = vshll.u32 2102212464, %v2798
        %v2811 = vshrl.u32 920167782, %v2799
        %v2812 = vor.u32 %v2810, %v2811
        %v2813 = vshll.u32 920167782, %v2798
        %v2814 = vshrl.u32 1326507024, %v2799
        %v2815 = vor.u32 %v2813, %v2814
        %vm2816 = vcmp.lt.s32.totalorder %v2797, 1
        %vm2817 = vcmp.lt.s32.totalorder %v2797, 2
        %vm2818 = vcmp.lt.s32.totalorder %v2797, 3
        %vm2819 = vcmp.lt.s32.totalorder %v2797, 4
        %v2820 = vsel %vm2816, %v2800, %v2803
        %v2821 = vsel %vm2819, %v2809, 2102212464
        %v2822 = vsel %vm2818, %v2806, %v2821
        %v2823 = vsel %vm2817, %v2820, %v2822
        %v2824 = vsel %vm2816, %v2803, %v2806
        %v2825 = vsel %vm2819, %v2812, 920167782
        %v2826 = vsel %vm2818, %v2809, %v2825
        %v2827 = vsel %vm2817, %v2824, %v2826
        %v2828 = vsel %vm2816, %v2806, %v2809
        %v2829 = vsel %vm2819, %v2815, 1326507024
        %v2830 = vsel %vm2818, %v2812, %v2829
        %v2831 = vsel %vm2817, %v2828, %v2830
        %v2832 = vshll.u32 %v2792, 8
        %v2833 = vmul.u32.u64.compose %v2832, %v2831
        %v2834 = vextract.low.u32 %v2833
        %v2835 = vextract.high.u32 %v2833
        %v2836 = vmul.u32.u64.compose %v2832, %v2827
        %v2837 = vextract.low.u32 %v2836
        %v2838 = vextract.high.u32 %v2836
        %v2839 = vmul.u32 %v2832, %v2823
        %v2840 = vadd.s32 %v2835, %v2837
        %vm2841 = vc.u32 %v2835, %v2837
        %v2842 = vadd.s32 %v2838, 1
        %v2843 = vsel %vm2841, %v2842, %v2838
        %v2844 = vadd.s32 %v2839, %v2843
        %v2845 = vadd.s32 %v2844, 536870912
        %v2846 = vshrl.u32 %v2845, 30
        %v2847 = vshll.u32 %v2846, 30
        %v2848 = vsub.s32 %v2844, %v2847
        %vm2849 = vcmp.lt.s32.totalorder %v2848, 0
        %v2850 = vsub.s32 0, %v2848
        %v2851 = vsel %vm2849, %v2850, %v2848
        %v2852 = vclz %v2851
        %v2853 = vsub.s32 %v2852, 2
        %vm2854 = vcmp.gt.s32.totalorder 0, %v2853
        %v2855 = vsel %vm2854, 0, %v2853
        %v2856 = vsub.s32 32, %v2855
        %v2857 = vshll.u32 %v2848, %v2855
        %v2858 = vshrl.u32 %v2840, %v2856
        %v2859 = vor.u32 %v2857, %v2858
        %v2860 = vsub.s32 4294967266, %v2855
        %v2861 = vadd.s32 %v2860, 127
        %v2862 = vshll.u32 %v2861, 23
        %v2863 = vor.u32 4788187, %v2862
        %v2864 = vand.u32 2147483647, %v2863
        %v2866 = vcvt.s32.f32 %v2859
        %v2867 = vmul.f32 %v2866, %v2864
        %v2868 = vxor.u32 %v2867, 2147483648
        %v2869 = vsel %vm2786, %v2868, %v2867
        %v2870 = vsub.s32 4, %v2846
        %v2871 = vsel %vm2786, %v2870, %v2846
        %v2872 = vsel %vm2785, %v404, %v2869
        %v2873 = vsel %vm2785, 0, %v2871
        %v2874 = vcosq.f32.pop %v2872
        %v2875 = vsinq.f32.pop %v2872
        %vm2876 = vweird.f32 %v404
        %v2877 = vand.u32 %v2873, 3
        %vm2878 = vcmp.lt.s32.totalorder %v2877, 2
        %vm2879 = vcmp.eq.s32.totalorder %v2877, 0
        %v2880 = vxor.u32 %v2875, 2147483648
        %v2881 = vsel %vm2879, %v2874, %v2880
        %vm2882 = vcmp.eq.s32.totalorder %v2877, 2
        %v2883 = vxor.u32 %v2874, 2147483648
        %v2884 = vsel %vm2882, %v2883, %v2875
        %v2885 = vsel %vm2878, %v2881, %v2884
        %v2886 = vsel %vm2876, nan, %v2885
        %v2887 = vand.u32 2147483647, %v405
        %vm2888 = vcmp.le.f32.partialorder %v2887, 0.7853982
        %vm2889 = vcmp.lt.s32.totalorder %v405, 0
        %v2890 = vand.u32 %v405, 2139095040
        %v2891 = vshrl.u32 %v2890, 23
        %v2892 = vsub.s32 %v2891, 127
        %v2893 = vand.u32 2147483647, %v405
        %v2894 = vand.u32 %v2893, 8388607
        %v2895 = vor.u32 %v2894, 8388608
        %v2896 = vsub.s32 0, %v2895
        %v2897 = vadd.s32 %v2892, 1
        %vm2898 = vcmp.gt.s32.totalorder %v2897, 0
        %v2899 = vsel %vm2898, %v2897, 0
        %v2900 = vshrl.u32 %v2899, 5
        %v2901 = vand.u32 %v2899, 31
        %v2902 = vsub.s32 32, %v2901
        %v2903 = vshrl.u32 683565275, %v2902
        %v2904 = vshll.u32 683565275, %v2901
        %v2905 = vshrl.u32 2475754826, %v2902
        %v2906 = vor.u32 %v2904, %v2905
        %v2907 = vshll.u32 2475754826, %v2901
        %v2908 = vshrl.u32 2131351028, %v2902
        %v2909 = vor.u32 %v2907, %v2908
        %v2910 = vshll.u32 2131351028, %v2901
        %v2911 = vshrl.u32 2102212464, %v2902
        %v2912 = vor.u32 %v2910, %v2911
        %v2913 = vshll.u32 2102212464, %v2901
        %v2914 = vshrl.u32 920167782, %v2902
        %v2915 = vor.u32 %v2913, %v2914
        %v2916 = vshll.u32 920167782, %v2901
        %v2917 = vshrl.u32 1326507024, %v2902
        %v2918 = vor.u32 %v2916, %v2917
        %vm2919 = vcmp.lt.s32.totalorder %v2900, 1
        %vm2920 = vcmp.lt.s32.totalorder %v2900, 2
        %vm2921 = vcmp.lt.s32.totalorder %v2900, 3
        %vm2922 = vcmp.lt.s32.totalorder %v2900, 4
        %v2923 = vsel %vm2919, %v2903, %v2906
        %v2924 = vsel %vm2922, %v2912, 2102212464
        %v2925 = vsel %vm2921, %v2909, %v2924
        %v2926 = vsel %vm2920, %v2923, %v2925
        %v2927 = vsel %vm2919, %v2906, %v2909
        %v2928 = vsel %vm2922, %v2915, 920167782
        %v2929 = vsel %vm2921, %v2912, %v2928
        %v2930 = vsel %vm2920, %v2927, %v2929
        %v2931 = vsel %vm2919, %v2909, %v2912
        %v2932 = vsel %vm2922, %v2918, 1326507024
        %v2933 = vsel %vm2921, %v2915, %v2932
        %v2934 = vsel %vm2920, %v2931, %v2933
        %v2935 = vshll.u32 %v2895, 8
        %v2936 = vmul.u32.u64.compose %v2935, %v2934
        %v2937 = vextract.low.u32 %v2936
        %v2938 = vextract.high.u32 %v2936
        %v2939 = vmul.u32.u64.compose %v2935, %v2930
        %v2940 = vextract.low.u32 %v2939
        %v2941 = vextract.high.u32 %v2939
        %v2942 = vmul.u32 %v2935, %v2926
        %v2943 = vadd.s32 %v2938, %v2940
        %vm2944 = vc.u32 %v2938, %v2940
        %v2945 = vadd.s32 %v2941, 1
        %v2946 = vsel %vm2944, %v2945, %v2941
        %v2947 = vadd.s32 %v2942, %v2946
        %v2948 = vadd.s32 %v2947, 536870912
        %v2949 = vshrl.u32 %v2948, 30
        %v2950 = vshll.u32 %v2949, 30
        %v2951 = vsub.s32 %v2947, %v2950
        %vm2952 = vcmp.lt.s32.totalorder %v2951, 0
        %v2953 = vsub.s32 0, %v2951
        %v2954 = vsel %vm2952, %v2953, %v2951
        %v2955 = vclz %v2954
        %v2956 = vsub.s32 %v2955, 2
        %vm2957 = vcmp.gt.s32.totalorder 0, %v2956
        %v2958 = vsel %vm2957, 0, %v2956
        %v2959 = vsub.s32 32, %v2958
        %v2960 = vshll.u32 %v2951, %v2958
        %v2961 = vshrl.u32 %v2943, %v2959
        %v2962 = vor.u32 %v2960, %v2961
        %v2963 = vsub.s32 4294967266, %v2958
        %v2964 = vadd.s32 %v2963, 127
        %v2965 = vshll.u32 %v2964, 23
        %v2966 = vor.u32 4788187, %v2965
        %v2967 = vand.u32 2147483647, %v2966
        %v2969 = vcvt.s32.f32 %v2962
        %v2970 = vmul.f32 %v2969, %v2967
        %v2971 = vxor.u32 %v2970, 2147483648
        %v2972 = vsel %vm2889, %v2971, %v2970
        %v2973 = vsub.s32 4, %v2949
        %v2974 = vsel %vm2889, %v2973, %v2949
        %v2975 = vsel %vm2888, %v405, %v2972
        %v2976 = vsel %vm2888, 0, %v2974
        %v2977 = vcosq.f32.pop %v2975
        %v2978 = vsinq.f32.pop %v2975
        %vm2979 = vweird.f32 %v405
        %v2980 = vand.u32 %v2976, 3
        %vm2981 = vcmp.lt.s32.totalorder %v2980, 2
        %vm2982 = vcmp.eq.s32.totalorder %v2980, 0
        %v2983 = vxor.u32 %v2978, 2147483648
        %v2984 = vsel %vm2982, %v2977, %v2983
        %vm2985 = vcmp.eq.s32.totalorder %v2980, 2
        %v2986 = vxor.u32 %v2977, 2147483648
        %v2987 = vsel %vm2985, %v2986, %v2978
        %v2988 = vsel %vm2981, %v2984, %v2987
        %v2989 = vsel %vm2979, nan, %v2988
        %v2990 = vand.u32 2147483647, %v406
        %vm2991 = vcmp.le.f32.partialorder %v2990, 0.7853982
        %vm2992 = vcmp.lt.s32.totalorder %v406, 0
        %v2993 = vand.u32 %v406, 2139095040
        %v2994 = vshrl.u32 %v2993, 23
        %v2995 = vsub.s32 %v2994, 127
        %v2996 = vand.u32 2147483647, %v406
        %v2997 = vand.u32 %v2996, 8388607
        %v2998 = vor.u32 %v2997, 8388608
        %v2999 = vsub.s32 0, %v2998
        %v3000 = vadd.s32 %v2995, 1
        %vm3001 = vcmp.gt.s32.totalorder %v3000, 0
        %v3002 = vsel %vm3001, %v3000, 0
        %v3003 = vshrl.u32 %v3002, 5
        %v3004 = vand.u32 %v3002, 31
        %v3005 = vsub.s32 32, %v3004
        %v3006 = vshrl.u32 683565275, %v3005
        %v3007 = vshll.u32 683565275, %v3004
        %v3008 = vshrl.u32 2475754826, %v3005
        %v3009 = vor.u32 %v3007, %v3008
        %v3010 = vshll.u32 2475754826, %v3004
        %v3011 = vshrl.u32 2131351028, %v3005
        %v3012 = vor.u32 %v3010, %v3011
        %v3013 = vshll.u32 2131351028, %v3004
        %v3014 = vshrl.u32 2102212464, %v3005
        %v3015 = vor.u32 %v3013, %v3014
        %v3016 = vshll.u32 2102212464, %v3004
        %v3017 = vshrl.u32 920167782, %v3005
        %v3018 = vor.u32 %v3016, %v3017
        %v3019 = vshll.u32 920167782, %v3004
        %v3020 = vshrl.u32 1326507024, %v3005
        %v3021 = vor.u32 %v3019, %v3020
        %vm3022 = vcmp.lt.s32.totalorder %v3003, 1
        %vm3023 = vcmp.lt.s32.totalorder %v3003, 2
        %vm3024 = vcmp.lt.s32.totalorder %v3003, 3
        %vm3025 = vcmp.lt.s32.totalorder %v3003, 4
        %v3026 = vsel %vm3022, %v3006, %v3009
        %v3027 = vsel %vm3025, %v3015, 2102212464
        %v3028 = vsel %vm3024, %v3012, %v3027
        %v3029 = vsel %vm3023, %v3026, %v3028
        %v3030 = vsel %vm3022, %v3009, %v3012
        %v3031 = vsel %vm3025, %v3018, 920167782
        %v3032 = vsel %vm3024, %v3015, %v3031
        %v3033 = vsel %vm3023, %v3030, %v3032
        %v3034 = vsel %vm3022, %v3012, %v3015
        %v3035 = vsel %vm3025, %v3021, 1326507024
        %v3036 = vsel %vm3024, %v3018, %v3035
        %v3037 = vsel %vm3023, %v3034, %v3036
        %v3038 = vshll.u32 %v2998, 8
        %v3039 = vmul.u32.u64.compose %v3038, %v3037
        %v3040 = vextract.low.u32 %v3039
        %v3041 = vextract.high.u32 %v3039
        %v3042 = vmul.u32.u64.compose %v3038, %v3033
        %v3043 = vextract.low.u32 %v3042
        %v3044 = vextract.high.u32 %v3042
        %v3045 = vmul.u32 %v3038, %v3029
        %v3046 = vadd.s32 %v3041, %v3043
        %vm3047 = vc.u32 %v3041, %v3043
        %v3048 = vadd.s32 %v3044, 1
        %v3049 = vsel %vm3047, %v3048, %v3044
        %v3050 = vadd.s32 %v3045, %v3049
        %v3051 = vadd.s32 %v3050, 536870912
        %v3052 = vshrl.u32 %v3051, 30
        %v3053 = vshll.u32 %v3052, 30
        %v3054 = vsub.s32 %v3050, %v3053
        %vm3055 = vcmp.lt.s32.totalorder %v3054, 0
        %v3056 = vsub.s32 0, %v3054
        %v3057 = vsel %vm3055, %v3056, %v3054
        %v3058 = vclz %v3057
        %v3059 = vsub.s32 %v3058, 2
        %vm3060 = vcmp.gt.s32.totalorder 0, %v3059
        %v3061 = vsel %vm3060, 0, %v3059
        %v3062 = vsub.s32 32, %v3061
        %v3063 = vshll.u32 %v3054, %v3061
        %v3064 = vshrl.u32 %v3046, %v3062
        %v3065 = vor.u32 %v3063, %v3064
        %v3066 = vsub.s32 4294967266, %v3061
        %v3067 = vadd.s32 %v3066, 127
        %v3068 = vshll.u32 %v3067, 23
        %v3069 = vor.u32 4788187, %v3068
        %v3070 = vand.u32 2147483647, %v3069
        %v3072 = vcvt.s32.f32 %v3065
        %v3073 = vmul.f32 %v3072, %v3070
        %v3074 = vxor.u32 %v3073, 2147483648
        %v3075 = vsel %vm2992, %v3074, %v3073
        %v3076 = vsub.s32 4, %v3052
        %v3077 = vsel %vm2992, %v3076, %v3052
        %v3078 = vsel %vm2991, %v406, %v3075
        %v3079 = vsel %vm2991, 0, %v3077
        %v3080 = vcosq.f32.pop %v3078
        %v3081 = vsinq.f32.pop %v3078
        %vm3082 = vweird.f32 %v406
        %v3083 = vand.u32 %v3079, 3
        %vm3084 = vcmp.lt.s32.totalorder %v3083, 2
        %vm3085 = vcmp.eq.s32.totalorder %v3083, 0
        %v3086 = vxor.u32 %v3081, 2147483648
        %v3087 = vsel %vm3085, %v3080, %v3086
        %vm3088 = vcmp.eq.s32.totalorder %v3083, 2
        %v3089 = vxor.u32 %v3080, 2147483648
        %v3090 = vsel %vm3088, %v3089, %v3081
        %v3091 = vsel %vm3084, %v3087, %v3090
        %v3092 = vsel %vm3082, nan, %v3091
        %v3093 = vand.u32 2147483647, %v407
        %vm3094 = vcmp.le.f32.partialorder %v3093, 0.7853982
        %vm3095 = vcmp.lt.s32.totalorder %v407, 0
        %v3096 = vand.u32 %v407, 2139095040
        %v3097 = vshrl.u32 %v3096, 23
        %v3098 = vsub.s32 %v3097, 127
        %v3099 = vand.u32 2147483647, %v407
        %v3100 = vand.u32 %v3099, 8388607
        %v3101 = vor.u32 %v3100, 8388608
        %v3102 = vsub.s32 0, %v3101
        %v3103 = vadd.s32 %v3098, 1
        %vm3104 = vcmp.gt.s32.totalorder %v3103, 0
        %v3105 = vsel %vm3104, %v3103, 0
        %v3106 = vshrl.u32 %v3105, 5
        %v3107 = vand.u32 %v3105, 31
        %v3108 = vsub.s32 32, %v3107
        %v3109 = vshrl.u32 683565275, %v3108
        %v3110 = vshll.u32 683565275, %v3107
        %v3111 = vshrl.u32 2475754826, %v3108
        %v3112 = vor.u32 %v3110, %v3111
        %v3113 = vshll.u32 2475754826, %v3107
        %v3114 = vshrl.u32 2131351028, %v3108
        %v3115 = vor.u32 %v3113, %v3114
        %v3116 = vshll.u32 2131351028, %v3107
        %v3117 = vshrl.u32 2102212464, %v3108
        %v3118 = vor.u32 %v3116, %v3117
        %v3119 = vshll.u32 2102212464, %v3107
        %v3120 = vshrl.u32 920167782, %v3108
        %v3121 = vor.u32 %v3119, %v3120
        %v3122 = vshll.u32 920167782, %v3107
        %v3123 = vshrl.u32 1326507024, %v3108
        %v3124 = vor.u32 %v3122, %v3123
        %vm3125 = vcmp.lt.s32.totalorder %v3106, 1
        %vm3126 = vcmp.lt.s32.totalorder %v3106, 2
        %vm3127 = vcmp.lt.s32.totalorder %v3106, 3
        %vm3128 = vcmp.lt.s32.totalorder %v3106, 4
        %v3129 = vsel %vm3125, %v3109, %v3112
        %v3130 = vsel %vm3128, %v3118, 2102212464
        %v3131 = vsel %vm3127, %v3115, %v3130
        %v3132 = vsel %vm3126, %v3129, %v3131
        %v3133 = vsel %vm3125, %v3112, %v3115
        %v3134 = vsel %vm3128, %v3121, 920167782
        %v3135 = vsel %vm3127, %v3118, %v3134
        %v3136 = vsel %vm3126, %v3133, %v3135
        %v3137 = vsel %vm3125, %v3115, %v3118
        %v3138 = vsel %vm3128, %v3124, 1326507024
        %v3139 = vsel %vm3127, %v3121, %v3138
        %v3140 = vsel %vm3126, %v3137, %v3139
        %v3141 = vshll.u32 %v3101, 8
        %v3142 = vmul.u32.u64.compose %v3141, %v3140
        %v3143 = vextract.low.u32 %v3142
        %v3144 = vextract.high.u32 %v3142
        %v3145 = vmul.u32.u64.compose %v3141, %v3136
        %v3146 = vextract.low.u32 %v3145
        %v3147 = vextract.high.u32 %v3145
        %v3148 = vmul.u32 %v3141, %v3132
        %v3149 = vadd.s32 %v3144, %v3146
        %vm3150 = vc.u32 %v3144, %v3146
        %v3151 = vadd.s32 %v3147, 1
        %v3152 = vsel %vm3150, %v3151, %v3147
        %v3153 = vadd.s32 %v3148, %v3152
        %v3154 = vadd.s32 %v3153, 536870912
        %v3155 = vshrl.u32 %v3154, 30
        %v3156 = vshll.u32 %v3155, 30
        %v3157 = vsub.s32 %v3153, %v3156
        %vm3158 = vcmp.lt.s32.totalorder %v3157, 0
        %v3159 = vsub.s32 0, %v3157
        %v3160 = vsel %vm3158, %v3159, %v3157
        %v3161 = vclz %v3160
        %v3162 = vsub.s32 %v3161, 2
        %vm3163 = vcmp.gt.s32.totalorder 0, %v3162
        %v3164 = vsel %vm3163, 0, %v3162
        %v3165 = vsub.s32 32, %v3164
        %v3166 = vshll.u32 %v3157, %v3164
        %v3167 = vshrl.u32 %v3149, %v3165
        %v3168 = vor.u32 %v3166, %v3167
        %v3169 = vsub.s32 4294967266, %v3164
        %v3170 = vadd.s32 %v3169, 127
        %v3171 = vshll.u32 %v3170, 23
        %v3172 = vor.u32 4788187, %v3171
        %v3173 = vand.u32 2147483647, %v3172
        %v3175 = vcvt.s32.f32 %v3168
        %v3176 = vmul.f32 %v3175, %v3173
        %v3177 = vxor.u32 %v3176, 2147483648
        %v3178 = vsel %vm3095, %v3177, %v3176
        %v3179 = vsub.s32 4, %v3155
        %v3180 = vsel %vm3095, %v3179, %v3155
        %v3181 = vsel %vm3094, %v407, %v3178
        %v3182 = vsel %vm3094, 0, %v3180
        %v3183 = vcosq.f32.pop %v3181
        %v3184 = vsinq.f32.pop %v3181
        %vm3185 = vweird.f32 %v407
        %v3186 = vand.u32 %v3182, 3
        %vm3187 = vcmp.lt.s32.totalorder %v3186, 2
        %vm3188 = vcmp.eq.s32.totalorder %v3186, 0
        %v3189 = vxor.u32 %v3184, 2147483648
        %v3190 = vsel %vm3188, %v3183, %v3189
        %vm3191 = vcmp.eq.s32.totalorder %v3186, 2
        %v3192 = vxor.u32 %v3183, 2147483648
        %v3193 = vsel %vm3191, %v3192, %v3184
        %v3194 = vsel %vm3187, %v3190, %v3193
        %v3195 = vsel %vm3185, nan, %v3194
        %v3196 = vand.u32 2147483647, %v408
        %vm3197 = vcmp.le.f32.partialorder %v3196, 0.7853982
        %vm3198 = vcmp.lt.s32.totalorder %v408, 0
        %v3199 = vand.u32 %v408, 2139095040
        %v3200 = vshrl.u32 %v3199, 23
        %v3201 = vsub.s32 %v3200, 127
        %v3202 = vand.u32 2147483647, %v408
        %v3203 = vand.u32 %v3202, 8388607
        %v3204 = vor.u32 %v3203, 8388608
        %v3205 = vsub.s32 0, %v3204
        %v3206 = vadd.s32 %v3201, 1
        %vm3207 = vcmp.gt.s32.totalorder %v3206, 0
        %v3208 = vsel %vm3207, %v3206, 0
        %v3209 = vshrl.u32 %v3208, 5
        %v3210 = vand.u32 %v3208, 31
        %v3211 = vsub.s32 32, %v3210
        %v3212 = vshrl.u32 683565275, %v3211
        %v3213 = vshll.u32 683565275, %v3210
        %v3214 = vshrl.u32 2475754826, %v3211
        %v3215 = vor.u32 %v3213, %v3214
        %v3216 = vshll.u32 2475754826, %v3210
        %v3217 = vshrl.u32 2131351028, %v3211
        %v3218 = vor.u32 %v3216, %v3217
        %v3219 = vshll.u32 2131351028, %v3210
        %v3220 = vshrl.u32 2102212464, %v3211
        %v3221 = vor.u32 %v3219, %v3220
        %v3222 = vshll.u32 2102212464, %v3210
        %v3223 = vshrl.u32 920167782, %v3211
        %v3224 = vor.u32 %v3222, %v3223
        %v3225 = vshll.u32 920167782, %v3210
        %v3226 = vshrl.u32 1326507024, %v3211
        %v3227 = vor.u32 %v3225, %v3226
        %vm3228 = vcmp.lt.s32.totalorder %v3209, 1
        %vm3229 = vcmp.lt.s32.totalorder %v3209, 2
        %vm3230 = vcmp.lt.s32.totalorder %v3209, 3
        %vm3231 = vcmp.lt.s32.totalorder %v3209, 4
        %v3232 = vsel %vm3228, %v3212, %v3215
        %v3233 = vsel %vm3231, %v3221, 2102212464
        %v3234 = vsel %vm3230, %v3218, %v3233
        %v3235 = vsel %vm3229, %v3232, %v3234
        %v3236 = vsel %vm3228, %v3215, %v3218
        %v3237 = vsel %vm3231, %v3224, 920167782
        %v3238 = vsel %vm3230, %v3221, %v3237
        %v3239 = vsel %vm3229, %v3236, %v3238
        %v3240 = vsel %vm3228, %v3218, %v3221
        %v3241 = vsel %vm3231, %v3227, 1326507024
        %v3242 = vsel %vm3230, %v3224, %v3241
        %v3243 = vsel %vm3229, %v3240, %v3242
        %v3244 = vshll.u32 %v3204, 8
        %v3245 = vmul.u32.u64.compose %v3244, %v3243
        %v3246 = vextract.low.u32 %v3245
        %v3247 = vextract.high.u32 %v3245
        %v3248 = vmul.u32.u64.compose %v3244, %v3239
        %v3249 = vextract.low.u32 %v3248
        %v3250 = vextract.high.u32 %v3248
        %v3251 = vmul.u32 %v3244, %v3235
        %v3252 = vadd.s32 %v3247, %v3249
        %vm3253 = vc.u32 %v3247, %v3249
        %v3254 = vadd.s32 %v3250, 1
        %v3255 = vsel %vm3253, %v3254, %v3250
        %v3256 = vadd.s32 %v3251, %v3255
        %v3257 = vadd.s32 %v3256, 536870912
        %v3258 = vshrl.u32 %v3257, 30
        %v3259 = vshll.u32 %v3258, 30
        %v3260 = vsub.s32 %v3256, %v3259
        %vm3261 = vcmp.lt.s32.totalorder %v3260, 0
        %v3262 = vsub.s32 0, %v3260
        %v3263 = vsel %vm3261, %v3262, %v3260
        %v3264 = vclz %v3263
        %v3265 = vsub.s32 %v3264, 2
        %vm3266 = vcmp.gt.s32.totalorder 0, %v3265
        %v3267 = vsel %vm3266, 0, %v3265
        %v3268 = vsub.s32 32, %v3267
        %v3269 = vshll.u32 %v3260, %v3267
        %v3270 = vshrl.u32 %v3252, %v3268
        %v3271 = vor.u32 %v3269, %v3270
        %v3272 = vsub.s32 4294967266, %v3267
        %v3273 = vadd.s32 %v3272, 127
        %v3274 = vshll.u32 %v3273, 23
        %v3275 = vor.u32 4788187, %v3274
        %v3276 = vand.u32 2147483647, %v3275
        %v3278 = vcvt.s32.f32 %v3271
        %v3279 = vmul.f32 %v3278, %v3276
        %v3280 = vxor.u32 %v3279, 2147483648
        %v3281 = vsel %vm3198, %v3280, %v3279
        %v3282 = vsub.s32 4, %v3258
        %v3283 = vsel %vm3198, %v3282, %v3258
        %v3284 = vsel %vm3197, %v408, %v3281
        %v3285 = vsel %vm3197, 0, %v3283
        %v3286 = vcosq.f32.pop %v3284
        %v3287 = vsinq.f32.pop %v3284
        %vm3288 = vweird.f32 %v408
        %v3289 = vand.u32 %v3285, 3
        %vm3290 = vcmp.lt.s32.totalorder %v3289, 2
        %vm3291 = vcmp.eq.s32.totalorder %v3289, 0
        %v3292 = vxor.u32 %v3287, 2147483648
        %v3293 = vsel %vm3291, %v3286, %v3292
        %vm3294 = vcmp.eq.s32.totalorder %v3289, 2
        %v3295 = vxor.u32 %v3286, 2147483648
        %v3296 = vsel %vm3294, %v3295, %v3287
        %v3297 = vsel %vm3290, %v3293, %v3296
        %v3298 = vsel %vm3288, nan, %v3297
        %v3299 = vand.u32 2147483647, %v409
        %vm3300 = vcmp.le.f32.partialorder %v3299, 0.7853982
        %vm3301 = vcmp.lt.s32.totalorder %v409, 0
        %v3302 = vand.u32 %v409, 2139095040
        %v3303 = vshrl.u32 %v3302, 23
        %v3304 = vsub.s32 %v3303, 127
        %v3305 = vand.u32 2147483647, %v409
        %v3306 = vand.u32 %v3305, 8388607
        %v3307 = vor.u32 %v3306, 8388608
        %v3308 = vsub.s32 0, %v3307
        %v3309 = vadd.s32 %v3304, 1
        %vm3310 = vcmp.gt.s32.totalorder %v3309, 0
        %v3311 = vsel %vm3310, %v3309, 0
        %v3312 = vshrl.u32 %v3311, 5
        %v3313 = vand.u32 %v3311, 31
        %v3314 = vsub.s32 32, %v3313
        %v3315 = vshrl.u32 683565275, %v3314
        %v3316 = vshll.u32 683565275, %v3313
        %v3317 = vshrl.u32 2475754826, %v3314
        %v3318 = vor.u32 %v3316, %v3317
        %v3319 = vshll.u32 2475754826, %v3313
        %v3320 = vshrl.u32 2131351028, %v3314
        %v3321 = vor.u32 %v3319, %v3320
        %v3322 = vshll.u32 2131351028, %v3313
        %v3323 = vshrl.u32 2102212464, %v3314
        %v3324 = vor.u32 %v3322, %v3323
        %v3325 = vshll.u32 2102212464, %v3313
        %v3326 = vshrl.u32 920167782, %v3314
        %v3327 = vor.u32 %v3325, %v3326
        %v3328 = vshll.u32 920167782, %v3313
        %v3329 = vshrl.u32 1326507024, %v3314
        %v3330 = vor.u32 %v3328, %v3329
        %vm3331 = vcmp.lt.s32.totalorder %v3312, 1
        %vm3332 = vcmp.lt.s32.totalorder %v3312, 2
        %vm3333 = vcmp.lt.s32.totalorder %v3312, 3
        %vm3334 = vcmp.lt.s32.totalorder %v3312, 4
        %v3335 = vsel %vm3331, %v3315, %v3318
        %v3336 = vsel %vm3334, %v3324, 2102212464
        %v3337 = vsel %vm3333, %v3321, %v3336
        %v3338 = vsel %vm3332, %v3335, %v3337
        %v3339 = vsel %vm3331, %v3318, %v3321
        %v3340 = vsel %vm3334, %v3327, 920167782
        %v3341 = vsel %vm3333, %v3324, %v3340
        %v3342 = vsel %vm3332, %v3339, %v3341
        %v3343 = vsel %vm3331, %v3321, %v3324
        %v3344 = vsel %vm3334, %v3330, 1326507024
        %v3345 = vsel %vm3333, %v3327, %v3344
        %v3346 = vsel %vm3332, %v3343, %v3345
        %v3347 = vshll.u32 %v3307, 8
        %v3348 = vmul.u32.u64.compose %v3347, %v3346
        %v3349 = vextract.low.u32 %v3348
        %v3350 = vextract.high.u32 %v3348
        %v3351 = vmul.u32.u64.compose %v3347, %v3342
        %v3352 = vextract.low.u32 %v3351
        %v3353 = vextract.high.u32 %v3351
        %v3354 = vmul.u32 %v3347, %v3338
        %v3355 = vadd.s32 %v3350, %v3352
        %vm3356 = vc.u32 %v3350, %v3352
        %v3357 = vadd.s32 %v3353, 1
        %v3358 = vsel %vm3356, %v3357, %v3353
        %v3359 = vadd.s32 %v3354, %v3358
        %v3360 = vadd.s32 %v3359, 536870912
        %v3361 = vshrl.u32 %v3360, 30
        %v3362 = vshll.u32 %v3361, 30
        %v3363 = vsub.s32 %v3359, %v3362
        %vm3364 = vcmp.lt.s32.totalorder %v3363, 0
        %v3365 = vsub.s32 0, %v3363
        %v3366 = vsel %vm3364, %v3365, %v3363
        %v3367 = vclz %v3366
        %v3368 = vsub.s32 %v3367, 2
        %vm3369 = vcmp.gt.s32.totalorder 0, %v3368
        %v3370 = vsel %vm3369, 0, %v3368
        %v3371 = vsub.s32 32, %v3370
        %v3372 = vshll.u32 %v3363, %v3370
        %v3373 = vshrl.u32 %v3355, %v3371
        %v3374 = vor.u32 %v3372, %v3373
        %v3375 = vsub.s32 4294967266, %v3370
        %v3376 = vadd.s32 %v3375, 127
        %v3377 = vshll.u32 %v3376, 23
        %v3378 = vor.u32 4788187, %v3377
        %v3379 = vand.u32 2147483647, %v3378
        %v3381 = vcvt.s32.f32 %v3374
        %v3382 = vmul.f32 %v3381, %v3379
        %v3383 = vxor.u32 %v3382, 2147483648
        %v3384 = vsel %vm3301, %v3383, %v3382
        %v3385 = vsub.s32 4, %v3361
        %v3386 = vsel %vm3301, %v3385, %v3361
        %v3387 = vsel %vm3300, %v409, %v3384
        %v3388 = vsel %vm3300, 0, %v3386
        %v3389 = vcosq.f32.pop %v3387
        %v3390 = vsinq.f32.pop %v3387
        %vm3391 = vweird.f32 %v409
        %v3392 = vand.u32 %v3388, 3
        %vm3393 = vcmp.lt.s32.totalorder %v3392, 2
        %vm3394 = vcmp.eq.s32.totalorder %v3392, 0
        %v3395 = vxor.u32 %v3390, 2147483648
        %v3396 = vsel %vm3394, %v3389, %v3395
        %vm3397 = vcmp.eq.s32.totalorder %v3392, 2
        %v3398 = vxor.u32 %v3389, 2147483648
        %v3399 = vsel %vm3397, %v3398, %v3390
        %v3400 = vsel %vm3393, %v3396, %v3399
        %v3401 = vsel %vm3391, nan, %v3400
        %v3402 = vand.u32 2147483647, %v410
        %vm3403 = vcmp.le.f32.partialorder %v3402, 0.7853982
        %vm3404 = vcmp.lt.s32.totalorder %v410, 0
        %v3405 = vand.u32 %v410, 2139095040
        %v3406 = vshrl.u32 %v3405, 23
        %v3407 = vsub.s32 %v3406, 127
        %v3408 = vand.u32 2147483647, %v410
        %v3409 = vand.u32 %v3408, 8388607
        %v3410 = vor.u32 %v3409, 8388608
        %v3411 = vsub.s32 0, %v3410
        %v3412 = vadd.s32 %v3407, 1
        %vm3413 = vcmp.gt.s32.totalorder %v3412, 0
        %v3414 = vsel %vm3413, %v3412, 0
        %v3415 = vshrl.u32 %v3414, 5
        %v3416 = vand.u32 %v3414, 31
        %v3417 = vsub.s32 32, %v3416
        %v3418 = vshrl.u32 683565275, %v3417
        %v3419 = vshll.u32 683565275, %v3416
        %v3420 = vshrl.u32 2475754826, %v3417
        %v3421 = vor.u32 %v3419, %v3420
        %v3422 = vshll.u32 2475754826, %v3416
        %v3423 = vshrl.u32 2131351028, %v3417
        %v3424 = vor.u32 %v3422, %v3423
        %v3425 = vshll.u32 2131351028, %v3416
        %v3426 = vshrl.u32 2102212464, %v3417
        %v3427 = vor.u32 %v3425, %v3426
        %v3428 = vshll.u32 2102212464, %v3416
        %v3429 = vshrl.u32 920167782, %v3417
        %v3430 = vor.u32 %v3428, %v3429
        %v3431 = vshll.u32 920167782, %v3416
        %v3432 = vshrl.u32 1326507024, %v3417
        %v3433 = vor.u32 %v3431, %v3432
        %vm3434 = vcmp.lt.s32.totalorder %v3415, 1
        %vm3435 = vcmp.lt.s32.totalorder %v3415, 2
        %vm3436 = vcmp.lt.s32.totalorder %v3415, 3
        %vm3437 = vcmp.lt.s32.totalorder %v3415, 4
        %v3438 = vsel %vm3434, %v3418, %v3421
        %v3439 = vsel %vm3437, %v3427, 2102212464
        %v3440 = vsel %vm3436, %v3424, %v3439
        %v3441 = vsel %vm3435, %v3438, %v3440
        %v3442 = vsel %vm3434, %v3421, %v3424
        %v3443 = vsel %vm3437, %v3430, 920167782
        %v3444 = vsel %vm3436, %v3427, %v3443
        %v3445 = vsel %vm3435, %v3442, %v3444
        %v3446 = vsel %vm3434, %v3424, %v3427
        %v3447 = vsel %vm3437, %v3433, 1326507024
        %v3448 = vsel %vm3436, %v3430, %v3447
        %v3449 = vsel %vm3435, %v3446, %v3448
        %v3450 = vshll.u32 %v3410, 8
        %v3451 = vmul.u32.u64.compose %v3450, %v3449
        %v3452 = vextract.low.u32 %v3451
        %v3453 = vextract.high.u32 %v3451
        %v3454 = vmul.u32.u64.compose %v3450, %v3445
        %v3455 = vextract.low.u32 %v3454
        %v3456 = vextract.high.u32 %v3454
        %v3457 = vmul.u32 %v3450, %v3441
        %v3458 = vadd.s32 %v3453, %v3455
        %vm3459 = vc.u32 %v3453, %v3455
        %v3460 = vadd.s32 %v3456, 1
        %v3461 = vsel %vm3459, %v3460, %v3456
        %v3462 = vadd.s32 %v3457, %v3461
        %v3463 = vadd.s32 %v3462, 536870912
        %v3464 = vshrl.u32 %v3463, 30
        %v3465 = vshll.u32 %v3464, 30
        %v3466 = vsub.s32 %v3462, %v3465
        %vm3467 = vcmp.lt.s32.totalorder %v3466, 0
        %v3468 = vsub.s32 0, %v3466
        %v3469 = vsel %vm3467, %v3468, %v3466
        %v3470 = vclz %v3469
        %v3471 = vsub.s32 %v3470, 2
        %vm3472 = vcmp.gt.s32.totalorder 0, %v3471
        %v3473 = vsel %vm3472, 0, %v3471
        %v3474 = vsub.s32 32, %v3473
        %v3475 = vshll.u32 %v3466, %v3473
        %v3476 = vshrl.u32 %v3458, %v3474
        %v3477 = vor.u32 %v3475, %v3476
        %v3478 = vsub.s32 4294967266, %v3473
        %v3479 = vadd.s32 %v3478, 127
        %v3480 = vshll.u32 %v3479, 23
        %v3481 = vor.u32 4788187, %v3480
        %v3482 = vand.u32 2147483647, %v3481
        %v3484 = vcvt.s32.f32 %v3477
        %v3485 = vmul.f32 %v3484, %v3482
        %v3486 = vxor.u32 %v3485, 2147483648
        %v3487 = vsel %vm3404, %v3486, %v3485
        %v3488 = vsub.s32 4, %v3464
        %v3489 = vsel %vm3404, %v3488, %v3464
        %v3490 = vsel %vm3403, %v410, %v3487
        %v3491 = vsel %vm3403, 0, %v3489
        %v3492 = vcosq.f32.pop %v3490
        %v3493 = vsinq.f32.pop %v3490
        %vm3494 = vweird.f32 %v410
        %v3495 = vand.u32 %v3491, 3
        %vm3496 = vcmp.lt.s32.totalorder %v3495, 2
        %vm3497 = vcmp.eq.s32.totalorder %v3495, 0
        %v3498 = vxor.u32 %v3493, 2147483648
        %v3499 = vsel %vm3497, %v3492, %v3498
        %vm3500 = vcmp.eq.s32.totalorder %v3495, 2
        %v3501 = vxor.u32 %v3492, 2147483648
        %v3502 = vsel %vm3500, %v3501, %v3493
        %v3503 = vsel %vm3496, %v3499, %v3502
        %v3504 = vsel %vm3494, nan, %v3503
        %v3505 = vand.u32 2147483647, %v411
        %vm3506 = vcmp.le.f32.partialorder %v3505, 0.7853982
        %vm3507 = vcmp.lt.s32.totalorder %v411, 0
        %v3508 = vand.u32 %v411, 2139095040
        %v3509 = vshrl.u32 %v3508, 23
        %v3510 = vsub.s32 %v3509, 127
        %v3511 = vand.u32 2147483647, %v411
        %v3512 = vand.u32 %v3511, 8388607
        %v3513 = vor.u32 %v3512, 8388608
        %v3514 = vsub.s32 0, %v3513
        %v3515 = vadd.s32 %v3510, 1
        %vm3516 = vcmp.gt.s32.totalorder %v3515, 0
        %v3517 = vsel %vm3516, %v3515, 0
        %v3518 = vshrl.u32 %v3517, 5
        %v3519 = vand.u32 %v3517, 31
        %v3520 = vsub.s32 32, %v3519
        %v3521 = vshrl.u32 683565275, %v3520
        %v3522 = vshll.u32 683565275, %v3519
        %v3523 = vshrl.u32 2475754826, %v3520
        %v3524 = vor.u32 %v3522, %v3523
        %v3525 = vshll.u32 2475754826, %v3519
        %v3526 = vshrl.u32 2131351028, %v3520
        %v3527 = vor.u32 %v3525, %v3526
        %v3528 = vshll.u32 2131351028, %v3519
        %v3529 = vshrl.u32 2102212464, %v3520
        %v3530 = vor.u32 %v3528, %v3529
        %v3531 = vshll.u32 2102212464, %v3519
        %v3532 = vshrl.u32 920167782, %v3520
        %v3533 = vor.u32 %v3531, %v3532
        %v3534 = vshll.u32 920167782, %v3519
        %v3535 = vshrl.u32 1326507024, %v3520
        %v3536 = vor.u32 %v3534, %v3535
        %vm3537 = vcmp.lt.s32.totalorder %v3518, 1
        %vm3538 = vcmp.lt.s32.totalorder %v3518, 2
        %vm3539 = vcmp.lt.s32.totalorder %v3518, 3
        %vm3540 = vcmp.lt.s32.totalorder %v3518, 4
        %v3541 = vsel %vm3537, %v3521, %v3524
        %v3542 = vsel %vm3540, %v3530, 2102212464
        %v3543 = vsel %vm3539, %v3527, %v3542
        %v3544 = vsel %vm3538, %v3541, %v3543
        %v3545 = vsel %vm3537, %v3524, %v3527
        %v3546 = vsel %vm3540, %v3533, 920167782
        %v3547 = vsel %vm3539, %v3530, %v3546
        %v3548 = vsel %vm3538, %v3545, %v3547
        %v3549 = vsel %vm3537, %v3527, %v3530
        %v3550 = vsel %vm3540, %v3536, 1326507024
        %v3551 = vsel %vm3539, %v3533, %v3550
        %v3552 = vsel %vm3538, %v3549, %v3551
        %v3553 = vshll.u32 %v3513, 8
        %v3554 = vmul.u32.u64.compose %v3553, %v3552
        %v3555 = vextract.low.u32 %v3554
        %v3556 = vextract.high.u32 %v3554
        %v3557 = vmul.u32.u64.compose %v3553, %v3548
        %v3558 = vextract.low.u32 %v3557
        %v3559 = vextract.high.u32 %v3557
        %v3560 = vmul.u32 %v3553, %v3544
        %v3561 = vadd.s32 %v3556, %v3558
        %vm3562 = vc.u32 %v3556, %v3558
        %v3563 = vadd.s32 %v3559, 1
        %v3564 = vsel %vm3562, %v3563, %v3559
        %v3565 = vadd.s32 %v3560, %v3564
        %v3566 = vadd.s32 %v3565, 536870912
        %v3567 = vshrl.u32 %v3566, 30
        %v3568 = vshll.u32 %v3567, 30
        %v3569 = vsub.s32 %v3565, %v3568
        %vm3570 = vcmp.lt.s32.totalorder %v3569, 0
        %v3571 = vsub.s32 0, %v3569
        %v3572 = vsel %vm3570, %v3571, %v3569
        %v3573 = vclz %v3572
        %v3574 = vsub.s32 %v3573, 2
        %vm3575 = vcmp.gt.s32.totalorder 0, %v3574
        %v3576 = vsel %vm3575, 0, %v3574
        %v3577 = vsub.s32 32, %v3576
        %v3578 = vshll.u32 %v3569, %v3576
        %v3579 = vshrl.u32 %v3561, %v3577
        %v3580 = vor.u32 %v3578, %v3579
        %v3581 = vsub.s32 4294967266, %v3576
        %v3582 = vadd.s32 %v3581, 127
        %v3583 = vshll.u32 %v3582, 23
        %v3584 = vor.u32 4788187, %v3583
        %v3585 = vand.u32 2147483647, %v3584
        %v3587 = vcvt.s32.f32 %v3580
        %v3588 = vmul.f32 %v3587, %v3585
        %v3589 = vxor.u32 %v3588, 2147483648
        %v3590 = vsel %vm3507, %v3589, %v3588
        %v3591 = vsub.s32 4, %v3567
        %v3592 = vsel %vm3507, %v3591, %v3567
        %v3593 = vsel %vm3506, %v411, %v3590
        %v3594 = vsel %vm3506, 0, %v3592
        %v3595 = vcosq.f32.pop %v3593
        %v3596 = vsinq.f32.pop %v3593
        %vm3597 = vweird.f32 %v411
        %v3598 = vand.u32 %v3594, 3
        %vm3599 = vcmp.lt.s32.totalorder %v3598, 2
        %vm3600 = vcmp.eq.s32.totalorder %v3598, 0
        %v3601 = vxor.u32 %v3596, 2147483648
        %v3602 = vsel %vm3600, %v3595, %v3601
        %vm3603 = vcmp.eq.s32.totalorder %v3598, 2
        %v3604 = vxor.u32 %v3595, 2147483648
        %v3605 = vsel %vm3603, %v3604, %v3596
        %v3606 = vsel %vm3599, %v3602, %v3605
        %v3607 = vsel %vm3597, nan, %v3606
        %v3608 = vand.u32 2147483647, %v412
        %vm3609 = vcmp.le.f32.partialorder %v3608, 0.7853982
        %vm3610 = vcmp.lt.s32.totalorder %v412, 0
        %v3611 = vand.u32 %v412, 2139095040
        %v3612 = vshrl.u32 %v3611, 23
        %v3613 = vsub.s32 %v3612, 127
        %v3614 = vand.u32 2147483647, %v412
        %v3615 = vand.u32 %v3614, 8388607
        %v3616 = vor.u32 %v3615, 8388608
        %v3617 = vsub.s32 0, %v3616
        %v3618 = vadd.s32 %v3613, 1
        %vm3619 = vcmp.gt.s32.totalorder %v3618, 0
        %v3620 = vsel %vm3619, %v3618, 0
        %v3621 = vshrl.u32 %v3620, 5
        %v3622 = vand.u32 %v3620, 31
        %v3623 = vsub.s32 32, %v3622
        %v3624 = vshrl.u32 683565275, %v3623
        %v3625 = vshll.u32 683565275, %v3622
        %v3626 = vshrl.u32 2475754826, %v3623
        %v3627 = vor.u32 %v3625, %v3626
        %v3628 = vshll.u32 2475754826, %v3622
        %v3629 = vshrl.u32 2131351028, %v3623
        %v3630 = vor.u32 %v3628, %v3629
        %v3631 = vshll.u32 2131351028, %v3622
        %v3632 = vshrl.u32 2102212464, %v3623
        %v3633 = vor.u32 %v3631, %v3632
        %v3634 = vshll.u32 2102212464, %v3622
        %v3635 = vshrl.u32 920167782, %v3623
        %v3636 = vor.u32 %v3634, %v3635
        %v3637 = vshll.u32 920167782, %v3622
        %v3638 = vshrl.u32 1326507024, %v3623
        %v3639 = vor.u32 %v3637, %v3638
        %vm3640 = vcmp.lt.s32.totalorder %v3621, 1
        %vm3641 = vcmp.lt.s32.totalorder %v3621, 2
        %vm3642 = vcmp.lt.s32.totalorder %v3621, 3
        %vm3643 = vcmp.lt.s32.totalorder %v3621, 4
        %v3644 = vsel %vm3640, %v3624, %v3627
        %v3645 = vsel %vm3643, %v3633, 2102212464
        %v3646 = vsel %vm3642, %v3630, %v3645
        %v3647 = vsel %vm3641, %v3644, %v3646
        %v3648 = vsel %vm3640, %v3627, %v3630
        %v3649 = vsel %vm3643, %v3636, 920167782
        %v3650 = vsel %vm3642, %v3633, %v3649
        %v3651 = vsel %vm3641, %v3648, %v3650
        %v3652 = vsel %vm3640, %v3630, %v3633
        %v3653 = vsel %vm3643, %v3639, 1326507024
        %v3654 = vsel %vm3642, %v3636, %v3653
        %v3655 = vsel %vm3641, %v3652, %v3654
        %v3656 = vshll.u32 %v3616, 8
        %v3657 = vmul.u32.u64.compose %v3656, %v3655
        %v3658 = vextract.low.u32 %v3657
        %v3659 = vextract.high.u32 %v3657
        %v3660 = vmul.u32.u64.compose %v3656, %v3651
        %v3661 = vextract.low.u32 %v3660
        %v3662 = vextract.high.u32 %v3660
        %v3663 = vmul.u32 %v3656, %v3647
        %v3664 = vadd.s32 %v3659, %v3661
        %vm3665 = vc.u32 %v3659, %v3661
        %v3666 = vadd.s32 %v3662, 1
        %v3667 = vsel %vm3665, %v3666, %v3662
        %v3668 = vadd.s32 %v3663, %v3667
        %v3669 = vadd.s32 %v3668, 536870912
        %v3670 = vshrl.u32 %v3669, 30
        %v3671 = vshll.u32 %v3670, 30
        %v3672 = vsub.s32 %v3668, %v3671
        %vm3673 = vcmp.lt.s32.totalorder %v3672, 0
        %v3674 = vsub.s32 0, %v3672
        %v3675 = vsel %vm3673, %v3674, %v3672
        %v3676 = vclz %v3675
        %v3677 = vsub.s32 %v3676, 2
        %vm3678 = vcmp.gt.s32.totalorder 0, %v3677
        %v3679 = vsel %vm3678, 0, %v3677
        %v3680 = vsub.s32 32, %v3679
        %v3681 = vshll.u32 %v3672, %v3679
        %v3682 = vshrl.u32 %v3664, %v3680
        %v3683 = vor.u32 %v3681, %v3682
        %v3684 = vsub.s32 4294967266, %v3679
        %v3685 = vadd.s32 %v3684, 127
        %v3686 = vshll.u32 %v3685, 23
        %v3687 = vor.u32 4788187, %v3686
        %v3688 = vand.u32 2147483647, %v3687
        %v3690 = vcvt.s32.f32 %v3683
        %v3691 = vmul.f32 %v3690, %v3688
        %v3692 = vxor.u32 %v3691, 2147483648
        %v3693 = vsel %vm3610, %v3692, %v3691
        %v3694 = vsub.s32 4, %v3670
        %v3695 = vsel %vm3610, %v3694, %v3670
        %v3696 = vsel %vm3609, %v412, %v3693
        %v3697 = vsel %vm3609, 0, %v3695
        %v3698 = vcosq.f32.pop %v3696
        %v3699 = vsinq.f32.pop %v3696
        %vm3700 = vweird.f32 %v412
        %v3701 = vand.u32 %v3697, 3
        %vm3702 = vcmp.lt.s32.totalorder %v3701, 2
        %vm3703 = vcmp.eq.s32.totalorder %v3701, 0
        %v3704 = vxor.u32 %v3699, 2147483648
        %v3705 = vsel %vm3703, %v3698, %v3704
        %vm3706 = vcmp.eq.s32.totalorder %v3701, 2
        %v3707 = vxor.u32 %v3698, 2147483648
        %v3708 = vsel %vm3706, %v3707, %v3699
        %v3709 = vsel %vm3702, %v3705, %v3708
        %v3710 = vsel %vm3700, nan, %v3709
        %vm3711 = vcmask 39968
        %v3712 = vsel %vm3711, %v517, 0.0
        %v3713 = vsel %vm3711, %v723, 0.0
        %v3714 = vadd.f32 %v3712, %v3713
        %v3715 = vsel %vm3711, %v929, 0.0
        %v3716 = vadd.f32 %v3714, %v3715
        %v3717 = vsel %vm3711, %v1135, 0.0
        %v3718 = vadd.f32 %v3716, %v3717
        %v3719 = vsel %vm3711, %v1341, 0.0
        %v3720 = vadd.f32 %v3718, %v3719
        %v3721 = vsel %vm3711, %v1547, 0.0
        %v3722 = vadd.f32 %v3720, %v3721
        %v3723 = vsel %vm3711, %v1753, 0.0
        %v3724 = vadd.f32 %v3722, %v3723
        %v3725 = vsel %vm3711, %v1959, 0.0
        %v3726 = vadd.f32 %v3724, %v3725
        %v3727 = vsel %vm3711, %v2165, 0.0
        %v3728 = vadd.f32 %v3726, %v3727
        %v3729 = vsel %vm3711, %v2371, 0.0
        %v3730 = vadd.f32 %v3728, %v3729
        %v3731 = vsel %vm3711, %v2577, 0.0
        %v3732 = vadd.f32 %v3730, %v3731
        %v3733 = vsel %vm3711, %v2783, 0.0
        %v3734 = vadd.f32 %v3732, %v3733
        %v3735 = vsel %vm3711, %v2989, 0.0
        %v3736 = vadd.f32 %v3734, %v3735
        %v3737 = vsel %vm3711, %v3195, 0.0
        %v3738 = vadd.f32 %v3736, %v3737
        %v3739 = vsel %vm3711, %v3401, 0.0
        %v3740 = vadd.f32 %v3738, %v3739
        %v3741 = vsel %vm3711, %v3607, 0.0
        %v3742 = vadd.f32 %v3740, %v3741
        %v3743 = vsel %vm3711, %v620, 0.0
        %v3744 = vsel %vm3711, %v826, 0.0
        %v3745 = vadd.f32 %v3743, %v3744
        %v3746 = vsel %vm3711, %v1032, 0.0
        %v3747 = vadd.f32 %v3745, %v3746
        %v3748 = vsel %vm3711, %v1238, 0.0
        %v3749 = vadd.f32 %v3747, %v3748
        %v3750 = vsel %vm3711, %v1444, 0.0
        %v3751 = vadd.f32 %v3749, %v3750
        %v3752 = vsel %vm3711, %v1650, 0.0
        %v3753 = vadd.f32 %v3751, %v3752
        %v3754 = vsel %vm3711, %v1856, 0.0
        %v3755 = vadd.f32 %v3753, %v3754
        %v3756 = vsel %vm3711, %v2062, 0.0
        %v3757 = vadd.f32 %v3755, %v3756
        %v3758 = vsel %vm3711, %v2268, 0.0
        %v3759 = vadd.f32 %v3757, %v3758
        %v3760 = vsel %vm3711, %v2474, 0.0
        %v3761 = vadd.f32 %v3759, %v3760
        %v3762 = vsel %vm3711, %v2680, 0.0
        %v3763 = vadd.f32 %v3761, %v3762
        %v3764 = vsel %vm3711, %v2886, 0.0
        %v3765 = vadd.f32 %v3763, %v3764
        %v3766 = vsel %vm3711, %v3092, 0.0
        %v3767 = vadd.f32 %v3765, %v3766
        %v3768 = vsel %vm3711, %v3298, 0.0
        %v3769 = vadd.f32 %v3767, %v3768
        %v3770 = vsel %vm3711, %v3504, 0.0
        %v3771 = vadd.f32 %v3769, %v3770
        %v3772 = vsel %vm3711, %v3710, 0.0
        %v3773 = vadd.f32 %v3771, %v3772
        %3776 = vrot.lane.b32.xlu0 %v3742, 124
        %v3777 = vpop.permute.xlu0 %3776
        %3778 = vrot.lane.b32.xlu0 %v3773, 124
        %v3779 = vpop.permute.xlu0 %3778
        %v3782 = vadd.f32 %v413, %v3777
        %v3783 = vadd.f32 %v414, %v3779
        %vm3784 = vcmask 7168
        %3785 = vst.msk [vmem:[#allocation4] sm:$0xff] %vm3784, %v3782
        %3786 = vst.msk [vmem:[#allocation4 + $0x8] sm:$0xff] %vm3784, %v3783
        %v3787 = vld [vmem:[#allocation5] sm:$0xff]
        %v3788 = vld [vmem:[#allocation5 + $0x8] sm:$0xff]
        %v3789 = vand.u32 2147483647, %v381
        %vm3790 = vcmp.le.f32.partialorder %v3789, 0.7853982
        %vm3791 = vcmp.lt.s32.totalorder %v381, 0
        %v3792 = vand.u32 %v381, 2139095040
        %v3793 = vshrl.u32 %v3792, 23
        %v3794 = vsub.s32 %v3793, 127
        %v3795 = vand.u32 2147483647, %v381
        %v3796 = vand.u32 %v3795, 8388607
        %v3797 = vor.u32 %v3796, 8388608
        %v3798 = vsub.s32 0, %v3797
        %v3799 = vadd.s32 %v3794, 1
        %vm3800 = vcmp.gt.s32.totalorder %v3799, 0
        %v3801 = vsel %vm3800, %v3799, 0
        %v3802 = vshrl.u32 %v3801, 5
        %v3803 = vand.u32 %v3801, 31
        %v3804 = vsub.s32 32, %v3803
        %v3805 = vshrl.u32 683565275, %v3804
        %v3806 = vshll.u32 683565275, %v3803
        %v3807 = vshrl.u32 2475754826, %v3804
        %v3808 = vor.u32 %v3806, %v3807
        %v3809 = vshll.u32 2475754826, %v3803
        %v3810 = vshrl.u32 2131351028, %v3804
        %v3811 = vor.u32 %v3809, %v3810
        %v3812 = vshll.u32 2131351028, %v3803
        %v3813 = vshrl.u32 2102212464, %v3804
        %v3814 = vor.u32 %v3812, %v3813
        %v3815 = vshll.u32 2102212464, %v3803
        %v3816 = vshrl.u32 920167782, %v3804
        %v3817 = vor.u32 %v3815, %v3816
        %v3818 = vshll.u32 920167782, %v3803
        %v3819 = vshrl.u32 1326507024, %v3804
        %v3820 = vor.u32 %v3818, %v3819
        %vm3821 = vcmp.lt.s32.totalorder %v3802, 1
        %vm3822 = vcmp.lt.s32.totalorder %v3802, 2
        %vm3823 = vcmp.lt.s32.totalorder %v3802, 3
        %vm3824 = vcmp.lt.s32.totalorder %v3802, 4
        %v3825 = vsel %vm3821, %v3805, %v3808
        %v3826 = vsel %vm3824, %v3814, 2102212464
        %v3827 = vsel %vm3823, %v3811, %v3826
        %v3828 = vsel %vm3822, %v3825, %v3827
        %v3829 = vsel %vm3821, %v3808, %v3811
        %v3830 = vsel %vm3824, %v3817, 920167782
        %v3831 = vsel %vm3823, %v3814, %v3830
        %v3832 = vsel %vm3822, %v3829, %v3831
        %v3833 = vsel %vm3821, %v3811, %v3814
        %v3834 = vsel %vm3824, %v3820, 1326507024
        %v3835 = vsel %vm3823, %v3817, %v3834
        %v3836 = vsel %vm3822, %v3833, %v3835
        %v3837 = vshll.u32 %v3797, 8
        %v3838 = vmul.u32.u64.compose %v3837, %v3836
        %v3839 = vextract.low.u32 %v3838
        %v3840 = vextract.high.u32 %v3838
        %v3841 = vmul.u32.u64.compose %v3837, %v3832
        %v3842 = vextract.low.u32 %v3841
        %v3843 = vextract.high.u32 %v3841
        %v3844 = vmul.u32 %v3837, %v3828
        %v3845 = vadd.s32 %v3840, %v3842
        %vm3846 = vc.u32 %v3840, %v3842
        %v3847 = vadd.s32 %v3843, 1
        %v3848 = vsel %vm3846, %v3847, %v3843
        %v3849 = vadd.s32 %v3844, %v3848
        %v3850 = vadd.s32 %v3849, 536870912
        %v3851 = vshrl.u32 %v3850, 30
        %v3852 = vshll.u32 %v3851, 30
        %v3853 = vsub.s32 %v3849, %v3852
        %vm3854 = vcmp.lt.s32.totalorder %v3853, 0
        %v3855 = vsub.s32 0, %v3853
        %v3856 = vsel %vm3854, %v3855, %v3853
        %v3857 = vclz %v3856
        %v3858 = vsub.s32 %v3857, 2
        %vm3859 = vcmp.gt.s32.totalorder 0, %v3858
        %v3860 = vsel %vm3859, 0, %v3858
        %v3861 = vsub.s32 32, %v3860
        %v3862 = vshll.u32 %v3853, %v3860
        %v3863 = vshrl.u32 %v3845, %v3861
        %v3864 = vor.u32 %v3862, %v3863
        %v3865 = vsub.s32 4294967266, %v3860
        %v3866 = vadd.s32 %v3865, 127
        %v3867 = vshll.u32 %v3866, 23
        %v3868 = vor.u32 4788187, %v3867
        %v3869 = vand.u32 2147483647, %v3868
        %v3871 = vcvt.s32.f32 %v3864
        %v3872 = vmul.f32 %v3871, %v3869
        %v3873 = vxor.u32 %v3872, 2147483648
        %v3874 = vsel %vm3791, %v3873, %v3872
        %v3875 = vsub.s32 4, %v3851
        %v3876 = vsel %vm3791, %v3875, %v3851
        %v3877 = vsel %vm3790, %v381, %v3874
        %v3878 = vsel %vm3790, 0, %v3876
        %v3879 = vcosq.f32.pop %v3877
        %v3880 = vsinq.f32.pop %v3877
        %vm3881 = vweird.f32 %v381
        %v3882 = vadd.s32 %v3878, 3
        %v3883 = vand.u32 %v3882, 3
        %vm3884 = vcmp.lt.s32.totalorder %v3883, 2
        %vm3885 = vcmp.eq.s32.totalorder %v3883, 0
        %v3886 = vxor.u32 %v3880, 2147483648
        %v3887 = vsel %vm3885, %v3879, %v3886
        %vm3888 = vcmp.eq.s32.totalorder %v3883, 2
        %v3889 = vxor.u32 %v3879, 2147483648
        %v3890 = vsel %vm3888, %v3889, %v3880
        %v3891 = vsel %vm3884, %v3887, %v3890
        %v3892 = vsel %vm3881, nan, %v3891
        %v3893 = vand.u32 2147483647, %v382
        %vm3894 = vcmp.le.f32.partialorder %v3893, 0.7853982
        %vm3895 = vcmp.lt.s32.totalorder %v382, 0
        %v3896 = vand.u32 %v382, 2139095040
        %v3897 = vshrl.u32 %v3896, 23
        %v3898 = vsub.s32 %v3897, 127
        %v3899 = vand.u32 2147483647, %v382
        %v3900 = vand.u32 %v3899, 8388607
        %v3901 = vor.u32 %v3900, 8388608
        %v3902 = vsub.s32 0, %v3901
        %v3903 = vadd.s32 %v3898, 1
        %vm3904 = vcmp.gt.s32.totalorder %v3903, 0
        %v3905 = vsel %vm3904, %v3903, 0
        %v3906 = vshrl.u32 %v3905, 5
        %v3907 = vand.u32 %v3905, 31
        %v3908 = vsub.s32 32, %v3907
        %v3909 = vshrl.u32 683565275, %v3908
        %v3910 = vshll.u32 683565275, %v3907
        %v3911 = vshrl.u32 2475754826, %v3908
        %v3912 = vor.u32 %v3910, %v3911
        %v3913 = vshll.u32 2475754826, %v3907
        %v3914 = vshrl.u32 2131351028, %v3908
        %v3915 = vor.u32 %v3913, %v3914
        %v3916 = vshll.u32 2131351028, %v3907
        %v3917 = vshrl.u32 2102212464, %v3908
        %v3918 = vor.u32 %v3916, %v3917
        %v3919 = vshll.u32 2102212464, %v3907
        %v3920 = vshrl.u32 920167782, %v3908
        %v3921 = vor.u32 %v3919, %v3920
        %v3922 = vshll.u32 920167782, %v3907
        %v3923 = vshrl.u32 1326507024, %v3908
        %v3924 = vor.u32 %v3922, %v3923
        %vm3925 = vcmp.lt.s32.totalorder %v3906, 1
        %vm3926 = vcmp.lt.s32.totalorder %v3906, 2
        %vm3927 = vcmp.lt.s32.totalorder %v3906, 3
        %vm3928 = vcmp.lt.s32.totalorder %v3906, 4
        %v3929 = vsel %vm3925, %v3909, %v3912
        %v3930 = vsel %vm3928, %v3918, 2102212464
        %v3931 = vsel %vm3927, %v3915, %v3930
        %v3932 = vsel %vm3926, %v3929, %v3931
        %v3933 = vsel %vm3925, %v3912, %v3915
        %v3934 = vsel %vm3928, %v3921, 920167782
        %v3935 = vsel %vm3927, %v3918, %v3934
        %v3936 = vsel %vm3926, %v3933, %v3935
        %v3937 = vsel %vm3925, %v3915, %v3918
        %v3938 = vsel %vm3928, %v3924, 1326507024
        %v3939 = vsel %vm3927, %v3921, %v3938
        %v3940 = vsel %vm3926, %v3937, %v3939
        %v3941 = vshll.u32 %v3901, 8
        %v3942 = vmul.u32.u64.compose %v3941, %v3940
        %v3943 = vextract.low.u32 %v3942
        %v3944 = vextract.high.u32 %v3942
        %v3945 = vmul.u32.u64.compose %v3941, %v3936
        %v3946 = vextract.low.u32 %v3945
        %v3947 = vextract.high.u32 %v3945
        %v3948 = vmul.u32 %v3941, %v3932
        %v3949 = vadd.s32 %v3944, %v3946
        %vm3950 = vc.u32 %v3944, %v3946
        %v3951 = vadd.s32 %v3947, 1
        %v3952 = vsel %vm3950, %v3951, %v3947
        %v3953 = vadd.s32 %v3948, %v3952
        %v3954 = vadd.s32 %v3953, 536870912
        %v3955 = vshrl.u32 %v3954, 30
        %v3956 = vshll.u32 %v3955, 30
        %v3957 = vsub.s32 %v3953, %v3956
        %vm3958 = vcmp.lt.s32.totalorder %v3957, 0
        %v3959 = vsub.s32 0, %v3957
        %v3960 = vsel %vm3958, %v3959, %v3957
        %v3961 = vclz %v3960
        %v3962 = vsub.s32 %v3961, 2
        %vm3963 = vcmp.gt.s32.totalorder 0, %v3962
        %v3964 = vsel %vm3963, 0, %v3962
        %v3965 = vsub.s32 32, %v3964
        %v3966 = vshll.u32 %v3957, %v3964
        %v3967 = vshrl.u32 %v3949, %v3965
        %v3968 = vor.u32 %v3966, %v3967
        %v3969 = vsub.s32 4294967266, %v3964
        %v3970 = vadd.s32 %v3969, 127
        %v3971 = vshll.u32 %v3970, 23
        %v3972 = vor.u32 4788187, %v3971
        %v3973 = vand.u32 2147483647, %v3972
        %v3975 = vcvt.s32.f32 %v3968
        %v3976 = vmul.f32 %v3975, %v3973
        %v3977 = vxor.u32 %v3976, 2147483648
        %v3978 = vsel %vm3895, %v3977, %v3976
        %v3979 = vsub.s32 4, %v3955
        %v3980 = vsel %vm3895, %v3979, %v3955
        %v3981 = vsel %vm3894, %v382, %v3978
        %v3982 = vsel %vm3894, 0, %v3980
        %v3983 = vcosq.f32.pop %v3981
        %v3984 = vsinq.f32.pop %v3981
        %vm3985 = vweird.f32 %v382
        %v3986 = vadd.s32 %v3982, 3
        %v3987 = vand.u32 %v3986, 3
        %vm3988 = vcmp.lt.s32.totalorder %v3987, 2
        %vm3989 = vcmp.eq.s32.totalorder %v3987, 0
        %v3990 = vxor.u32 %v3984, 2147483648
        %v3991 = vsel %vm3989, %v3983, %v3990
        %vm3992 = vcmp.eq.s32.totalorder %v3987, 2
        %v3993 = vxor.u32 %v3983, 2147483648
        %v3994 = vsel %vm3992, %v3993, %v3984
        %v3995 = vsel %vm3988, %v3991, %v3994
        %v3996 = vsel %vm3985, nan, %v3995
        %v3997 = vand.u32 2147483647, %v383
        %vm3998 = vcmp.le.f32.partialorder %v3997, 0.7853982
        %vm3999 = vcmp.lt.s32.totalorder %v383, 0
        %v4000 = vand.u32 %v383, 2139095040
        %v4001 = vshrl.u32 %v4000, 23
        %v4002 = vsub.s32 %v4001, 127
        %v4003 = vand.u32 2147483647, %v383
        %v4004 = vand.u32 %v4003, 8388607
        %v4005 = vor.u32 %v4004, 8388608
        %v4006 = vsub.s32 0, %v4005
        %v4007 = vadd.s32 %v4002, 1
        %vm4008 = vcmp.gt.s32.totalorder %v4007, 0
        %v4009 = vsel %vm4008, %v4007, 0
        %v4010 = vshrl.u32 %v4009, 5
        %v4011 = vand.u32 %v4009, 31
        %v4012 = vsub.s32 32, %v4011
        %v4013 = vshrl.u32 683565275, %v4012
        %v4014 = vshll.u32 683565275, %v4011
        %v4015 = vshrl.u32 2475754826, %v4012
        %v4016 = vor.u32 %v4014, %v4015
        %v4017 = vshll.u32 2475754826, %v4011
        %v4018 = vshrl.u32 2131351028, %v4012
        %v4019 = vor.u32 %v4017, %v4018
        %v4020 = vshll.u32 2131351028, %v4011
        %v4021 = vshrl.u32 2102212464, %v4012
        %v4022 = vor.u32 %v4020, %v4021
        %v4023 = vshll.u32 2102212464, %v4011
        %v4024 = vshrl.u32 920167782, %v4012
        %v4025 = vor.u32 %v4023, %v4024
        %v4026 = vshll.u32 920167782, %v4011
        %v4027 = vshrl.u32 1326507024, %v4012
        %v4028 = vor.u32 %v4026, %v4027
        %vm4029 = vcmp.lt.s32.totalorder %v4010, 1
        %vm4030 = vcmp.lt.s32.totalorder %v4010, 2
        %vm4031 = vcmp.lt.s32.totalorder %v4010, 3
        %vm4032 = vcmp.lt.s32.totalorder %v4010, 4
        %v4033 = vsel %vm4029, %v4013, %v4016
        %v4034 = vsel %vm4032, %v4022, 2102212464
        %v4035 = vsel %vm4031, %v4019, %v4034
        %v4036 = vsel %vm4030, %v4033, %v4035
        %v4037 = vsel %vm4029, %v4016, %v4019
        %v4038 = vsel %vm4032, %v4025, 920167782
        %v4039 = vsel %vm4031, %v4022, %v4038
        %v4040 = vsel %vm4030, %v4037, %v4039
        %v4041 = vsel %vm4029, %v4019, %v4022
        %v4042 = vsel %vm4032, %v4028, 1326507024
        %v4043 = vsel %vm4031, %v4025, %v4042
        %v4044 = vsel %vm4030, %v4041, %v4043
        %v4045 = vshll.u32 %v4005, 8
        %v4046 = vmul.u32.u64.compose %v4045, %v4044
        %v4047 = vextract.low.u32 %v4046
        %v4048 = vextract.high.u32 %v4046
        %v4049 = vmul.u32.u64.compose %v4045, %v4040
        %v4050 = vextract.low.u32 %v4049
        %v4051 = vextract.high.u32 %v4049
        %v4052 = vmul.u32 %v4045, %v4036
        %v4053 = vadd.s32 %v4048, %v4050
        %vm4054 = vc.u32 %v4048, %v4050
        %v4055 = vadd.s32 %v4051, 1
        %v4056 = vsel %vm4054, %v4055, %v4051
        %v4057 = vadd.s32 %v4052, %v4056
        %v4058 = vadd.s32 %v4057, 536870912
        %v4059 = vshrl.u32 %v4058, 30
        %v4060 = vshll.u32 %v4059, 30
        %v4061 = vsub.s32 %v4057, %v4060
        %vm4062 = vcmp.lt.s32.totalorder %v4061, 0
        %v4063 = vsub.s32 0, %v4061
        %v4064 = vsel %vm4062, %v4063, %v4061
        %v4065 = vclz %v4064
        %v4066 = vsub.s32 %v4065, 2
        %vm4067 = vcmp.gt.s32.totalorder 0, %v4066
        %v4068 = vsel %vm4067, 0, %v4066
        %v4069 = vsub.s32 32, %v4068
        %v4070 = vshll.u32 %v4061, %v4068
        %v4071 = vshrl.u32 %v4053, %v4069
        %v4072 = vor.u32 %v4070, %v4071
        %v4073 = vsub.s32 4294967266, %v4068
        %v4074 = vadd.s32 %v4073, 127
        %v4075 = vshll.u32 %v4074, 23
        %v4076 = vor.u32 4788187, %v4075
        %v4077 = vand.u32 2147483647, %v4076
        %v4079 = vcvt.s32.f32 %v4072
        %v4080 = vmul.f32 %v4079, %v4077
        %v4081 = vxor.u32 %v4080, 2147483648
        %v4082 = vsel %vm3999, %v4081, %v4080
        %v4083 = vsub.s32 4, %v4059
        %v4084 = vsel %vm3999, %v4083, %v4059
        %v4085 = vsel %vm3998, %v383, %v4082
        %v4086 = vsel %vm3998, 0, %v4084
        %v4087 = vcosq.f32.pop %v4085
        %v4088 = vsinq.f32.pop %v4085
        %vm4089 = vweird.f32 %v383
        %v4090 = vadd.s32 %v4086, 3
        %v4091 = vand.u32 %v4090, 3
        %vm4092 = vcmp.lt.s32.totalorder %v4091, 2
        %vm4093 = vcmp.eq.s32.totalorder %v4091, 0
        %v4094 = vxor.u32 %v4088, 2147483648
        %v4095 = vsel %vm4093, %v4087, %v4094
        %vm4096 = vcmp.eq.s32.totalorder %v4091, 2
        %v4097 = vxor.u32 %v4087, 2147483648
        %v4098 = vsel %vm4096, %v4097, %v4088
        %v4099 = vsel %vm4092, %v4095, %v4098
        %v4100 = vsel %vm4089, nan, %v4099
        %v4101 = vand.u32 2147483647, %v384
        %vm4102 = vcmp.le.f32.partialorder %v4101, 0.7853982
        %vm4103 = vcmp.lt.s32.totalorder %v384, 0
        %v4104 = vand.u32 %v384, 2139095040
        %v4105 = vshrl.u32 %v4104, 23
        %v4106 = vsub.s32 %v4105, 127
        %v4107 = vand.u32 2147483647, %v384
        %v4108 = vand.u32 %v4107, 8388607
        %v4109 = vor.u32 %v4108, 8388608
        %v4110 = vsub.s32 0, %v4109
        %v4111 = vadd.s32 %v4106, 1
        %vm4112 = vcmp.gt.s32.totalorder %v4111, 0
        %v4113 = vsel %vm4112, %v4111, 0
        %v4114 = vshrl.u32 %v4113, 5
        %v4115 = vand.u32 %v4113, 31
        %v4116 = vsub.s32 32, %v4115
        %v4117 = vshrl.u32 683565275, %v4116
        %v4118 = vshll.u32 683565275, %v4115
        %v4119 = vshrl.u32 2475754826, %v4116
        %v4120 = vor.u32 %v4118, %v4119
        %v4121 = vshll.u32 2475754826, %v4115
        %v4122 = vshrl.u32 2131351028, %v4116
        %v4123 = vor.u32 %v4121, %v4122
        %v4124 = vshll.u32 2131351028, %v4115
        %v4125 = vshrl.u32 2102212464, %v4116
        %v4126 = vor.u32 %v4124, %v4125
        %v4127 = vshll.u32 2102212464, %v4115
        %v4128 = vshrl.u32 920167782, %v4116
        %v4129 = vor.u32 %v4127, %v4128
        %v4130 = vshll.u32 920167782, %v4115
        %v4131 = vshrl.u32 1326507024, %v4116
        %v4132 = vor.u32 %v4130, %v4131
        %vm4133 = vcmp.lt.s32.totalorder %v4114, 1
        %vm4134 = vcmp.lt.s32.totalorder %v4114, 2
        %vm4135 = vcmp.lt.s32.totalorder %v4114, 3
        %vm4136 = vcmp.lt.s32.totalorder %v4114, 4
        %v4137 = vsel %vm4133, %v4117, %v4120
        %v4138 = vsel %vm4136, %v4126, 2102212464
        %v4139 = vsel %vm4135, %v4123, %v4138
        %v4140 = vsel %vm4134, %v4137, %v4139
        %v4141 = vsel %vm4133, %v4120, %v4123
        %v4142 = vsel %vm4136, %v4129, 920167782
        %v4143 = vsel %vm4135, %v4126, %v4142
        %v4144 = vsel %vm4134, %v4141, %v4143
        %v4145 = vsel %vm4133, %v4123, %v4126
        %v4146 = vsel %vm4136, %v4132, 1326507024
        %v4147 = vsel %vm4135, %v4129, %v4146
        %v4148 = vsel %vm4134, %v4145, %v4147
        %v4149 = vshll.u32 %v4109, 8
        %v4150 = vmul.u32.u64.compose %v4149, %v4148
        %v4151 = vextract.low.u32 %v4150
        %v4152 = vextract.high.u32 %v4150
        %v4153 = vmul.u32.u64.compose %v4149, %v4144
        %v4154 = vextract.low.u32 %v4153
        %v4155 = vextract.high.u32 %v4153
        %v4156 = vmul.u32 %v4149, %v4140
        %v4157 = vadd.s32 %v4152, %v4154
        %vm4158 = vc.u32 %v4152, %v4154
        %v4159 = vadd.s32 %v4155, 1
        %v4160 = vsel %vm4158, %v4159, %v4155
        %v4161 = vadd.s32 %v4156, %v4160
        %v4162 = vadd.s32 %v4161, 536870912
        %v4163 = vshrl.u32 %v4162, 30
        %v4164 = vshll.u32 %v4163, 30
        %v4165 = vsub.s32 %v4161, %v4164
        %vm4166 = vcmp.lt.s32.totalorder %v4165, 0
        %v4167 = vsub.s32 0, %v4165
        %v4168 = vsel %vm4166, %v4167, %v4165
        %v4169 = vclz %v4168
        %v4170 = vsub.s32 %v4169, 2
        %vm4171 = vcmp.gt.s32.totalorder 0, %v4170
        %v4172 = vsel %vm4171, 0, %v4170
        %v4173 = vsub.s32 32, %v4172
        %v4174 = vshll.u32 %v4165, %v4172
        %v4175 = vshrl.u32 %v4157, %v4173
        %v4176 = vor.u32 %v4174, %v4175
        %v4177 = vsub.s32 4294967266, %v4172
        %v4178 = vadd.s32 %v4177, 127
        %v4179 = vshll.u32 %v4178, 23
        %v4180 = vor.u32 4788187, %v4179
        %v4181 = vand.u32 2147483647, %v4180
        %v4183 = vcvt.s32.f32 %v4176
        %v4184 = vmul.f32 %v4183, %v4181
        %v4185 = vxor.u32 %v4184, 2147483648
        %v4186 = vsel %vm4103, %v4185, %v4184
        %v4187 = vsub.s32 4, %v4163
        %v4188 = vsel %vm4103, %v4187, %v4163
        %v4189 = vsel %vm4102, %v384, %v4186
        %v4190 = vsel %vm4102, 0, %v4188
        %v4191 = vcosq.f32.pop %v4189
        %v4192 = vsinq.f32.pop %v4189
        %vm4193 = vweird.f32 %v384
        %v4194 = vadd.s32 %v4190, 3
        %v4195 = vand.u32 %v4194, 3
        %vm4196 = vcmp.lt.s32.totalorder %v4195, 2
        %vm4197 = vcmp.eq.s32.totalorder %v4195, 0
        %v4198 = vxor.u32 %v4192, 2147483648
        %v4199 = vsel %vm4197, %v4191, %v4198
        %vm4200 = vcmp.eq.s32.totalorder %v4195, 2
        %v4201 = vxor.u32 %v4191, 2147483648
        %v4202 = vsel %vm4200, %v4201, %v4192
        %v4203 = vsel %vm4196, %v4199, %v4202
        %v4204 = vsel %vm4193, nan, %v4203
        %v4205 = vand.u32 2147483647, %v385
        %vm4206 = vcmp.le.f32.partialorder %v4205, 0.7853982
        %vm4207 = vcmp.lt.s32.totalorder %v385, 0
        %v4208 = vand.u32 %v385, 2139095040
        %v4209 = vshrl.u32 %v4208, 23
        %v4210 = vsub.s32 %v4209, 127
        %v4211 = vand.u32 2147483647, %v385
        %v4212 = vand.u32 %v4211, 8388607
        %v4213 = vor.u32 %v4212, 8388608
        %v4214 = vsub.s32 0, %v4213
        %v4215 = vadd.s32 %v4210, 1
        %vm4216 = vcmp.gt.s32.totalorder %v4215, 0
        %v4217 = vsel %vm4216, %v4215, 0
        %v4218 = vshrl.u32 %v4217, 5
        %v4219 = vand.u32 %v4217, 31
        %v4220 = vsub.s32 32, %v4219
        %v4221 = vshrl.u32 683565275, %v4220
        %v4222 = vshll.u32 683565275, %v4219
        %v4223 = vshrl.u32 2475754826, %v4220
        %v4224 = vor.u32 %v4222, %v4223
        %v4225 = vshll.u32 2475754826, %v4219
        %v4226 = vshrl.u32 2131351028, %v4220
        %v4227 = vor.u32 %v4225, %v4226
        %v4228 = vshll.u32 2131351028, %v4219
        %v4229 = vshrl.u32 2102212464, %v4220
        %v4230 = vor.u32 %v4228, %v4229
        %v4231 = vshll.u32 2102212464, %v4219
        %v4232 = vshrl.u32 920167782, %v4220
        %v4233 = vor.u32 %v4231, %v4232
        %v4234 = vshll.u32 920167782, %v4219
        %v4235 = vshrl.u32 1326507024, %v4220
        %v4236 = vor.u32 %v4234, %v4235
        %vm4237 = vcmp.lt.s32.totalorder %v4218, 1
        %vm4238 = vcmp.lt.s32.totalorder %v4218, 2
        %vm4239 = vcmp.lt.s32.totalorder %v4218, 3
        %vm4240 = vcmp.lt.s32.totalorder %v4218, 4
        %v4241 = vsel %vm4237, %v4221, %v4224
        %v4242 = vsel %vm4240, %v4230, 2102212464
        %v4243 = vsel %vm4239, %v4227, %v4242
        %v4244 = vsel %vm4238, %v4241, %v4243
        %v4245 = vsel %vm4237, %v4224, %v4227
        %v4246 = vsel %vm4240, %v4233, 920167782
        %v4247 = vsel %vm4239, %v4230, %v4246
        %v4248 = vsel %vm4238, %v4245, %v4247
        %v4249 = vsel %vm4237, %v4227, %v4230
        %v4250 = vsel %vm4240, %v4236, 1326507024
        %v4251 = vsel %vm4239, %v4233, %v4250
        %v4252 = vsel %vm4238, %v4249, %v4251
        %v4253 = vshll.u32 %v4213, 8
        %v4254 = vmul.u32.u64.compose %v4253, %v4252
        %v4255 = vextract.low.u32 %v4254
        %v4256 = vextract.high.u32 %v4254
        %v4257 = vmul.u32.u64.compose %v4253, %v4248
        %v4258 = vextract.low.u32 %v4257
        %v4259 = vextract.high.u32 %v4257
        %v4260 = vmul.u32 %v4253, %v4244
        %v4261 = vadd.s32 %v4256, %v4258
        %vm4262 = vc.u32 %v4256, %v4258
        %v4263 = vadd.s32 %v4259, 1
        %v4264 = vsel %vm4262, %v4263, %v4259
        %v4265 = vadd.s32 %v4260, %v4264
        %v4266 = vadd.s32 %v4265, 536870912
        %v4267 = vshrl.u32 %v4266, 30
        %v4268 = vshll.u32 %v4267, 30
        %v4269 = vsub.s32 %v4265, %v4268
        %vm4270 = vcmp.lt.s32.totalorder %v4269, 0
        %v4271 = vsub.s32 0, %v4269
        %v4272 = vsel %vm4270, %v4271, %v4269
        %v4273 = vclz %v4272
        %v4274 = vsub.s32 %v4273, 2
        %vm4275 = vcmp.gt.s32.totalorder 0, %v4274
        %v4276 = vsel %vm4275, 0, %v4274
        %v4277 = vsub.s32 32, %v4276
        %v4278 = vshll.u32 %v4269, %v4276
        %v4279 = vshrl.u32 %v4261, %v4277
        %v4280 = vor.u32 %v4278, %v4279
        %v4281 = vsub.s32 4294967266, %v4276
        %v4282 = vadd.s32 %v4281, 127
        %v4283 = vshll.u32 %v4282, 23
        %v4284 = vor.u32 4788187, %v4283
        %v4285 = vand.u32 2147483647, %v4284
        %v4287 = vcvt.s32.f32 %v4280
        %v4288 = vmul.f32 %v4287, %v4285
        %v4289 = vxor.u32 %v4288, 2147483648
        %v4290 = vsel %vm4207, %v4289, %v4288
        %v4291 = vsub.s32 4, %v4267
        %v4292 = vsel %vm4207, %v4291, %v4267
        %v4293 = vsel %vm4206, %v385, %v4290
        %v4294 = vsel %vm4206, 0, %v4292
        %v4295 = vcosq.f32.pop %v4293
        %v4296 = vsinq.f32.pop %v4293
        %vm4297 = vweird.f32 %v385
        %v4298 = vadd.s32 %v4294, 3
        %v4299 = vand.u32 %v4298, 3
        %vm4300 = vcmp.lt.s32.totalorder %v4299, 2
        %vm4301 = vcmp.eq.s32.totalorder %v4299, 0
        %v4302 = vxor.u32 %v4296, 2147483648
        %v4303 = vsel %vm4301, %v4295, %v4302
        %vm4304 = vcmp.eq.s32.totalorder %v4299, 2
        %v4305 = vxor.u32 %v4295, 2147483648
        %v4306 = vsel %vm4304, %v4305, %v4296
        %v4307 = vsel %vm4300, %v4303, %v4306
        %v4308 = vsel %vm4297, nan, %v4307
        %v4309 = vand.u32 2147483647, %v386
        %vm4310 = vcmp.le.f32.partialorder %v4309, 0.7853982
        %vm4311 = vcmp.lt.s32.totalorder %v386, 0
        %v4312 = vand.u32 %v386, 2139095040
        %v4313 = vshrl.u32 %v4312, 23
        %v4314 = vsub.s32 %v4313, 127
        %v4315 = vand.u32 2147483647, %v386
        %v4316 = vand.u32 %v4315, 8388607
        %v4317 = vor.u32 %v4316, 8388608
        %v4318 = vsub.s32 0, %v4317
        %v4319 = vadd.s32 %v4314, 1
        %vm4320 = vcmp.gt.s32.totalorder %v4319, 0
        %v4321 = vsel %vm4320, %v4319, 0
        %v4322 = vshrl.u32 %v4321, 5
        %v4323 = vand.u32 %v4321, 31
        %v4324 = vsub.s32 32, %v4323
        %v4325 = vshrl.u32 683565275, %v4324
        %v4326 = vshll.u32 683565275, %v4323
        %v4327 = vshrl.u32 2475754826, %v4324
        %v4328 = vor.u32 %v4326, %v4327
        %v4329 = vshll.u32 2475754826, %v4323
        %v4330 = vshrl.u32 2131351028, %v4324
        %v4331 = vor.u32 %v4329, %v4330
        %v4332 = vshll.u32 2131351028, %v4323
        %v4333 = vshrl.u32 2102212464, %v4324
        %v4334 = vor.u32 %v4332, %v4333
        %v4335 = vshll.u32 2102212464, %v4323
        %v4336 = vshrl.u32 920167782, %v4324
        %v4337 = vor.u32 %v4335, %v4336
        %v4338 = vshll.u32 920167782, %v4323
        %v4339 = vshrl.u32 1326507024, %v4324
        %v4340 = vor.u32 %v4338, %v4339
        %vm4341 = vcmp.lt.s32.totalorder %v4322, 1
        %vm4342 = vcmp.lt.s32.totalorder %v4322, 2
        %vm4343 = vcmp.lt.s32.totalorder %v4322, 3
        %vm4344 = vcmp.lt.s32.totalorder %v4322, 4
        %v4345 = vsel %vm4341, %v4325, %v4328
        %v4346 = vsel %vm4344, %v4334, 2102212464
        %v4347 = vsel %vm4343, %v4331, %v4346
        %v4348 = vsel %vm4342, %v4345, %v4347
        %v4349 = vsel %vm4341, %v4328, %v4331
        %v4350 = vsel %vm4344, %v4337, 920167782
        %v4351 = vsel %vm4343, %v4334, %v4350
        %v4352 = vsel %vm4342, %v4349, %v4351
        %v4353 = vsel %vm4341, %v4331, %v4334
        %v4354 = vsel %vm4344, %v4340, 1326507024
        %v4355 = vsel %vm4343, %v4337, %v4354
        %v4356 = vsel %vm4342, %v4353, %v4355
        %v4357 = vshll.u32 %v4317, 8
        %v4358 = vmul.u32.u64.compose %v4357, %v4356
        %v4359 = vextract.low.u32 %v4358
        %v4360 = vextract.high.u32 %v4358
        %v4361 = vmul.u32.u64.compose %v4357, %v4352
        %v4362 = vextract.low.u32 %v4361
        %v4363 = vextract.high.u32 %v4361
        %v4364 = vmul.u32 %v4357, %v4348
        %v4365 = vadd.s32 %v4360, %v4362
        %vm4366 = vc.u32 %v4360, %v4362
        %v4367 = vadd.s32 %v4363, 1
        %v4368 = vsel %vm4366, %v4367, %v4363
        %v4369 = vadd.s32 %v4364, %v4368
        %v4370 = vadd.s32 %v4369, 536870912
        %v4371 = vshrl.u32 %v4370, 30
        %v4372 = vshll.u32 %v4371, 30
        %v4373 = vsub.s32 %v4369, %v4372
        %vm4374 = vcmp.lt.s32.totalorder %v4373, 0
        %v4375 = vsub.s32 0, %v4373
        %v4376 = vsel %vm4374, %v4375, %v4373
        %v4377 = vclz %v4376
        %v4378 = vsub.s32 %v4377, 2
        %vm4379 = vcmp.gt.s32.totalorder 0, %v4378
        %v4380 = vsel %vm4379, 0, %v4378
        %v4381 = vsub.s32 32, %v4380
        %v4382 = vshll.u32 %v4373, %v4380
        %v4383 = vshrl.u32 %v4365, %v4381
        %v4384 = vor.u32 %v4382, %v4383
        %v4385 = vsub.s32 4294967266, %v4380
        %v4386 = vadd.s32 %v4385, 127
        %v4387 = vshll.u32 %v4386, 23
        %v4388 = vor.u32 4788187, %v4387
        %v4389 = vand.u32 2147483647, %v4388
        %v4391 = vcvt.s32.f32 %v4384
        %v4392 = vmul.f32 %v4391, %v4389
        %v4393 = vxor.u32 %v4392, 2147483648
        %v4394 = vsel %vm4311, %v4393, %v4392
        %v4395 = vsub.s32 4, %v4371
        %v4396 = vsel %vm4311, %v4395, %v4371
        %v4397 = vsel %vm4310, %v386, %v4394
        %v4398 = vsel %vm4310, 0, %v4396
        %v4399 = vcosq.f32.pop %v4397
        %v4400 = vsinq.f32.pop %v4397
        %vm4401 = vweird.f32 %v386
        %v4402 = vadd.s32 %v4398, 3
        %v4403 = vand.u32 %v4402, 3
        %vm4404 = vcmp.lt.s32.totalorder %v4403, 2
        %vm4405 = vcmp.eq.s32.totalorder %v4403, 0
        %v4406 = vxor.u32 %v4400, 2147483648
        %v4407 = vsel %vm4405, %v4399, %v4406
        %vm4408 = vcmp.eq.s32.totalorder %v4403, 2
        %v4409 = vxor.u32 %v4399, 2147483648
        %v4410 = vsel %vm4408, %v4409, %v4400
        %v4411 = vsel %vm4404, %v4407, %v4410
        %v4412 = vsel %vm4401, nan, %v4411
        %v4413 = vand.u32 2147483647, %v387
        %vm4414 = vcmp.le.f32.partialorder %v4413, 0.7853982
        %vm4415 = vcmp.lt.s32.totalorder %v387, 0
        %v4416 = vand.u32 %v387, 2139095040
        %v4417 = vshrl.u32 %v4416, 23
        %v4418 = vsub.s32 %v4417, 127
        %v4419 = vand.u32 2147483647, %v387
        %v4420 = vand.u32 %v4419, 8388607
        %v4421 = vor.u32 %v4420, 8388608
        %v4422 = vsub.s32 0, %v4421
        %v4423 = vadd.s32 %v4418, 1
        %vm4424 = vcmp.gt.s32.totalorder %v4423, 0
        %v4425 = vsel %vm4424, %v4423, 0
        %v4426 = vshrl.u32 %v4425, 5
        %v4427 = vand.u32 %v4425, 31
        %v4428 = vsub.s32 32, %v4427
        %v4429 = vshrl.u32 683565275, %v4428
        %v4430 = vshll.u32 683565275, %v4427
        %v4431 = vshrl.u32 2475754826, %v4428
        %v4432 = vor.u32 %v4430, %v4431
        %v4433 = vshll.u32 2475754826, %v4427
        %v4434 = vshrl.u32 2131351028, %v4428
        %v4435 = vor.u32 %v4433, %v4434
        %v4436 = vshll.u32 2131351028, %v4427
        %v4437 = vshrl.u32 2102212464, %v4428
        %v4438 = vor.u32 %v4436, %v4437
        %v4439 = vshll.u32 2102212464, %v4427
        %v4440 = vshrl.u32 920167782, %v4428
        %v4441 = vor.u32 %v4439, %v4440
        %v4442 = vshll.u32 920167782, %v4427
        %v4443 = vshrl.u32 1326507024, %v4428
        %v4444 = vor.u32 %v4442, %v4443
        %vm4445 = vcmp.lt.s32.totalorder %v4426, 1
        %vm4446 = vcmp.lt.s32.totalorder %v4426, 2
        %vm4447 = vcmp.lt.s32.totalorder %v4426, 3
        %vm4448 = vcmp.lt.s32.totalorder %v4426, 4
        %v4449 = vsel %vm4445, %v4429, %v4432
        %v4450 = vsel %vm4448, %v4438, 2102212464
        %v4451 = vsel %vm4447, %v4435, %v4450
        %v4452 = vsel %vm4446, %v4449, %v4451
        %v4453 = vsel %vm4445, %v4432, %v4435
        %v4454 = vsel %vm4448, %v4441, 920167782
        %v4455 = vsel %vm4447, %v4438, %v4454
        %v4456 = vsel %vm4446, %v4453, %v4455
        %v4457 = vsel %vm4445, %v4435, %v4438
        %v4458 = vsel %vm4448, %v4444, 1326507024
        %v4459 = vsel %vm4447, %v4441, %v4458
        %v4460 = vsel %vm4446, %v4457, %v4459
        %v4461 = vshll.u32 %v4421, 8
        %v4462 = vmul.u32.u64.compose %v4461, %v4460
        %v4463 = vextract.low.u32 %v4462
        %v4464 = vextract.high.u32 %v4462
        %v4465 = vmul.u32.u64.compose %v4461, %v4456
        %v4466 = vextract.low.u32 %v4465
        %v4467 = vextract.high.u32 %v4465
        %v4468 = vmul.u32 %v4461, %v4452
        %v4469 = vadd.s32 %v4464, %v4466
        %vm4470 = vc.u32 %v4464, %v4466
        %v4471 = vadd.s32 %v4467, 1
        %v4472 = vsel %vm4470, %v4471, %v4467
        %v4473 = vadd.s32 %v4468, %v4472
        %v4474 = vadd.s32 %v4473, 536870912
        %v4475 = vshrl.u32 %v4474, 30
        %v4476 = vshll.u32 %v4475, 30
        %v4477 = vsub.s32 %v4473, %v4476
        %vm4478 = vcmp.lt.s32.totalorder %v4477, 0
        %v4479 = vsub.s32 0, %v4477
        %v4480 = vsel %vm4478, %v4479, %v4477
        %v4481 = vclz %v4480
        %v4482 = vsub.s32 %v4481, 2
        %vm4483 = vcmp.gt.s32.totalorder 0, %v4482
        %v4484 = vsel %vm4483, 0, %v4482
        %v4485 = vsub.s32 32, %v4484
        %v4486 = vshll.u32 %v4477, %v4484
        %v4487 = vshrl.u32 %v4469, %v4485
        %v4488 = vor.u32 %v4486, %v4487
        %v4489 = vsub.s32 4294967266, %v4484
        %v4490 = vadd.s32 %v4489, 127
        %v4491 = vshll.u32 %v4490, 23
        %v4492 = vor.u32 4788187, %v4491
        %v4493 = vand.u32 2147483647, %v4492
        %v4495 = vcvt.s32.f32 %v4488
        %v4496 = vmul.f32 %v4495, %v4493
        %v4497 = vxor.u32 %v4496, 2147483648
        %v4498 = vsel %vm4415, %v4497, %v4496
        %v4499 = vsub.s32 4, %v4475
        %v4500 = vsel %vm4415, %v4499, %v4475
        %v4501 = vsel %vm4414, %v387, %v4498
        %v4502 = vsel %vm4414, 0, %v4500
        %v4503 = vcosq.f32.pop %v4501
        %v4504 = vsinq.f32.pop %v4501
        %vm4505 = vweird.f32 %v387
        %v4506 = vadd.s32 %v4502, 3
        %v4507 = vand.u32 %v4506, 3
        %vm4508 = vcmp.lt.s32.totalorder %v4507, 2
        %vm4509 = vcmp.eq.s32.totalorder %v4507, 0
        %v4510 = vxor.u32 %v4504, 2147483648
        %v4511 = vsel %vm4509, %v4503, %v4510
        %vm4512 = vcmp.eq.s32.totalorder %v4507, 2
        %v4513 = vxor.u32 %v4503, 2147483648
        %v4514 = vsel %vm4512, %v4513, %v4504
        %v4515 = vsel %vm4508, %v4511, %v4514
        %v4516 = vsel %vm4505, nan, %v4515
        %v4517 = vand.u32 2147483647, %v388
        %vm4518 = vcmp.le.f32.partialorder %v4517, 0.7853982
        %vm4519 = vcmp.lt.s32.totalorder %v388, 0
        %v4520 = vand.u32 %v388, 2139095040
        %v4521 = vshrl.u32 %v4520, 23
        %v4522 = vsub.s32 %v4521, 127
        %v4523 = vand.u32 2147483647, %v388
        %v4524 = vand.u32 %v4523, 8388607
        %v4525 = vor.u32 %v4524, 8388608
        %v4526 = vsub.s32 0, %v4525
        %v4527 = vadd.s32 %v4522, 1
        %vm4528 = vcmp.gt.s32.totalorder %v4527, 0
        %v4529 = vsel %vm4528, %v4527, 0
        %v4530 = vshrl.u32 %v4529, 5
        %v4531 = vand.u32 %v4529, 31
        %v4532 = vsub.s32 32, %v4531
        %v4533 = vshrl.u32 683565275, %v4532
        %v4534 = vshll.u32 683565275, %v4531
        %v4535 = vshrl.u32 2475754826, %v4532
        %v4536 = vor.u32 %v4534, %v4535
        %v4537 = vshll.u32 2475754826, %v4531
        %v4538 = vshrl.u32 2131351028, %v4532
        %v4539 = vor.u32 %v4537, %v4538
        %v4540 = vshll.u32 2131351028, %v4531
        %v4541 = vshrl.u32 2102212464, %v4532
        %v4542 = vor.u32 %v4540, %v4541
        %v4543 = vshll.u32 2102212464, %v4531
        %v4544 = vshrl.u32 920167782, %v4532
        %v4545 = vor.u32 %v4543, %v4544
        %v4546 = vshll.u32 920167782, %v4531
        %v4547 = vshrl.u32 1326507024, %v4532
        %v4548 = vor.u32 %v4546, %v4547
        %vm4549 = vcmp.lt.s32.totalorder %v4530, 1
        %vm4550 = vcmp.lt.s32.totalorder %v4530, 2
        %vm4551 = vcmp.lt.s32.totalorder %v4530, 3
        %vm4552 = vcmp.lt.s32.totalorder %v4530, 4
        %v4553 = vsel %vm4549, %v4533, %v4536
        %v4554 = vsel %vm4552, %v4542, 2102212464
        %v4555 = vsel %vm4551, %v4539, %v4554
        %v4556 = vsel %vm4550, %v4553, %v4555
        %v4557 = vsel %vm4549, %v4536, %v4539
        %v4558 = vsel %vm4552, %v4545, 920167782
        %v4559 = vsel %vm4551, %v4542, %v4558
        %v4560 = vsel %vm4550, %v4557, %v4559
        %v4561 = vsel %vm4549, %v4539, %v4542
        %v4562 = vsel %vm4552, %v4548, 1326507024
        %v4563 = vsel %vm4551, %v4545, %v4562
        %v4564 = vsel %vm4550, %v4561, %v4563
        %v4565 = vshll.u32 %v4525, 8
        %v4566 = vmul.u32.u64.compose %v4565, %v4564
        %v4567 = vextract.low.u32 %v4566
        %v4568 = vextract.high.u32 %v4566
        %v4569 = vmul.u32.u64.compose %v4565, %v4560
        %v4570 = vextract.low.u32 %v4569
        %v4571 = vextract.high.u32 %v4569
        %v4572 = vmul.u32 %v4565, %v4556
        %v4573 = vadd.s32 %v4568, %v4570
        %vm4574 = vc.u32 %v4568, %v4570
        %v4575 = vadd.s32 %v4571, 1
        %v4576 = vsel %vm4574, %v4575, %v4571
        %v4577 = vadd.s32 %v4572, %v4576
        %v4578 = vadd.s32 %v4577, 536870912
        %v4579 = vshrl.u32 %v4578, 30
        %v4580 = vshll.u32 %v4579, 30
        %v4581 = vsub.s32 %v4577, %v4580
        %vm4582 = vcmp.lt.s32.totalorder %v4581, 0
        %v4583 = vsub.s32 0, %v4581
        %v4584 = vsel %vm4582, %v4583, %v4581
        %v4585 = vclz %v4584
        %v4586 = vsub.s32 %v4585, 2
        %vm4587 = vcmp.gt.s32.totalorder 0, %v4586
        %v4588 = vsel %vm4587, 0, %v4586
        %v4589 = vsub.s32 32, %v4588
        %v4590 = vshll.u32 %v4581, %v4588
        %v4591 = vshrl.u32 %v4573, %v4589
        %v4592 = vor.u32 %v4590, %v4591
        %v4593 = vsub.s32 4294967266, %v4588
        %v4594 = vadd.s32 %v4593, 127
        %v4595 = vshll.u32 %v4594, 23
        %v4596 = vor.u32 4788187, %v4595
        %v4597 = vand.u32 2147483647, %v4596
        %v4599 = vcvt.s32.f32 %v4592
        %v4600 = vmul.f32 %v4599, %v4597
        %v4601 = vxor.u32 %v4600, 2147483648
        %v4602 = vsel %vm4519, %v4601, %v4600
        %v4603 = vsub.s32 4, %v4579
        %v4604 = vsel %vm4519, %v4603, %v4579
        %v4605 = vsel %vm4518, %v388, %v4602
        %v4606 = vsel %vm4518, 0, %v4604
        %v4607 = vcosq.f32.pop %v4605
        %v4608 = vsinq.f32.pop %v4605
        %vm4609 = vweird.f32 %v388
        %v4610 = vadd.s32 %v4606, 3
        %v4611 = vand.u32 %v4610, 3
        %vm4612 = vcmp.lt.s32.totalorder %v4611, 2
        %vm4613 = vcmp.eq.s32.totalorder %v4611, 0
        %v4614 = vxor.u32 %v4608, 2147483648
        %v4615 = vsel %vm4613, %v4607, %v4614
        %vm4616 = vcmp.eq.s32.totalorder %v4611, 2
        %v4617 = vxor.u32 %v4607, 2147483648
        %v4618 = vsel %vm4616, %v4617, %v4608
        %v4619 = vsel %vm4612, %v4615, %v4618
        %v4620 = vsel %vm4609, nan, %v4619
        %v4621 = vand.u32 2147483647, %v389
        %vm4622 = vcmp.le.f32.partialorder %v4621, 0.7853982
        %vm4623 = vcmp.lt.s32.totalorder %v389, 0
        %v4624 = vand.u32 %v389, 2139095040
        %v4625 = vshrl.u32 %v4624, 23
        %v4626 = vsub.s32 %v4625, 127
        %v4627 = vand.u32 2147483647, %v389
        %v4628 = vand.u32 %v4627, 8388607
        %v4629 = vor.u32 %v4628, 8388608
        %v4630 = vsub.s32 0, %v4629
        %v4631 = vadd.s32 %v4626, 1
        %vm4632 = vcmp.gt.s32.totalorder %v4631, 0
        %v4633 = vsel %vm4632, %v4631, 0
        %v4634 = vshrl.u32 %v4633, 5
        %v4635 = vand.u32 %v4633, 31
        %v4636 = vsub.s32 32, %v4635
        %v4637 = vshrl.u32 683565275, %v4636
        %v4638 = vshll.u32 683565275, %v4635
        %v4639 = vshrl.u32 2475754826, %v4636
        %v4640 = vor.u32 %v4638, %v4639
        %v4641 = vshll.u32 2475754826, %v4635
        %v4642 = vshrl.u32 2131351028, %v4636
        %v4643 = vor.u32 %v4641, %v4642
        %v4644 = vshll.u32 2131351028, %v4635
        %v4645 = vshrl.u32 2102212464, %v4636
        %v4646 = vor.u32 %v4644, %v4645
        %v4647 = vshll.u32 2102212464, %v4635
        %v4648 = vshrl.u32 920167782, %v4636
        %v4649 = vor.u32 %v4647, %v4648
        %v4650 = vshll.u32 920167782, %v4635
        %v4651 = vshrl.u32 1326507024, %v4636
        %v4652 = vor.u32 %v4650, %v4651
        %vm4653 = vcmp.lt.s32.totalorder %v4634, 1
        %vm4654 = vcmp.lt.s32.totalorder %v4634, 2
        %vm4655 = vcmp.lt.s32.totalorder %v4634, 3
        %vm4656 = vcmp.lt.s32.totalorder %v4634, 4
        %v4657 = vsel %vm4653, %v4637, %v4640
        %v4658 = vsel %vm4656, %v4646, 2102212464
        %v4659 = vsel %vm4655, %v4643, %v4658
        %v4660 = vsel %vm4654, %v4657, %v4659
        %v4661 = vsel %vm4653, %v4640, %v4643
        %v4662 = vsel %vm4656, %v4649, 920167782
        %v4663 = vsel %vm4655, %v4646, %v4662
        %v4664 = vsel %vm4654, %v4661, %v4663
        %v4665 = vsel %vm4653, %v4643, %v4646
        %v4666 = vsel %vm4656, %v4652, 1326507024
        %v4667 = vsel %vm4655, %v4649, %v4666
        %v4668 = vsel %vm4654, %v4665, %v4667
        %v4669 = vshll.u32 %v4629, 8
        %v4670 = vmul.u32.u64.compose %v4669, %v4668
        %v4671 = vextract.low.u32 %v4670
        %v4672 = vextract.high.u32 %v4670
        %v4673 = vmul.u32.u64.compose %v4669, %v4664
        %v4674 = vextract.low.u32 %v4673
        %v4675 = vextract.high.u32 %v4673
        %v4676 = vmul.u32 %v4669, %v4660
        %v4677 = vadd.s32 %v4672, %v4674
        %vm4678 = vc.u32 %v4672, %v4674
        %v4679 = vadd.s32 %v4675, 1
        %v4680 = vsel %vm4678, %v4679, %v4675
        %v4681 = vadd.s32 %v4676, %v4680
        %v4682 = vadd.s32 %v4681, 536870912
        %v4683 = vshrl.u32 %v4682, 30
        %v4684 = vshll.u32 %v4683, 30
        %v4685 = vsub.s32 %v4681, %v4684
        %vm4686 = vcmp.lt.s32.totalorder %v4685, 0
        %v4687 = vsub.s32 0, %v4685
        %v4688 = vsel %vm4686, %v4687, %v4685
        %v4689 = vclz %v4688
        %v4690 = vsub.s32 %v4689, 2
        %vm4691 = vcmp.gt.s32.totalorder 0, %v4690
        %v4692 = vsel %vm4691, 0, %v4690
        %v4693 = vsub.s32 32, %v4692
        %v4694 = vshll.u32 %v4685, %v4692
        %v4695 = vshrl.u32 %v4677, %v4693
        %v4696 = vor.u32 %v4694, %v4695
        %v4697 = vsub.s32 4294967266, %v4692
        %v4698 = vadd.s32 %v4697, 127
        %v4699 = vshll.u32 %v4698, 23
        %v4700 = vor.u32 4788187, %v4699
        %v4701 = vand.u32 2147483647, %v4700
        %v4703 = vcvt.s32.f32 %v4696
        %v4704 = vmul.f32 %v4703, %v4701
        %v4705 = vxor.u32 %v4704, 2147483648
        %v4706 = vsel %vm4623, %v4705, %v4704
        %v4707 = vsub.s32 4, %v4683
        %v4708 = vsel %vm4623, %v4707, %v4683
        %v4709 = vsel %vm4622, %v389, %v4706
        %v4710 = vsel %vm4622, 0, %v4708
        %v4711 = vcosq.f32.pop %v4709
        %v4712 = vsinq.f32.pop %v4709
        %vm4713 = vweird.f32 %v389
        %v4714 = vadd.s32 %v4710, 3
        %v4715 = vand.u32 %v4714, 3
        %vm4716 = vcmp.lt.s32.totalorder %v4715, 2
        %vm4717 = vcmp.eq.s32.totalorder %v4715, 0
        %v4718 = vxor.u32 %v4712, 2147483648
        %v4719 = vsel %vm4717, %v4711, %v4718
        %vm4720 = vcmp.eq.s32.totalorder %v4715, 2
        %v4721 = vxor.u32 %v4711, 2147483648
        %v4722 = vsel %vm4720, %v4721, %v4712
        %v4723 = vsel %vm4716, %v4719, %v4722
        %v4724 = vsel %vm4713, nan, %v4723
        %v4725 = vand.u32 2147483647, %v390
        %vm4726 = vcmp.le.f32.partialorder %v4725, 0.7853982
        %vm4727 = vcmp.lt.s32.totalorder %v390, 0
        %v4728 = vand.u32 %v390, 2139095040
        %v4729 = vshrl.u32 %v4728, 23
        %v4730 = vsub.s32 %v4729, 127
        %v4731 = vand.u32 2147483647, %v390
        %v4732 = vand.u32 %v4731, 8388607
        %v4733 = vor.u32 %v4732, 8388608
        %v4734 = vsub.s32 0, %v4733
        %v4735 = vadd.s32 %v4730, 1
        %vm4736 = vcmp.gt.s32.totalorder %v4735, 0
        %v4737 = vsel %vm4736, %v4735, 0
        %v4738 = vshrl.u32 %v4737, 5
        %v4739 = vand.u32 %v4737, 31
        %v4740 = vsub.s32 32, %v4739
        %v4741 = vshrl.u32 683565275, %v4740
        %v4742 = vshll.u32 683565275, %v4739
        %v4743 = vshrl.u32 2475754826, %v4740
        %v4744 = vor.u32 %v4742, %v4743
        %v4745 = vshll.u32 2475754826, %v4739
        %v4746 = vshrl.u32 2131351028, %v4740
        %v4747 = vor.u32 %v4745, %v4746
        %v4748 = vshll.u32 2131351028, %v4739
        %v4749 = vshrl.u32 2102212464, %v4740
        %v4750 = vor.u32 %v4748, %v4749
        %v4751 = vshll.u32 2102212464, %v4739
        %v4752 = vshrl.u32 920167782, %v4740
        %v4753 = vor.u32 %v4751, %v4752
        %v4754 = vshll.u32 920167782, %v4739
        %v4755 = vshrl.u32 1326507024, %v4740
        %v4756 = vor.u32 %v4754, %v4755
        %vm4757 = vcmp.lt.s32.totalorder %v4738, 1
        %vm4758 = vcmp.lt.s32.totalorder %v4738, 2
        %vm4759 = vcmp.lt.s32.totalorder %v4738, 3
        %vm4760 = vcmp.lt.s32.totalorder %v4738, 4
        %v4761 = vsel %vm4757, %v4741, %v4744
        %v4762 = vsel %vm4760, %v4750, 2102212464
        %v4763 = vsel %vm4759, %v4747, %v4762
        %v4764 = vsel %vm4758, %v4761, %v4763
        %v4765 = vsel %vm4757, %v4744, %v4747
        %v4766 = vsel %vm4760, %v4753, 920167782
        %v4767 = vsel %vm4759, %v4750, %v4766
        %v4768 = vsel %vm4758, %v4765, %v4767
        %v4769 = vsel %vm4757, %v4747, %v4750
        %v4770 = vsel %vm4760, %v4756, 1326507024
        %v4771 = vsel %vm4759, %v4753, %v4770
        %v4772 = vsel %vm4758, %v4769, %v4771
        %v4773 = vshll.u32 %v4733, 8
        %v4774 = vmul.u32.u64.compose %v4773, %v4772
        %v4775 = vextract.low.u32 %v4774
        %v4776 = vextract.high.u32 %v4774
        %v4777 = vmul.u32.u64.compose %v4773, %v4768
        %v4778 = vextract.low.u32 %v4777
        %v4779 = vextract.high.u32 %v4777
        %v4780 = vmul.u32 %v4773, %v4764
        %v4781 = vadd.s32 %v4776, %v4778
        %vm4782 = vc.u32 %v4776, %v4778
        %v4783 = vadd.s32 %v4779, 1
        %v4784 = vsel %vm4782, %v4783, %v4779
        %v4785 = vadd.s32 %v4780, %v4784
        %v4786 = vadd.s32 %v4785, 536870912
        %v4787 = vshrl.u32 %v4786, 30
        %v4788 = vshll.u32 %v4787, 30
        %v4789 = vsub.s32 %v4785, %v4788
        %vm4790 = vcmp.lt.s32.totalorder %v4789, 0
        %v4791 = vsub.s32 0, %v4789
        %v4792 = vsel %vm4790, %v4791, %v4789
        %v4793 = vclz %v4792
        %v4794 = vsub.s32 %v4793, 2
        %vm4795 = vcmp.gt.s32.totalorder 0, %v4794
        %v4796 = vsel %vm4795, 0, %v4794
        %v4797 = vsub.s32 32, %v4796
        %v4798 = vshll.u32 %v4789, %v4796
        %v4799 = vshrl.u32 %v4781, %v4797
        %v4800 = vor.u32 %v4798, %v4799
        %v4801 = vsub.s32 4294967266, %v4796
        %v4802 = vadd.s32 %v4801, 127
        %v4803 = vshll.u32 %v4802, 23
        %v4804 = vor.u32 4788187, %v4803
        %v4805 = vand.u32 2147483647, %v4804
        %v4807 = vcvt.s32.f32 %v4800
        %v4808 = vmul.f32 %v4807, %v4805
        %v4809 = vxor.u32 %v4808, 2147483648
        %v4810 = vsel %vm4727, %v4809, %v4808
        %v4811 = vsub.s32 4, %v4787
        %v4812 = vsel %vm4727, %v4811, %v4787
        %v4813 = vsel %vm4726, %v390, %v4810
        %v4814 = vsel %vm4726, 0, %v4812
        %v4815 = vcosq.f32.pop %v4813
        %v4816 = vsinq.f32.pop %v4813
        %vm4817 = vweird.f32 %v390
        %v4818 = vadd.s32 %v4814, 3
        %v4819 = vand.u32 %v4818, 3
        %vm4820 = vcmp.lt.s32.totalorder %v4819, 2
        %vm4821 = vcmp.eq.s32.totalorder %v4819, 0
        %v4822 = vxor.u32 %v4816, 2147483648
        %v4823 = vsel %vm4821, %v4815, %v4822
        %vm4824 = vcmp.eq.s32.totalorder %v4819, 2
        %v4825 = vxor.u32 %v4815, 2147483648
        %v4826 = vsel %vm4824, %v4825, %v4816
        %v4827 = vsel %vm4820, %v4823, %v4826
        %v4828 = vsel %vm4817, nan, %v4827
        %v4829 = vand.u32 2147483647, %v391
        %vm4830 = vcmp.le.f32.partialorder %v4829, 0.7853982
        %vm4831 = vcmp.lt.s32.totalorder %v391, 0
        %v4832 = vand.u32 %v391, 2139095040
        %v4833 = vshrl.u32 %v4832, 23
        %v4834 = vsub.s32 %v4833, 127
        %v4835 = vand.u32 2147483647, %v391
        %v4836 = vand.u32 %v4835, 8388607
        %v4837 = vor.u32 %v4836, 8388608
        %v4838 = vsub.s32 0, %v4837
        %v4839 = vadd.s32 %v4834, 1
        %vm4840 = vcmp.gt.s32.totalorder %v4839, 0
        %v4841 = vsel %vm4840, %v4839, 0
        %v4842 = vshrl.u32 %v4841, 5
        %v4843 = vand.u32 %v4841, 31
        %v4844 = vsub.s32 32, %v4843
        %v4845 = vshrl.u32 683565275, %v4844
        %v4846 = vshll.u32 683565275, %v4843
        %v4847 = vshrl.u32 2475754826, %v4844
        %v4848 = vor.u32 %v4846, %v4847
        %v4849 = vshll.u32 2475754826, %v4843
        %v4850 = vshrl.u32 2131351028, %v4844
        %v4851 = vor.u32 %v4849, %v4850
        %v4852 = vshll.u32 2131351028, %v4843
        %v4853 = vshrl.u32 2102212464, %v4844
        %v4854 = vor.u32 %v4852, %v4853
        %v4855 = vshll.u32 2102212464, %v4843
        %v4856 = vshrl.u32 920167782, %v4844
        %v4857 = vor.u32 %v4855, %v4856
        %v4858 = vshll.u32 920167782, %v4843
        %v4859 = vshrl.u32 1326507024, %v4844
        %v4860 = vor.u32 %v4858, %v4859
        %vm4861 = vcmp.lt.s32.totalorder %v4842, 1
        %vm4862 = vcmp.lt.s32.totalorder %v4842, 2
        %vm4863 = vcmp.lt.s32.totalorder %v4842, 3
        %vm4864 = vcmp.lt.s32.totalorder %v4842, 4
        %v4865 = vsel %vm4861, %v4845, %v4848
        %v4866 = vsel %vm4864, %v4854, 2102212464
        %v4867 = vsel %vm4863, %v4851, %v4866
        %v4868 = vsel %vm4862, %v4865, %v4867
        %v4869 = vsel %vm4861, %v4848, %v4851
        %v4870 = vsel %vm4864, %v4857, 920167782
        %v4871 = vsel %vm4863, %v4854, %v4870
        %v4872 = vsel %vm4862, %v4869, %v4871
        %v4873 = vsel %vm4861, %v4851, %v4854
        %v4874 = vsel %vm4864, %v4860, 1326507024
        %v4875 = vsel %vm4863, %v4857, %v4874
        %v4876 = vsel %vm4862, %v4873, %v4875
        %v4877 = vshll.u32 %v4837, 8
        %v4878 = vmul.u32.u64.compose %v4877, %v4876
        %v4879 = vextract.low.u32 %v4878
        %v4880 = vextract.high.u32 %v4878
        %v4881 = vmul.u32.u64.compose %v4877, %v4872
        %v4882 = vextract.low.u32 %v4881
        %v4883 = vextract.high.u32 %v4881
        %v4884 = vmul.u32 %v4877, %v4868
        %v4885 = vadd.s32 %v4880, %v4882
        %vm4886 = vc.u32 %v4880, %v4882
        %v4887 = vadd.s32 %v4883, 1
        %v4888 = vsel %vm4886, %v4887, %v4883
        %v4889 = vadd.s32 %v4884, %v4888
        %v4890 = vadd.s32 %v4889, 536870912
        %v4891 = vshrl.u32 %v4890, 30
        %v4892 = vshll.u32 %v4891, 30
        %v4893 = vsub.s32 %v4889, %v4892
        %vm4894 = vcmp.lt.s32.totalorder %v4893, 0
        %v4895 = vsub.s32 0, %v4893
        %v4896 = vsel %vm4894, %v4895, %v4893
        %v4897 = vclz %v4896
        %v4898 = vsub.s32 %v4897, 2
        %vm4899 = vcmp.gt.s32.totalorder 0, %v4898
        %v4900 = vsel %vm4899, 0, %v4898
        %v4901 = vsub.s32 32, %v4900
        %v4902 = vshll.u32 %v4893, %v4900
        %v4903 = vshrl.u32 %v4885, %v4901
        %v4904 = vor.u32 %v4902, %v4903
        %v4905 = vsub.s32 4294967266, %v4900
        %v4906 = vadd.s32 %v4905, 127
        %v4907 = vshll.u32 %v4906, 23
        %v4908 = vor.u32 4788187, %v4907
        %v4909 = vand.u32 2147483647, %v4908
        %v4911 = vcvt.s32.f32 %v4904
        %v4912 = vmul.f32 %v4911, %v4909
        %v4913 = vxor.u32 %v4912, 2147483648
        %v4914 = vsel %vm4831, %v4913, %v4912
        %v4915 = vsub.s32 4, %v4891
        %v4916 = vsel %vm4831, %v4915, %v4891
        %v4917 = vsel %vm4830, %v391, %v4914
        %v4918 = vsel %vm4830, 0, %v4916
        %v4919 = vcosq.f32.pop %v4917
        %v4920 = vsinq.f32.pop %v4917
        %vm4921 = vweird.f32 %v391
        %v4922 = vadd.s32 %v4918, 3
        %v4923 = vand.u32 %v4922, 3
        %vm4924 = vcmp.lt.s32.totalorder %v4923, 2
        %vm4925 = vcmp.eq.s32.totalorder %v4923, 0
        %v4926 = vxor.u32 %v4920, 2147483648
        %v4927 = vsel %vm4925, %v4919, %v4926
        %vm4928 = vcmp.eq.s32.totalorder %v4923, 2
        %v4929 = vxor.u32 %v4919, 2147483648
        %v4930 = vsel %vm4928, %v4929, %v4920
        %v4931 = vsel %vm4924, %v4927, %v4930
        %v4932 = vsel %vm4921, nan, %v4931
        %v4933 = vand.u32 2147483647, %v392
        %vm4934 = vcmp.le.f32.partialorder %v4933, 0.7853982
        %vm4935 = vcmp.lt.s32.totalorder %v392, 0
        %v4936 = vand.u32 %v392, 2139095040
        %v4937 = vshrl.u32 %v4936, 23
        %v4938 = vsub.s32 %v4937, 127
        %v4939 = vand.u32 2147483647, %v392
        %v4940 = vand.u32 %v4939, 8388607
        %v4941 = vor.u32 %v4940, 8388608
        %v4942 = vsub.s32 0, %v4941
        %v4943 = vadd.s32 %v4938, 1
        %vm4944 = vcmp.gt.s32.totalorder %v4943, 0
        %v4945 = vsel %vm4944, %v4943, 0
        %v4946 = vshrl.u32 %v4945, 5
        %v4947 = vand.u32 %v4945, 31
        %v4948 = vsub.s32 32, %v4947
        %v4949 = vshrl.u32 683565275, %v4948
        %v4950 = vshll.u32 683565275, %v4947
        %v4951 = vshrl.u32 2475754826, %v4948
        %v4952 = vor.u32 %v4950, %v4951
        %v4953 = vshll.u32 2475754826, %v4947
        %v4954 = vshrl.u32 2131351028, %v4948
        %v4955 = vor.u32 %v4953, %v4954
        %v4956 = vshll.u32 2131351028, %v4947
        %v4957 = vshrl.u32 2102212464, %v4948
        %v4958 = vor.u32 %v4956, %v4957
        %v4959 = vshll.u32 2102212464, %v4947
        %v4960 = vshrl.u32 920167782, %v4948
        %v4961 = vor.u32 %v4959, %v4960
        %v4962 = vshll.u32 920167782, %v4947
        %v4963 = vshrl.u32 1326507024, %v4948
        %v4964 = vor.u32 %v4962, %v4963
        %vm4965 = vcmp.lt.s32.totalorder %v4946, 1
        %vm4966 = vcmp.lt.s32.totalorder %v4946, 2
        %vm4967 = vcmp.lt.s32.totalorder %v4946, 3
        %vm4968 = vcmp.lt.s32.totalorder %v4946, 4
        %v4969 = vsel %vm4965, %v4949, %v4952
        %v4970 = vsel %vm4968, %v4958, 2102212464
        %v4971 = vsel %vm4967, %v4955, %v4970
        %v4972 = vsel %vm4966, %v4969, %v4971
        %v4973 = vsel %vm4965, %v4952, %v4955
        %v4974 = vsel %vm4968, %v4961, 920167782
        %v4975 = vsel %vm4967, %v4958, %v4974
        %v4976 = vsel %vm4966, %v4973, %v4975
        %v4977 = vsel %vm4965, %v4955, %v4958
        %v4978 = vsel %vm4968, %v4964, 1326507024
        %v4979 = vsel %vm4967, %v4961, %v4978
        %v4980 = vsel %vm4966, %v4977, %v4979
        %v4981 = vshll.u32 %v4941, 8
        %v4982 = vmul.u32.u64.compose %v4981, %v4980
        %v4983 = vextract.low.u32 %v4982
        %v4984 = vextract.high.u32 %v4982
        %v4985 = vmul.u32.u64.compose %v4981, %v4976
        %v4986 = vextract.low.u32 %v4985
        %v4987 = vextract.high.u32 %v4985
        %v4988 = vmul.u32 %v4981, %v4972
        %v4989 = vadd.s32 %v4984, %v4986
        %vm4990 = vc.u32 %v4984, %v4986
        %v4991 = vadd.s32 %v4987, 1
        %v4992 = vsel %vm4990, %v4991, %v4987
        %v4993 = vadd.s32 %v4988, %v4992
        %v4994 = vadd.s32 %v4993, 536870912
        %v4995 = vshrl.u32 %v4994, 30
        %v4996 = vshll.u32 %v4995, 30
        %v4997 = vsub.s32 %v4993, %v4996
        %vm4998 = vcmp.lt.s32.totalorder %v4997, 0
        %v4999 = vsub.s32 0, %v4997
        %v5000 = vsel %vm4998, %v4999, %v4997
        %v5001 = vclz %v5000
        %v5002 = vsub.s32 %v5001, 2
        %vm5003 = vcmp.gt.s32.totalorder 0, %v5002
        %v5004 = vsel %vm5003, 0, %v5002
        %v5005 = vsub.s32 32, %v5004
        %v5006 = vshll.u32 %v4997, %v5004
        %v5007 = vshrl.u32 %v4989, %v5005
        %v5008 = vor.u32 %v5006, %v5007
        %v5009 = vsub.s32 4294967266, %v5004
        %v5010 = vadd.s32 %v5009, 127
        %v5011 = vshll.u32 %v5010, 23
        %v5012 = vor.u32 4788187, %v5011
        %v5013 = vand.u32 2147483647, %v5012
        %v5015 = vcvt.s32.f32 %v5008
        %v5016 = vmul.f32 %v5015, %v5013
        %v5017 = vxor.u32 %v5016, 2147483648
        %v5018 = vsel %vm4935, %v5017, %v5016
        %v5019 = vsub.s32 4, %v4995
        %v5020 = vsel %vm4935, %v5019, %v4995
        %v5021 = vsel %vm4934, %v392, %v5018
        %v5022 = vsel %vm4934, 0, %v5020
        %v5023 = vcosq.f32.pop %v5021
        %v5024 = vsinq.f32.pop %v5021
        %vm5025 = vweird.f32 %v392
        %v5026 = vadd.s32 %v5022, 3
        %v5027 = vand.u32 %v5026, 3
        %vm5028 = vcmp.lt.s32.totalorder %v5027, 2
        %vm5029 = vcmp.eq.s32.totalorder %v5027, 0
        %v5030 = vxor.u32 %v5024, 2147483648
        %v5031 = vsel %vm5029, %v5023, %v5030
        %vm5032 = vcmp.eq.s32.totalorder %v5027, 2
        %v5033 = vxor.u32 %v5023, 2147483648
        %v5034 = vsel %vm5032, %v5033, %v5024
        %v5035 = vsel %vm5028, %v5031, %v5034
        %v5036 = vsel %vm5025, nan, %v5035
        %v5037 = vand.u32 2147483647, %v393
        %vm5038 = vcmp.le.f32.partialorder %v5037, 0.7853982
        %vm5039 = vcmp.lt.s32.totalorder %v393, 0
        %v5040 = vand.u32 %v393, 2139095040
        %v5041 = vshrl.u32 %v5040, 23
        %v5042 = vsub.s32 %v5041, 127
        %v5043 = vand.u32 2147483647, %v393
        %v5044 = vand.u32 %v5043, 8388607
        %v5045 = vor.u32 %v5044, 8388608
        %v5046 = vsub.s32 0, %v5045
        %v5047 = vadd.s32 %v5042, 1
        %vm5048 = vcmp.gt.s32.totalorder %v5047, 0
        %v5049 = vsel %vm5048, %v5047, 0
        %v5050 = vshrl.u32 %v5049, 5
        %v5051 = vand.u32 %v5049, 31
        %v5052 = vsub.s32 32, %v5051
        %v5053 = vshrl.u32 683565275, %v5052
        %v5054 = vshll.u32 683565275, %v5051
        %v5055 = vshrl.u32 2475754826, %v5052
        %v5056 = vor.u32 %v5054, %v5055
        %v5057 = vshll.u32 2475754826, %v5051
        %v5058 = vshrl.u32 2131351028, %v5052
        %v5059 = vor.u32 %v5057, %v5058
        %v5060 = vshll.u32 2131351028, %v5051
        %v5061 = vshrl.u32 2102212464, %v5052
        %v5062 = vor.u32 %v5060, %v5061
        %v5063 = vshll.u32 2102212464, %v5051
        %v5064 = vshrl.u32 920167782, %v5052
        %v5065 = vor.u32 %v5063, %v5064
        %v5066 = vshll.u32 920167782, %v5051
        %v5067 = vshrl.u32 1326507024, %v5052
        %v5068 = vor.u32 %v5066, %v5067
        %vm5069 = vcmp.lt.s32.totalorder %v5050, 1
        %vm5070 = vcmp.lt.s32.totalorder %v5050, 2
        %vm5071 = vcmp.lt.s32.totalorder %v5050, 3
        %vm5072 = vcmp.lt.s32.totalorder %v5050, 4
        %v5073 = vsel %vm5069, %v5053, %v5056
        %v5074 = vsel %vm5072, %v5062, 2102212464
        %v5075 = vsel %vm5071, %v5059, %v5074
        %v5076 = vsel %vm5070, %v5073, %v5075
        %v5077 = vsel %vm5069, %v5056, %v5059
        %v5078 = vsel %vm5072, %v5065, 920167782
        %v5079 = vsel %vm5071, %v5062, %v5078
        %v5080 = vsel %vm5070, %v5077, %v5079
        %v5081 = vsel %vm5069, %v5059, %v5062
        %v5082 = vsel %vm5072, %v5068, 1326507024
        %v5083 = vsel %vm5071, %v5065, %v5082
        %v5084 = vsel %vm5070, %v5081, %v5083
        %v5085 = vshll.u32 %v5045, 8
        %v5086 = vmul.u32.u64.compose %v5085, %v5084
        %v5087 = vextract.low.u32 %v5086
        %v5088 = vextract.high.u32 %v5086
        %v5089 = vmul.u32.u64.compose %v5085, %v5080
        %v5090 = vextract.low.u32 %v5089
        %v5091 = vextract.high.u32 %v5089
        %v5092 = vmul.u32 %v5085, %v5076
        %v5093 = vadd.s32 %v5088, %v5090
        %vm5094 = vc.u32 %v5088, %v5090
        %v5095 = vadd.s32 %v5091, 1
        %v5096 = vsel %vm5094, %v5095, %v5091
        %v5097 = vadd.s32 %v5092, %v5096
        %v5098 = vadd.s32 %v5097, 536870912
        %v5099 = vshrl.u32 %v5098, 30
        %v5100 = vshll.u32 %v5099, 30
        %v5101 = vsub.s32 %v5097, %v5100
        %vm5102 = vcmp.lt.s32.totalorder %v5101, 0
        %v5103 = vsub.s32 0, %v5101
        %v5104 = vsel %vm5102, %v5103, %v5101
        %v5105 = vclz %v5104
        %v5106 = vsub.s32 %v5105, 2
        %vm5107 = vcmp.gt.s32.totalorder 0, %v5106
        %v5108 = vsel %vm5107, 0, %v5106
        %v5109 = vsub.s32 32, %v5108
        %v5110 = vshll.u32 %v5101, %v5108
        %v5111 = vshrl.u32 %v5093, %v5109
        %v5112 = vor.u32 %v5110, %v5111
        %v5113 = vsub.s32 4294967266, %v5108
        %v5114 = vadd.s32 %v5113, 127
        %v5115 = vshll.u32 %v5114, 23
        %v5116 = vor.u32 4788187, %v5115
        %v5117 = vand.u32 2147483647, %v5116
        %v5119 = vcvt.s32.f32 %v5112
        %v5120 = vmul.f32 %v5119, %v5117
        %v5121 = vxor.u32 %v5120, 2147483648
        %v5122 = vsel %vm5039, %v5121, %v5120
        %v5123 = vsub.s32 4, %v5099
        %v5124 = vsel %vm5039, %v5123, %v5099
        %v5125 = vsel %vm5038, %v393, %v5122
        %v5126 = vsel %vm5038, 0, %v5124
        %v5127 = vcosq.f32.pop %v5125
        %v5128 = vsinq.f32.pop %v5125
        %vm5129 = vweird.f32 %v393
        %v5130 = vadd.s32 %v5126, 3
        %v5131 = vand.u32 %v5130, 3
        %vm5132 = vcmp.lt.s32.totalorder %v5131, 2
        %vm5133 = vcmp.eq.s32.totalorder %v5131, 0
        %v5134 = vxor.u32 %v5128, 2147483648
        %v5135 = vsel %vm5133, %v5127, %v5134
        %vm5136 = vcmp.eq.s32.totalorder %v5131, 2
        %v5137 = vxor.u32 %v5127, 2147483648
        %v5138 = vsel %vm5136, %v5137, %v5128
        %v5139 = vsel %vm5132, %v5135, %v5138
        %v5140 = vsel %vm5129, nan, %v5139
        %v5141 = vand.u32 2147483647, %v394
        %vm5142 = vcmp.le.f32.partialorder %v5141, 0.7853982
        %vm5143 = vcmp.lt.s32.totalorder %v394, 0
        %v5144 = vand.u32 %v394, 2139095040
        %v5145 = vshrl.u32 %v5144, 23
        %v5146 = vsub.s32 %v5145, 127
        %v5147 = vand.u32 2147483647, %v394
        %v5148 = vand.u32 %v5147, 8388607
        %v5149 = vor.u32 %v5148, 8388608
        %v5150 = vsub.s32 0, %v5149
        %v5151 = vadd.s32 %v5146, 1
        %vm5152 = vcmp.gt.s32.totalorder %v5151, 0
        %v5153 = vsel %vm5152, %v5151, 0
        %v5154 = vshrl.u32 %v5153, 5
        %v5155 = vand.u32 %v5153, 31
        %v5156 = vsub.s32 32, %v5155
        %v5157 = vshrl.u32 683565275, %v5156
        %v5158 = vshll.u32 683565275, %v5155
        %v5159 = vshrl.u32 2475754826, %v5156
        %v5160 = vor.u32 %v5158, %v5159
        %v5161 = vshll.u32 2475754826, %v5155
        %v5162 = vshrl.u32 2131351028, %v5156
        %v5163 = vor.u32 %v5161, %v5162
        %v5164 = vshll.u32 2131351028, %v5155
        %v5165 = vshrl.u32 2102212464, %v5156
        %v5166 = vor.u32 %v5164, %v5165
        %v5167 = vshll.u32 2102212464, %v5155
        %v5168 = vshrl.u32 920167782, %v5156
        %v5169 = vor.u32 %v5167, %v5168
        %v5170 = vshll.u32 920167782, %v5155
        %v5171 = vshrl.u32 1326507024, %v5156
        %v5172 = vor.u32 %v5170, %v5171
        %vm5173 = vcmp.lt.s32.totalorder %v5154, 1
        %vm5174 = vcmp.lt.s32.totalorder %v5154, 2
        %vm5175 = vcmp.lt.s32.totalorder %v5154, 3
        %vm5176 = vcmp.lt.s32.totalorder %v5154, 4
        %v5177 = vsel %vm5173, %v5157, %v5160
        %v5178 = vsel %vm5176, %v5166, 2102212464
        %v5179 = vsel %vm5175, %v5163, %v5178
        %v5180 = vsel %vm5174, %v5177, %v5179
        %v5181 = vsel %vm5173, %v5160, %v5163
        %v5182 = vsel %vm5176, %v5169, 920167782
        %v5183 = vsel %vm5175, %v5166, %v5182
        %v5184 = vsel %vm5174, %v5181, %v5183
        %v5185 = vsel %vm5173, %v5163, %v5166
        %v5186 = vsel %vm5176, %v5172, 1326507024
        %v5187 = vsel %vm5175, %v5169, %v5186
        %v5188 = vsel %vm5174, %v5185, %v5187
        %v5189 = vshll.u32 %v5149, 8
        %v5190 = vmul.u32.u64.compose %v5189, %v5188
        %v5191 = vextract.low.u32 %v5190
        %v5192 = vextract.high.u32 %v5190
        %v5193 = vmul.u32.u64.compose %v5189, %v5184
        %v5194 = vextract.low.u32 %v5193
        %v5195 = vextract.high.u32 %v5193
        %v5196 = vmul.u32 %v5189, %v5180
        %v5197 = vadd.s32 %v5192, %v5194
        %vm5198 = vc.u32 %v5192, %v5194
        %v5199 = vadd.s32 %v5195, 1
        %v5200 = vsel %vm5198, %v5199, %v5195
        %v5201 = vadd.s32 %v5196, %v5200
        %v5202 = vadd.s32 %v5201, 536870912
        %v5203 = vshrl.u32 %v5202, 30
        %v5204 = vshll.u32 %v5203, 30
        %v5205 = vsub.s32 %v5201, %v5204
        %vm5206 = vcmp.lt.s32.totalorder %v5205, 0
        %v5207 = vsub.s32 0, %v5205
        %v5208 = vsel %vm5206, %v5207, %v5205
        %v5209 = vclz %v5208
        %v5210 = vsub.s32 %v5209, 2
        %vm5211 = vcmp.gt.s32.totalorder 0, %v5210
        %v5212 = vsel %vm5211, 0, %v5210
        %v5213 = vsub.s32 32, %v5212
        %v5214 = vshll.u32 %v5205, %v5212
        %v5215 = vshrl.u32 %v5197, %v5213
        %v5216 = vor.u32 %v5214, %v5215
        %v5217 = vsub.s32 4294967266, %v5212
        %v5218 = vadd.s32 %v5217, 127
        %v5219 = vshll.u32 %v5218, 23
        %v5220 = vor.u32 4788187, %v5219
        %v5221 = vand.u32 2147483647, %v5220
        %v5223 = vcvt.s32.f32 %v5216
        %v5224 = vmul.f32 %v5223, %v5221
        %v5225 = vxor.u32 %v5224, 2147483648
        %v5226 = vsel %vm5143, %v5225, %v5224
        %v5227 = vsub.s32 4, %v5203
        %v5228 = vsel %vm5143, %v5227, %v5203
        %v5229 = vsel %vm5142, %v394, %v5226
        %v5230 = vsel %vm5142, 0, %v5228
        %v5231 = vcosq.f32.pop %v5229
        %v5232 = vsinq.f32.pop %v5229
        %vm5233 = vweird.f32 %v394
        %v5234 = vadd.s32 %v5230, 3
        %v5235 = vand.u32 %v5234, 3
        %vm5236 = vcmp.lt.s32.totalorder %v5235, 2
        %vm5237 = vcmp.eq.s32.totalorder %v5235, 0
        %v5238 = vxor.u32 %v5232, 2147483648
        %v5239 = vsel %vm5237, %v5231, %v5238
        %vm5240 = vcmp.eq.s32.totalorder %v5235, 2
        %v5241 = vxor.u32 %v5231, 2147483648
        %v5242 = vsel %vm5240, %v5241, %v5232
        %v5243 = vsel %vm5236, %v5239, %v5242
        %v5244 = vsel %vm5233, nan, %v5243
        %v5245 = vand.u32 2147483647, %v395
        %vm5246 = vcmp.le.f32.partialorder %v5245, 0.7853982
        %vm5247 = vcmp.lt.s32.totalorder %v395, 0
        %v5248 = vand.u32 %v395, 2139095040
        %v5249 = vshrl.u32 %v5248, 23
        %v5250 = vsub.s32 %v5249, 127
        %v5251 = vand.u32 2147483647, %v395
        %v5252 = vand.u32 %v5251, 8388607
        %v5253 = vor.u32 %v5252, 8388608
        %v5254 = vsub.s32 0, %v5253
        %v5255 = vadd.s32 %v5250, 1
        %vm5256 = vcmp.gt.s32.totalorder %v5255, 0
        %v5257 = vsel %vm5256, %v5255, 0
        %v5258 = vshrl.u32 %v5257, 5
        %v5259 = vand.u32 %v5257, 31
        %v5260 = vsub.s32 32, %v5259
        %v5261 = vshrl.u32 683565275, %v5260
        %v5262 = vshll.u32 683565275, %v5259
        %v5263 = vshrl.u32 2475754826, %v5260
        %v5264 = vor.u32 %v5262, %v5263
        %v5265 = vshll.u32 2475754826, %v5259
        %v5266 = vshrl.u32 2131351028, %v5260
        %v5267 = vor.u32 %v5265, %v5266
        %v5268 = vshll.u32 2131351028, %v5259
        %v5269 = vshrl.u32 2102212464, %v5260
        %v5270 = vor.u32 %v5268, %v5269
        %v5271 = vshll.u32 2102212464, %v5259
        %v5272 = vshrl.u32 920167782, %v5260
        %v5273 = vor.u32 %v5271, %v5272
        %v5274 = vshll.u32 920167782, %v5259
        %v5275 = vshrl.u32 1326507024, %v5260
        %v5276 = vor.u32 %v5274, %v5275
        %vm5277 = vcmp.lt.s32.totalorder %v5258, 1
        %vm5278 = vcmp.lt.s32.totalorder %v5258, 2
        %vm5279 = vcmp.lt.s32.totalorder %v5258, 3
        %vm5280 = vcmp.lt.s32.totalorder %v5258, 4
        %v5281 = vsel %vm5277, %v5261, %v5264
        %v5282 = vsel %vm5280, %v5270, 2102212464
        %v5283 = vsel %vm5279, %v5267, %v5282
        %v5284 = vsel %vm5278, %v5281, %v5283
        %v5285 = vsel %vm5277, %v5264, %v5267
        %v5286 = vsel %vm5280, %v5273, 920167782
        %v5287 = vsel %vm5279, %v5270, %v5286
        %v5288 = vsel %vm5278, %v5285, %v5287
        %v5289 = vsel %vm5277, %v5267, %v5270
        %v5290 = vsel %vm5280, %v5276, 1326507024
        %v5291 = vsel %vm5279, %v5273, %v5290
        %v5292 = vsel %vm5278, %v5289, %v5291
        %v5293 = vshll.u32 %v5253, 8
        %v5294 = vmul.u32.u64.compose %v5293, %v5292
        %v5295 = vextract.low.u32 %v5294
        %v5296 = vextract.high.u32 %v5294
        %v5297 = vmul.u32.u64.compose %v5293, %v5288
        %v5298 = vextract.low.u32 %v5297
        %v5299 = vextract.high.u32 %v5297
        %v5300 = vmul.u32 %v5293, %v5284
        %v5301 = vadd.s32 %v5296, %v5298
        %vm5302 = vc.u32 %v5296, %v5298
        %v5303 = vadd.s32 %v5299, 1
        %v5304 = vsel %vm5302, %v5303, %v5299
        %v5305 = vadd.s32 %v5300, %v5304
        %v5306 = vadd.s32 %v5305, 536870912
        %v5307 = vshrl.u32 %v5306, 30
        %v5308 = vshll.u32 %v5307, 30
        %v5309 = vsub.s32 %v5305, %v5308
        %vm5310 = vcmp.lt.s32.totalorder %v5309, 0
        %v5311 = vsub.s32 0, %v5309
        %v5312 = vsel %vm5310, %v5311, %v5309
        %v5313 = vclz %v5312
        %v5314 = vsub.s32 %v5313, 2
        %vm5315 = vcmp.gt.s32.totalorder 0, %v5314
        %v5316 = vsel %vm5315, 0, %v5314
        %v5317 = vsub.s32 32, %v5316
        %v5318 = vshll.u32 %v5309, %v5316
        %v5319 = vshrl.u32 %v5301, %v5317
        %v5320 = vor.u32 %v5318, %v5319
        %v5321 = vsub.s32 4294967266, %v5316
        %v5322 = vadd.s32 %v5321, 127
        %v5323 = vshll.u32 %v5322, 23
        %v5324 = vor.u32 4788187, %v5323
        %v5325 = vand.u32 2147483647, %v5324
        %v5327 = vcvt.s32.f32 %v5320
        %v5328 = vmul.f32 %v5327, %v5325
        %v5329 = vxor.u32 %v5328, 2147483648
        %v5330 = vsel %vm5247, %v5329, %v5328
        %v5331 = vsub.s32 4, %v5307
        %v5332 = vsel %vm5247, %v5331, %v5307
        %v5333 = vsel %vm5246, %v395, %v5330
        %v5334 = vsel %vm5246, 0, %v5332
        %v5335 = vcosq.f32.pop %v5333
        %v5336 = vsinq.f32.pop %v5333
        %vm5337 = vweird.f32 %v395
        %v5338 = vadd.s32 %v5334, 3
        %v5339 = vand.u32 %v5338, 3
        %vm5340 = vcmp.lt.s32.totalorder %v5339, 2
        %vm5341 = vcmp.eq.s32.totalorder %v5339, 0
        %v5342 = vxor.u32 %v5336, 2147483648
        %v5343 = vsel %vm5341, %v5335, %v5342
        %vm5344 = vcmp.eq.s32.totalorder %v5339, 2
        %v5345 = vxor.u32 %v5335, 2147483648
        %v5346 = vsel %vm5344, %v5345, %v5336
        %v5347 = vsel %vm5340, %v5343, %v5346
        %v5348 = vsel %vm5337, nan, %v5347
        %v5349 = vand.u32 2147483647, %v396
        %vm5350 = vcmp.le.f32.partialorder %v5349, 0.7853982
        %vm5351 = vcmp.lt.s32.totalorder %v396, 0
        %v5352 = vand.u32 %v396, 2139095040
        %v5353 = vshrl.u32 %v5352, 23
        %v5354 = vsub.s32 %v5353, 127
        %v5355 = vand.u32 2147483647, %v396
        %v5356 = vand.u32 %v5355, 8388607
        %v5357 = vor.u32 %v5356, 8388608
        %v5358 = vsub.s32 0, %v5357
        %v5359 = vadd.s32 %v5354, 1
        %vm5360 = vcmp.gt.s32.totalorder %v5359, 0
        %v5361 = vsel %vm5360, %v5359, 0
        %v5362 = vshrl.u32 %v5361, 5
        %v5363 = vand.u32 %v5361, 31
        %v5364 = vsub.s32 32, %v5363
        %v5365 = vshrl.u32 683565275, %v5364
        %v5366 = vshll.u32 683565275, %v5363
        %v5367 = vshrl.u32 2475754826, %v5364
        %v5368 = vor.u32 %v5366, %v5367
        %v5369 = vshll.u32 2475754826, %v5363
        %v5370 = vshrl.u32 2131351028, %v5364
        %v5371 = vor.u32 %v5369, %v5370
        %v5372 = vshll.u32 2131351028, %v5363
        %v5373 = vshrl.u32 2102212464, %v5364
        %v5374 = vor.u32 %v5372, %v5373
        %v5375 = vshll.u32 2102212464, %v5363
        %v5376 = vshrl.u32 920167782, %v5364
        %v5377 = vor.u32 %v5375, %v5376
        %v5378 = vshll.u32 920167782, %v5363
        %v5379 = vshrl.u32 1326507024, %v5364
        %v5380 = vor.u32 %v5378, %v5379
        %vm5381 = vcmp.lt.s32.totalorder %v5362, 1
        %vm5382 = vcmp.lt.s32.totalorder %v5362, 2
        %vm5383 = vcmp.lt.s32.totalorder %v5362, 3
        %vm5384 = vcmp.lt.s32.totalorder %v5362, 4
        %v5385 = vsel %vm5381, %v5365, %v5368
        %v5386 = vsel %vm5384, %v5374, 2102212464
        %v5387 = vsel %vm5383, %v5371, %v5386
        %v5388 = vsel %vm5382, %v5385, %v5387
        %v5389 = vsel %vm5381, %v5368, %v5371
        %v5390 = vsel %vm5384, %v5377, 920167782
        %v5391 = vsel %vm5383, %v5374, %v5390
        %v5392 = vsel %vm5382, %v5389, %v5391
        %v5393 = vsel %vm5381, %v5371, %v5374
        %v5394 = vsel %vm5384, %v5380, 1326507024
        %v5395 = vsel %vm5383, %v5377, %v5394
        %v5396 = vsel %vm5382, %v5393, %v5395
        %v5397 = vshll.u32 %v5357, 8
        %v5398 = vmul.u32.u64.compose %v5397, %v5396
        %v5399 = vextract.low.u32 %v5398
        %v5400 = vextract.high.u32 %v5398
        %v5401 = vmul.u32.u64.compose %v5397, %v5392
        %v5402 = vextract.low.u32 %v5401
        %v5403 = vextract.high.u32 %v5401
        %v5404 = vmul.u32 %v5397, %v5388
        %v5405 = vadd.s32 %v5400, %v5402
        %vm5406 = vc.u32 %v5400, %v5402
        %v5407 = vadd.s32 %v5403, 1
        %v5408 = vsel %vm5406, %v5407, %v5403
        %v5409 = vadd.s32 %v5404, %v5408
        %v5410 = vadd.s32 %v5409, 536870912
        %v5411 = vshrl.u32 %v5410, 30
        %v5412 = vshll.u32 %v5411, 30
        %v5413 = vsub.s32 %v5409, %v5412
        %vm5414 = vcmp.lt.s32.totalorder %v5413, 0
        %v5415 = vsub.s32 0, %v5413
        %v5416 = vsel %vm5414, %v5415, %v5413
        %v5417 = vclz %v5416
        %v5418 = vsub.s32 %v5417, 2
        %vm5419 = vcmp.gt.s32.totalorder 0, %v5418
        %v5420 = vsel %vm5419, 0, %v5418
        %v5421 = vsub.s32 32, %v5420
        %v5422 = vshll.u32 %v5413, %v5420
        %v5423 = vshrl.u32 %v5405, %v5421
        %v5424 = vor.u32 %v5422, %v5423
        %v5425 = vsub.s32 4294967266, %v5420
        %v5426 = vadd.s32 %v5425, 127
        %v5427 = vshll.u32 %v5426, 23
        %v5428 = vor.u32 4788187, %v5427
        %v5429 = vand.u32 2147483647, %v5428
        %v5431 = vcvt.s32.f32 %v5424
        %v5432 = vmul.f32 %v5431, %v5429
        %v5433 = vxor.u32 %v5432, 2147483648
        %v5434 = vsel %vm5351, %v5433, %v5432
        %v5435 = vsub.s32 4, %v5411
        %v5436 = vsel %vm5351, %v5435, %v5411
        %v5437 = vsel %vm5350, %v396, %v5434
        %v5438 = vsel %vm5350, 0, %v5436
        %v5439 = vcosq.f32.pop %v5437
        %v5440 = vsinq.f32.pop %v5437
        %vm5441 = vweird.f32 %v396
        %v5442 = vadd.s32 %v5438, 3
        %v5443 = vand.u32 %v5442, 3
        %vm5444 = vcmp.lt.s32.totalorder %v5443, 2
        %vm5445 = vcmp.eq.s32.totalorder %v5443, 0
        %v5446 = vxor.u32 %v5440, 2147483648
        %v5447 = vsel %vm5445, %v5439, %v5446
        %vm5448 = vcmp.eq.s32.totalorder %v5443, 2
        %v5449 = vxor.u32 %v5439, 2147483648
        %v5450 = vsel %vm5448, %v5449, %v5440
        %v5451 = vsel %vm5444, %v5447, %v5450
        %v5452 = vsel %vm5441, nan, %v5451
        %v5453 = vand.u32 2147483647, %v397
        %vm5454 = vcmp.le.f32.partialorder %v5453, 0.7853982
        %vm5455 = vcmp.lt.s32.totalorder %v397, 0
        %v5456 = vand.u32 %v397, 2139095040
        %v5457 = vshrl.u32 %v5456, 23
        %v5458 = vsub.s32 %v5457, 127
        %v5459 = vand.u32 2147483647, %v397
        %v5460 = vand.u32 %v5459, 8388607
        %v5461 = vor.u32 %v5460, 8388608
        %v5462 = vsub.s32 0, %v5461
        %v5463 = vadd.s32 %v5458, 1
        %vm5464 = vcmp.gt.s32.totalorder %v5463, 0
        %v5465 = vsel %vm5464, %v5463, 0
        %v5466 = vshrl.u32 %v5465, 5
        %v5467 = vand.u32 %v5465, 31
        %v5468 = vsub.s32 32, %v5467
        %v5469 = vshrl.u32 683565275, %v5468
        %v5470 = vshll.u32 683565275, %v5467
        %v5471 = vshrl.u32 2475754826, %v5468
        %v5472 = vor.u32 %v5470, %v5471
        %v5473 = vshll.u32 2475754826, %v5467
        %v5474 = vshrl.u32 2131351028, %v5468
        %v5475 = vor.u32 %v5473, %v5474
        %v5476 = vshll.u32 2131351028, %v5467
        %v5477 = vshrl.u32 2102212464, %v5468
        %v5478 = vor.u32 %v5476, %v5477
        %v5479 = vshll.u32 2102212464, %v5467
        %v5480 = vshrl.u32 920167782, %v5468
        %v5481 = vor.u32 %v5479, %v5480
        %v5482 = vshll.u32 920167782, %v5467
        %v5483 = vshrl.u32 1326507024, %v5468
        %v5484 = vor.u32 %v5482, %v5483
        %vm5485 = vcmp.lt.s32.totalorder %v5466, 1
        %vm5486 = vcmp.lt.s32.totalorder %v5466, 2
        %vm5487 = vcmp.lt.s32.totalorder %v5466, 3
        %vm5488 = vcmp.lt.s32.totalorder %v5466, 4
        %v5489 = vsel %vm5485, %v5469, %v5472
        %v5490 = vsel %vm5488, %v5478, 2102212464
        %v5491 = vsel %vm5487, %v5475, %v5490
        %v5492 = vsel %vm5486, %v5489, %v5491
        %v5493 = vsel %vm5485, %v5472, %v5475
        %v5494 = vsel %vm5488, %v5481, 920167782
        %v5495 = vsel %vm5487, %v5478, %v5494
        %v5496 = vsel %vm5486, %v5493, %v5495
        %v5497 = vsel %vm5485, %v5475, %v5478
        %v5498 = vsel %vm5488, %v5484, 1326507024
        %v5499 = vsel %vm5487, %v5481, %v5498
        %v5500 = vsel %vm5486, %v5497, %v5499
        %v5501 = vshll.u32 %v5461, 8
        %v5502 = vmul.u32.u64.compose %v5501, %v5500
        %v5503 = vextract.low.u32 %v5502
        %v5504 = vextract.high.u32 %v5502
        %v5505 = vmul.u32.u64.compose %v5501, %v5496
        %v5506 = vextract.low.u32 %v5505
        %v5507 = vextract.high.u32 %v5505
        %v5508 = vmul.u32 %v5501, %v5492
        %v5509 = vadd.s32 %v5504, %v5506
        %vm5510 = vc.u32 %v5504, %v5506
        %v5511 = vadd.s32 %v5507, 1
        %v5512 = vsel %vm5510, %v5511, %v5507
        %v5513 = vadd.s32 %v5508, %v5512
        %v5514 = vadd.s32 %v5513, 536870912
        %v5515 = vshrl.u32 %v5514, 30
        %v5516 = vshll.u32 %v5515, 30
        %v5517 = vsub.s32 %v5513, %v5516
        %vm5518 = vcmp.lt.s32.totalorder %v5517, 0
        %v5519 = vsub.s32 0, %v5517
        %v5520 = vsel %vm5518, %v5519, %v5517
        %v5521 = vclz %v5520
        %v5522 = vsub.s32 %v5521, 2
        %vm5523 = vcmp.gt.s32.totalorder 0, %v5522
        %v5524 = vsel %vm5523, 0, %v5522
        %v5525 = vsub.s32 32, %v5524
        %v5526 = vshll.u32 %v5517, %v5524
        %v5527 = vshrl.u32 %v5509, %v5525
        %v5528 = vor.u32 %v5526, %v5527
        %v5529 = vsub.s32 4294967266, %v5524
        %v5530 = vadd.s32 %v5529, 127
        %v5531 = vshll.u32 %v5530, 23
        %v5532 = vor.u32 4788187, %v5531
        %v5533 = vand.u32 2147483647, %v5532
        %v5535 = vcvt.s32.f32 %v5528
        %v5536 = vmul.f32 %v5535, %v5533
        %v5537 = vxor.u32 %v5536, 2147483648
        %v5538 = vsel %vm5455, %v5537, %v5536
        %v5539 = vsub.s32 4, %v5515
        %v5540 = vsel %vm5455, %v5539, %v5515
        %v5541 = vsel %vm5454, %v397, %v5538
        %v5542 = vsel %vm5454, 0, %v5540
        %v5543 = vcosq.f32.pop %v5541
        %v5544 = vsinq.f32.pop %v5541
        %vm5545 = vweird.f32 %v397
        %v5546 = vadd.s32 %v5542, 3
        %v5547 = vand.u32 %v5546, 3
        %vm5548 = vcmp.lt.s32.totalorder %v5547, 2
        %vm5549 = vcmp.eq.s32.totalorder %v5547, 0
        %v5550 = vxor.u32 %v5544, 2147483648
        %v5551 = vsel %vm5549, %v5543, %v5550
        %vm5552 = vcmp.eq.s32.totalorder %v5547, 2
        %v5553 = vxor.u32 %v5543, 2147483648
        %v5554 = vsel %vm5552, %v5553, %v5544
        %v5555 = vsel %vm5548, %v5551, %v5554
        %v5556 = vsel %vm5545, nan, %v5555
        %v5557 = vand.u32 2147483647, %v398
        %vm5558 = vcmp.le.f32.partialorder %v5557, 0.7853982
        %vm5559 = vcmp.lt.s32.totalorder %v398, 0
        %v5560 = vand.u32 %v398, 2139095040
        %v5561 = vshrl.u32 %v5560, 23
        %v5562 = vsub.s32 %v5561, 127
        %v5563 = vand.u32 2147483647, %v398
        %v5564 = vand.u32 %v5563, 8388607
        %v5565 = vor.u32 %v5564, 8388608
        %v5566 = vsub.s32 0, %v5565
        %v5567 = vadd.s32 %v5562, 1
        %vm5568 = vcmp.gt.s32.totalorder %v5567, 0
        %v5569 = vsel %vm5568, %v5567, 0
        %v5570 = vshrl.u32 %v5569, 5
        %v5571 = vand.u32 %v5569, 31
        %v5572 = vsub.s32 32, %v5571
        %v5573 = vshrl.u32 683565275, %v5572
        %v5574 = vshll.u32 683565275, %v5571
        %v5575 = vshrl.u32 2475754826, %v5572
        %v5576 = vor.u32 %v5574, %v5575
        %v5577 = vshll.u32 2475754826, %v5571
        %v5578 = vshrl.u32 2131351028, %v5572
        %v5579 = vor.u32 %v5577, %v5578
        %v5580 = vshll.u32 2131351028, %v5571
        %v5581 = vshrl.u32 2102212464, %v5572
        %v5582 = vor.u32 %v5580, %v5581
        %v5583 = vshll.u32 2102212464, %v5571
        %v5584 = vshrl.u32 920167782, %v5572
        %v5585 = vor.u32 %v5583, %v5584
        %v5586 = vshll.u32 920167782, %v5571
        %v5587 = vshrl.u32 1326507024, %v5572
        %v5588 = vor.u32 %v5586, %v5587
        %vm5589 = vcmp.lt.s32.totalorder %v5570, 1
        %vm5590 = vcmp.lt.s32.totalorder %v5570, 2
        %vm5591 = vcmp.lt.s32.totalorder %v5570, 3
        %vm5592 = vcmp.lt.s32.totalorder %v5570, 4
        %v5593 = vsel %vm5589, %v5573, %v5576
        %v5594 = vsel %vm5592, %v5582, 2102212464
        %v5595 = vsel %vm5591, %v5579, %v5594
        %v5596 = vsel %vm5590, %v5593, %v5595
        %v5597 = vsel %vm5589, %v5576, %v5579
        %v5598 = vsel %vm5592, %v5585, 920167782
        %v5599 = vsel %vm5591, %v5582, %v5598
        %v5600 = vsel %vm5590, %v5597, %v5599
        %v5601 = vsel %vm5589, %v5579, %v5582
        %v5602 = vsel %vm5592, %v5588, 1326507024
        %v5603 = vsel %vm5591, %v5585, %v5602
        %v5604 = vsel %vm5590, %v5601, %v5603
        %v5605 = vshll.u32 %v5565, 8
        %v5606 = vmul.u32.u64.compose %v5605, %v5604
        %v5607 = vextract.low.u32 %v5606
        %v5608 = vextract.high.u32 %v5606
        %v5609 = vmul.u32.u64.compose %v5605, %v5600
        %v5610 = vextract.low.u32 %v5609
        %v5611 = vextract.high.u32 %v5609
        %v5612 = vmul.u32 %v5605, %v5596
        %v5613 = vadd.s32 %v5608, %v5610
        %vm5614 = vc.u32 %v5608, %v5610
        %v5615 = vadd.s32 %v5611, 1
        %v5616 = vsel %vm5614, %v5615, %v5611
        %v5617 = vadd.s32 %v5612, %v5616
        %v5618 = vadd.s32 %v5617, 536870912
        %v5619 = vshrl.u32 %v5618, 30
        %v5620 = vshll.u32 %v5619, 30
        %v5621 = vsub.s32 %v5617, %v5620
        %vm5622 = vcmp.lt.s32.totalorder %v5621, 0
        %v5623 = vsub.s32 0, %v5621
        %v5624 = vsel %vm5622, %v5623, %v5621
        %v5625 = vclz %v5624
        %v5626 = vsub.s32 %v5625, 2
        %vm5627 = vcmp.gt.s32.totalorder 0, %v5626
        %v5628 = vsel %vm5627, 0, %v5626
        %v5629 = vsub.s32 32, %v5628
        %v5630 = vshll.u32 %v5621, %v5628
        %v5631 = vshrl.u32 %v5613, %v5629
        %v5632 = vor.u32 %v5630, %v5631
        %v5633 = vsub.s32 4294967266, %v5628
        %v5634 = vadd.s32 %v5633, 127
        %v5635 = vshll.u32 %v5634, 23
        %v5636 = vor.u32 4788187, %v5635
        %v5637 = vand.u32 2147483647, %v5636
        %v5639 = vcvt.s32.f32 %v5632
        %v5640 = vmul.f32 %v5639, %v5637
        %v5641 = vxor.u32 %v5640, 2147483648
        %v5642 = vsel %vm5559, %v5641, %v5640
        %v5643 = vsub.s32 4, %v5619
        %v5644 = vsel %vm5559, %v5643, %v5619
        %v5645 = vsel %vm5558, %v398, %v5642
        %v5646 = vsel %vm5558, 0, %v5644
        %v5647 = vcosq.f32.pop %v5645
        %v5648 = vsinq.f32.pop %v5645
        %vm5649 = vweird.f32 %v398
        %v5650 = vadd.s32 %v5646, 3
        %v5651 = vand.u32 %v5650, 3
        %vm5652 = vcmp.lt.s32.totalorder %v5651, 2
        %vm5653 = vcmp.eq.s32.totalorder %v5651, 0
        %v5654 = vxor.u32 %v5648, 2147483648
        %v5655 = vsel %vm5653, %v5647, %v5654
        %vm5656 = vcmp.eq.s32.totalorder %v5651, 2
        %v5657 = vxor.u32 %v5647, 2147483648
        %v5658 = vsel %vm5656, %v5657, %v5648
        %v5659 = vsel %vm5652, %v5655, %v5658
        %v5660 = vsel %vm5649, nan, %v5659
        %v5661 = vand.u32 2147483647, %v399
        %vm5662 = vcmp.le.f32.partialorder %v5661, 0.7853982
        %vm5663 = vcmp.lt.s32.totalorder %v399, 0
        %v5664 = vand.u32 %v399, 2139095040
        %v5665 = vshrl.u32 %v5664, 23
        %v5666 = vsub.s32 %v5665, 127
        %v5667 = vand.u32 2147483647, %v399
        %v5668 = vand.u32 %v5667, 8388607
        %v5669 = vor.u32 %v5668, 8388608
        %v5670 = vsub.s32 0, %v5669
        %v5671 = vadd.s32 %v5666, 1
        %vm5672 = vcmp.gt.s32.totalorder %v5671, 0
        %v5673 = vsel %vm5672, %v5671, 0
        %v5674 = vshrl.u32 %v5673, 5
        %v5675 = vand.u32 %v5673, 31
        %v5676 = vsub.s32 32, %v5675
        %v5677 = vshrl.u32 683565275, %v5676
        %v5678 = vshll.u32 683565275, %v5675
        %v5679 = vshrl.u32 2475754826, %v5676
        %v5680 = vor.u32 %v5678, %v5679
        %v5681 = vshll.u32 2475754826, %v5675
        %v5682 = vshrl.u32 2131351028, %v5676
        %v5683 = vor.u32 %v5681, %v5682
        %v5684 = vshll.u32 2131351028, %v5675
        %v5685 = vshrl.u32 2102212464, %v5676
        %v5686 = vor.u32 %v5684, %v5685
        %v5687 = vshll.u32 2102212464, %v5675
        %v5688 = vshrl.u32 920167782, %v5676
        %v5689 = vor.u32 %v5687, %v5688
        %v5690 = vshll.u32 920167782, %v5675
        %v5691 = vshrl.u32 1326507024, %v5676
        %v5692 = vor.u32 %v5690, %v5691
        %vm5693 = vcmp.lt.s32.totalorder %v5674, 1
        %vm5694 = vcmp.lt.s32.totalorder %v5674, 2
        %vm5695 = vcmp.lt.s32.totalorder %v5674, 3
        %vm5696 = vcmp.lt.s32.totalorder %v5674, 4
        %v5697 = vsel %vm5693, %v5677, %v5680
        %v5698 = vsel %vm5696, %v5686, 2102212464
        %v5699 = vsel %vm5695, %v5683, %v5698
        %v5700 = vsel %vm5694, %v5697, %v5699
        %v5701 = vsel %vm5693, %v5680, %v5683
        %v5702 = vsel %vm5696, %v5689, 920167782
        %v5703 = vsel %vm5695, %v5686, %v5702
        %v5704 = vsel %vm5694, %v5701, %v5703
        %v5705 = vsel %vm5693, %v5683, %v5686
        %v5706 = vsel %vm5696, %v5692, 1326507024
        %v5707 = vsel %vm5695, %v5689, %v5706
        %v5708 = vsel %vm5694, %v5705, %v5707
        %v5709 = vshll.u32 %v5669, 8
        %v5710 = vmul.u32.u64.compose %v5709, %v5708
        %v5711 = vextract.low.u32 %v5710
        %v5712 = vextract.high.u32 %v5710
        %v5713 = vmul.u32.u64.compose %v5709, %v5704
        %v5714 = vextract.low.u32 %v5713
        %v5715 = vextract.high.u32 %v5713
        %v5716 = vmul.u32 %v5709, %v5700
        %v5717 = vadd.s32 %v5712, %v5714
        %vm5718 = vc.u32 %v5712, %v5714
        %v5719 = vadd.s32 %v5715, 1
        %v5720 = vsel %vm5718, %v5719, %v5715
        %v5721 = vadd.s32 %v5716, %v5720
        %v5722 = vadd.s32 %v5721, 536870912
        %v5723 = vshrl.u32 %v5722, 30
        %v5724 = vshll.u32 %v5723, 30
        %v5725 = vsub.s32 %v5721, %v5724
        %vm5726 = vcmp.lt.s32.totalorder %v5725, 0
        %v5727 = vsub.s32 0, %v5725
        %v5728 = vsel %vm5726, %v5727, %v5725
        %v5729 = vclz %v5728
        %v5730 = vsub.s32 %v5729, 2
        %vm5731 = vcmp.gt.s32.totalorder 0, %v5730
        %v5732 = vsel %vm5731, 0, %v5730
        %v5733 = vsub.s32 32, %v5732
        %v5734 = vshll.u32 %v5725, %v5732
        %v5735 = vshrl.u32 %v5717, %v5733
        %v5736 = vor.u32 %v5734, %v5735
        %v5737 = vsub.s32 4294967266, %v5732
        %v5738 = vadd.s32 %v5737, 127
        %v5739 = vshll.u32 %v5738, 23
        %v5740 = vor.u32 4788187, %v5739
        %v5741 = vand.u32 2147483647, %v5740
        %v5743 = vcvt.s32.f32 %v5736
        %v5744 = vmul.f32 %v5743, %v5741
        %v5745 = vxor.u32 %v5744, 2147483648
        %v5746 = vsel %vm5663, %v5745, %v5744
        %v5747 = vsub.s32 4, %v5723
        %v5748 = vsel %vm5663, %v5747, %v5723
        %v5749 = vsel %vm5662, %v399, %v5746
        %v5750 = vsel %vm5662, 0, %v5748
        %v5751 = vcosq.f32.pop %v5749
        %v5752 = vsinq.f32.pop %v5749
        %vm5753 = vweird.f32 %v399
        %v5754 = vadd.s32 %v5750, 3
        %v5755 = vand.u32 %v5754, 3
        %vm5756 = vcmp.lt.s32.totalorder %v5755, 2
        %vm5757 = vcmp.eq.s32.totalorder %v5755, 0
        %v5758 = vxor.u32 %v5752, 2147483648
        %v5759 = vsel %vm5757, %v5751, %v5758
        %vm5760 = vcmp.eq.s32.totalorder %v5755, 2
        %v5761 = vxor.u32 %v5751, 2147483648
        %v5762 = vsel %vm5760, %v5761, %v5752
        %v5763 = vsel %vm5756, %v5759, %v5762
        %v5764 = vsel %vm5753, nan, %v5763
        %v5765 = vand.u32 2147483647, %v400
        %vm5766 = vcmp.le.f32.partialorder %v5765, 0.7853982
        %vm5767 = vcmp.lt.s32.totalorder %v400, 0
        %v5768 = vand.u32 %v400, 2139095040
        %v5769 = vshrl.u32 %v5768, 23
        %v5770 = vsub.s32 %v5769, 127
        %v5771 = vand.u32 2147483647, %v400
        %v5772 = vand.u32 %v5771, 8388607
        %v5773 = vor.u32 %v5772, 8388608
        %v5774 = vsub.s32 0, %v5773
        %v5775 = vadd.s32 %v5770, 1
        %vm5776 = vcmp.gt.s32.totalorder %v5775, 0
        %v5777 = vsel %vm5776, %v5775, 0
        %v5778 = vshrl.u32 %v5777, 5
        %v5779 = vand.u32 %v5777, 31
        %v5780 = vsub.s32 32, %v5779
        %v5781 = vshrl.u32 683565275, %v5780
        %v5782 = vshll.u32 683565275, %v5779
        %v5783 = vshrl.u32 2475754826, %v5780
        %v5784 = vor.u32 %v5782, %v5783
        %v5785 = vshll.u32 2475754826, %v5779
        %v5786 = vshrl.u32 2131351028, %v5780
        %v5787 = vor.u32 %v5785, %v5786
        %v5788 = vshll.u32 2131351028, %v5779
        %v5789 = vshrl.u32 2102212464, %v5780
        %v5790 = vor.u32 %v5788, %v5789
        %v5791 = vshll.u32 2102212464, %v5779
        %v5792 = vshrl.u32 920167782, %v5780
        %v5793 = vor.u32 %v5791, %v5792
        %v5794 = vshll.u32 920167782, %v5779
        %v5795 = vshrl.u32 1326507024, %v5780
        %v5796 = vor.u32 %v5794, %v5795
        %vm5797 = vcmp.lt.s32.totalorder %v5778, 1
        %vm5798 = vcmp.lt.s32.totalorder %v5778, 2
        %vm5799 = vcmp.lt.s32.totalorder %v5778, 3
        %vm5800 = vcmp.lt.s32.totalorder %v5778, 4
        %v5801 = vsel %vm5797, %v5781, %v5784
        %v5802 = vsel %vm5800, %v5790, 2102212464
        %v5803 = vsel %vm5799, %v5787, %v5802
        %v5804 = vsel %vm5798, %v5801, %v5803
        %v5805 = vsel %vm5797, %v5784, %v5787
        %v5806 = vsel %vm5800, %v5793, 920167782
        %v5807 = vsel %vm5799, %v5790, %v5806
        %v5808 = vsel %vm5798, %v5805, %v5807
        %v5809 = vsel %vm5797, %v5787, %v5790
        %v5810 = vsel %vm5800, %v5796, 1326507024
        %v5811 = vsel %vm5799, %v5793, %v5810
        %v5812 = vsel %vm5798, %v5809, %v5811
        %v5813 = vshll.u32 %v5773, 8
        %v5814 = vmul.u32.u64.compose %v5813, %v5812
        %v5815 = vextract.low.u32 %v5814
        %v5816 = vextract.high.u32 %v5814
        %v5817 = vmul.u32.u64.compose %v5813, %v5808
        %v5818 = vextract.low.u32 %v5817
        %v5819 = vextract.high.u32 %v5817
        %v5820 = vmul.u32 %v5813, %v5804
        %v5821 = vadd.s32 %v5816, %v5818
        %vm5822 = vc.u32 %v5816, %v5818
        %v5823 = vadd.s32 %v5819, 1
        %v5824 = vsel %vm5822, %v5823, %v5819
        %v5825 = vadd.s32 %v5820, %v5824
        %v5826 = vadd.s32 %v5825, 536870912
        %v5827 = vshrl.u32 %v5826, 30
        %v5828 = vshll.u32 %v5827, 30
        %v5829 = vsub.s32 %v5825, %v5828
        %vm5830 = vcmp.lt.s32.totalorder %v5829, 0
        %v5831 = vsub.s32 0, %v5829
        %v5832 = vsel %vm5830, %v5831, %v5829
        %v5833 = vclz %v5832
        %v5834 = vsub.s32 %v5833, 2
        %vm5835 = vcmp.gt.s32.totalorder 0, %v5834
        %v5836 = vsel %vm5835, 0, %v5834
        %v5837 = vsub.s32 32, %v5836
        %v5838 = vshll.u32 %v5829, %v5836
        %v5839 = vshrl.u32 %v5821, %v5837
        %v5840 = vor.u32 %v5838, %v5839
        %v5841 = vsub.s32 4294967266, %v5836
        %v5842 = vadd.s32 %v5841, 127
        %v5843 = vshll.u32 %v5842, 23
        %v5844 = vor.u32 4788187, %v5843
        %v5845 = vand.u32 2147483647, %v5844
        %v5847 = vcvt.s32.f32 %v5840
        %v5848 = vmul.f32 %v5847, %v5845
        %v5849 = vxor.u32 %v5848, 2147483648
        %v5850 = vsel %vm5767, %v5849, %v5848
        %v5851 = vsub.s32 4, %v5827
        %v5852 = vsel %vm5767, %v5851, %v5827
        %v5853 = vsel %vm5766, %v400, %v5850
        %v5854 = vsel %vm5766, 0, %v5852
        %v5855 = vcosq.f32.pop %v5853
        %v5856 = vsinq.f32.pop %v5853
        %vm5857 = vweird.f32 %v400
        %v5858 = vadd.s32 %v5854, 3
        %v5859 = vand.u32 %v5858, 3
        %vm5860 = vcmp.lt.s32.totalorder %v5859, 2
        %vm5861 = vcmp.eq.s32.totalorder %v5859, 0
        %v5862 = vxor.u32 %v5856, 2147483648
        %v5863 = vsel %vm5861, %v5855, %v5862
        %vm5864 = vcmp.eq.s32.totalorder %v5859, 2
        %v5865 = vxor.u32 %v5855, 2147483648
        %v5866 = vsel %vm5864, %v5865, %v5856
        %v5867 = vsel %vm5860, %v5863, %v5866
        %v5868 = vsel %vm5857, nan, %v5867
        %v5869 = vand.u32 2147483647, %v401
        %vm5870 = vcmp.le.f32.partialorder %v5869, 0.7853982
        %vm5871 = vcmp.lt.s32.totalorder %v401, 0
        %v5872 = vand.u32 %v401, 2139095040
        %v5873 = vshrl.u32 %v5872, 23
        %v5874 = vsub.s32 %v5873, 127
        %v5875 = vand.u32 2147483647, %v401
        %v5876 = vand.u32 %v5875, 8388607
        %v5877 = vor.u32 %v5876, 8388608
        %v5878 = vsub.s32 0, %v5877
        %v5879 = vadd.s32 %v5874, 1
        %vm5880 = vcmp.gt.s32.totalorder %v5879, 0
        %v5881 = vsel %vm5880, %v5879, 0
        %v5882 = vshrl.u32 %v5881, 5
        %v5883 = vand.u32 %v5881, 31
        %v5884 = vsub.s32 32, %v5883
        %v5885 = vshrl.u32 683565275, %v5884
        %v5886 = vshll.u32 683565275, %v5883
        %v5887 = vshrl.u32 2475754826, %v5884
        %v5888 = vor.u32 %v5886, %v5887
        %v5889 = vshll.u32 2475754826, %v5883
        %v5890 = vshrl.u32 2131351028, %v5884
        %v5891 = vor.u32 %v5889, %v5890
        %v5892 = vshll.u32 2131351028, %v5883
        %v5893 = vshrl.u32 2102212464, %v5884
        %v5894 = vor.u32 %v5892, %v5893
        %v5895 = vshll.u32 2102212464, %v5883
        %v5896 = vshrl.u32 920167782, %v5884
        %v5897 = vor.u32 %v5895, %v5896
        %v5898 = vshll.u32 920167782, %v5883
        %v5899 = vshrl.u32 1326507024, %v5884
        %v5900 = vor.u32 %v5898, %v5899
        %vm5901 = vcmp.lt.s32.totalorder %v5882, 1
        %vm5902 = vcmp.lt.s32.totalorder %v5882, 2
        %vm5903 = vcmp.lt.s32.totalorder %v5882, 3
        %vm5904 = vcmp.lt.s32.totalorder %v5882, 4
        %v5905 = vsel %vm5901, %v5885, %v5888
        %v5906 = vsel %vm5904, %v5894, 2102212464
        %v5907 = vsel %vm5903, %v5891, %v5906
        %v5908 = vsel %vm5902, %v5905, %v5907
        %v5909 = vsel %vm5901, %v5888, %v5891
        %v5910 = vsel %vm5904, %v5897, 920167782
        %v5911 = vsel %vm5903, %v5894, %v5910
        %v5912 = vsel %vm5902, %v5909, %v5911
        %v5913 = vsel %vm5901, %v5891, %v5894
        %v5914 = vsel %vm5904, %v5900, 1326507024
        %v5915 = vsel %vm5903, %v5897, %v5914
        %v5916 = vsel %vm5902, %v5913, %v5915
        %v5917 = vshll.u32 %v5877, 8
        %v5918 = vmul.u32.u64.compose %v5917, %v5916
        %v5919 = vextract.low.u32 %v5918
        %v5920 = vextract.high.u32 %v5918
        %v5921 = vmul.u32.u64.compose %v5917, %v5912
        %v5922 = vextract.low.u32 %v5921
        %v5923 = vextract.high.u32 %v5921
        %v5924 = vmul.u32 %v5917, %v5908
        %v5925 = vadd.s32 %v5920, %v5922
        %vm5926 = vc.u32 %v5920, %v5922
        %v5927 = vadd.s32 %v5923, 1
        %v5928 = vsel %vm5926, %v5927, %v5923
        %v5929 = vadd.s32 %v5924, %v5928
        %v5930 = vadd.s32 %v5929, 536870912
        %v5931 = vshrl.u32 %v5930, 30
        %v5932 = vshll.u32 %v5931, 30
        %v5933 = vsub.s32 %v5929, %v5932
        %vm5934 = vcmp.lt.s32.totalorder %v5933, 0
        %v5935 = vsub.s32 0, %v5933
        %v5936 = vsel %vm5934, %v5935, %v5933
        %v5937 = vclz %v5936
        %v5938 = vsub.s32 %v5937, 2
        %vm5939 = vcmp.gt.s32.totalorder 0, %v5938
        %v5940 = vsel %vm5939, 0, %v5938
        %v5941 = vsub.s32 32, %v5940
        %v5942 = vshll.u32 %v5933, %v5940
        %v5943 = vshrl.u32 %v5925, %v5941
        %v5944 = vor.u32 %v5942, %v5943
        %v5945 = vsub.s32 4294967266, %v5940
        %v5946 = vadd.s32 %v5945, 127
        %v5947 = vshll.u32 %v5946, 23
        %v5948 = vor.u32 4788187, %v5947
        %v5949 = vand.u32 2147483647, %v5948
        %v5951 = vcvt.s32.f32 %v5944
        %v5952 = vmul.f32 %v5951, %v5949
        %v5953 = vxor.u32 %v5952, 2147483648
        %v5954 = vsel %vm5871, %v5953, %v5952
        %v5955 = vsub.s32 4, %v5931
        %v5956 = vsel %vm5871, %v5955, %v5931
        %v5957 = vsel %vm5870, %v401, %v5954
        %v5958 = vsel %vm5870, 0, %v5956
        %v5959 = vcosq.f32.pop %v5957
        %v5960 = vsinq.f32.pop %v5957
        %vm5961 = vweird.f32 %v401
        %v5962 = vadd.s32 %v5958, 3
        %v5963 = vand.u32 %v5962, 3
        %vm5964 = vcmp.lt.s32.totalorder %v5963, 2
        %vm5965 = vcmp.eq.s32.totalorder %v5963, 0
        %v5966 = vxor.u32 %v5960, 2147483648
        %v5967 = vsel %vm5965, %v5959, %v5966
        %vm5968 = vcmp.eq.s32.totalorder %v5963, 2
        %v5969 = vxor.u32 %v5959, 2147483648
        %v5970 = vsel %vm5968, %v5969, %v5960
        %v5971 = vsel %vm5964, %v5967, %v5970
        %v5972 = vsel %vm5961, nan, %v5971
        %v5973 = vand.u32 2147483647, %v402
        %vm5974 = vcmp.le.f32.partialorder %v5973, 0.7853982
        %vm5975 = vcmp.lt.s32.totalorder %v402, 0
        %v5976 = vand.u32 %v402, 2139095040
        %v5977 = vshrl.u32 %v5976, 23
        %v5978 = vsub.s32 %v5977, 127
        %v5979 = vand.u32 2147483647, %v402
        %v5980 = vand.u32 %v5979, 8388607
        %v5981 = vor.u32 %v5980, 8388608
        %v5982 = vsub.s32 0, %v5981
        %v5983 = vadd.s32 %v5978, 1
        %vm5984 = vcmp.gt.s32.totalorder %v5983, 0
        %v5985 = vsel %vm5984, %v5983, 0
        %v5986 = vshrl.u32 %v5985, 5
        %v5987 = vand.u32 %v5985, 31
        %v5988 = vsub.s32 32, %v5987
        %v5989 = vshrl.u32 683565275, %v5988
        %v5990 = vshll.u32 683565275, %v5987
        %v5991 = vshrl.u32 2475754826, %v5988
        %v5992 = vor.u32 %v5990, %v5991
        %v5993 = vshll.u32 2475754826, %v5987
        %v5994 = vshrl.u32 2131351028, %v5988
        %v5995 = vor.u32 %v5993, %v5994
        %v5996 = vshll.u32 2131351028, %v5987
        %v5997 = vshrl.u32 2102212464, %v5988
        %v5998 = vor.u32 %v5996, %v5997
        %v5999 = vshll.u32 2102212464, %v5987
        %v6000 = vshrl.u32 920167782, %v5988
        %v6001 = vor.u32 %v5999, %v6000
        %v6002 = vshll.u32 920167782, %v5987
        %v6003 = vshrl.u32 1326507024, %v5988
        %v6004 = vor.u32 %v6002, %v6003
        %vm6005 = vcmp.lt.s32.totalorder %v5986, 1
        %vm6006 = vcmp.lt.s32.totalorder %v5986, 2
        %vm6007 = vcmp.lt.s32.totalorder %v5986, 3
        %vm6008 = vcmp.lt.s32.totalorder %v5986, 4
        %v6009 = vsel %vm6005, %v5989, %v5992
        %v6010 = vsel %vm6008, %v5998, 2102212464
        %v6011 = vsel %vm6007, %v5995, %v6010
        %v6012 = vsel %vm6006, %v6009, %v6011
        %v6013 = vsel %vm6005, %v5992, %v5995
        %v6014 = vsel %vm6008, %v6001, 920167782
        %v6015 = vsel %vm6007, %v5998, %v6014
        %v6016 = vsel %vm6006, %v6013, %v6015
        %v6017 = vsel %vm6005, %v5995, %v5998
        %v6018 = vsel %vm6008, %v6004, 1326507024
        %v6019 = vsel %vm6007, %v6001, %v6018
        %v6020 = vsel %vm6006, %v6017, %v6019
        %v6021 = vshll.u32 %v5981, 8
        %v6022 = vmul.u32.u64.compose %v6021, %v6020
        %v6023 = vextract.low.u32 %v6022
        %v6024 = vextract.high.u32 %v6022
        %v6025 = vmul.u32.u64.compose %v6021, %v6016
        %v6026 = vextract.low.u32 %v6025
        %v6027 = vextract.high.u32 %v6025
        %v6028 = vmul.u32 %v6021, %v6012
        %v6029 = vadd.s32 %v6024, %v6026
        %vm6030 = vc.u32 %v6024, %v6026
        %v6031 = vadd.s32 %v6027, 1
        %v6032 = vsel %vm6030, %v6031, %v6027
        %v6033 = vadd.s32 %v6028, %v6032
        %v6034 = vadd.s32 %v6033, 536870912
        %v6035 = vshrl.u32 %v6034, 30
        %v6036 = vshll.u32 %v6035, 30
        %v6037 = vsub.s32 %v6033, %v6036
        %vm6038 = vcmp.lt.s32.totalorder %v6037, 0
        %v6039 = vsub.s32 0, %v6037
        %v6040 = vsel %vm6038, %v6039, %v6037
        %v6041 = vclz %v6040
        %v6042 = vsub.s32 %v6041, 2
        %vm6043 = vcmp.gt.s32.totalorder 0, %v6042
        %v6044 = vsel %vm6043, 0, %v6042
        %v6045 = vsub.s32 32, %v6044
        %v6046 = vshll.u32 %v6037, %v6044
        %v6047 = vshrl.u32 %v6029, %v6045
        %v6048 = vor.u32 %v6046, %v6047
        %v6049 = vsub.s32 4294967266, %v6044
        %v6050 = vadd.s32 %v6049, 127
        %v6051 = vshll.u32 %v6050, 23
        %v6052 = vor.u32 4788187, %v6051
        %v6053 = vand.u32 2147483647, %v6052
        %v6055 = vcvt.s32.f32 %v6048
        %v6056 = vmul.f32 %v6055, %v6053
        %v6057 = vxor.u32 %v6056, 2147483648
        %v6058 = vsel %vm5975, %v6057, %v6056
        %v6059 = vsub.s32 4, %v6035
        %v6060 = vsel %vm5975, %v6059, %v6035
        %v6061 = vsel %vm5974, %v402, %v6058
        %v6062 = vsel %vm5974, 0, %v6060
        %v6063 = vcosq.f32.pop %v6061
        %v6064 = vsinq.f32.pop %v6061
        %vm6065 = vweird.f32 %v402
        %v6066 = vadd.s32 %v6062, 3
        %v6067 = vand.u32 %v6066, 3
        %vm6068 = vcmp.lt.s32.totalorder %v6067, 2
        %vm6069 = vcmp.eq.s32.totalorder %v6067, 0
        %v6070 = vxor.u32 %v6064, 2147483648
        %v6071 = vsel %vm6069, %v6063, %v6070
        %vm6072 = vcmp.eq.s32.totalorder %v6067, 2
        %v6073 = vxor.u32 %v6063, 2147483648
        %v6074 = vsel %vm6072, %v6073, %v6064
        %v6075 = vsel %vm6068, %v6071, %v6074
        %v6076 = vsel %vm6065, nan, %v6075
        %v6077 = vand.u32 2147483647, %v403
        %vm6078 = vcmp.le.f32.partialorder %v6077, 0.7853982
        %vm6079 = vcmp.lt.s32.totalorder %v403, 0
        %v6080 = vand.u32 %v403, 2139095040
        %v6081 = vshrl.u32 %v6080, 23
        %v6082 = vsub.s32 %v6081, 127
        %v6083 = vand.u32 2147483647, %v403
        %v6084 = vand.u32 %v6083, 8388607
        %v6085 = vor.u32 %v6084, 8388608
        %v6086 = vsub.s32 0, %v6085
        %v6087 = vadd.s32 %v6082, 1
        %vm6088 = vcmp.gt.s32.totalorder %v6087, 0
        %v6089 = vsel %vm6088, %v6087, 0
        %v6090 = vshrl.u32 %v6089, 5
        %v6091 = vand.u32 %v6089, 31
        %v6092 = vsub.s32 32, %v6091
        %v6093 = vshrl.u32 683565275, %v6092
        %v6094 = vshll.u32 683565275, %v6091
        %v6095 = vshrl.u32 2475754826, %v6092
        %v6096 = vor.u32 %v6094, %v6095
        %v6097 = vshll.u32 2475754826, %v6091
        %v6098 = vshrl.u32 2131351028, %v6092
        %v6099 = vor.u32 %v6097, %v6098
        %v6100 = vshll.u32 2131351028, %v6091
        %v6101 = vshrl.u32 2102212464, %v6092
        %v6102 = vor.u32 %v6100, %v6101
        %v6103 = vshll.u32 2102212464, %v6091
        %v6104 = vshrl.u32 920167782, %v6092
        %v6105 = vor.u32 %v6103, %v6104
        %v6106 = vshll.u32 920167782, %v6091
        %v6107 = vshrl.u32 1326507024, %v6092
        %v6108 = vor.u32 %v6106, %v6107
        %vm6109 = vcmp.lt.s32.totalorder %v6090, 1
        %vm6110 = vcmp.lt.s32.totalorder %v6090, 2
        %vm6111 = vcmp.lt.s32.totalorder %v6090, 3
        %vm6112 = vcmp.lt.s32.totalorder %v6090, 4
        %v6113 = vsel %vm6109, %v6093, %v6096
        %v6114 = vsel %vm6112, %v6102, 2102212464
        %v6115 = vsel %vm6111, %v6099, %v6114
        %v6116 = vsel %vm6110, %v6113, %v6115
        %v6117 = vsel %vm6109, %v6096, %v6099
        %v6118 = vsel %vm6112, %v6105, 920167782
        %v6119 = vsel %vm6111, %v6102, %v6118
        %v6120 = vsel %vm6110, %v6117, %v6119
        %v6121 = vsel %vm6109, %v6099, %v6102
        %v6122 = vsel %vm6112, %v6108, 1326507024
        %v6123 = vsel %vm6111, %v6105, %v6122
        %v6124 = vsel %vm6110, %v6121, %v6123
        %v6125 = vshll.u32 %v6085, 8
        %v6126 = vmul.u32.u64.compose %v6125, %v6124
        %v6127 = vextract.low.u32 %v6126
        %v6128 = vextract.high.u32 %v6126
        %v6129 = vmul.u32.u64.compose %v6125, %v6120
        %v6130 = vextract.low.u32 %v6129
        %v6131 = vextract.high.u32 %v6129
        %v6132 = vmul.u32 %v6125, %v6116
        %v6133 = vadd.s32 %v6128, %v6130
        %vm6134 = vc.u32 %v6128, %v6130
        %v6135 = vadd.s32 %v6131, 1
        %v6136 = vsel %vm6134, %v6135, %v6131
        %v6137 = vadd.s32 %v6132, %v6136
        %v6138 = vadd.s32 %v6137, 536870912
        %v6139 = vshrl.u32 %v6138, 30
        %v6140 = vshll.u32 %v6139, 30
        %v6141 = vsub.s32 %v6137, %v6140
        %vm6142 = vcmp.lt.s32.totalorder %v6141, 0
        %v6143 = vsub.s32 0, %v6141
        %v6144 = vsel %vm6142, %v6143, %v6141
        %v6145 = vclz %v6144
        %v6146 = vsub.s32 %v6145, 2
        %vm6147 = vcmp.gt.s32.totalorder 0, %v6146
        %v6148 = vsel %vm6147, 0, %v6146
        %v6149 = vsub.s32 32, %v6148
        %v6150 = vshll.u32 %v6141, %v6148
        %v6151 = vshrl.u32 %v6133, %v6149
        %v6152 = vor.u32 %v6150, %v6151
        %v6153 = vsub.s32 4294967266, %v6148
        %v6154 = vadd.s32 %v6153, 127
        %v6155 = vshll.u32 %v6154, 23
        %v6156 = vor.u32 4788187, %v6155
        %v6157 = vand.u32 2147483647, %v6156
        %v6159 = vcvt.s32.f32 %v6152
        %v6160 = vmul.f32 %v6159, %v6157
        %v6161 = vxor.u32 %v6160, 2147483648
        %v6162 = vsel %vm6079, %v6161, %v6160
        %v6163 = vsub.s32 4, %v6139
        %v6164 = vsel %vm6079, %v6163, %v6139
        %v6165 = vsel %vm6078, %v403, %v6162
        %v6166 = vsel %vm6078, 0, %v6164
        %v6167 = vcosq.f32.pop %v6165
        %v6168 = vsinq.f32.pop %v6165
        %vm6169 = vweird.f32 %v403
        %v6170 = vadd.s32 %v6166, 3
        %v6171 = vand.u32 %v6170, 3
        %vm6172 = vcmp.lt.s32.totalorder %v6171, 2
        %vm6173 = vcmp.eq.s32.totalorder %v6171, 0
        %v6174 = vxor.u32 %v6168, 2147483648
        %v6175 = vsel %vm6173, %v6167, %v6174
        %vm6176 = vcmp.eq.s32.totalorder %v6171, 2
        %v6177 = vxor.u32 %v6167, 2147483648
        %v6178 = vsel %vm6176, %v6177, %v6168
        %v6179 = vsel %vm6172, %v6175, %v6178
        %v6180 = vsel %vm6169, nan, %v6179
        %v6181 = vand.u32 2147483647, %v404
        %vm6182 = vcmp.le.f32.partialorder %v6181, 0.7853982
        %vm6183 = vcmp.lt.s32.totalorder %v404, 0
        %v6184 = vand.u32 %v404, 2139095040
        %v6185 = vshrl.u32 %v6184, 23
        %v6186 = vsub.s32 %v6185, 127
        %v6187 = vand.u32 2147483647, %v404
        %v6188 = vand.u32 %v6187, 8388607
        %v6189 = vor.u32 %v6188, 8388608
        %v6190 = vsub.s32 0, %v6189
        %v6191 = vadd.s32 %v6186, 1
        %vm6192 = vcmp.gt.s32.totalorder %v6191, 0
        %v6193 = vsel %vm6192, %v6191, 0
        %v6194 = vshrl.u32 %v6193, 5
        %v6195 = vand.u32 %v6193, 31
        %v6196 = vsub.s32 32, %v6195
        %v6197 = vshrl.u32 683565275, %v6196
        %v6198 = vshll.u32 683565275, %v6195
        %v6199 = vshrl.u32 2475754826, %v6196
        %v6200 = vor.u32 %v6198, %v6199
        %v6201 = vshll.u32 2475754826, %v6195
        %v6202 = vshrl.u32 2131351028, %v6196
        %v6203 = vor.u32 %v6201, %v6202
        %v6204 = vshll.u32 2131351028, %v6195
        %v6205 = vshrl.u32 2102212464, %v6196
        %v6206 = vor.u32 %v6204, %v6205
        %v6207 = vshll.u32 2102212464, %v6195
        %v6208 = vshrl.u32 920167782, %v6196
        %v6209 = vor.u32 %v6207, %v6208
        %v6210 = vshll.u32 920167782, %v6195
        %v6211 = vshrl.u32 1326507024, %v6196
        %v6212 = vor.u32 %v6210, %v6211
        %vm6213 = vcmp.lt.s32.totalorder %v6194, 1
        %vm6214 = vcmp.lt.s32.totalorder %v6194, 2
        %vm6215 = vcmp.lt.s32.totalorder %v6194, 3
        %vm6216 = vcmp.lt.s32.totalorder %v6194, 4
        %v6217 = vsel %vm6213, %v6197, %v6200
        %v6218 = vsel %vm6216, %v6206, 2102212464
        %v6219 = vsel %vm6215, %v6203, %v6218
        %v6220 = vsel %vm6214, %v6217, %v6219
        %v6221 = vsel %vm6213, %v6200, %v6203
        %v6222 = vsel %vm6216, %v6209, 920167782
        %v6223 = vsel %vm6215, %v6206, %v6222
        %v6224 = vsel %vm6214, %v6221, %v6223
        %v6225 = vsel %vm6213, %v6203, %v6206
        %v6226 = vsel %vm6216, %v6212, 1326507024
        %v6227 = vsel %vm6215, %v6209, %v6226
        %v6228 = vsel %vm6214, %v6225, %v6227
        %v6229 = vshll.u32 %v6189, 8
        %v6230 = vmul.u32.u64.compose %v6229, %v6228
        %v6231 = vextract.low.u32 %v6230
        %v6232 = vextract.high.u32 %v6230
        %v6233 = vmul.u32.u64.compose %v6229, %v6224
        %v6234 = vextract.low.u32 %v6233
        %v6235 = vextract.high.u32 %v6233
        %v6236 = vmul.u32 %v6229, %v6220
        %v6237 = vadd.s32 %v6232, %v6234
        %vm6238 = vc.u32 %v6232, %v6234
        %v6239 = vadd.s32 %v6235, 1
        %v6240 = vsel %vm6238, %v6239, %v6235
        %v6241 = vadd.s32 %v6236, %v6240
        %v6242 = vadd.s32 %v6241, 536870912
        %v6243 = vshrl.u32 %v6242, 30
        %v6244 = vshll.u32 %v6243, 30
        %v6245 = vsub.s32 %v6241, %v6244
        %vm6246 = vcmp.lt.s32.totalorder %v6245, 0
        %v6247 = vsub.s32 0, %v6245
        %v6248 = vsel %vm6246, %v6247, %v6245
        %v6249 = vclz %v6248
        %v6250 = vsub.s32 %v6249, 2
        %vm6251 = vcmp.gt.s32.totalorder 0, %v6250
        %v6252 = vsel %vm6251, 0, %v6250
        %v6253 = vsub.s32 32, %v6252
        %v6254 = vshll.u32 %v6245, %v6252
        %v6255 = vshrl.u32 %v6237, %v6253
        %v6256 = vor.u32 %v6254, %v6255
        %v6257 = vsub.s32 4294967266, %v6252
        %v6258 = vadd.s32 %v6257, 127
        %v6259 = vshll.u32 %v6258, 23
        %v6260 = vor.u32 4788187, %v6259
        %v6261 = vand.u32 2147483647, %v6260
        %v6263 = vcvt.s32.f32 %v6256
        %v6264 = vmul.f32 %v6263, %v6261
        %v6265 = vxor.u32 %v6264, 2147483648
        %v6266 = vsel %vm6183, %v6265, %v6264
        %v6267 = vsub.s32 4, %v6243
        %v6268 = vsel %vm6183, %v6267, %v6243
        %v6269 = vsel %vm6182, %v404, %v6266
        %v6270 = vsel %vm6182, 0, %v6268
        %v6271 = vcosq.f32.pop %v6269
        %v6272 = vsinq.f32.pop %v6269
        %vm6273 = vweird.f32 %v404
        %v6274 = vadd.s32 %v6270, 3
        %v6275 = vand.u32 %v6274, 3
        %vm6276 = vcmp.lt.s32.totalorder %v6275, 2
        %vm6277 = vcmp.eq.s32.totalorder %v6275, 0
        %v6278 = vxor.u32 %v6272, 2147483648
        %v6279 = vsel %vm6277, %v6271, %v6278
        %vm6280 = vcmp.eq.s32.totalorder %v6275, 2
        %v6281 = vxor.u32 %v6271, 2147483648
        %v6282 = vsel %vm6280, %v6281, %v6272
        %v6283 = vsel %vm6276, %v6279, %v6282
        %v6284 = vsel %vm6273, nan, %v6283
        %v6285 = vand.u32 2147483647, %v405
        %vm6286 = vcmp.le.f32.partialorder %v6285, 0.7853982
        %vm6287 = vcmp.lt.s32.totalorder %v405, 0
        %v6288 = vand.u32 %v405, 2139095040
        %v6289 = vshrl.u32 %v6288, 23
        %v6290 = vsub.s32 %v6289, 127
        %v6291 = vand.u32 2147483647, %v405
        %v6292 = vand.u32 %v6291, 8388607
        %v6293 = vor.u32 %v6292, 8388608
        %v6294 = vsub.s32 0, %v6293
        %v6295 = vadd.s32 %v6290, 1
        %vm6296 = vcmp.gt.s32.totalorder %v6295, 0
        %v6297 = vsel %vm6296, %v6295, 0
        %v6298 = vshrl.u32 %v6297, 5
        %v6299 = vand.u32 %v6297, 31
        %v6300 = vsub.s32 32, %v6299
        %v6301 = vshrl.u32 683565275, %v6300
        %v6302 = vshll.u32 683565275, %v6299
        %v6303 = vshrl.u32 2475754826, %v6300
        %v6304 = vor.u32 %v6302, %v6303
        %v6305 = vshll.u32 2475754826, %v6299
        %v6306 = vshrl.u32 2131351028, %v6300
        %v6307 = vor.u32 %v6305, %v6306
        %v6308 = vshll.u32 2131351028, %v6299
        %v6309 = vshrl.u32 2102212464, %v6300
        %v6310 = vor.u32 %v6308, %v6309
        %v6311 = vshll.u32 2102212464, %v6299
        %v6312 = vshrl.u32 920167782, %v6300
        %v6313 = vor.u32 %v6311, %v6312
        %v6314 = vshll.u32 920167782, %v6299
        %v6315 = vshrl.u32 1326507024, %v6300
        %v6316 = vor.u32 %v6314, %v6315
        %vm6317 = vcmp.lt.s32.totalorder %v6298, 1
        %vm6318 = vcmp.lt.s32.totalorder %v6298, 2
        %vm6319 = vcmp.lt.s32.totalorder %v6298, 3
        %vm6320 = vcmp.lt.s32.totalorder %v6298, 4
        %v6321 = vsel %vm6317, %v6301, %v6304
        %v6322 = vsel %vm6320, %v6310, 2102212464
        %v6323 = vsel %vm6319, %v6307, %v6322
        %v6324 = vsel %vm6318, %v6321, %v6323
        %v6325 = vsel %vm6317, %v6304, %v6307
        %v6326 = vsel %vm6320, %v6313, 920167782
        %v6327 = vsel %vm6319, %v6310, %v6326
        %v6328 = vsel %vm6318, %v6325, %v6327
        %v6329 = vsel %vm6317, %v6307, %v6310
        %v6330 = vsel %vm6320, %v6316, 1326507024
        %v6331 = vsel %vm6319, %v6313, %v6330
        %v6332 = vsel %vm6318, %v6329, %v6331
        %v6333 = vshll.u32 %v6293, 8
        %v6334 = vmul.u32.u64.compose %v6333, %v6332
        %v6335 = vextract.low.u32 %v6334
        %v6336 = vextract.high.u32 %v6334
        %v6337 = vmul.u32.u64.compose %v6333, %v6328
        %v6338 = vextract.low.u32 %v6337
        %v6339 = vextract.high.u32 %v6337
        %v6340 = vmul.u32 %v6333, %v6324
        %v6341 = vadd.s32 %v6336, %v6338
        %vm6342 = vc.u32 %v6336, %v6338
        %v6343 = vadd.s32 %v6339, 1
        %v6344 = vsel %vm6342, %v6343, %v6339
        %v6345 = vadd.s32 %v6340, %v6344
        %v6346 = vadd.s32 %v6345, 536870912
        %v6347 = vshrl.u32 %v6346, 30
        %v6348 = vshll.u32 %v6347, 30
        %v6349 = vsub.s32 %v6345, %v6348
        %vm6350 = vcmp.lt.s32.totalorder %v6349, 0
        %v6351 = vsub.s32 0, %v6349
        %v6352 = vsel %vm6350, %v6351, %v6349
        %v6353 = vclz %v6352
        %v6354 = vsub.s32 %v6353, 2
        %vm6355 = vcmp.gt.s32.totalorder 0, %v6354
        %v6356 = vsel %vm6355, 0, %v6354
        %v6357 = vsub.s32 32, %v6356
        %v6358 = vshll.u32 %v6349, %v6356
        %v6359 = vshrl.u32 %v6341, %v6357
        %v6360 = vor.u32 %v6358, %v6359
        %v6361 = vsub.s32 4294967266, %v6356
        %v6362 = vadd.s32 %v6361, 127
        %v6363 = vshll.u32 %v6362, 23
        %v6364 = vor.u32 4788187, %v6363
        %v6365 = vand.u32 2147483647, %v6364
        %v6367 = vcvt.s32.f32 %v6360
        %v6368 = vmul.f32 %v6367, %v6365
        %v6369 = vxor.u32 %v6368, 2147483648
        %v6370 = vsel %vm6287, %v6369, %v6368
        %v6371 = vsub.s32 4, %v6347
        %v6372 = vsel %vm6287, %v6371, %v6347
        %v6373 = vsel %vm6286, %v405, %v6370
        %v6374 = vsel %vm6286, 0, %v6372
        %v6375 = vcosq.f32.pop %v6373
        %v6376 = vsinq.f32.pop %v6373
        %vm6377 = vweird.f32 %v405
        %v6378 = vadd.s32 %v6374, 3
        %v6379 = vand.u32 %v6378, 3
        %vm6380 = vcmp.lt.s32.totalorder %v6379, 2
        %vm6381 = vcmp.eq.s32.totalorder %v6379, 0
        %v6382 = vxor.u32 %v6376, 2147483648
        %v6383 = vsel %vm6381, %v6375, %v6382
        %vm6384 = vcmp.eq.s32.totalorder %v6379, 2
        %v6385 = vxor.u32 %v6375, 2147483648
        %v6386 = vsel %vm6384, %v6385, %v6376
        %v6387 = vsel %vm6380, %v6383, %v6386
        %v6388 = vsel %vm6377, nan, %v6387
        %v6389 = vand.u32 2147483647, %v406
        %vm6390 = vcmp.le.f32.partialorder %v6389, 0.7853982
        %vm6391 = vcmp.lt.s32.totalorder %v406, 0
        %v6392 = vand.u32 %v406, 2139095040
        %v6393 = vshrl.u32 %v6392, 23
        %v6394 = vsub.s32 %v6393, 127
        %v6395 = vand.u32 2147483647, %v406
        %v6396 = vand.u32 %v6395, 8388607
        %v6397 = vor.u32 %v6396, 8388608
        %v6398 = vsub.s32 0, %v6397
        %v6399 = vadd.s32 %v6394, 1
        %vm6400 = vcmp.gt.s32.totalorder %v6399, 0
        %v6401 = vsel %vm6400, %v6399, 0
        %v6402 = vshrl.u32 %v6401, 5
        %v6403 = vand.u32 %v6401, 31
        %v6404 = vsub.s32 32, %v6403
        %v6405 = vshrl.u32 683565275, %v6404
        %v6406 = vshll.u32 683565275, %v6403
        %v6407 = vshrl.u32 2475754826, %v6404
        %v6408 = vor.u32 %v6406, %v6407
        %v6409 = vshll.u32 2475754826, %v6403
        %v6410 = vshrl.u32 2131351028, %v6404
        %v6411 = vor.u32 %v6409, %v6410
        %v6412 = vshll.u32 2131351028, %v6403
        %v6413 = vshrl.u32 2102212464, %v6404
        %v6414 = vor.u32 %v6412, %v6413
        %v6415 = vshll.u32 2102212464, %v6403
        %v6416 = vshrl.u32 920167782, %v6404
        %v6417 = vor.u32 %v6415, %v6416
        %v6418 = vshll.u32 920167782, %v6403
        %v6419 = vshrl.u32 1326507024, %v6404
        %v6420 = vor.u32 %v6418, %v6419
        %vm6421 = vcmp.lt.s32.totalorder %v6402, 1
        %vm6422 = vcmp.lt.s32.totalorder %v6402, 2
        %vm6423 = vcmp.lt.s32.totalorder %v6402, 3
        %vm6424 = vcmp.lt.s32.totalorder %v6402, 4
        %v6425 = vsel %vm6421, %v6405, %v6408
        %v6426 = vsel %vm6424, %v6414, 2102212464
        %v6427 = vsel %vm6423, %v6411, %v6426
        %v6428 = vsel %vm6422, %v6425, %v6427
        %v6429 = vsel %vm6421, %v6408, %v6411
        %v6430 = vsel %vm6424, %v6417, 920167782
        %v6431 = vsel %vm6423, %v6414, %v6430
        %v6432 = vsel %vm6422, %v6429, %v6431
        %v6433 = vsel %vm6421, %v6411, %v6414
        %v6434 = vsel %vm6424, %v6420, 1326507024
        %v6435 = vsel %vm6423, %v6417, %v6434
        %v6436 = vsel %vm6422, %v6433, %v6435
        %v6437 = vshll.u32 %v6397, 8
        %v6438 = vmul.u32.u64.compose %v6437, %v6436
        %v6439 = vextract.low.u32 %v6438
        %v6440 = vextract.high.u32 %v6438
        %v6441 = vmul.u32.u64.compose %v6437, %v6432
        %v6442 = vextract.low.u32 %v6441
        %v6443 = vextract.high.u32 %v6441
        %v6444 = vmul.u32 %v6437, %v6428
        %v6445 = vadd.s32 %v6440, %v6442
        %vm6446 = vc.u32 %v6440, %v6442
        %v6447 = vadd.s32 %v6443, 1
        %v6448 = vsel %vm6446, %v6447, %v6443
        %v6449 = vadd.s32 %v6444, %v6448
        %v6450 = vadd.s32 %v6449, 536870912
        %v6451 = vshrl.u32 %v6450, 30
        %v6452 = vshll.u32 %v6451, 30
        %v6453 = vsub.s32 %v6449, %v6452
        %vm6454 = vcmp.lt.s32.totalorder %v6453, 0
        %v6455 = vsub.s32 0, %v6453
        %v6456 = vsel %vm6454, %v6455, %v6453
        %v6457 = vclz %v6456
        %v6458 = vsub.s32 %v6457, 2
        %vm6459 = vcmp.gt.s32.totalorder 0, %v6458
        %v6460 = vsel %vm6459, 0, %v6458
        %v6461 = vsub.s32 32, %v6460
        %v6462 = vshll.u32 %v6453, %v6460
        %v6463 = vshrl.u32 %v6445, %v6461
        %v6464 = vor.u32 %v6462, %v6463
        %v6465 = vsub.s32 4294967266, %v6460
        %v6466 = vadd.s32 %v6465, 127
        %v6467 = vshll.u32 %v6466, 23
        %v6468 = vor.u32 4788187, %v6467
        %v6469 = vand.u32 2147483647, %v6468
        %v6471 = vcvt.s32.f32 %v6464
        %v6472 = vmul.f32 %v6471, %v6469
        %v6473 = vxor.u32 %v6472, 2147483648
        %v6474 = vsel %vm6391, %v6473, %v6472
        %v6475 = vsub.s32 4, %v6451
        %v6476 = vsel %vm6391, %v6475, %v6451
        %v6477 = vsel %vm6390, %v406, %v6474
        %v6478 = vsel %vm6390, 0, %v6476
        %v6479 = vcosq.f32.pop %v6477
        %v6480 = vsinq.f32.pop %v6477
        %vm6481 = vweird.f32 %v406
        %v6482 = vadd.s32 %v6478, 3
        %v6483 = vand.u32 %v6482, 3
        %vm6484 = vcmp.lt.s32.totalorder %v6483, 2
        %vm6485 = vcmp.eq.s32.totalorder %v6483, 0
        %v6486 = vxor.u32 %v6480, 2147483648
        %v6487 = vsel %vm6485, %v6479, %v6486
        %vm6488 = vcmp.eq.s32.totalorder %v6483, 2
        %v6489 = vxor.u32 %v6479, 2147483648
        %v6490 = vsel %vm6488, %v6489, %v6480
        %v6491 = vsel %vm6484, %v6487, %v6490
        %v6492 = vsel %vm6481, nan, %v6491
        %v6493 = vand.u32 2147483647, %v407
        %vm6494 = vcmp.le.f32.partialorder %v6493, 0.7853982
        %vm6495 = vcmp.lt.s32.totalorder %v407, 0
        %v6496 = vand.u32 %v407, 2139095040
        %v6497 = vshrl.u32 %v6496, 23
        %v6498 = vsub.s32 %v6497, 127
        %v6499 = vand.u32 2147483647, %v407
        %v6500 = vand.u32 %v6499, 8388607
        %v6501 = vor.u32 %v6500, 8388608
        %v6502 = vsub.s32 0, %v6501
        %v6503 = vadd.s32 %v6498, 1
        %vm6504 = vcmp.gt.s32.totalorder %v6503, 0
        %v6505 = vsel %vm6504, %v6503, 0
        %v6506 = vshrl.u32 %v6505, 5
        %v6507 = vand.u32 %v6505, 31
        %v6508 = vsub.s32 32, %v6507
        %v6509 = vshrl.u32 683565275, %v6508
        %v6510 = vshll.u32 683565275, %v6507
        %v6511 = vshrl.u32 2475754826, %v6508
        %v6512 = vor.u32 %v6510, %v6511
        %v6513 = vshll.u32 2475754826, %v6507
        %v6514 = vshrl.u32 2131351028, %v6508
        %v6515 = vor.u32 %v6513, %v6514
        %v6516 = vshll.u32 2131351028, %v6507
        %v6517 = vshrl.u32 2102212464, %v6508
        %v6518 = vor.u32 %v6516, %v6517
        %v6519 = vshll.u32 2102212464, %v6507
        %v6520 = vshrl.u32 920167782, %v6508
        %v6521 = vor.u32 %v6519, %v6520
        %v6522 = vshll.u32 920167782, %v6507
        %v6523 = vshrl.u32 1326507024, %v6508
        %v6524 = vor.u32 %v6522, %v6523
        %vm6525 = vcmp.lt.s32.totalorder %v6506, 1
        %vm6526 = vcmp.lt.s32.totalorder %v6506, 2
        %vm6527 = vcmp.lt.s32.totalorder %v6506, 3
        %vm6528 = vcmp.lt.s32.totalorder %v6506, 4
        %v6529 = vsel %vm6525, %v6509, %v6512
        %v6530 = vsel %vm6528, %v6518, 2102212464
        %v6531 = vsel %vm6527, %v6515, %v6530
        %v6532 = vsel %vm6526, %v6529, %v6531
        %v6533 = vsel %vm6525, %v6512, %v6515
        %v6534 = vsel %vm6528, %v6521, 920167782
        %v6535 = vsel %vm6527, %v6518, %v6534
        %v6536 = vsel %vm6526, %v6533, %v6535
        %v6537 = vsel %vm6525, %v6515, %v6518
        %v6538 = vsel %vm6528, %v6524, 1326507024
        %v6539 = vsel %vm6527, %v6521, %v6538
        %v6540 = vsel %vm6526, %v6537, %v6539
        %v6541 = vshll.u32 %v6501, 8
        %v6542 = vmul.u32.u64.compose %v6541, %v6540
        %v6543 = vextract.low.u32 %v6542
        %v6544 = vextract.high.u32 %v6542
        %v6545 = vmul.u32.u64.compose %v6541, %v6536
        %v6546 = vextract.low.u32 %v6545
        %v6547 = vextract.high.u32 %v6545
        %v6548 = vmul.u32 %v6541, %v6532
        %v6549 = vadd.s32 %v6544, %v6546
        %vm6550 = vc.u32 %v6544, %v6546
        %v6551 = vadd.s32 %v6547, 1
        %v6552 = vsel %vm6550, %v6551, %v6547
        %v6553 = vadd.s32 %v6548, %v6552
        %v6554 = vadd.s32 %v6553, 536870912
        %v6555 = vshrl.u32 %v6554, 30
        %v6556 = vshll.u32 %v6555, 30
        %v6557 = vsub.s32 %v6553, %v6556
        %vm6558 = vcmp.lt.s32.totalorder %v6557, 0
        %v6559 = vsub.s32 0, %v6557
        %v6560 = vsel %vm6558, %v6559, %v6557
        %v6561 = vclz %v6560
        %v6562 = vsub.s32 %v6561, 2
        %vm6563 = vcmp.gt.s32.totalorder 0, %v6562
        %v6564 = vsel %vm6563, 0, %v6562
        %v6565 = vsub.s32 32, %v6564
        %v6566 = vshll.u32 %v6557, %v6564
        %v6567 = vshrl.u32 %v6549, %v6565
        %v6568 = vor.u32 %v6566, %v6567
        %v6569 = vsub.s32 4294967266, %v6564
        %v6570 = vadd.s32 %v6569, 127
        %v6571 = vshll.u32 %v6570, 23
        %v6572 = vor.u32 4788187, %v6571
        %v6573 = vand.u32 2147483647, %v6572
        %v6575 = vcvt.s32.f32 %v6568
        %v6576 = vmul.f32 %v6575, %v6573
        %v6577 = vxor.u32 %v6576, 2147483648
        %v6578 = vsel %vm6495, %v6577, %v6576
        %v6579 = vsub.s32 4, %v6555
        %v6580 = vsel %vm6495, %v6579, %v6555
        %v6581 = vsel %vm6494, %v407, %v6578
        %v6582 = vsel %vm6494, 0, %v6580
        %v6583 = vcosq.f32.pop %v6581
        %v6584 = vsinq.f32.pop %v6581
        %vm6585 = vweird.f32 %v407
        %v6586 = vadd.s32 %v6582, 3
        %v6587 = vand.u32 %v6586, 3
        %vm6588 = vcmp.lt.s32.totalorder %v6587, 2
        %vm6589 = vcmp.eq.s32.totalorder %v6587, 0
        %v6590 = vxor.u32 %v6584, 2147483648
        %v6591 = vsel %vm6589, %v6583, %v6590
        %vm6592 = vcmp.eq.s32.totalorder %v6587, 2
        %v6593 = vxor.u32 %v6583, 2147483648
        %v6594 = vsel %vm6592, %v6593, %v6584
        %v6595 = vsel %vm6588, %v6591, %v6594
        %v6596 = vsel %vm6585, nan, %v6595
        %v6597 = vand.u32 2147483647, %v408
        %vm6598 = vcmp.le.f32.partialorder %v6597, 0.7853982
        %vm6599 = vcmp.lt.s32.totalorder %v408, 0
        %v6600 = vand.u32 %v408, 2139095040
        %v6601 = vshrl.u32 %v6600, 23
        %v6602 = vsub.s32 %v6601, 127
        %v6603 = vand.u32 2147483647, %v408
        %v6604 = vand.u32 %v6603, 8388607
        %v6605 = vor.u32 %v6604, 8388608
        %v6606 = vsub.s32 0, %v6605
        %v6607 = vadd.s32 %v6602, 1
        %vm6608 = vcmp.gt.s32.totalorder %v6607, 0
        %v6609 = vsel %vm6608, %v6607, 0
        %v6610 = vshrl.u32 %v6609, 5
        %v6611 = vand.u32 %v6609, 31
        %v6612 = vsub.s32 32, %v6611
        %v6613 = vshrl.u32 683565275, %v6612
        %v6614 = vshll.u32 683565275, %v6611
        %v6615 = vshrl.u32 2475754826, %v6612
        %v6616 = vor.u32 %v6614, %v6615
        %v6617 = vshll.u32 2475754826, %v6611
        %v6618 = vshrl.u32 2131351028, %v6612
        %v6619 = vor.u32 %v6617, %v6618
        %v6620 = vshll.u32 2131351028, %v6611
        %v6621 = vshrl.u32 2102212464, %v6612
        %v6622 = vor.u32 %v6620, %v6621
        %v6623 = vshll.u32 2102212464, %v6611
        %v6624 = vshrl.u32 920167782, %v6612
        %v6625 = vor.u32 %v6623, %v6624
        %v6626 = vshll.u32 920167782, %v6611
        %v6627 = vshrl.u32 1326507024, %v6612
        %v6628 = vor.u32 %v6626, %v6627
        %vm6629 = vcmp.lt.s32.totalorder %v6610, 1
        %vm6630 = vcmp.lt.s32.totalorder %v6610, 2
        %vm6631 = vcmp.lt.s32.totalorder %v6610, 3
        %vm6632 = vcmp.lt.s32.totalorder %v6610, 4
        %v6633 = vsel %vm6629, %v6613, %v6616
        %v6634 = vsel %vm6632, %v6622, 2102212464
        %v6635 = vsel %vm6631, %v6619, %v6634
        %v6636 = vsel %vm6630, %v6633, %v6635
        %v6637 = vsel %vm6629, %v6616, %v6619
        %v6638 = vsel %vm6632, %v6625, 920167782
        %v6639 = vsel %vm6631, %v6622, %v6638
        %v6640 = vsel %vm6630, %v6637, %v6639
        %v6641 = vsel %vm6629, %v6619, %v6622
        %v6642 = vsel %vm6632, %v6628, 1326507024
        %v6643 = vsel %vm6631, %v6625, %v6642
        %v6644 = vsel %vm6630, %v6641, %v6643
        %v6645 = vshll.u32 %v6605, 8
        %v6646 = vmul.u32.u64.compose %v6645, %v6644
        %v6647 = vextract.low.u32 %v6646
        %v6648 = vextract.high.u32 %v6646
        %v6649 = vmul.u32.u64.compose %v6645, %v6640
        %v6650 = vextract.low.u32 %v6649
        %v6651 = vextract.high.u32 %v6649
        %v6652 = vmul.u32 %v6645, %v6636
        %v6653 = vadd.s32 %v6648, %v6650
        %vm6654 = vc.u32 %v6648, %v6650
        %v6655 = vadd.s32 %v6651, 1
        %v6656 = vsel %vm6654, %v6655, %v6651
        %v6657 = vadd.s32 %v6652, %v6656
        %v6658 = vadd.s32 %v6657, 536870912
        %v6659 = vshrl.u32 %v6658, 30
        %v6660 = vshll.u32 %v6659, 30
        %v6661 = vsub.s32 %v6657, %v6660
        %vm6662 = vcmp.lt.s32.totalorder %v6661, 0
        %v6663 = vsub.s32 0, %v6661
        %v6664 = vsel %vm6662, %v6663, %v6661
        %v6665 = vclz %v6664
        %v6666 = vsub.s32 %v6665, 2
        %vm6667 = vcmp.gt.s32.totalorder 0, %v6666
        %v6668 = vsel %vm6667, 0, %v6666
        %v6669 = vsub.s32 32, %v6668
        %v6670 = vshll.u32 %v6661, %v6668
        %v6671 = vshrl.u32 %v6653, %v6669
        %v6672 = vor.u32 %v6670, %v6671
        %v6673 = vsub.s32 4294967266, %v6668
        %v6674 = vadd.s32 %v6673, 127
        %v6675 = vshll.u32 %v6674, 23
        %v6676 = vor.u32 4788187, %v6675
        %v6677 = vand.u32 2147483647, %v6676
        %v6679 = vcvt.s32.f32 %v6672
        %v6680 = vmul.f32 %v6679, %v6677
        %v6681 = vxor.u32 %v6680, 2147483648
        %v6682 = vsel %vm6599, %v6681, %v6680
        %v6683 = vsub.s32 4, %v6659
        %v6684 = vsel %vm6599, %v6683, %v6659
        %v6685 = vsel %vm6598, %v408, %v6682
        %v6686 = vsel %vm6598, 0, %v6684
        %v6687 = vcosq.f32.pop %v6685
        %v6688 = vsinq.f32.pop %v6685
        %vm6689 = vweird.f32 %v408
        %v6690 = vadd.s32 %v6686, 3
        %v6691 = vand.u32 %v6690, 3
        %vm6692 = vcmp.lt.s32.totalorder %v6691, 2
        %vm6693 = vcmp.eq.s32.totalorder %v6691, 0
        %v6694 = vxor.u32 %v6688, 2147483648
        %v6695 = vsel %vm6693, %v6687, %v6694
        %vm6696 = vcmp.eq.s32.totalorder %v6691, 2
        %v6697 = vxor.u32 %v6687, 2147483648
        %v6698 = vsel %vm6696, %v6697, %v6688
        %v6699 = vsel %vm6692, %v6695, %v6698
        %v6700 = vsel %vm6689, nan, %v6699
        %v6701 = vand.u32 2147483647, %v409
        %vm6702 = vcmp.le.f32.partialorder %v6701, 0.7853982
        %vm6703 = vcmp.lt.s32.totalorder %v409, 0
        %v6704 = vand.u32 %v409, 2139095040
        %v6705 = vshrl.u32 %v6704, 23
        %v6706 = vsub.s32 %v6705, 127
        %v6707 = vand.u32 2147483647, %v409
        %v6708 = vand.u32 %v6707, 8388607
        %v6709 = vor.u32 %v6708, 8388608
        %v6710 = vsub.s32 0, %v6709
        %v6711 = vadd.s32 %v6706, 1
        %vm6712 = vcmp.gt.s32.totalorder %v6711, 0
        %v6713 = vsel %vm6712, %v6711, 0
        %v6714 = vshrl.u32 %v6713, 5
        %v6715 = vand.u32 %v6713, 31
        %v6716 = vsub.s32 32, %v6715
        %v6717 = vshrl.u32 683565275, %v6716
        %v6718 = vshll.u32 683565275, %v6715
        %v6719 = vshrl.u32 2475754826, %v6716
        %v6720 = vor.u32 %v6718, %v6719
        %v6721 = vshll.u32 2475754826, %v6715
        %v6722 = vshrl.u32 2131351028, %v6716
        %v6723 = vor.u32 %v6721, %v6722
        %v6724 = vshll.u32 2131351028, %v6715
        %v6725 = vshrl.u32 2102212464, %v6716
        %v6726 = vor.u32 %v6724, %v6725
        %v6727 = vshll.u32 2102212464, %v6715
        %v6728 = vshrl.u32 920167782, %v6716
        %v6729 = vor.u32 %v6727, %v6728
        %v6730 = vshll.u32 920167782, %v6715
        %v6731 = vshrl.u32 1326507024, %v6716
        %v6732 = vor.u32 %v6730, %v6731
        %vm6733 = vcmp.lt.s32.totalorder %v6714, 1
        %vm6734 = vcmp.lt.s32.totalorder %v6714, 2
        %vm6735 = vcmp.lt.s32.totalorder %v6714, 3
        %vm6736 = vcmp.lt.s32.totalorder %v6714, 4
        %v6737 = vsel %vm6733, %v6717, %v6720
        %v6738 = vsel %vm6736, %v6726, 2102212464
        %v6739 = vsel %vm6735, %v6723, %v6738
        %v6740 = vsel %vm6734, %v6737, %v6739
        %v6741 = vsel %vm6733, %v6720, %v6723
        %v6742 = vsel %vm6736, %v6729, 920167782
        %v6743 = vsel %vm6735, %v6726, %v6742
        %v6744 = vsel %vm6734, %v6741, %v6743
        %v6745 = vsel %vm6733, %v6723, %v6726
        %v6746 = vsel %vm6736, %v6732, 1326507024
        %v6747 = vsel %vm6735, %v6729, %v6746
        %v6748 = vsel %vm6734, %v6745, %v6747
        %v6749 = vshll.u32 %v6709, 8
        %v6750 = vmul.u32.u64.compose %v6749, %v6748
        %v6751 = vextract.low.u32 %v6750
        %v6752 = vextract.high.u32 %v6750
        %v6753 = vmul.u32.u64.compose %v6749, %v6744
        %v6754 = vextract.low.u32 %v6753
        %v6755 = vextract.high.u32 %v6753
        %v6756 = vmul.u32 %v6749, %v6740
        %v6757 = vadd.s32 %v6752, %v6754
        %vm6758 = vc.u32 %v6752, %v6754
        %v6759 = vadd.s32 %v6755, 1
        %v6760 = vsel %vm6758, %v6759, %v6755
        %v6761 = vadd.s32 %v6756, %v6760
        %v6762 = vadd.s32 %v6761, 536870912
        %v6763 = vshrl.u32 %v6762, 30
        %v6764 = vshll.u32 %v6763, 30
        %v6765 = vsub.s32 %v6761, %v6764
        %vm6766 = vcmp.lt.s32.totalorder %v6765, 0
        %v6767 = vsub.s32 0, %v6765
        %v6768 = vsel %vm6766, %v6767, %v6765
        %v6769 = vclz %v6768
        %v6770 = vsub.s32 %v6769, 2
        %vm6771 = vcmp.gt.s32.totalorder 0, %v6770
        %v6772 = vsel %vm6771, 0, %v6770
        %v6773 = vsub.s32 32, %v6772
        %v6774 = vshll.u32 %v6765, %v6772
        %v6775 = vshrl.u32 %v6757, %v6773
        %v6776 = vor.u32 %v6774, %v6775
        %v6777 = vsub.s32 4294967266, %v6772
        %v6778 = vadd.s32 %v6777, 127
        %v6779 = vshll.u32 %v6778, 23
        %v6780 = vor.u32 4788187, %v6779
        %v6781 = vand.u32 2147483647, %v6780
        %v6783 = vcvt.s32.f32 %v6776
        %v6784 = vmul.f32 %v6783, %v6781
        %v6785 = vxor.u32 %v6784, 2147483648
        %v6786 = vsel %vm6703, %v6785, %v6784
        %v6787 = vsub.s32 4, %v6763
        %v6788 = vsel %vm6703, %v6787, %v6763
        %v6789 = vsel %vm6702, %v409, %v6786
        %v6790 = vsel %vm6702, 0, %v6788
        %v6791 = vcosq.f32.pop %v6789
        %v6792 = vsinq.f32.pop %v6789
        %vm6793 = vweird.f32 %v409
        %v6794 = vadd.s32 %v6790, 3
        %v6795 = vand.u32 %v6794, 3
        %vm6796 = vcmp.lt.s32.totalorder %v6795, 2
        %vm6797 = vcmp.eq.s32.totalorder %v6795, 0
        %v6798 = vxor.u32 %v6792, 2147483648
        %v6799 = vsel %vm6797, %v6791, %v6798
        %vm6800 = vcmp.eq.s32.totalorder %v6795, 2
        %v6801 = vxor.u32 %v6791, 2147483648
        %v6802 = vsel %vm6800, %v6801, %v6792
        %v6803 = vsel %vm6796, %v6799, %v6802
        %v6804 = vsel %vm6793, nan, %v6803
        %v6805 = vand.u32 2147483647, %v410
        %vm6806 = vcmp.le.f32.partialorder %v6805, 0.7853982
        %vm6807 = vcmp.lt.s32.totalorder %v410, 0
        %v6808 = vand.u32 %v410, 2139095040
        %v6809 = vshrl.u32 %v6808, 23
        %v6810 = vsub.s32 %v6809, 127
        %v6811 = vand.u32 2147483647, %v410
        %v6812 = vand.u32 %v6811, 8388607
        %v6813 = vor.u32 %v6812, 8388608
        %v6814 = vsub.s32 0, %v6813
        %v6815 = vadd.s32 %v6810, 1
        %vm6816 = vcmp.gt.s32.totalorder %v6815, 0
        %v6817 = vsel %vm6816, %v6815, 0
        %v6818 = vshrl.u32 %v6817, 5
        %v6819 = vand.u32 %v6817, 31
        %v6820 = vsub.s32 32, %v6819
        %v6821 = vshrl.u32 683565275, %v6820
        %v6822 = vshll.u32 683565275, %v6819
        %v6823 = vshrl.u32 2475754826, %v6820
        %v6824 = vor.u32 %v6822, %v6823
        %v6825 = vshll.u32 2475754826, %v6819
        %v6826 = vshrl.u32 2131351028, %v6820
        %v6827 = vor.u32 %v6825, %v6826
        %v6828 = vshll.u32 2131351028, %v6819
        %v6829 = vshrl.u32 2102212464, %v6820
        %v6830 = vor.u32 %v6828, %v6829
        %v6831 = vshll.u32 2102212464, %v6819
        %v6832 = vshrl.u32 920167782, %v6820
        %v6833 = vor.u32 %v6831, %v6832
        %v6834 = vshll.u32 920167782, %v6819
        %v6835 = vshrl.u32 1326507024, %v6820
        %v6836 = vor.u32 %v6834, %v6835
        %vm6837 = vcmp.lt.s32.totalorder %v6818, 1
        %vm6838 = vcmp.lt.s32.totalorder %v6818, 2
        %vm6839 = vcmp.lt.s32.totalorder %v6818, 3
        %vm6840 = vcmp.lt.s32.totalorder %v6818, 4
        %v6841 = vsel %vm6837, %v6821, %v6824
        %v6842 = vsel %vm6840, %v6830, 2102212464
        %v6843 = vsel %vm6839, %v6827, %v6842
        %v6844 = vsel %vm6838, %v6841, %v6843
        %v6845 = vsel %vm6837, %v6824, %v6827
        %v6846 = vsel %vm6840, %v6833, 920167782
        %v6847 = vsel %vm6839, %v6830, %v6846
        %v6848 = vsel %vm6838, %v6845, %v6847
        %v6849 = vsel %vm6837, %v6827, %v6830
        %v6850 = vsel %vm6840, %v6836, 1326507024
        %v6851 = vsel %vm6839, %v6833, %v6850
        %v6852 = vsel %vm6838, %v6849, %v6851
        %v6853 = vshll.u32 %v6813, 8
        %v6854 = vmul.u32.u64.compose %v6853, %v6852
        %v6855 = vextract.low.u32 %v6854
        %v6856 = vextract.high.u32 %v6854
        %v6857 = vmul.u32.u64.compose %v6853, %v6848
        %v6858 = vextract.low.u32 %v6857
        %v6859 = vextract.high.u32 %v6857
        %v6860 = vmul.u32 %v6853, %v6844
        %v6861 = vadd.s32 %v6856, %v6858
        %vm6862 = vc.u32 %v6856, %v6858
        %v6863 = vadd.s32 %v6859, 1
        %v6864 = vsel %vm6862, %v6863, %v6859
        %v6865 = vadd.s32 %v6860, %v6864
        %v6866 = vadd.s32 %v6865, 536870912
        %v6867 = vshrl.u32 %v6866, 30
        %v6868 = vshll.u32 %v6867, 30
        %v6869 = vsub.s32 %v6865, %v6868
        %vm6870 = vcmp.lt.s32.totalorder %v6869, 0
        %v6871 = vsub.s32 0, %v6869
        %v6872 = vsel %vm6870, %v6871, %v6869
        %v6873 = vclz %v6872
        %v6874 = vsub.s32 %v6873, 2
        %vm6875 = vcmp.gt.s32.totalorder 0, %v6874
        %v6876 = vsel %vm6875, 0, %v6874
        %v6877 = vsub.s32 32, %v6876
        %v6878 = vshll.u32 %v6869, %v6876
        %v6879 = vshrl.u32 %v6861, %v6877
        %v6880 = vor.u32 %v6878, %v6879
        %v6881 = vsub.s32 4294967266, %v6876
        %v6882 = vadd.s32 %v6881, 127
        %v6883 = vshll.u32 %v6882, 23
        %v6884 = vor.u32 4788187, %v6883
        %v6885 = vand.u32 2147483647, %v6884
        %v6887 = vcvt.s32.f32 %v6880
        %v6888 = vmul.f32 %v6887, %v6885
        %v6889 = vxor.u32 %v6888, 2147483648
        %v6890 = vsel %vm6807, %v6889, %v6888
        %v6891 = vsub.s32 4, %v6867
        %v6892 = vsel %vm6807, %v6891, %v6867
        %v6893 = vsel %vm6806, %v410, %v6890
        %v6894 = vsel %vm6806, 0, %v6892
        %v6895 = vcosq.f32.pop %v6893
        %v6896 = vsinq.f32.pop %v6893
        %vm6897 = vweird.f32 %v410
        %v6898 = vadd.s32 %v6894, 3
        %v6899 = vand.u32 %v6898, 3
        %vm6900 = vcmp.lt.s32.totalorder %v6899, 2
        %vm6901 = vcmp.eq.s32.totalorder %v6899, 0
        %v6902 = vxor.u32 %v6896, 2147483648
        %v6903 = vsel %vm6901, %v6895, %v6902
        %vm6904 = vcmp.eq.s32.totalorder %v6899, 2
        %v6905 = vxor.u32 %v6895, 2147483648
        %v6906 = vsel %vm6904, %v6905, %v6896
        %v6907 = vsel %vm6900, %v6903, %v6906
        %v6908 = vsel %vm6897, nan, %v6907
        %v6909 = vand.u32 2147483647, %v411
        %vm6910 = vcmp.le.f32.partialorder %v6909, 0.7853982
        %vm6911 = vcmp.lt.s32.totalorder %v411, 0
        %v6912 = vand.u32 %v411, 2139095040
        %v6913 = vshrl.u32 %v6912, 23
        %v6914 = vsub.s32 %v6913, 127
        %v6915 = vand.u32 2147483647, %v411
        %v6916 = vand.u32 %v6915, 8388607
        %v6917 = vor.u32 %v6916, 8388608
        %v6918 = vsub.s32 0, %v6917
        %v6919 = vadd.s32 %v6914, 1
        %vm6920 = vcmp.gt.s32.totalorder %v6919, 0
        %v6921 = vsel %vm6920, %v6919, 0
        %v6922 = vshrl.u32 %v6921, 5
        %v6923 = vand.u32 %v6921, 31
        %v6924 = vsub.s32 32, %v6923
        %v6925 = vshrl.u32 683565275, %v6924
        %v6926 = vshll.u32 683565275, %v6923
        %v6927 = vshrl.u32 2475754826, %v6924
        %v6928 = vor.u32 %v6926, %v6927
        %v6929 = vshll.u32 2475754826, %v6923
        %v6930 = vshrl.u32 2131351028, %v6924
        %v6931 = vor.u32 %v6929, %v6930
        %v6932 = vshll.u32 2131351028, %v6923
        %v6933 = vshrl.u32 2102212464, %v6924
        %v6934 = vor.u32 %v6932, %v6933
        %v6935 = vshll.u32 2102212464, %v6923
        %v6936 = vshrl.u32 920167782, %v6924
        %v6937 = vor.u32 %v6935, %v6936
        %v6938 = vshll.u32 920167782, %v6923
        %v6939 = vshrl.u32 1326507024, %v6924
        %v6940 = vor.u32 %v6938, %v6939
        %vm6941 = vcmp.lt.s32.totalorder %v6922, 1
        %vm6942 = vcmp.lt.s32.totalorder %v6922, 2
        %vm6943 = vcmp.lt.s32.totalorder %v6922, 3
        %vm6944 = vcmp.lt.s32.totalorder %v6922, 4
        %v6945 = vsel %vm6941, %v6925, %v6928
        %v6946 = vsel %vm6944, %v6934, 2102212464
        %v6947 = vsel %vm6943, %v6931, %v6946
        %v6948 = vsel %vm6942, %v6945, %v6947
        %v6949 = vsel %vm6941, %v6928, %v6931
        %v6950 = vsel %vm6944, %v6937, 920167782
        %v6951 = vsel %vm6943, %v6934, %v6950
        %v6952 = vsel %vm6942, %v6949, %v6951
        %v6953 = vsel %vm6941, %v6931, %v6934
        %v6954 = vsel %vm6944, %v6940, 1326507024
        %v6955 = vsel %vm6943, %v6937, %v6954
        %v6956 = vsel %vm6942, %v6953, %v6955
        %v6957 = vshll.u32 %v6917, 8
        %v6958 = vmul.u32.u64.compose %v6957, %v6956
        %v6959 = vextract.low.u32 %v6958
        %v6960 = vextract.high.u32 %v6958
        %v6961 = vmul.u32.u64.compose %v6957, %v6952
        %v6962 = vextract.low.u32 %v6961
        %v6963 = vextract.high.u32 %v6961
        %v6964 = vmul.u32 %v6957, %v6948
        %v6965 = vadd.s32 %v6960, %v6962
        %vm6966 = vc.u32 %v6960, %v6962
        %v6967 = vadd.s32 %v6963, 1
        %v6968 = vsel %vm6966, %v6967, %v6963
        %v6969 = vadd.s32 %v6964, %v6968
        %v6970 = vadd.s32 %v6969, 536870912
        %v6971 = vshrl.u32 %v6970, 30
        %v6972 = vshll.u32 %v6971, 30
        %v6973 = vsub.s32 %v6969, %v6972
        %vm6974 = vcmp.lt.s32.totalorder %v6973, 0
        %v6975 = vsub.s32 0, %v6973
        %v6976 = vsel %vm6974, %v6975, %v6973
        %v6977 = vclz %v6976
        %v6978 = vsub.s32 %v6977, 2
        %vm6979 = vcmp.gt.s32.totalorder 0, %v6978
        %v6980 = vsel %vm6979, 0, %v6978
        %v6981 = vsub.s32 32, %v6980
        %v6982 = vshll.u32 %v6973, %v6980
        %v6983 = vshrl.u32 %v6965, %v6981
        %v6984 = vor.u32 %v6982, %v6983
        %v6985 = vsub.s32 4294967266, %v6980
        %v6986 = vadd.s32 %v6985, 127
        %v6987 = vshll.u32 %v6986, 23
        %v6988 = vor.u32 4788187, %v6987
        %v6989 = vand.u32 2147483647, %v6988
        %v6991 = vcvt.s32.f32 %v6984
        %v6992 = vmul.f32 %v6991, %v6989
        %v6993 = vxor.u32 %v6992, 2147483648
        %v6994 = vsel %vm6911, %v6993, %v6992
        %v6995 = vsub.s32 4, %v6971
        %v6996 = vsel %vm6911, %v6995, %v6971
        %v6997 = vsel %vm6910, %v411, %v6994
        %v6998 = vsel %vm6910, 0, %v6996
        %v6999 = vcosq.f32.pop %v6997
        %v7000 = vsinq.f32.pop %v6997
        %vm7001 = vweird.f32 %v411
        %v7002 = vadd.s32 %v6998, 3
        %v7003 = vand.u32 %v7002, 3
        %vm7004 = vcmp.lt.s32.totalorder %v7003, 2
        %vm7005 = vcmp.eq.s32.totalorder %v7003, 0
        %v7006 = vxor.u32 %v7000, 2147483648
        %v7007 = vsel %vm7005, %v6999, %v7006
        %vm7008 = vcmp.eq.s32.totalorder %v7003, 2
        %v7009 = vxor.u32 %v6999, 2147483648
        %v7010 = vsel %vm7008, %v7009, %v7000
        %v7011 = vsel %vm7004, %v7007, %v7010
        %v7012 = vsel %vm7001, nan, %v7011
        %v7013 = vand.u32 2147483647, %v412
        %vm7014 = vcmp.le.f32.partialorder %v7013, 0.7853982
        %vm7015 = vcmp.lt.s32.totalorder %v412, 0
        %v7016 = vand.u32 %v412, 2139095040
        %v7017 = vshrl.u32 %v7016, 23
        %v7018 = vsub.s32 %v7017, 127
        %v7019 = vand.u32 2147483647, %v412
        %v7020 = vand.u32 %v7019, 8388607
        %v7021 = vor.u32 %v7020, 8388608
        %v7022 = vsub.s32 0, %v7021
        %v7023 = vadd.s32 %v7018, 1
        %vm7024 = vcmp.gt.s32.totalorder %v7023, 0
        %v7025 = vsel %vm7024, %v7023, 0
        %v7026 = vshrl.u32 %v7025, 5
        %v7027 = vand.u32 %v7025, 31
        %v7028 = vsub.s32 32, %v7027
        %v7029 = vshrl.u32 683565275, %v7028
        %v7030 = vshll.u32 683565275, %v7027
        %v7031 = vshrl.u32 2475754826, %v7028
        %v7032 = vor.u32 %v7030, %v7031
        %v7033 = vshll.u32 2475754826, %v7027
        %v7034 = vshrl.u32 2131351028, %v7028
        %v7035 = vor.u32 %v7033, %v7034
        %v7036 = vshll.u32 2131351028, %v7027
        %v7037 = vshrl.u32 2102212464, %v7028
        %v7038 = vor.u32 %v7036, %v7037
        %v7039 = vshll.u32 2102212464, %v7027
        %v7040 = vshrl.u32 920167782, %v7028
        %v7041 = vor.u32 %v7039, %v7040
        %v7042 = vshll.u32 920167782, %v7027
        %v7043 = vshrl.u32 1326507024, %v7028
        %v7044 = vor.u32 %v7042, %v7043
        %vm7045 = vcmp.lt.s32.totalorder %v7026, 1
        %vm7046 = vcmp.lt.s32.totalorder %v7026, 2
        %vm7047 = vcmp.lt.s32.totalorder %v7026, 3
        %vm7048 = vcmp.lt.s32.totalorder %v7026, 4
        %v7049 = vsel %vm7045, %v7029, %v7032
        %v7050 = vsel %vm7048, %v7038, 2102212464
        %v7051 = vsel %vm7047, %v7035, %v7050
        %v7052 = vsel %vm7046, %v7049, %v7051
        %v7053 = vsel %vm7045, %v7032, %v7035
        %v7054 = vsel %vm7048, %v7041, 920167782
        %v7055 = vsel %vm7047, %v7038, %v7054
        %v7056 = vsel %vm7046, %v7053, %v7055
        %v7057 = vsel %vm7045, %v7035, %v7038
        %v7058 = vsel %vm7048, %v7044, 1326507024
        %v7059 = vsel %vm7047, %v7041, %v7058
        %v7060 = vsel %vm7046, %v7057, %v7059
        %v7061 = vshll.u32 %v7021, 8
        %v7062 = vmul.u32.u64.compose %v7061, %v7060
        %v7063 = vextract.low.u32 %v7062
        %v7064 = vextract.high.u32 %v7062
        %v7065 = vmul.u32.u64.compose %v7061, %v7056
        %v7066 = vextract.low.u32 %v7065
        %v7067 = vextract.high.u32 %v7065
        %v7068 = vmul.u32 %v7061, %v7052
        %v7069 = vadd.s32 %v7064, %v7066
        %vm7070 = vc.u32 %v7064, %v7066
        %v7071 = vadd.s32 %v7067, 1
        %v7072 = vsel %vm7070, %v7071, %v7067
        %v7073 = vadd.s32 %v7068, %v7072
        %v7074 = vadd.s32 %v7073, 536870912
        %v7075 = vshrl.u32 %v7074, 30
        %v7076 = vshll.u32 %v7075, 30
        %v7077 = vsub.s32 %v7073, %v7076
        %vm7078 = vcmp.lt.s32.totalorder %v7077, 0
        %v7079 = vsub.s32 0, %v7077
        %v7080 = vsel %vm7078, %v7079, %v7077
        %v7081 = vclz %v7080
        %v7082 = vsub.s32 %v7081, 2
        %vm7083 = vcmp.gt.s32.totalorder 0, %v7082
        %v7084 = vsel %vm7083, 0, %v7082
        %v7085 = vsub.s32 32, %v7084
        %v7086 = vshll.u32 %v7077, %v7084
        %v7087 = vshrl.u32 %v7069, %v7085
        %v7088 = vor.u32 %v7086, %v7087
        %v7089 = vsub.s32 4294967266, %v7084
        %v7090 = vadd.s32 %v7089, 127
        %v7091 = vshll.u32 %v7090, 23
        %v7092 = vor.u32 4788187, %v7091
        %v7093 = vand.u32 2147483647, %v7092
        %v7095 = vcvt.s32.f32 %v7088
        %v7096 = vmul.f32 %v7095, %v7093
        %v7097 = vxor.u32 %v7096, 2147483648
        %v7098 = vsel %vm7015, %v7097, %v7096
        %v7099 = vsub.s32 4, %v7075
        %v7100 = vsel %vm7015, %v7099, %v7075
        %v7101 = vsel %vm7014, %v412, %v7098
        %v7102 = vsel %vm7014, 0, %v7100
        %v7103 = vcosq.f32.pop %v7101
        %v7104 = vsinq.f32.pop %v7101
        %vm7105 = vweird.f32 %v412
        %v7106 = vadd.s32 %v7102, 3
        %v7107 = vand.u32 %v7106, 3
        %vm7108 = vcmp.lt.s32.totalorder %v7107, 2
        %vm7109 = vcmp.eq.s32.totalorder %v7107, 0
        %v7110 = vxor.u32 %v7104, 2147483648
        %v7111 = vsel %vm7109, %v7103, %v7110
        %vm7112 = vcmp.eq.s32.totalorder %v7107, 2
        %v7113 = vxor.u32 %v7103, 2147483648
        %v7114 = vsel %vm7112, %v7113, %v7104
        %v7115 = vsel %vm7108, %v7111, %v7114
        %v7116 = vsel %vm7105, nan, %v7115
        %v7117 = vsel %vm3711, %v3892, 0.0
        %v7118 = vsel %vm3711, %v4100, 0.0
        %v7119 = vadd.f32 %v7117, %v7118
        %v7120 = vsel %vm3711, %v4308, 0.0
        %v7121 = vadd.f32 %v7119, %v7120
        %v7122 = vsel %vm3711, %v4516, 0.0
        %v7123 = vadd.f32 %v7121, %v7122
        %v7124 = vsel %vm3711, %v4724, 0.0
        %v7125 = vadd.f32 %v7123, %v7124
        %v7126 = vsel %vm3711, %v4932, 0.0
        %v7127 = vadd.f32 %v7125, %v7126
        %v7128 = vsel %vm3711, %v5140, 0.0
        %v7129 = vadd.f32 %v7127, %v7128
        %v7130 = vsel %vm3711, %v5348, 0.0
        %v7131 = vadd.f32 %v7129, %v7130
        %v7132 = vsel %vm3711, %v5556, 0.0
        %v7133 = vadd.f32 %v7131, %v7132
        %v7134 = vsel %vm3711, %v5764, 0.0
        %v7135 = vadd.f32 %v7133, %v7134
        %v7136 = vsel %vm3711, %v5972, 0.0
        %v7137 = vadd.f32 %v7135, %v7136
        %v7138 = vsel %vm3711, %v6180, 0.0
        %v7139 = vadd.f32 %v7137, %v7138
        %v7140 = vsel %vm3711, %v6388, 0.0
        %v7141 = vadd.f32 %v7139, %v7140
        %v7142 = vsel %vm3711, %v6596, 0.0
        %v7143 = vadd.f32 %v7141, %v7142
        %v7144 = vsel %vm3711, %v6804, 0.0
        %v7145 = vadd.f32 %v7143, %v7144
        %v7146 = vsel %vm3711, %v7012, 0.0
        %v7147 = vadd.f32 %v7145, %v7146
        %v7148 = vsel %vm3711, %v3996, 0.0
        %v7149 = vsel %vm3711, %v4204, 0.0
        %v7150 = vadd.f32 %v7148, %v7149
        %v7151 = vsel %vm3711, %v4412, 0.0
        %v7152 = vadd.f32 %v7150, %v7151
        %v7153 = vsel %vm3711, %v4620, 0.0
        %v7154 = vadd.f32 %v7152, %v7153
        %v7155 = vsel %vm3711, %v4828, 0.0
        %v7156 = vadd.f32 %v7154, %v7155
        %v7157 = vsel %vm3711, %v5036, 0.0
        %v7158 = vadd.f32 %v7156, %v7157
        %v7159 = vsel %vm3711, %v5244, 0.0
        %v7160 = vadd.f32 %v7158, %v7159
        %v7161 = vsel %vm3711, %v5452, 0.0
        %v7162 = vadd.f32 %v7160, %v7161
        %v7163 = vsel %vm3711, %v5660, 0.0
        %v7164 = vadd.f32 %v7162, %v7163
        %v7165 = vsel %vm3711, %v5868, 0.0
        %v7166 = vadd.f32 %v7164, %v7165
        %v7167 = vsel %vm3711, %v6076, 0.0
        %v7168 = vadd.f32 %v7166, %v7167
        %v7169 = vsel %vm3711, %v6284, 0.0
        %v7170 = vadd.f32 %v7168, %v7169
        %v7171 = vsel %vm3711, %v6492, 0.0
        %v7172 = vadd.f32 %v7170, %v7171
        %v7173 = vsel %vm3711, %v6700, 0.0
        %v7174 = vadd.f32 %v7172, %v7173
        %v7175 = vsel %vm3711, %v6908, 0.0
        %v7176 = vadd.f32 %v7174, %v7175
        %v7177 = vsel %vm3711, %v7116, 0.0
        %v7178 = vadd.f32 %v7176, %v7177
        %7181 = vrot.lane.b32.xlu0 %v7147, 124
        %v7182 = vpop.permute.xlu0 %7181
        %7183 = vrot.lane.b32.xlu0 %v7178, 124
        %v7184 = vpop.permute.xlu0 %7183
        %v7187 = vadd.f32 %v3787, %v7182
        %v7188 = vadd.f32 %v3788, %v7184
        %7189 = vst.msk [vmem:[#allocation5] sm:$0xff] %vm3784, %v7187
        %7190 = vst.msk [vmem:[#allocation5 + $0x8] sm:$0xff] %vm3784, %v7188
        %7223 = vrot.lane.b32.xlu0 %v381, 126
        %v7224 = vpop.permute.xlu0 %7223
        %7225 = vrot.lane.b32.xlu0 %v382, 126
        %v7226 = vpop.permute.xlu0 %7225
        %7227 = vrot.lane.b32.xlu0 %v383, 126
        %v7228 = vpop.permute.xlu0 %7227
        %7229 = vrot.lane.b32.xlu0 %v384, 126
        %v7230 = vpop.permute.xlu0 %7229
        %7231 = vrot.lane.b32.xlu0 %v385, 126
        %v7232 = vpop.permute.xlu0 %7231
        %7233 = vrot.lane.b32.xlu0 %v386, 126
        %v7234 = vpop.permute.xlu0 %7233
        %7235 = vrot.lane.b32.xlu0 %v387, 126
        %v7236 = vpop.permute.xlu0 %7235
        %7237 = vrot.lane.b32.xlu0 %v388, 126
        %v7238 = vpop.permute.xlu0 %7237
        %7239 = vrot.lane.b32.xlu0 %v389, 126
        %v7240 = vpop.permute.xlu0 %7239
        %7241 = vrot.lane.b32.xlu0 %v390, 126
        %v7242 = vpop.permute.xlu0 %7241
        %7243 = vrot.lane.b32.xlu0 %v391, 126
        %v7244 = vpop.permute.xlu0 %7243
        %7245 = vrot.lane.b32.xlu0 %v392, 126
        %v7246 = vpop.permute.xlu0 %7245
        %7247 = vrot.lane.b32.xlu0 %v393, 126
        %v7248 = vpop.permute.xlu0 %7247
        %7249 = vrot.lane.b32.xlu0 %v394, 126
        %v7250 = vpop.permute.xlu0 %7249
        %7251 = vrot.lane.b32.xlu0 %v395, 126
        %v7252 = vpop.permute.xlu0 %7251
        %7253 = vrot.lane.b32.xlu0 %v396, 126
        %v7254 = vpop.permute.xlu0 %7253
        %7255 = vrot.lane.b32.xlu0 %v397, 126
        %v7256 = vpop.permute.xlu0 %7255
        %7257 = vrot.lane.b32.xlu0 %v398, 126
        %v7258 = vpop.permute.xlu0 %7257
        %7259 = vrot.lane.b32.xlu0 %v399, 126
        %v7260 = vpop.permute.xlu0 %7259
        %7261 = vrot.lane.b32.xlu0 %v400, 126
        %v7262 = vpop.permute.xlu0 %7261
        %7263 = vrot.lane.b32.xlu0 %v401, 126
        %v7264 = vpop.permute.xlu0 %7263
        %7265 = vrot.lane.b32.xlu0 %v402, 126
        %v7266 = vpop.permute.xlu0 %7265
        %7267 = vrot.lane.b32.xlu0 %v403, 126
        %v7268 = vpop.permute.xlu0 %7267
        %7269 = vrot.lane.b32.xlu0 %v404, 126
        %v7270 = vpop.permute.xlu0 %7269
        %7271 = vrot.lane.b32.xlu0 %v405, 126
        %v7272 = vpop.permute.xlu0 %7271
        %7273 = vrot.lane.b32.xlu0 %v406, 126
        %v7274 = vpop.permute.xlu0 %7273
        %7275 = vrot.lane.b32.xlu0 %v407, 126
        %v7276 = vpop.permute.xlu0 %7275
        %7277 = vrot.lane.b32.xlu0 %v408, 126
        %v7278 = vpop.permute.xlu0 %7277
        %7279 = vrot.lane.b32.xlu0 %v409, 126
        %v7280 = vpop.permute.xlu0 %7279
        %7281 = vrot.lane.b32.xlu0 %v410, 126
        %v7282 = vpop.permute.xlu0 %7281
        %7283 = vrot.lane.b32.xlu0 %v411, 126
        %v7284 = vpop.permute.xlu0 %7283
        %7285 = vrot.lane.b32.xlu0 %v412, 126
        %v7286 = vpop.permute.xlu0 %7285
        %v7319 = vadd.f32 %v381, %v7224
        %v7320 = vadd.f32 %v382, %v7226
        %v7321 = vadd.f32 %v383, %v7228
        %v7322 = vadd.f32 %v384, %v7230
        %v7323 = vadd.f32 %v385, %v7232
        %v7324 = vadd.f32 %v386, %v7234
        %v7325 = vadd.f32 %v387, %v7236
        %v7326 = vadd.f32 %v388, %v7238
        %v7327 = vadd.f32 %v389, %v7240
        %v7328 = vadd.f32 %v390, %v7242
        %v7329 = vadd.f32 %v391, %v7244
        %v7330 = vadd.f32 %v392, %v7246
        %v7331 = vadd.f32 %v393, %v7248
        %v7332 = vadd.f32 %v394, %v7250
        %v7333 = vadd.f32 %v395, %v7252
        %v7334 = vadd.f32 %v396, %v7254
        %v7335 = vadd.f32 %v397, %v7256
        %v7336 = vadd.f32 %v398, %v7258
        %v7337 = vadd.f32 %v399, %v7260
        %v7338 = vadd.f32 %v400, %v7262
        %v7339 = vadd.f32 %v401, %v7264
        %v7340 = vadd.f32 %v402, %v7266
        %v7341 = vadd.f32 %v403, %v7268
        %v7342 = vadd.f32 %v404, %v7270
        %v7343 = vadd.f32 %v405, %v7272
        %v7344 = vadd.f32 %v406, %v7274
        %v7345 = vadd.f32 %v407, %v7276
        %v7346 = vadd.f32 %v408, %v7278
        %v7347 = vadd.f32 %v409, %v7280
        %v7348 = vadd.f32 %v410, %v7282
        %v7349 = vadd.f32 %v411, %v7284
        %v7350 = vadd.f32 %v412, %v7286
        %7383 = vrot.lane.b32.xlu0 %v7319, 127
        %v7384 = vpop.permute.xlu0 %7383
        %7385 = vrot.lane.b32.xlu0 %v7320, 127
        %v7386 = vpop.permute.xlu0 %7385
        %7387 = vrot.lane.b32.xlu0 %v7321, 127
        %v7388 = vpop.permute.xlu0 %7387
        %7389 = vrot.lane.b32.xlu0 %v7322, 127
        %v7390 = vpop.permute.xlu0 %7389
        %7391 = vrot.lane.b32.xlu0 %v7323, 127
        %v7392 = vpop.permute.xlu0 %7391
        %7393 = vrot.lane.b32.xlu0 %v7324, 127
        %v7394 = vpop.permute.xlu0 %7393
        %7395 = vrot.lane.b32.xlu0 %v7325, 127
        %v7396 = vpop.permute.xlu0 %7395
        %7397 = vrot.lane.b32.xlu0 %v7326, 127
        %v7398 = vpop.permute.xlu0 %7397
        %7399 = vrot.lane.b32.xlu0 %v7327, 127
        %v7400 = vpop.permute.xlu0 %7399
        %7401 = vrot.lane.b32.xlu0 %v7328, 127
        %v7402 = vpop.permute.xlu0 %7401
        %7403 = vrot.lane.b32.xlu0 %v7329, 127
        %v7404 = vpop.permute.xlu0 %7403
        %7405 = vrot.lane.b32.xlu0 %v7330, 127
        %v7406 = vpop.permute.xlu0 %7405
        %7407 = vrot.lane.b32.xlu0 %v7331, 127
        %v7408 = vpop.permute.xlu0 %7407
        %7409 = vrot.lane.b32.xlu0 %v7332, 127
        %v7410 = vpop.permute.xlu0 %7409
        %7411 = vrot.lane.b32.xlu0 %v7333, 127
        %v7412 = vpop.permute.xlu0 %7411
        %7413 = vrot.lane.b32.xlu0 %v7334, 127
        %v7414 = vpop.permute.xlu0 %7413
        %7415 = vrot.lane.b32.xlu0 %v7335, 127
        %v7416 = vpop.permute.xlu0 %7415
        %7417 = vrot.lane.b32.xlu0 %v7336, 127
        %v7418 = vpop.permute.xlu0 %7417
        %7419 = vrot.lane.b32.xlu0 %v7337, 127
        %v7420 = vpop.permute.xlu0 %7419
        %7421 = vrot.lane.b32.xlu0 %v7338, 127
        %v7422 = vpop.permute.xlu0 %7421
        %7423 = vrot.lane.b32.xlu0 %v7339, 127
        %v7424 = vpop.permute.xlu0 %7423
        %7425 = vrot.lane.b32.xlu0 %v7340, 127
        %v7426 = vpop.permute.xlu0 %7425
        %7427 = vrot.lane.b32.xlu0 %v7341, 127
        %v7428 = vpop.permute.xlu0 %7427
        %7429 = vrot.lane.b32.xlu0 %v7342, 127
        %v7430 = vpop.permute.xlu0 %7429
        %7431 = vrot.lane.b32.xlu0 %v7343, 127
        %v7432 = vpop.permute.xlu0 %7431
        %7433 = vrot.lane.b32.xlu0 %v7344, 127
        %v7434 = vpop.permute.xlu0 %7433
        %7435 = vrot.lane.b32.xlu0 %v7345, 127
        %v7436 = vpop.permute.xlu0 %7435
        %7437 = vrot.lane.b32.xlu0 %v7346, 127
        %v7438 = vpop.permute.xlu0 %7437
        %7439 = vrot.lane.b32.xlu0 %v7347, 127
        %v7440 = vpop.permute.xlu0 %7439
        %7441 = vrot.lane.b32.xlu0 %v7348, 127
        %v7442 = vpop.permute.xlu0 %7441
        %7443 = vrot.lane.b32.xlu0 %v7349, 127
        %v7444 = vpop.permute.xlu0 %7443
        %7445 = vrot.lane.b32.xlu0 %v7350, 127
        %v7446 = vpop.permute.xlu0 %7445
        %v7479 = vmul.f32 %v7319, %v7384
        %v7480 = vmul.f32 %v7320, %v7386
        %v7481 = vmul.f32 %v7321, %v7388
        %v7482 = vmul.f32 %v7322, %v7390
        %v7483 = vmul.f32 %v7323, %v7392
        %v7484 = vmul.f32 %v7324, %v7394
        %v7485 = vmul.f32 %v7325, %v7396
        %v7486 = vmul.f32 %v7326, %v7398
        %v7487 = vmul.f32 %v7327, %v7400
        %v7488 = vmul.f32 %v7328, %v7402
        %v7489 = vmul.f32 %v7329, %v7404
        %v7490 = vmul.f32 %v7330, %v7406
        %v7491 = vmul.f32 %v7331, %v7408
        %v7492 = vmul.f32 %v7332, %v7410
        %v7493 = vmul.f32 %v7333, %v7412
        %v7494 = vmul.f32 %v7334, %v7414
        %v7495 = vmul.f32 %v7335, %v7416
        %v7496 = vmul.f32 %v7336, %v7418
        %v7497 = vmul.f32 %v7337, %v7420
        %v7498 = vmul.f32 %v7338, %v7422
        %v7499 = vmul.f32 %v7339, %v7424
        %v7500 = vmul.f32 %v7340, %v7426
        %v7501 = vmul.f32 %v7341, %v7428
        %v7502 = vmul.f32 %v7342, %v7430
        %v7503 = vmul.f32 %v7343, %v7432
        %v7504 = vmul.f32 %v7344, %v7434
        %v7505 = vmul.f32 %v7345, %v7436
        %v7506 = vmul.f32 %v7346, %v7438
        %v7507 = vmul.f32 %v7347, %v7440
        %v7508 = vmul.f32 %v7348, %v7442
        %v7509 = vmul.f32 %v7349, %v7444
        %v7510 = vmul.f32 %v7350, %v7446
        %7511 = vset.pattern.permute.xlu0 1
        %7512 = vperm.xlu0 %7511, %v381
        %v7513 = vpop.permute.xlu0 %7512
        %7515 = vset.pattern.permute.xlu0 1
        %7516 = vperm.xlu0 %7515, %v382
        %v7517 = vpop.permute.xlu0 %7516
        %7519 = vset.pattern.permute.xlu0 1
        %7520 = vperm.xlu0 %7519, %v383
        %v7521 = vpop.permute.xlu0 %7520
        %7523 = vset.pattern.permute.xlu0 1
        %7524 = vperm.xlu0 %7523, %v384
        %v7525 = vpop.permute.xlu0 %7524
        %7527 = vset.pattern.permute.xlu0 1
        %7528 = vperm.xlu0 %7527, %v385
        %v7529 = vpop.permute.xlu0 %7528
        %7531 = vset.pattern.permute.xlu0 1
        %7532 = vperm.xlu0 %7531, %v386
        %v7533 = vpop.permute.xlu0 %7532
        %7535 = vset.pattern.permute.xlu0 1
        %7536 = vperm.xlu0 %7535, %v387
        %v7537 = vpop.permute.xlu0 %7536
        %7539 = vset.pattern.permute.xlu0 1
        %7540 = vperm.xlu0 %7539, %v388
        %v7541 = vpop.permute.xlu0 %7540
        %7543 = vset.pattern.permute.xlu0 1
        %7544 = vperm.xlu0 %7543, %v389
        %v7545 = vpop.permute.xlu0 %7544
        %7547 = vset.pattern.permute.xlu0 1
        %7548 = vperm.xlu0 %7547, %v390
        %v7549 = vpop.permute.xlu0 %7548
        %7551 = vset.pattern.permute.xlu0 1
        %7552 = vperm.xlu0 %7551, %v391
        %v7553 = vpop.permute.xlu0 %7552
        %7555 = vset.pattern.permute.xlu0 1
        %7556 = vperm.xlu0 %7555, %v392
        %v7557 = vpop.permute.xlu0 %7556
        %7559 = vset.pattern.permute.xlu0 1
        %7560 = vperm.xlu0 %7559, %v393
        %v7561 = vpop.permute.xlu0 %7560
        %7563 = vset.pattern.permute.xlu0 1
        %7564 = vperm.xlu0 %7563, %v394
        %v7565 = vpop.permute.xlu0 %7564
        %7567 = vset.pattern.permute.xlu0 1
        %7568 = vperm.xlu0 %7567, %v395
        %v7569 = vpop.permute.xlu0 %7568
        %7571 = vset.pattern.permute.xlu0 1
        %7572 = vperm.xlu0 %7571, %v396
        %v7573 = vpop.permute.xlu0 %7572
        %7575 = vset.pattern.permute.xlu0 1
        %7576 = vperm.xlu0 %7575, %v397
        %v7577 = vpop.permute.xlu0 %7576
        %7579 = vset.pattern.permute.xlu0 1
        %7580 = vperm.xlu0 %7579, %v398
        %v7581 = vpop.permute.xlu0 %7580
        %7583 = vset.pattern.permute.xlu0 1
        %7584 = vperm.xlu0 %7583, %v399
        %v7585 = vpop.permute.xlu0 %7584
        %7587 = vset.pattern.permute.xlu0 1
        %7588 = vperm.xlu0 %7587, %v400
        %v7589 = vpop.permute.xlu0 %7588
        %7591 = vset.pattern.permute.xlu0 1
        %7592 = vperm.xlu0 %7591, %v401
        %v7593 = vpop.permute.xlu0 %7592
        %7595 = vset.pattern.permute.xlu0 1
        %7596 = vperm.xlu0 %7595, %v402
        %v7597 = vpop.permute.xlu0 %7596
        %7599 = vset.pattern.permute.xlu0 1
        %7600 = vperm.xlu0 %7599, %v403
        %v7601 = vpop.permute.xlu0 %7600
        %7603 = vset.pattern.permute.xlu0 1
        %7604 = vperm.xlu0 %7603, %v404
        %v7605 = vpop.permute.xlu0 %7604
        %7607 = vset.pattern.permute.xlu0 1
        %7608 = vperm.xlu0 %7607, %v405
        %v7609 = vpop.permute.xlu0 %7608
        %7611 = vset.pattern.permute.xlu0 1
        %7612 = vperm.xlu0 %7611, %v406
        %v7613 = vpop.permute.xlu0 %7612
        %7615 = vset.pattern.permute.xlu0 1
        %7616 = vperm.xlu0 %7615, %v407
        %v7617 = vpop.permute.xlu0 %7616
        %7619 = vset.pattern.permute.xlu0 1
        %7620 = vperm.xlu0 %7619, %v408
        %v7621 = vpop.permute.xlu0 %7620
        %7623 = vset.pattern.permute.xlu0 1
        %7624 = vperm.xlu0 %7623, %v409
        %v7625 = vpop.permute.xlu0 %7624
        %7627 = vset.pattern.permute.xlu0 1
        %7628 = vperm.xlu0 %7627, %v410
        %v7629 = vpop.permute.xlu0 %7628
        %7631 = vset.pattern.permute.xlu0 1
        %7632 = vperm.xlu0 %7631, %v411
        %v7633 = vpop.permute.xlu0 %7632
        %7635 = vset.pattern.permute.xlu0 1
        %7636 = vperm.xlu0 %7635, %v412
        %v7637 = vpop.permute.xlu0 %7636
        %v7639 = vmin.f32 %v7513, %v353
        %v7640 = vmin.f32 %v7517, %v354
        %v7641 = vmin.f32 %v7521, %v353
        %v7642 = vmin.f32 %v7525, %v354
        %v7643 = vmin.f32 %v7529, %v353
        %v7644 = vmin.f32 %v7533, %v354
        %v7645 = vmin.f32 %v7537, %v353
        %v7646 = vmin.f32 %v7541, %v354
        %v7647 = vmin.f32 %v7545, %v353
        %v7648 = vmin.f32 %v7549, %v354
        %v7649 = vmin.f32 %v7553, %v353
        %v7650 = vmin.f32 %v7557, %v354
        %v7651 = vmin.f32 %v7561, %v353
        %v7652 = vmin.f32 %v7565, %v354
        %v7653 = vmin.f32 %v7569, %v353
        %v7654 = vmin.f32 %v7573, %v354
        %v7655 = vmin.f32 %v7577, %v353
        %v7656 = vmin.f32 %v7581, %v354
        %v7657 = vmin.f32 %v7585, %v353
        %v7658 = vmin.f32 %v7589, %v354
        %v7659 = vmin.f32 %v7593, %v353
        %v7660 = vmin.f32 %v7597, %v354
        %v7661 = vmin.f32 %v7601, %v353
        %v7662 = vmin.f32 %v7605, %v354
        %v7663 = vmin.f32 %v7609, %v353
        %v7664 = vmin.f32 %v7613, %v354
        %v7665 = vmin.f32 %v7617, %v353
        %v7666 = vmin.f32 %v7621, %v354
        %v7667 = vmin.f32 %v7625, %v353
        %v7668 = vmin.f32 %v7629, %v354
        %v7669 = vmin.f32 %v7633, %v353
        %v7670 = vmin.f32 %v7637, %v354
        %7671 = vset.pattern.permute.xlu0 3
        %7672 = vperm.xlu0 %7671, %v381
        %v7673 = vpop.permute.xlu0 %7672
        %7675 = vset.pattern.permute.xlu0 3
        %7676 = vperm.xlu0 %7675, %v382
        %v7677 = vpop.permute.xlu0 %7676
        %7679 = vset.pattern.permute.xlu0 3
        %7680 = vperm.xlu0 %7679, %v383
        %v7681 = vpop.permute.xlu0 %7680
        %7683 = vset.pattern.permute.xlu0 3
        %7684 = vperm.xlu0 %7683, %v384
        %v7685 = vpop.permute.xlu0 %7684
        %7687 = vset.pattern.permute.xlu0 3
        %7688 = vperm.xlu0 %7687, %v385
        %v7689 = vpop.permute.xlu0 %7688
        %7691 = vset.pattern.permute.xlu0 3
        %7692 = vperm.xlu0 %7691, %v386
        %v7693 = vpop.permute.xlu0 %7692
        %7695 = vset.pattern.permute.xlu0 3
        %7696 = vperm.xlu0 %7695, %v387
        %v7697 = vpop.permute.xlu0 %7696
        %7699 = vset.pattern.permute.xlu0 3
        %7700 = vperm.xlu0 %7699, %v388
        %v7701 = vpop.permute.xlu0 %7700
        %7703 = vset.pattern.permute.xlu0 3
        %7704 = vperm.xlu0 %7703, %v389
        %v7705 = vpop.permute.xlu0 %7704
        %7707 = vset.pattern.permute.xlu0 3
        %7708 = vperm.xlu0 %7707, %v390
        %v7709 = vpop.permute.xlu0 %7708
        %7711 = vset.pattern.permute.xlu0 3
        %7712 = vperm.xlu0 %7711, %v391
        %v7713 = vpop.permute.xlu0 %7712
        %7715 = vset.pattern.permute.xlu0 3
        %7716 = vperm.xlu0 %7715, %v392
        %v7717 = vpop.permute.xlu0 %7716
        %7719 = vset.pattern.permute.xlu0 3
        %7720 = vperm.xlu0 %7719, %v393
        %v7721 = vpop.permute.xlu0 %7720
        %7723 = vset.pattern.permute.xlu0 3
        %7724 = vperm.xlu0 %7723, %v394
        %v7725 = vpop.permute.xlu0 %7724
        %7727 = vset.pattern.permute.xlu0 3
        %7728 = vperm.xlu0 %7727, %v395
        %v7729 = vpop.permute.xlu0 %7728
        %7731 = vset.pattern.permute.xlu0 3
        %7732 = vperm.xlu0 %7731, %v396
        %v7733 = vpop.permute.xlu0 %7732
        %7735 = vset.pattern.permute.xlu0 3
        %7736 = vperm.xlu0 %7735, %v397
        %v7737 = vpop.permute.xlu0 %7736
        %7739 = vset.pattern.permute.xlu0 3
        %7740 = vperm.xlu0 %7739, %v398
        %v7741 = vpop.permute.xlu0 %7740
        %7743 = vset.pattern.permute.xlu0 3
        %7744 = vperm.xlu0 %7743, %v399
        %v7745 = vpop.permute.xlu0 %7744
        %7747 = vset.pattern.permute.xlu0 3
        %7748 = vperm.xlu0 %7747, %v400
        %v7749 = vpop.permute.xlu0 %7748
        %7751 = vset.pattern.permute.xlu0 3
        %7752 = vperm.xlu0 %7751, %v401
        %v7753 = vpop.permute.xlu0 %7752
        %7755 = vset.pattern.permute.xlu0 3
        %7756 = vperm.xlu0 %7755, %v402
        %v7757 = vpop.permute.xlu0 %7756
        %7759 = vset.pattern.permute.xlu0 3
        %7760 = vperm.xlu0 %7759, %v403
        %v7761 = vpop.permute.xlu0 %7760
        %7763 = vset.pattern.permute.xlu0 3
        %7764 = vperm.xlu0 %7763, %v404
        %v7765 = vpop.permute.xlu0 %7764
        %7767 = vset.pattern.permute.xlu0 3
        %7768 = vperm.xlu0 %7767, %v405
        %v7769 = vpop.permute.xlu0 %7768
        %7771 = vset.pattern.permute.xlu0 3
        %7772 = vperm.xlu0 %7771, %v406
        %v7773 = vpop.permute.xlu0 %7772
        %7775 = vset.pattern.permute.xlu0 3
        %7776 = vperm.xlu0 %7775, %v407
        %v7777 = vpop.permute.xlu0 %7776
        %7779 = vset.pattern.permute.xlu0 3
        %7780 = vperm.xlu0 %7779, %v408
        %v7781 = vpop.permute.xlu0 %7780
        %7783 = vset.pattern.permute.xlu0 3
        %7784 = vperm.xlu0 %7783, %v409
        %v7785 = vpop.permute.xlu0 %7784
        %7787 = vset.pattern.permute.xlu0 3
        %7788 = vperm.xlu0 %7787, %v410
        %v7789 = vpop.permute.xlu0 %7788
        %7791 = vset.pattern.permute.xlu0 3
        %7792 = vperm.xlu0 %7791, %v411
        %v7793 = vpop.permute.xlu0 %7792
        %7795 = vset.pattern.permute.xlu0 3
        %7796 = vperm.xlu0 %7795, %v412
        %v7797 = vpop.permute.xlu0 %7796
        %v7799 = vmin.f32 %v7673, %v359
        %v7800 = vmin.f32 %v7677, %v360
        %v7801 = vmin.f32 %v7681, %v359
        %v7802 = vmin.f32 %v7685, %v360
        %v7803 = vmin.f32 %v7689, %v359
        %v7804 = vmin.f32 %v7693, %v360
        %v7805 = vmin.f32 %v7697, %v359
        %v7806 = vmin.f32 %v7701, %v360
        %v7807 = vmin.f32 %v7705, %v359
        %v7808 = vmin.f32 %v7709, %v360
        %v7809 = vmin.f32 %v7713, %v359
        %v7810 = vmin.f32 %v7717, %v360
        %v7811 = vmin.f32 %v7721, %v359
        %v7812 = vmin.f32 %v7725, %v360
        %v7813 = vmin.f32 %v7729, %v359
        %v7814 = vmin.f32 %v7733, %v360
        %v7815 = vmin.f32 %v7737, %v359
        %v7816 = vmin.f32 %v7741, %v360
        %v7817 = vmin.f32 %v7745, %v359
        %v7818 = vmin.f32 %v7749, %v360
        %v7819 = vmin.f32 %v7753, %v359
        %v7820 = vmin.f32 %v7757, %v360
        %v7821 = vmin.f32 %v7761, %v359
        %v7822 = vmin.f32 %v7765, %v360
        %v7823 = vmin.f32 %v7769, %v359
        %v7824 = vmin.f32 %v7773, %v360
        %v7825 = vmin.f32 %v7777, %v359
        %v7826 = vmin.f32 %v7781, %v360
        %v7827 = vmin.f32 %v7785, %v359
        %v7828 = vmin.f32 %v7789, %v360
        %v7829 = vmin.f32 %v7793, %v359
        %v7830 = vmin.f32 %v7797, %v360
        %v7831 = vadd.f32 %v7639, %v7799
        %v7832 = vadd.f32 %v7640, %v7800
        %v7833 = vadd.f32 %v7641, %v7801
        %v7834 = vadd.f32 %v7642, %v7802
        %v7835 = vadd.f32 %v7643, %v7803
        %v7836 = vadd.f32 %v7644, %v7804
        %v7837 = vadd.f32 %v7645, %v7805
        %v7838 = vadd.f32 %v7646, %v7806
        %v7839 = vadd.f32 %v7647, %v7807
        %v7840 = vadd.f32 %v7648, %v7808
        %v7841 = vadd.f32 %v7649, %v7809
        %v7842 = vadd.f32 %v7650, %v7810
        %v7843 = vadd.f32 %v7651, %v7811
        %v7844 = vadd.f32 %v7652, %v7812
        %v7845 = vadd.f32 %v7653, %v7813
        %v7846 = vadd.f32 %v7654, %v7814
        %v7847 = vadd.f32 %v7655, %v7815
        %v7848 = vadd.f32 %v7656, %v7816
        %v7849 = vadd.f32 %v7657, %v7817
        %v7850 = vadd.f32 %v7658, %v7818
        %v7851 = vadd.f32 %v7659, %v7819
        %v7852 = vadd.f32 %v7660, %v7820
        %v7853 = vadd.f32 %v7661, %v7821
        %v7854 = vadd.f32 %v7662, %v7822
        %v7855 = vadd.f32 %v7663, %v7823
        %v7856 = vadd.f32 %v7664, %v7824
        %v7857 = vadd.f32 %v7665, %v7825
        %v7858 = vadd.f32 %v7666, %v7826
        %v7859 = vadd.f32 %v7667, %v7827
        %v7860 = vadd.f32 %v7668, %v7828
        %v7861 = vadd.f32 %v7669, %v7829
        %v7862 = vadd.f32 %v7670, %v7830
        %7863 = vset.pattern.permute.xlu0 0
        %7864 = vperm.xlu0 %7863, %v381
        %v7865 = vpop.permute.xlu0 %7864
        %7867 = vset.pattern.permute.xlu0 0
        %7868 = vperm.xlu0 %7867, %v382
        %v7869 = vpop.permute.xlu0 %7868
        %7871 = vset.pattern.permute.xlu0 0
        %7872 = vperm.xlu0 %7871, %v383
        %v7873 = vpop.permute.xlu0 %7872
        %7875 = vset.pattern.permute.xlu0 0
        %7876 = vperm.xlu0 %7875, %v384
        %v7877 = vpop.permute.xlu0 %7876
        %7879 = vset.pattern.permute.xlu0 0
        %7880 = vperm.xlu0 %7879, %v385
        %v7881 = vpop.permute.xlu0 %7880
        %7883 = vset.pattern.permute.xlu0 0
        %7884 = vperm.xlu0 %7883, %v386
        %v7885 = vpop.permute.xlu0 %7884
        %7887 = vset.pattern.permute.xlu0 0
        %7888 = vperm.xlu0 %7887, %v387
        %v7889 = vpop.permute.xlu0 %7888
        %7891 = vset.pattern.permute.xlu0 0
        %7892 = vperm.xlu0 %7891, %v388
        %v7893 = vpop.permute.xlu0 %7892
        %7895 = vset.pattern.permute.xlu0 0
        %7896 = vperm.xlu0 %7895, %v389
        %v7897 = vpop.permute.xlu0 %7896
        %7899 = vset.pattern.permute.xlu0 0
        %7900 = vperm.xlu0 %7899, %v390
        %v7901 = vpop.permute.xlu0 %7900
        %7903 = vset.pattern.permute.xlu0 0
        %7904 = vperm.xlu0 %7903, %v391
        %v7905 = vpop.permute.xlu0 %7904
        %7907 = vset.pattern.permute.xlu0 0
        %7908 = vperm.xlu0 %7907, %v392
        %v7909 = vpop.permute.xlu0 %7908
        %7911 = vset.pattern.permute.xlu0 0
        %7912 = vperm.xlu0 %7911, %v393
        %v7913 = vpop.permute.xlu0 %7912
        %7915 = vset.pattern.permute.xlu0 0
        %7916 = vperm.xlu0 %7915, %v394
        %v7917 = vpop.permute.xlu0 %7916
        %7919 = vset.pattern.permute.xlu0 0
        %7920 = vperm.xlu0 %7919, %v395
        %v7921 = vpop.permute.xlu0 %7920
        %7923 = vset.pattern.permute.xlu0 0
        %7924 = vperm.xlu0 %7923, %v396
        %v7925 = vpop.permute.xlu0 %7924
        %7927 = vset.pattern.permute.xlu0 0
        %7928 = vperm.xlu0 %7927, %v397
        %v7929 = vpop.permute.xlu0 %7928
        %7931 = vset.pattern.permute.xlu0 0
        %7932 = vperm.xlu0 %7931, %v398
        %v7933 = vpop.permute.xlu0 %7932
        %7935 = vset.pattern.permute.xlu0 0
        %7936 = vperm.xlu0 %7935, %v399
        %v7937 = vpop.permute.xlu0 %7936
        %7939 = vset.pattern.permute.xlu0 0
        %7940 = vperm.xlu0 %7939, %v400
        %v7941 = vpop.permute.xlu0 %7940
        %7943 = vset.pattern.permute.xlu0 0
        %7944 = vperm.xlu0 %7943, %v401
        %v7945 = vpop.permute.xlu0 %7944
        %7947 = vset.pattern.permute.xlu0 0
        %7948 = vperm.xlu0 %7947, %v402
        %v7949 = vpop.permute.xlu0 %7948
        %7951 = vset.pattern.permute.xlu0 0
        %7952 = vperm.xlu0 %7951, %v403
        %v7953 = vpop.permute.xlu0 %7952
        %7955 = vset.pattern.permute.xlu0 0
        %7956 = vperm.xlu0 %7955, %v404
        %v7957 = vpop.permute.xlu0 %7956
        %7959 = vset.pattern.permute.xlu0 0
        %7960 = vperm.xlu0 %7959, %v405
        %v7961 = vpop.permute.xlu0 %7960
        %7963 = vset.pattern.permute.xlu0 0
        %7964 = vperm.xlu0 %7963, %v406
        %v7965 = vpop.permute.xlu0 %7964
        %7967 = vset.pattern.permute.xlu0 0
        %7968 = vperm.xlu0 %7967, %v407
        %v7969 = vpop.permute.xlu0 %7968
        %7971 = vset.pattern.permute.xlu0 0
        %7972 = vperm.xlu0 %7971, %v408
        %v7973 = vpop.permute.xlu0 %7972
        %7975 = vset.pattern.permute.xlu0 0
        %7976 = vperm.xlu0 %7975, %v409
        %v7977 = vpop.permute.xlu0 %7976
        %7979 = vset.pattern.permute.xlu0 0
        %7980 = vperm.xlu0 %7979, %v410
        %v7981 = vpop.permute.xlu0 %7980
        %7983 = vset.pattern.permute.xlu0 0
        %7984 = vperm.xlu0 %7983, %v411
        %v7985 = vpop.permute.xlu0 %7984
        %7987 = vset.pattern.permute.xlu0 0
        %7988 = vperm.xlu0 %7987, %v412
        %v7989 = vpop.permute.xlu0 %7988
        %v7991 = vmin.f32 %v7865, %v350
        %v7992 = vmin.f32 %v7869, %v351
        %v7993 = vmin.f32 %v7873, %v350
        %v7994 = vmin.f32 %v7877, %v351
        %v7995 = vmin.f32 %v7881, %v350
        %v7996 = vmin.f32 %v7885, %v351
        %v7997 = vmin.f32 %v7889, %v350
        %v7998 = vmin.f32 %v7893, %v351
        %v7999 = vmin.f32 %v7897, %v350
        %v8000 = vmin.f32 %v7901, %v351
        %v8001 = vmin.f32 %v7905, %v350
        %v8002 = vmin.f32 %v7909, %v351
        %v8003 = vmin.f32 %v7913, %v350
        %v8004 = vmin.f32 %v7917, %v351
        %v8005 = vmin.f32 %v7921, %v350
        %v8006 = vmin.f32 %v7925, %v351
        %v8007 = vmin.f32 %v7929, %v350
        %v8008 = vmin.f32 %v7933, %v351
        %v8009 = vmin.f32 %v7937, %v350
        %v8010 = vmin.f32 %v7941, %v351
        %v8011 = vmin.f32 %v7945, %v350
        %v8012 = vmin.f32 %v7949, %v351
        %v8013 = vmin.f32 %v7953, %v350
        %v8014 = vmin.f32 %v7957, %v351
        %v8015 = vmin.f32 %v7961, %v350
        %v8016 = vmin.f32 %v7965, %v351
        %v8017 = vmin.f32 %v7969, %v350
        %v8018 = vmin.f32 %v7973, %v351
        %v8019 = vmin.f32 %v7977, %v350
        %v8020 = vmin.f32 %v7981, %v351
        %v8021 = vmin.f32 %v7985, %v350
        %v8022 = vmin.f32 %v7989, %v351
        %8023 = vset.pattern.permute.xlu0 2
        %8024 = vperm.xlu0 %8023, %v381
        %v8025 = vpop.permute.xlu0 %8024
        %8027 = vset.pattern.permute.xlu0 2
        %8028 = vperm.xlu0 %8027, %v382
        %v8029 = vpop.permute.xlu0 %8028
        %8031 = vset.pattern.permute.xlu0 2
        %8032 = vperm.xlu0 %8031, %v383
        %v8033 = vpop.permute.xlu0 %8032
        %8035 = vset.pattern.permute.xlu0 2
        %8036 = vperm.xlu0 %8035, %v384
        %v8037 = vpop.permute.xlu0 %8036
        %8039 = vset.pattern.permute.xlu0 2
        %8040 = vperm.xlu0 %8039, %v385
        %v8041 = vpop.permute.xlu0 %8040
        %8043 = vset.pattern.permute.xlu0 2
        %8044 = vperm.xlu0 %8043, %v386
        %v8045 = vpop.permute.xlu0 %8044
        %8047 = vset.pattern.permute.xlu0 2
        %8048 = vperm.xlu0 %8047, %v387
        %v8049 = vpop.permute.xlu0 %8048
        %8051 = vset.pattern.permute.xlu0 2
        %8052 = vperm.xlu0 %8051, %v388
        %v8053 = vpop.permute.xlu0 %8052
        %8055 = vset.pattern.permute.xlu0 2
        %8056 = vperm.xlu0 %8055, %v389
        %v8057 = vpop.permute.xlu0 %8056
        %8059 = vset.pattern.permute.xlu0 2
        %8060 = vperm.xlu0 %8059, %v390
        %v8061 = vpop.permute.xlu0 %8060
        %8063 = vset.pattern.permute.xlu0 2
        %8064 = vperm.xlu0 %8063, %v391
        %v8065 = vpop.permute.xlu0 %8064
        %8067 = vset.pattern.permute.xlu0 2
        %8068 = vperm.xlu0 %8067, %v392
        %v8069 = vpop.permute.xlu0 %8068
        %8071 = vset.pattern.permute.xlu0 2
        %8072 = vperm.xlu0 %8071, %v393
        %v8073 = vpop.permute.xlu0 %8072
        %8075 = vset.pattern.permute.xlu0 2
        %8076 = vperm.xlu0 %8075, %v394
        %v8077 = vpop.permute.xlu0 %8076
        %8079 = vset.pattern.permute.xlu0 2
        %8080 = vperm.xlu0 %8079, %v395
        %v8081 = vpop.permute.xlu0 %8080
        %8083 = vset.pattern.permute.xlu0 2
        %8084 = vperm.xlu0 %8083, %v396
        %v8085 = vpop.permute.xlu0 %8084
        %8087 = vset.pattern.permute.xlu0 2
        %8088 = vperm.xlu0 %8087, %v397
        %v8089 = vpop.permute.xlu0 %8088
        %8091 = vset.pattern.permute.xlu0 2
        %8092 = vperm.xlu0 %8091, %v398
        %v8093 = vpop.permute.xlu0 %8092
        %8095 = vset.pattern.permute.xlu0 2
        %8096 = vperm.xlu0 %8095, %v399
        %v8097 = vpop.permute.xlu0 %8096
        %8099 = vset.pattern.permute.xlu0 2
        %8100 = vperm.xlu0 %8099, %v400
        %v8101 = vpop.permute.xlu0 %8100
        %8103 = vset.pattern.permute.xlu0 2
        %8104 = vperm.xlu0 %8103, %v401
        %v8105 = vpop.permute.xlu0 %8104
        %8107 = vset.pattern.permute.xlu0 2
        %8108 = vperm.xlu0 %8107, %v402
        %v8109 = vpop.permute.xlu0 %8108
        %8111 = vset.pattern.permute.xlu0 2
        %8112 = vperm.xlu0 %8111, %v403
        %v8113 = vpop.permute.xlu0 %8112
        %8115 = vset.pattern.permute.xlu0 2
        %8116 = vperm.xlu0 %8115, %v404
        %v8117 = vpop.permute.xlu0 %8116
        %8119 = vset.pattern.permute.xlu0 2
        %8120 = vperm.xlu0 %8119, %v405
        %v8121 = vpop.permute.xlu0 %8120
        %8123 = vset.pattern.permute.xlu0 2
        %8124 = vperm.xlu0 %8123, %v406
        %v8125 = vpop.permute.xlu0 %8124
        %8127 = vset.pattern.permute.xlu0 2
        %8128 = vperm.xlu0 %8127, %v407
        %v8129 = vpop.permute.xlu0 %8128
        %8131 = vset.pattern.permute.xlu0 2
        %8132 = vperm.xlu0 %8131, %v408
        %v8133 = vpop.permute.xlu0 %8132
        %8135 = vset.pattern.permute.xlu0 2
        %8136 = vperm.xlu0 %8135, %v409
        %v8137 = vpop.permute.xlu0 %8136
        %8139 = vset.pattern.permute.xlu0 2
        %8140 = vperm.xlu0 %8139, %v410
        %v8141 = vpop.permute.xlu0 %8140
        %8143 = vset.pattern.permute.xlu0 2
        %8144 = vperm.xlu0 %8143, %v411
        %v8145 = vpop.permute.xlu0 %8144
        %8147 = vset.pattern.permute.xlu0 2
        %8148 = vperm.xlu0 %8147, %v412
        %v8149 = vpop.permute.xlu0 %8148
        %v8151 = vmin.f32 %v8025, %v356
        %v8152 = vmin.f32 %v8029, %v357
        %v8153 = vmin.f32 %v8033, %v356
        %v8154 = vmin.f32 %v8037, %v357
        %v8155 = vmin.f32 %v8041, %v356
        %v8156 = vmin.f32 %v8045, %v357
        %v8157 = vmin.f32 %v8049, %v356
        %v8158 = vmin.f32 %v8053, %v357
        %v8159 = vmin.f32 %v8057, %v356
        %v8160 = vmin.f32 %v8061, %v357
        %v8161 = vmin.f32 %v8065, %v356
        %v8162 = vmin.f32 %v8069, %v357
        %v8163 = vmin.f32 %v8073, %v356
        %v8164 = vmin.f32 %v8077, %v357
        %v8165 = vmin.f32 %v8081, %v356
        %v8166 = vmin.f32 %v8085, %v357
        %v8167 = vmin.f32 %v8089, %v356
        %v8168 = vmin.f32 %v8093, %v357
        %v8169 = vmin.f32 %v8097, %v356
        %v8170 = vmin.f32 %v8101, %v357
        %v8171 = vmin.f32 %v8105, %v356
        %v8172 = vmin.f32 %v8109, %v357
        %v8173 = vmin.f32 %v8113, %v356
        %v8174 = vmin.f32 %v8117, %v357
        %v8175 = vmin.f32 %v8121, %v356
        %v8176 = vmin.f32 %v8125, %v357
        %v8177 = vmin.f32 %v8129, %v356
        %v8178 = vmin.f32 %v8133, %v357
        %v8179 = vmin.f32 %v8137, %v356
        %v8180 = vmin.f32 %v8141, %v357
        %v8181 = vmin.f32 %v8145, %v356
        %v8182 = vmin.f32 %v8149, %v357
        %v8183 = vadd.f32 %v7991, %v8151
        %v8184 = vadd.f32 %v7992, %v8152
        %v8185 = vadd.f32 %v7993, %v8153
        %v8186 = vadd.f32 %v7994, %v8154
        %v8187 = vadd.f32 %v7995, %v8155
        %v8188 = vadd.f32 %v7996, %v8156
        %v8189 = vadd.f32 %v7997, %v8157
        %v8190 = vadd.f32 %v7998, %v8158
        %v8191 = vadd.f32 %v7999, %v8159
        %v8192 = vadd.f32 %v8000, %v8160
        %v8193 = vadd.f32 %v8001, %v8161
        %v8194 = vadd.f32 %v8002, %v8162
        %v8195 = vadd.f32 %v8003, %v8163
        %v8196 = vadd.f32 %v8004, %v8164
        %v8197 = vadd.f32 %v8005, %v8165
        %v8198 = vadd.f32 %v8006, %v8166
        %v8199 = vadd.f32 %v8007, %v8167
        %v8200 = vadd.f32 %v8008, %v8168
        %v8201 = vadd.f32 %v8009, %v8169
        %v8202 = vadd.f32 %v8010, %v8170
        %v8203 = vadd.f32 %v8011, %v8171
        %v8204 = vadd.f32 %v8012, %v8172
        %v8205 = vadd.f32 %v8013, %v8173
        %v8206 = vadd.f32 %v8014, %v8174
        %v8207 = vadd.f32 %v8015, %v8175
        %v8208 = vadd.f32 %v8016, %v8176
        %v8209 = vadd.f32 %v8017, %v8177
        %v8210 = vadd.f32 %v8018, %v8178
        %v8211 = vadd.f32 %v8019, %v8179
        %v8212 = vadd.f32 %v8020, %v8180
        %v8213 = vadd.f32 %v8021, %v8181
        %v8214 = vadd.f32 %v8022, %v8182
        %v8215 = vmul.f32 %v7831, %v8183
        %v8216 = vmul.f32 %v7832, %v8184
        %v8217 = vmul.f32 %v7833, %v8185
        %v8218 = vmul.f32 %v7834, %v8186
        %v8219 = vmul.f32 %v7835, %v8187
        %v8220 = vmul.f32 %v7836, %v8188
        %v8221 = vmul.f32 %v7837, %v8189
        %v8222 = vmul.f32 %v7838, %v8190
        %v8223 = vmul.f32 %v7839, %v8191
        %v8224 = vmul.f32 %v7840, %v8192
        %v8225 = vmul.f32 %v7841, %v8193
        %v8226 = vmul.f32 %v7842, %v8194
        %v8227 = vmul.f32 %v7843, %v8195
        %v8228 = vmul.f32 %v7844, %v8196
        %v8229 = vmul.f32 %v7845, %v8197
        %v8230 = vmul.f32 %v7846, %v8198
        %v8231 = vmul.f32 %v7847, %v8199
        %v8232 = vmul.f32 %v7848, %v8200
        %v8233 = vmul.f32 %v7849, %v8201
        %v8234 = vmul.f32 %v7850, %v8202
        %v8235 = vmul.f32 %v7851, %v8203
        %v8236 = vmul.f32 %v7852, %v8204
        %v8237 = vmul.f32 %v7853, %v8205
        %v8238 = vmul.f32 %v7854, %v8206
        %v8239 = vmul.f32 %v7855, %v8207
        %v8240 = vmul.f32 %v7856, %v8208
        %v8241 = vmul.f32 %v7857, %v8209
        %v8242 = vmul.f32 %v7858, %v8210
        %v8243 = vmul.f32 %v7859, %v8211
        %v8244 = vmul.f32 %v7860, %v8212
        %v8245 = vmul.f32 %v7861, %v8213
        %v8246 = vmul.f32 %v7862, %v8214
        %v8247 = vadd.f32 %v7479, 1.0
        %v8248 = vadd.f32 %v7480, 1.0
        %v8249 = vadd.f32 %v7481, 1.0
        %v8250 = vadd.f32 %v7482, 1.0
        %v8251 = vadd.f32 %v7483, 1.0
        %v8252 = vadd.f32 %v7484, 1.0
        %v8253 = vadd.f32 %v7485, 1.0
        %v8254 = vadd.f32 %v7486, 1.0
        %v8255 = vadd.f32 %v7487, 1.0
        %v8256 = vadd.f32 %v7488, 1.0
        %v8257 = vadd.f32 %v7489, 1.0
        %v8258 = vadd.f32 %v7490, 1.0
        %v8259 = vadd.f32 %v7491, 1.0
        %v8260 = vadd.f32 %v7492, 1.0
        %v8261 = vadd.f32 %v7493, 1.0
        %v8262 = vadd.f32 %v7494, 1.0
        %v8263 = vadd.f32 %v7495, 1.0
        %v8264 = vadd.f32 %v7496, 1.0
        %v8265 = vadd.f32 %v7497, 1.0
        %v8266 = vadd.f32 %v7498, 1.0
        %v8267 = vadd.f32 %v7499, 1.0
        %v8268 = vadd.f32 %v7500, 1.0
        %v8269 = vadd.f32 %v7501, 1.0
        %v8270 = vadd.f32 %v7502, 1.0
        %v8271 = vadd.f32 %v7503, 1.0
        %v8272 = vadd.f32 %v7504, 1.0
        %v8273 = vadd.f32 %v7505, 1.0
        %v8274 = vadd.f32 %v7506, 1.0
        %v8275 = vadd.f32 %v7507, 1.0
        %v8276 = vadd.f32 %v7508, 1.0
        %v8277 = vadd.f32 %v7509, 1.0
        %v8278 = vadd.f32 %v7510, 1.0
        %v8279 = vld [vmem:[#allocation3] sm:$0xff]
        %v8280 = vld [vmem:[#allocation3 + $0x8] sm:$0xff]
        %8282 = vset.pattern.permute.xlu0 0
        %8283 = vperm.xlu0 %8282, %v8247
        %v8284 = vpop.permute.xlu0 %8283
        %8287 = vset.pattern.permute.xlu0 0
        %8288 = vperm.xlu0 %8287, %v8248
        %v8289 = vpop.permute.xlu0 %8288
        %8292 = vset.pattern.permute.xlu0 0
        %8293 = vperm.xlu0 %8292, %v8249
        %v8294 = vpop.permute.xlu0 %8293
        %8297 = vset.pattern.permute.xlu0 0
        %8298 = vperm.xlu0 %8297, %v8250
        %v8299 = vpop.permute.xlu0 %8298
        %8302 = vset.pattern.permute.xlu0 0
        %8303 = vperm.xlu0 %8302, %v8251
        %v8304 = vpop.permute.xlu0 %8303
        %8307 = vset.pattern.permute.xlu0 0
        %8308 = vperm.xlu0 %8307, %v8252
        %v8309 = vpop.permute.xlu0 %8308
        %8312 = vset.pattern.permute.xlu0 0
        %8313 = vperm.xlu0 %8312, %v8253
        %v8314 = vpop.permute.xlu0 %8313
        %8317 = vset.pattern.permute.xlu0 0
        %8318 = vperm.xlu0 %8317, %v8254
        %v8319 = vpop.permute.xlu0 %8318
        %8322 = vset.pattern.permute.xlu0 0
        %8323 = vperm.xlu0 %8322, %v8255
        %v8324 = vpop.permute.xlu0 %8323
        %8327 = vset.pattern.permute.xlu0 0
        %8328 = vperm.xlu0 %8327, %v8256
        %v8329 = vpop.permute.xlu0 %8328
        %8332 = vset.pattern.permute.xlu0 0
        %8333 = vperm.xlu0 %8332, %v8257
        %v8334 = vpop.permute.xlu0 %8333
        %8337 = vset.pattern.permute.xlu0 0
        %8338 = vperm.xlu0 %8337, %v8258
        %v8339 = vpop.permute.xlu0 %8338
        %8342 = vset.pattern.permute.xlu0 0
        %8343 = vperm.xlu0 %8342, %v8259
        %v8344 = vpop.permute.xlu0 %8343
        %8347 = vset.pattern.permute.xlu0 0
        %8348 = vperm.xlu0 %8347, %v8260
        %v8349 = vpop.permute.xlu0 %8348
        %8352 = vset.pattern.permute.xlu0 0
        %8353 = vperm.xlu0 %8352, %v8261
        %v8354 = vpop.permute.xlu0 %8353
        %8357 = vset.pattern.permute.xlu0 0
        %8358 = vperm.xlu0 %8357, %v8262
        %v8359 = vpop.permute.xlu0 %8358
        %8362 = vset.pattern.permute.xlu0 0
        %8363 = vperm.xlu0 %8362, %v8263
        %v8364 = vpop.permute.xlu0 %8363
        %8367 = vset.pattern.permute.xlu0 0
        %8368 = vperm.xlu0 %8367, %v8264
        %v8369 = vpop.permute.xlu0 %8368
        %8372 = vset.pattern.permute.xlu0 0
        %8373 = vperm.xlu0 %8372, %v8265
        %v8374 = vpop.permute.xlu0 %8373
        %8377 = vset.pattern.permute.xlu0 0
        %8378 = vperm.xlu0 %8377, %v8266
        %v8379 = vpop.permute.xlu0 %8378
        %8382 = vset.pattern.permute.xlu0 0
        %8383 = vperm.xlu0 %8382, %v8267
        %v8384 = vpop.permute.xlu0 %8383
        %8387 = vset.pattern.permute.xlu0 0
        %8388 = vperm.xlu0 %8387, %v8268
        %v8389 = vpop.permute.xlu0 %8388
        %8392 = vset.pattern.permute.xlu0 0
        %8393 = vperm.xlu0 %8392, %v8269
        %v8394 = vpop.permute.xlu0 %8393
        %8397 = vset.pattern.permute.xlu0 0
        %8398 = vperm.xlu0 %8397, %v8270
        %v8399 = vpop.permute.xlu0 %8398
        %8402 = vset.pattern.permute.xlu0 0
        %8403 = vperm.xlu0 %8402, %v8271
        %v8404 = vpop.permute.xlu0 %8403
        %8407 = vset.pattern.permute.xlu0 0
        %8408 = vperm.xlu0 %8407, %v8272
        %v8409 = vpop.permute.xlu0 %8408
        %8412 = vset.pattern.permute.xlu0 0
        %8413 = vperm.xlu0 %8412, %v8273
        %v8414 = vpop.permute.xlu0 %8413
        %8417 = vset.pattern.permute.xlu0 0
        %8418 = vperm.xlu0 %8417, %v8274
        %v8419 = vpop.permute.xlu0 %8418
        %8422 = vset.pattern.permute.xlu0 0
        %8423 = vperm.xlu0 %8422, %v8275
        %v8424 = vpop.permute.xlu0 %8423
        %8427 = vset.pattern.permute.xlu0 0
        %8428 = vperm.xlu0 %8427, %v8276
        %v8429 = vpop.permute.xlu0 %8428
        %8432 = vset.pattern.permute.xlu0 0
        %8433 = vperm.xlu0 %8432, %v8277
        %v8434 = vpop.permute.xlu0 %8433
        %8437 = vset.pattern.permute.xlu0 0
        %8438 = vperm.xlu0 %8437, %v8278
        %v8439 = vpop.permute.xlu0 %8438
        %v8441 = vadd.f32 %v8284, %v8279
        %v8442 = vadd.f32 %v8289, %v8280
        %v8443 = vadd.f32 %v8294, %v8279
        %v8444 = vadd.f32 %v8299, %v8280
        %v8445 = vadd.f32 %v8304, %v8279
        %v8446 = vadd.f32 %v8309, %v8280
        %v8447 = vadd.f32 %v8314, %v8279
        %v8448 = vadd.f32 %v8319, %v8280
        %v8449 = vadd.f32 %v8324, %v8279
        %v8450 = vadd.f32 %v8329, %v8280
        %v8451 = vadd.f32 %v8334, %v8279
        %v8452 = vadd.f32 %v8339, %v8280
        %v8453 = vadd.f32 %v8344, %v8279
        %v8454 = vadd.f32 %v8349, %v8280
        %v8455 = vadd.f32 %v8354, %v8279
        %v8456 = vadd.f32 %v8359, %v8280
        %v8457 = vadd.f32 %v8364, %v8279
        %v8458 = vadd.f32 %v8369, %v8280
        %v8459 = vadd.f32 %v8374, %v8279
        %v8460 = vadd.f32 %v8379, %v8280
        %v8461 = vadd.f32 %v8384, %v8279
        %v8462 = vadd.f32 %v8389, %v8280
        %v8463 = vadd.f32 %v8394, %v8279
        %v8464 = vadd.f32 %v8399, %v8280
        %v8465 = vadd.f32 %v8404, %v8279
        %v8466 = vadd.f32 %v8409, %v8280
        %v8467 = vadd.f32 %v8414, %v8279
        %v8468 = vadd.f32 %v8419, %v8280
        %v8469 = vadd.f32 %v8424, %v8279
        %v8470 = vadd.f32 %v8429, %v8280
        %v8471 = vadd.f32 %v8434, %v8279
        %v8472 = vadd.f32 %v8439, %v8280
        %v8473 = vsub.f32 %v8441, %v8215
        %v8474 = vsub.f32 %v8442, %v8216
        %v8475 = vsub.f32 %v8443, %v8217
        %v8476 = vsub.f32 %v8444, %v8218
        %v8477 = vsub.f32 %v8445, %v8219
        %v8478 = vsub.f32 %v8446, %v8220
        %v8479 = vsub.f32 %v8447, %v8221
        %v8480 = vsub.f32 %v8448, %v8222
        %v8481 = vsub.f32 %v8449, %v8223
        %v8482 = vsub.f32 %v8450, %v8224
        %v8483 = vsub.f32 %v8451, %v8225
        %v8484 = vsub.f32 %v8452, %v8226
        %v8485 = vsub.f32 %v8453, %v8227
        %v8486 = vsub.f32 %v8454, %v8228
        %v8487 = vsub.f32 %v8455, %v8229
        %v8488 = vsub.f32 %v8456, %v8230
        %v8489 = vsub.f32 %v8457, %v8231
        %v8490 = vsub.f32 %v8458, %v8232
        %v8491 = vsub.f32 %v8459, %v8233
        %v8492 = vsub.f32 %v8460, %v8234
        %v8493 = vsub.f32 %v8461, %v8235
        %v8494 = vsub.f32 %v8462, %v8236
        %v8495 = vsub.f32 %v8463, %v8237
        %v8496 = vsub.f32 %v8464, %v8238
        %v8497 = vsub.f32 %v8465, %v8239
        %v8498 = vsub.f32 %v8466, %v8240
        %v8499 = vsub.f32 %v8467, %v8241
        %v8500 = vsub.f32 %v8468, %v8242
        %v8501 = vsub.f32 %v8469, %v8243
        %v8502 = vsub.f32 %v8470, %v8244
        %v8503 = vsub.f32 %v8471, %v8245
        %v8504 = vsub.f32 %v8472, %v8246
        %v8505 = vlog2.pop %v8473
        %v8506 = vmul.f32 %v8505, 0.6931472
        %v8507 = vlog2.pop %v8474
        %v8508 = vmul.f32 %v8507, 0.6931472
        %v8509 = vlog2.pop %v8475
        %v8510 = vmul.f32 %v8509, 0.6931472
        %v8511 = vlog2.pop %v8476
        %v8512 = vmul.f32 %v8511, 0.6931472
        %v8513 = vlog2.pop %v8477
        %v8514 = vmul.f32 %v8513, 0.6931472
        %v8515 = vlog2.pop %v8478
        %v8516 = vmul.f32 %v8515, 0.6931472
        %v8517 = vlog2.pop %v8479
        %v8518 = vmul.f32 %v8517, 0.6931472
        %v8519 = vlog2.pop %v8480
        %v8520 = vmul.f32 %v8519, 0.6931472
        %v8521 = vlog2.pop %v8481
        %v8522 = vmul.f32 %v8521, 0.6931472
        %v8523 = vlog2.pop %v8482
        %v8524 = vmul.f32 %v8523, 0.6931472
        %v8525 = vlog2.pop %v8483
        %v8526 = vmul.f32 %v8525, 0.6931472
        %v8527 = vlog2.pop %v8484
        %v8528 = vmul.f32 %v8527, 0.6931472
        %v8529 = vlog2.pop %v8485
        %v8530 = vmul.f32 %v8529, 0.6931472
        %v8531 = vlog2.pop %v8486
        %v8532 = vmul.f32 %v8531, 0.6931472
        %v8533 = vlog2.pop %v8487
        %v8534 = vmul.f32 %v8533, 0.6931472
        %v8535 = vlog2.pop %v8488
        %v8536 = vmul.f32 %v8535, 0.6931472
        %v8537 = vlog2.pop %v8489
        %v8538 = vmul.f32 %v8537, 0.6931472
        %v8539 = vlog2.pop %v8490
        %v8540 = vmul.f32 %v8539, 0.6931472
        %v8541 = vlog2.pop %v8491
        %v8542 = vmul.f32 %v8541, 0.6931472
        %v8543 = vlog2.pop %v8492
        %v8544 = vmul.f32 %v8543, 0.6931472
        %v8545 = vlog2.pop %v8493
        %v8546 = vmul.f32 %v8545, 0.6931472
        %v8547 = vlog2.pop %v8494
        %v8548 = vmul.f32 %v8547, 0.6931472
        %v8549 = vlog2.pop %v8495
        %v8550 = vmul.f32 %v8549, 0.6931472
        %v8551 = vlog2.pop %v8496
        %v8552 = vmul.f32 %v8551, 0.6931472
        %v8553 = vlog2.pop %v8497
        %v8554 = vmul.f32 %v8553, 0.6931472
        %v8555 = vlog2.pop %v8498
        %v8556 = vmul.f32 %v8555, 0.6931472
        %v8557 = vlog2.pop %v8499
        %v8558 = vmul.f32 %v8557, 0.6931472
        %v8559 = vlog2.pop %v8500
        %v8560 = vmul.f32 %v8559, 0.6931472
        %v8561 = vlog2.pop %v8501
        %v8562 = vmul.f32 %v8561, 0.6931472
        %v8563 = vlog2.pop %v8502
        %v8564 = vmul.f32 %v8563, 0.6931472
        %v8565 = vlog2.pop %v8503
        %v8566 = vmul.f32 %v8565, 0.6931472
        %v8567 = vlog2.pop %v8504
        %v8568 = vmul.f32 %v8567, 0.6931472
        %v8569 = vadd.f32 %v8215, 1.0
        %v8570 = vadd.f32 %v8216, 1.0
        %v8571 = vadd.f32 %v8217, 1.0
        %v8572 = vadd.f32 %v8218, 1.0
        %v8573 = vadd.f32 %v8219, 1.0
        %v8574 = vadd.f32 %v8220, 1.0
        %v8575 = vadd.f32 %v8221, 1.0
        %v8576 = vadd.f32 %v8222, 1.0
        %v8577 = vadd.f32 %v8223, 1.0
        %v8578 = vadd.f32 %v8224, 1.0
        %v8579 = vadd.f32 %v8225, 1.0
        %v8580 = vadd.f32 %v8226, 1.0
        %v8581 = vadd.f32 %v8227, 1.0
        %v8582 = vadd.f32 %v8228, 1.0
        %v8583 = vadd.f32 %v8229, 1.0
        %v8584 = vadd.f32 %v8230, 1.0
        %v8585 = vadd.f32 %v8231, 1.0
        %v8586 = vadd.f32 %v8232, 1.0
        %v8587 = vadd.f32 %v8233, 1.0
        %v8588 = vadd.f32 %v8234, 1.0
        %v8589 = vadd.f32 %v8235, 1.0
        %v8590 = vadd.f32 %v8236, 1.0
        %v8591 = vadd.f32 %v8237, 1.0
        %v8592 = vadd.f32 %v8238, 1.0
        %v8593 = vadd.f32 %v8239, 1.0
        %v8594 = vadd.f32 %v8240, 1.0
        %v8595 = vadd.f32 %v8241, 1.0
        %v8596 = vadd.f32 %v8242, 1.0
        %v8597 = vadd.f32 %v8243, 1.0
        %v8598 = vadd.f32 %v8244, 1.0
        %v8599 = vadd.f32 %v8245, 1.0
        %v8600 = vadd.f32 %v8246, 1.0
        %v8601 = vlog2.pop %v8569
        %v8602 = vmul.f32 %v8601, 0.6931472
        %v8603 = vlog2.pop %v8570
        %v8604 = vmul.f32 %v8603, 0.6931472
        %v8605 = vlog2.pop %v8571
        %v8606 = vmul.f32 %v8605, 0.6931472
        %v8607 = vlog2.pop %v8572
        %v8608 = vmul.f32 %v8607, 0.6931472
        %v8609 = vlog2.pop %v8573
        %v8610 = vmul.f32 %v8609, 0.6931472
        %v8611 = vlog2.pop %v8574
        %v8612 = vmul.f32 %v8611, 0.6931472
        %v8613 = vlog2.pop %v8575
        %v8614 = vmul.f32 %v8613, 0.6931472
        %v8615 = vlog2.pop %v8576
        %v8616 = vmul.f32 %v8615, 0.6931472
        %v8617 = vlog2.pop %v8577
        %v8618 = vmul.f32 %v8617, 0.6931472
        %v8619 = vlog2.pop %v8578
        %v8620 = vmul.f32 %v8619, 0.6931472
        %v8621 = vlog2.pop %v8579
        %v8622 = vmul.f32 %v8621, 0.6931472
        %v8623 = vlog2.pop %v8580
        %v8624 = vmul.f32 %v8623, 0.6931472
        %v8625 = vlog2.pop %v8581
        %v8626 = vmul.f32 %v8625, 0.6931472
        %v8627 = vlog2.pop %v8582
        %v8628 = vmul.f32 %v8627, 0.6931472
        %v8629 = vlog2.pop %v8583
        %v8630 = vmul.f32 %v8629, 0.6931472
        %v8631 = vlog2.pop %v8584
        %v8632 = vmul.f32 %v8631, 0.6931472
        %v8633 = vlog2.pop %v8585
        %v8634 = vmul.f32 %v8633, 0.6931472
        %v8635 = vlog2.pop %v8586
        %v8636 = vmul.f32 %v8635, 0.6931472
        %v8637 = vlog2.pop %v8587
        %v8638 = vmul.f32 %v8637, 0.6931472
        %v8639 = vlog2.pop %v8588
        %v8640 = vmul.f32 %v8639, 0.6931472
        %v8641 = vlog2.pop %v8589
        %v8642 = vmul.f32 %v8641, 0.6931472
        %v8643 = vlog2.pop %v8590
        %v8644 = vmul.f32 %v8643, 0.6931472
        %v8645 = vlog2.pop %v8591
        %v8646 = vmul.f32 %v8645, 0.6931472
        %v8647 = vlog2.pop %v8592
        %v8648 = vmul.f32 %v8647, 0.6931472
        %v8649 = vlog2.pop %v8593
        %v8650 = vmul.f32 %v8649, 0.6931472
        %v8651 = vlog2.pop %v8594
        %v8652 = vmul.f32 %v8651, 0.6931472
        %v8653 = vlog2.pop %v8595
        %v8654 = vmul.f32 %v8653, 0.6931472
        %v8655 = vlog2.pop %v8596
        %v8656 = vmul.f32 %v8655, 0.6931472
        %v8657 = vlog2.pop %v8597
        %v8658 = vmul.f32 %v8657, 0.6931472
        %v8659 = vlog2.pop %v8598
        %v8660 = vmul.f32 %v8659, 0.6931472
        %v8661 = vlog2.pop %v8599
        %v8662 = vmul.f32 %v8661, 0.6931472
        %v8663 = vlog2.pop %v8600
        %v8664 = vmul.f32 %v8663, 0.6931472
        %v8665 = vsub.f32 %v8506, %v8602
        %v8666 = vsub.f32 %v8508, %v8604
        %v8667 = vsub.f32 %v8510, %v8606
        %v8668 = vsub.f32 %v8512, %v8608
        %v8669 = vsub.f32 %v8514, %v8610
        %v8670 = vsub.f32 %v8516, %v8612
        %v8671 = vsub.f32 %v8518, %v8614
        %v8672 = vsub.f32 %v8520, %v8616
        %v8673 = vsub.f32 %v8522, %v8618
        %v8674 = vsub.f32 %v8524, %v8620
        %v8675 = vsub.f32 %v8526, %v8622
        %v8676 = vsub.f32 %v8528, %v8624
        %v8677 = vsub.f32 %v8530, %v8626
        %v8678 = vsub.f32 %v8532, %v8628
        %v8679 = vsub.f32 %v8534, %v8630
        %v8680 = vsub.f32 %v8536, %v8632
        %v8681 = vsub.f32 %v8538, %v8634
        %v8682 = vsub.f32 %v8540, %v8636
        %v8683 = vsub.f32 %v8542, %v8638
        %v8684 = vsub.f32 %v8544, %v8640
        %v8685 = vsub.f32 %v8546, %v8642
        %v8686 = vsub.f32 %v8548, %v8644
        %v8687 = vsub.f32 %v8550, %v8646
        %v8688 = vsub.f32 %v8552, %v8648
        %v8689 = vsub.f32 %v8554, %v8650
        %v8690 = vsub.f32 %v8556, %v8652
        %v8691 = vsub.f32 %v8558, %v8654
        %v8692 = vsub.f32 %v8560, %v8656
        %v8693 = vsub.f32 %v8562, %v8658
        %v8694 = vsub.f32 %v8564, %v8660
        %v8695 = vsub.f32 %v8566, %v8662
        %v8696 = vsub.f32 %v8568, %v8664
        %v8697 = vld [vmem:[#allocation2] sm:$0xff]
        %v8698 = vld [vmem:[#allocation2 + $0x8] sm:$0xff]
        %vm8699 = vcmask 130048
        %v8700 = vsel %vm8699, %v8665, 0.0
        %v8701 = vsel %vm8699, %v8667, 0.0
        %v8702 = vadd.f32 %v8700, %v8701
        %v8703 = vsel %vm8699, %v8669, 0.0
        %v8704 = vadd.f32 %v8702, %v8703
        %v8705 = vsel %vm8699, %v8671, 0.0
        %v8706 = vadd.f32 %v8704, %v8705
        %v8707 = vsel %vm8699, %v8673, 0.0
        %v8708 = vadd.f32 %v8706, %v8707
        %v8709 = vsel %vm8699, %v8675, 0.0
        %v8710 = vadd.f32 %v8708, %v8709
        %v8711 = vsel %vm8699, %v8677, 0.0
        %v8712 = vadd.f32 %v8710, %v8711
        %v8713 = vsel %vm8699, %v8679, 0.0
        %v8714 = vadd.f32 %v8712, %v8713
        %v8715 = vsel %vm8699, %v8681, 0.0
        %v8716 = vadd.f32 %v8714, %v8715
        %v8717 = vsel %vm8699, %v8683, 0.0
        %v8718 = vadd.f32 %v8716, %v8717
        %v8719 = vsel %vm8699, %v8685, 0.0
        %v8720 = vadd.f32 %v8718, %v8719
        %v8721 = vsel %vm8699, %v8687, 0.0
        %v8722 = vadd.f32 %v8720, %v8721
        %v8723 = vsel %vm8699, %v8689, 0.0
        %v8724 = vadd.f32 %v8722, %v8723
        %v8725 = vsel %vm8699, %v8691, 0.0
        %v8726 = vadd.f32 %v8724, %v8725
        %v8727 = vsel %vm8699, %v8693, 0.0
        %v8728 = vadd.f32 %v8726, %v8727
        %v8729 = vsel %vm8699, %v8695, 0.0
        %v8730 = vadd.f32 %v8728, %v8729
        %v8731 = vsel %vm8699, %v8666, 0.0
        %v8732 = vsel %vm8699, %v8668, 0.0
        %v8733 = vadd.f32 %v8731, %v8732
        %v8734 = vsel %vm8699, %v8670, 0.0
        %v8735 = vadd.f32 %v8733, %v8734
        %v8736 = vsel %vm8699, %v8672, 0.0
        %v8737 = vadd.f32 %v8735, %v8736
        %v8738 = vsel %vm8699, %v8674, 0.0
        %v8739 = vadd.f32 %v8737, %v8738
        %v8740 = vsel %vm8699, %v8676, 0.0
        %v8741 = vadd.f32 %v8739, %v8740
        %v8742 = vsel %vm8699, %v8678, 0.0
        %v8743 = vadd.f32 %v8741, %v8742
        %v8744 = vsel %vm8699, %v8680, 0.0
        %v8745 = vadd.f32 %v8743, %v8744
        %v8746 = vsel %vm8699, %v8682, 0.0
        %v8747 = vadd.f32 %v8745, %v8746
        %v8748 = vsel %vm8699, %v8684, 0.0
        %v8749 = vadd.f32 %v8747, %v8748
        %v8750 = vsel %vm8699, %v8686, 0.0
        %v8751 = vadd.f32 %v8749, %v8750
        %v8752 = vsel %vm8699, %v8688, 0.0
        %v8753 = vadd.f32 %v8751, %v8752
        %v8754 = vsel %vm8699, %v8690, 0.0
        %v8755 = vadd.f32 %v8753, %v8754
        %v8756 = vsel %vm8699, %v8692, 0.0
        %v8757 = vadd.f32 %v8755, %v8756
        %v8758 = vsel %vm8699, %v8694, 0.0
        %v8759 = vadd.f32 %v8757, %v8758
        %v8760 = vsel %vm8699, %v8696, 0.0
        %v8761 = vadd.f32 %v8759, %v8760
        %v8762 = vadd.f32 %v8697, %v8730
        %v8763 = vadd.f32 %v8698, %v8761
        %8764 = vst.msk [vmem:[#allocation2] sm:$0xff] %vm8699, %v8762
        %8765 = vst.msk [vmem:[#allocation2 + $0x8] sm:$0xff] %vm8699, %v8763
        // Predicated region
        $region45: #{tpu_custom_call.1} parent=39 // pred_check
          %p8766 = pneg %p361
        $region46: #{tpu_custom_call.1} parent=39 // pred_check_branch
          %8768 = sbr.rel (%p8766) target = $region48
        $region47: #{tpu_custom_call.1} parent=39 // pred_region
          %v8769 = vld [vmem:[%s320] sm:$0xff]
          %v8770 = vld [vmem:[%s320 + $0x8] sm:$0xff]
          %v8771 = vld [vmem:[%s330] sm:$0xff]
          %v8772 = vld [vmem:[%s330 + $0x8] sm:$0xff]
          %v8773 = vld [vmem:[%s325] sm:$0xff]
          %v8774 = vld [vmem:[%s325 + $0x8] sm:$0xff]
          %v8775 = vmul.f32 %v8769, %v8771
          %v8776 = vmul.f32 %v8770, %v8772
          %s8777 = scalar_lea.vmem %s348, 64
          %v8778 = vld [vmem:[%s8777] sm:$0xff]
          %v8779 = vld [vmem:[%s8777 + $0x8] sm:$0xff]
          %v8780 = vand.u32 2147483647, %v8778
          %vm8781 = vcmp.le.f32.partialorder %v8780, 0.7853982
          %vm8782 = vcmp.lt.s32.totalorder %v8778, 0
          %v8783 = vand.u32 %v8778, 2139095040
          %v8784 = vshrl.u32 %v8783, 23
          %v8785 = vsub.s32 %v8784, 127
          %v8786 = vand.u32 2147483647, %v8778
          %v8787 = vand.u32 %v8786, 8388607
          %v8788 = vor.u32 %v8787, 8388608
          %v8789 = vsub.s32 0, %v8788
          %v8790 = vadd.s32 %v8785, 1
          %vm8791 = vcmp.gt.s32.totalorder %v8790, 0
          %v8792 = vsel %vm8791, %v8790, 0
          %v8793 = vshrl.u32 %v8792, 5
          %v8794 = vand.u32 %v8792, 31
          %v8795 = vsub.s32 32, %v8794
          %v8796 = vshrl.u32 683565275, %v8795
          %v8797 = vshll.u32 683565275, %v8794
          %v8798 = vshrl.u32 2475754826, %v8795
          %v8799 = vor.u32 %v8797, %v8798
          %v8800 = vshll.u32 2475754826, %v8794
          %v8801 = vshrl.u32 2131351028, %v8795
          %v8802 = vor.u32 %v8800, %v8801
          %v8803 = vshll.u32 2131351028, %v8794
          %v8804 = vshrl.u32 2102212464, %v8795
          %v8805 = vor.u32 %v8803, %v8804
          %v8806 = vshll.u32 2102212464, %v8794
          %v8807 = vshrl.u32 920167782, %v8795
          %v8808 = vor.u32 %v8806, %v8807
          %v8809 = vshll.u32 920167782, %v8794
          %v8810 = vshrl.u32 1326507024, %v8795
          %v8811 = vor.u32 %v8809, %v8810
          %vm8812 = vcmp.lt.s32.totalorder %v8793, 1
          %vm8813 = vcmp.lt.s32.totalorder %v8793, 2
          %vm8814 = vcmp.lt.s32.totalorder %v8793, 3
          %vm8815 = vcmp.lt.s32.totalorder %v8793, 4
          %v8816 = vsel %vm8812, %v8796, %v8799
          %v8817 = vsel %vm8815, %v8805, 2102212464
          %v8818 = vsel %vm8814, %v8802, %v8817
          %v8819 = vsel %vm8813, %v8816, %v8818
          %v8820 = vsel %vm8812, %v8799, %v8802
          %v8821 = vsel %vm8815, %v8808, 920167782
          %v8822 = vsel %vm8814, %v8805, %v8821
          %v8823 = vsel %vm8813, %v8820, %v8822
          %v8824 = vsel %vm8812, %v8802, %v8805
          %v8825 = vsel %vm8815, %v8811, 1326507024
          %v8826 = vsel %vm8814, %v8808, %v8825
          %v8827 = vsel %vm8813, %v8824, %v8826
          %v8828 = vshll.u32 %v8788, 8
          %v8829 = vmul.u32.u64.compose %v8828, %v8827
          %v8830 = vextract.low.u32 %v8829
          %v8831 = vextract.high.u32 %v8829
          %v8832 = vmul.u32.u64.compose %v8828, %v8823
          %v8833 = vextract.low.u32 %v8832
          %v8834 = vextract.high.u32 %v8832
          %v8835 = vmul.u32 %v8828, %v8819
          %v8836 = vadd.s32 %v8831, %v8833
          %vm8837 = vc.u32 %v8831, %v8833
          %v8838 = vadd.s32 %v8834, 1
          %v8839 = vsel %vm8837, %v8838, %v8834
          %v8840 = vadd.s32 %v8835, %v8839
          %v8841 = vadd.s32 %v8840, 536870912
          %v8842 = vshrl.u32 %v8841, 30
          %v8843 = vshll.u32 %v8842, 30
          %v8844 = vsub.s32 %v8840, %v8843
          %vm8845 = vcmp.lt.s32.totalorder %v8844, 0
          %v8846 = vsub.s32 0, %v8844
          %v8847 = vsel %vm8845, %v8846, %v8844
          %v8848 = vclz %v8847
          %v8849 = vsub.s32 %v8848, 2
          %vm8850 = vcmp.gt.s32.totalorder 0, %v8849
          %v8851 = vsel %vm8850, 0, %v8849
          %v8852 = vsub.s32 32, %v8851
          %v8853 = vshll.u32 %v8844, %v8851
          %v8854 = vshrl.u32 %v8836, %v8852
          %v8855 = vor.u32 %v8853, %v8854
          %v8856 = vsub.s32 4294967266, %v8851
          %v8857 = vadd.s32 %v8856, 127
          %v8858 = vshll.u32 %v8857, 23
          %v8859 = vor.u32 4788187, %v8858
          %v8860 = vand.u32 2147483647, %v8859
          %v8862 = vcvt.s32.f32 %v8855
          %v8863 = vmul.f32 %v8862, %v8860
          %v8864 = vxor.u32 %v8863, 2147483648
          %v8865 = vsel %vm8782, %v8864, %v8863
          %v8866 = vsub.s32 4, %v8842
          %v8867 = vsel %vm8782, %v8866, %v8842
          %v8868 = vsel %vm8781, %v8778, %v8865
          %v8869 = vsel %vm8781, 0, %v8867
          %v8870 = vcosq.f32.pop %v8868
          %v8871 = vsinq.f32.pop %v8868
          %vm8872 = vweird.f32 %v8778
          %v8873 = vand.u32 %v8869, 3
          %vm8874 = vcmp.lt.s32.totalorder %v8873, 2
          %vm8875 = vcmp.eq.s32.totalorder %v8873, 0
          %v8876 = vxor.u32 %v8871, 2147483648
          %v8877 = vsel %vm8875, %v8870, %v8876
          %vm8878 = vcmp.eq.s32.totalorder %v8873, 2
          %v8879 = vxor.u32 %v8870, 2147483648
          %v8880 = vsel %vm8878, %v8879, %v8871
          %v8881 = vsel %vm8874, %v8877, %v8880
          %v8882 = vsel %vm8872, nan, %v8881
          %v8883 = vand.u32 2147483647, %v8779
          %vm8884 = vcmp.le.f32.partialorder %v8883, 0.7853982
          %vm8885 = vcmp.lt.s32.totalorder %v8779, 0
          %v8886 = vand.u32 %v8779, 2139095040
          %v8887 = vshrl.u32 %v8886, 23
          %v8888 = vsub.s32 %v8887, 127
          %v8889 = vand.u32 2147483647, %v8779
          %v8890 = vand.u32 %v8889, 8388607
          %v8891 = vor.u32 %v8890, 8388608
          %v8892 = vsub.s32 0, %v8891
          %v8893 = vadd.s32 %v8888, 1
          %vm8894 = vcmp.gt.s32.totalorder %v8893, 0
          %v8895 = vsel %vm8894, %v8893, 0
          %v8896 = vshrl.u32 %v8895, 5
          %v8897 = vand.u32 %v8895, 31
          %v8898 = vsub.s32 32, %v8897
          %v8899 = vshrl.u32 683565275, %v8898
          %v8900 = vshll.u32 683565275, %v8897
          %v8901 = vshrl.u32 2475754826, %v8898
          %v8902 = vor.u32 %v8900, %v8901
          %v8903 = vshll.u32 2475754826, %v8897
          %v8904 = vshrl.u32 2131351028, %v8898
          %v8905 = vor.u32 %v8903, %v8904
          %v8906 = vshll.u32 2131351028, %v8897
          %v8907 = vshrl.u32 2102212464, %v8898
          %v8908 = vor.u32 %v8906, %v8907
          %v8909 = vshll.u32 2102212464, %v8897
          %v8910 = vshrl.u32 920167782, %v8898
          %v8911 = vor.u32 %v8909, %v8910
          %v8912 = vshll.u32 920167782, %v8897
          %v8913 = vshrl.u32 1326507024, %v8898
          %v8914 = vor.u32 %v8912, %v8913
          %vm8915 = vcmp.lt.s32.totalorder %v8896, 1
          %vm8916 = vcmp.lt.s32.totalorder %v8896, 2
          %vm8917 = vcmp.lt.s32.totalorder %v8896, 3
          %vm8918 = vcmp.lt.s32.totalorder %v8896, 4
          %v8919 = vsel %vm8915, %v8899, %v8902
          %v8920 = vsel %vm8918, %v8908, 2102212464
          %v8921 = vsel %vm8917, %v8905, %v8920
          %v8922 = vsel %vm8916, %v8919, %v8921
          %v8923 = vsel %vm8915, %v8902, %v8905
          %v8924 = vsel %vm8918, %v8911, 920167782
          %v8925 = vsel %vm8917, %v8908, %v8924
          %v8926 = vsel %vm8916, %v8923, %v8925
          %v8927 = vsel %vm8915, %v8905, %v8908
          %v8928 = vsel %vm8918, %v8914, 1326507024
          %v8929 = vsel %vm8917, %v8911, %v8928
          %v8930 = vsel %vm8916, %v8927, %v8929
          %v8931 = vshll.u32 %v8891, 8
          %v8932 = vmul.u32.u64.compose %v8931, %v8930
          %v8933 = vextract.low.u32 %v8932
          %v8934 = vextract.high.u32 %v8932
          %v8935 = vmul.u32.u64.compose %v8931, %v8926
          %v8936 = vextract.low.u32 %v8935
          %v8937 = vextract.high.u32 %v8935
          %v8938 = vmul.u32 %v8931, %v8922
          %v8939 = vadd.s32 %v8934, %v8936
          %vm8940 = vc.u32 %v8934, %v8936
          %v8941 = vadd.s32 %v8937, 1
          %v8942 = vsel %vm8940, %v8941, %v8937
          %v8943 = vadd.s32 %v8938, %v8942
          %v8944 = vadd.s32 %v8943, 536870912
          %v8945 = vshrl.u32 %v8944, 30
          %v8946 = vshll.u32 %v8945, 30
          %v8947 = vsub.s32 %v8943, %v8946
          %vm8948 = vcmp.lt.s32.totalorder %v8947, 0
          %v8949 = vsub.s32 0, %v8947
          %v8950 = vsel %vm8948, %v8949, %v8947
          %v8951 = vclz %v8950
          %v8952 = vsub.s32 %v8951, 2
          %vm8953 = vcmp.gt.s32.totalorder 0, %v8952
          %v8954 = vsel %vm8953, 0, %v8952
          %v8955 = vsub.s32 32, %v8954
          %v8956 = vshll.u32 %v8947, %v8954
          %v8957 = vshrl.u32 %v8939, %v8955
          %v8958 = vor.u32 %v8956, %v8957
          %v8959 = vsub.s32 4294967266, %v8954
          %v8960 = vadd.s32 %v8959, 127
          %v8961 = vshll.u32 %v8960, 23
          %v8962 = vor.u32 4788187, %v8961
          %v8963 = vand.u32 2147483647, %v8962
          %v8965 = vcvt.s32.f32 %v8958
          %v8966 = vmul.f32 %v8965, %v8963
          %v8967 = vxor.u32 %v8966, 2147483648
          %v8968 = vsel %vm8885, %v8967, %v8966
          %v8969 = vsub.s32 4, %v8945
          %v8970 = vsel %vm8885, %v8969, %v8945
          %v8971 = vsel %vm8884, %v8779, %v8968
          %v8972 = vsel %vm8884, 0, %v8970
          %v8973 = vcosq.f32.pop %v8971
          %v8974 = vsinq.f32.pop %v8971
          %vm8975 = vweird.f32 %v8779
          %v8976 = vand.u32 %v8972, 3
          %vm8977 = vcmp.lt.s32.totalorder %v8976, 2
          %vm8978 = vcmp.eq.s32.totalorder %v8976, 0
          %v8979 = vxor.u32 %v8974, 2147483648
          %v8980 = vsel %vm8978, %v8973, %v8979
          %vm8981 = vcmp.eq.s32.totalorder %v8976, 2
          %v8982 = vxor.u32 %v8973, 2147483648
          %v8983 = vsel %vm8981, %v8982, %v8974
          %v8984 = vsel %vm8977, %v8980, %v8983
          %v8985 = vsel %vm8975, nan, %v8984
          %v8986 = vand.u32 2147483647, %v8778
          %vm8987 = vcmp.le.f32.partialorder %v8986, 0.7853982
          %vm8988 = vcmp.lt.s32.totalorder %v8778, 0
          %v8989 = vand.u32 %v8778, 2139095040
          %v8990 = vshrl.u32 %v8989, 23
          %v8991 = vsub.s32 %v8990, 127
          %v8992 = vand.u32 2147483647, %v8778
          %v8993 = vand.u32 %v8992, 8388607
          %v8994 = vor.u32 %v8993, 8388608
          %v8995 = vsub.s32 0, %v8994
          %v8996 = vadd.s32 %v8991, 1
          %vm8997 = vcmp.gt.s32.totalorder %v8996, 0
          %v8998 = vsel %vm8997, %v8996, 0
          %v8999 = vshrl.u32 %v8998, 5
          %v9000 = vand.u32 %v8998, 31
          %v9001 = vsub.s32 32, %v9000
          %v9002 = vshrl.u32 683565275, %v9001
          %v9003 = vshll.u32 683565275, %v9000
          %v9004 = vshrl.u32 2475754826, %v9001
          %v9005 = vor.u32 %v9003, %v9004
          %v9006 = vshll.u32 2475754826, %v9000
          %v9007 = vshrl.u32 2131351028, %v9001
          %v9008 = vor.u32 %v9006, %v9007
          %v9009 = vshll.u32 2131351028, %v9000
          %v9010 = vshrl.u32 2102212464, %v9001
          %v9011 = vor.u32 %v9009, %v9010
          %v9012 = vshll.u32 2102212464, %v9000
          %v9013 = vshrl.u32 920167782, %v9001
          %v9014 = vor.u32 %v9012, %v9013
          %v9015 = vshll.u32 920167782, %v9000
          %v9016 = vshrl.u32 1326507024, %v9001
          %v9017 = vor.u32 %v9015, %v9016
          %vm9018 = vcmp.lt.s32.totalorder %v8999, 1
          %vm9019 = vcmp.lt.s32.totalorder %v8999, 2
          %vm9020 = vcmp.lt.s32.totalorder %v8999, 3
          %vm9021 = vcmp.lt.s32.totalorder %v8999, 4
          %v9022 = vsel %vm9018, %v9002, %v9005
          %v9023 = vsel %vm9021, %v9011, 2102212464
          %v9024 = vsel %vm9020, %v9008, %v9023
          %v9025 = vsel %vm9019, %v9022, %v9024
          %v9026 = vsel %vm9018, %v9005, %v9008
          %v9027 = vsel %vm9021, %v9014, 920167782
          %v9028 = vsel %vm9020, %v9011, %v9027
          %v9029 = vsel %vm9019, %v9026, %v9028
          %v9030 = vsel %vm9018, %v9008, %v9011
          %v9031 = vsel %vm9021, %v9017, 1326507024
          %v9032 = vsel %vm9020, %v9014, %v9031
          %v9033 = vsel %vm9019, %v9030, %v9032
          %v9034 = vshll.u32 %v8994, 8
          %v9035 = vmul.u32.u64.compose %v9034, %v9033
          %v9036 = vextract.low.u32 %v9035
          %v9037 = vextract.high.u32 %v9035
          %v9038 = vmul.u32.u64.compose %v9034, %v9029
          %v9039 = vextract.low.u32 %v9038
          %v9040 = vextract.high.u32 %v9038
          %v9041 = vmul.u32 %v9034, %v9025
          %v9042 = vadd.s32 %v9037, %v9039
          %vm9043 = vc.u32 %v9037, %v9039
          %v9044 = vadd.s32 %v9040, 1
          %v9045 = vsel %vm9043, %v9044, %v9040
          %v9046 = vadd.s32 %v9041, %v9045
          %v9047 = vadd.s32 %v9046, 536870912
          %v9048 = vshrl.u32 %v9047, 30
          %v9049 = vshll.u32 %v9048, 30
          %v9050 = vsub.s32 %v9046, %v9049
          %vm9051 = vcmp.lt.s32.totalorder %v9050, 0
          %v9052 = vsub.s32 0, %v9050
          %v9053 = vsel %vm9051, %v9052, %v9050
          %v9054 = vclz %v9053
          %v9055 = vsub.s32 %v9054, 2
          %vm9056 = vcmp.gt.s32.totalorder 0, %v9055
          %v9057 = vsel %vm9056, 0, %v9055
          %v9058 = vsub.s32 32, %v9057
          %v9059 = vshll.u32 %v9050, %v9057
          %v9060 = vshrl.u32 %v9042, %v9058
          %v9061 = vor.u32 %v9059, %v9060
          %v9062 = vsub.s32 4294967266, %v9057
          %v9063 = vadd.s32 %v9062, 127
          %v9064 = vshll.u32 %v9063, 23
          %v9065 = vor.u32 4788187, %v9064
          %v9066 = vand.u32 2147483647, %v9065
          %v9068 = vcvt.s32.f32 %v9061
          %v9069 = vmul.f32 %v9068, %v9066
          %v9070 = vxor.u32 %v9069, 2147483648
          %v9071 = vsel %vm8988, %v9070, %v9069
          %v9072 = vsub.s32 4, %v9048
          %v9073 = vsel %vm8988, %v9072, %v9048
          %v9074 = vsel %vm8987, %v8778, %v9071
          %v9075 = vsel %vm8987, 0, %v9073
          %v9076 = vcosq.f32.pop %v9074
          %v9077 = vsinq.f32.pop %v9074
          %vm9078 = vweird.f32 %v8778
          %v9079 = vadd.s32 %v9075, 3
          %v9080 = vand.u32 %v9079, 3
          %vm9081 = vcmp.lt.s32.totalorder %v9080, 2
          %vm9082 = vcmp.eq.s32.totalorder %v9080, 0
          %v9083 = vxor.u32 %v9077, 2147483648
          %v9084 = vsel %vm9082, %v9076, %v9083
          %vm9085 = vcmp.eq.s32.totalorder %v9080, 2
          %v9086 = vxor.u32 %v9076, 2147483648
          %v9087 = vsel %vm9085, %v9086, %v9077
          %v9088 = vsel %vm9081, %v9084, %v9087
          %v9089 = vsel %vm9078, nan, %v9088
          %v9090 = vand.u32 2147483647, %v8779
          %vm9091 = vcmp.le.f32.partialorder %v9090, 0.7853982
          %vm9092 = vcmp.lt.s32.totalorder %v8779, 0
          %v9093 = vand.u32 %v8779, 2139095040
          %v9094 = vshrl.u32 %v9093, 23
          %v9095 = vsub.s32 %v9094, 127
          %v9096 = vand.u32 2147483647, %v8779
          %v9097 = vand.u32 %v9096, 8388607
          %v9098 = vor.u32 %v9097, 8388608
          %v9099 = vsub.s32 0, %v9098
          %v9100 = vadd.s32 %v9095, 1
          %vm9101 = vcmp.gt.s32.totalorder %v9100, 0
          %v9102 = vsel %vm9101, %v9100, 0
          %v9103 = vshrl.u32 %v9102, 5
          %v9104 = vand.u32 %v9102, 31
          %v9105 = vsub.s32 32, %v9104
          %v9106 = vshrl.u32 683565275, %v9105
          %v9107 = vshll.u32 683565275, %v9104
          %v9108 = vshrl.u32 2475754826, %v9105
          %v9109 = vor.u32 %v9107, %v9108
          %v9110 = vshll.u32 2475754826, %v9104
          %v9111 = vshrl.u32 2131351028, %v9105
          %v9112 = vor.u32 %v9110, %v9111
          %v9113 = vshll.u32 2131351028, %v9104
          %v9114 = vshrl.u32 2102212464, %v9105
          %v9115 = vor.u32 %v9113, %v9114
          %v9116 = vshll.u32 2102212464, %v9104
          %v9117 = vshrl.u32 920167782, %v9105
          %v9118 = vor.u32 %v9116, %v9117
          %v9119 = vshll.u32 920167782, %v9104
          %v9120 = vshrl.u32 1326507024, %v9105
          %v9121 = vor.u32 %v9119, %v9120
          %vm9122 = vcmp.lt.s32.totalorder %v9103, 1
          %vm9123 = vcmp.lt.s32.totalorder %v9103, 2
          %vm9124 = vcmp.lt.s32.totalorder %v9103, 3
          %vm9125 = vcmp.lt.s32.totalorder %v9103, 4
          %v9126 = vsel %vm9122, %v9106, %v9109
          %v9127 = vsel %vm9125, %v9115, 2102212464
          %v9128 = vsel %vm9124, %v9112, %v9127
          %v9129 = vsel %vm9123, %v9126, %v9128
          %v9130 = vsel %vm9122, %v9109, %v9112
          %v9131 = vsel %vm9125, %v9118, 920167782
          %v9132 = vsel %vm9124, %v9115, %v9131
          %v9133 = vsel %vm9123, %v9130, %v9132
          %v9134 = vsel %vm9122, %v9112, %v9115
          %v9135 = vsel %vm9125, %v9121, 1326507024
          %v9136 = vsel %vm9124, %v9118, %v9135
          %v9137 = vsel %vm9123, %v9134, %v9136
          %v9138 = vshll.u32 %v9098, 8
          %v9139 = vmul.u32.u64.compose %v9138, %v9137
          %v9140 = vextract.low.u32 %v9139
          %v9141 = vextract.high.u32 %v9139
          %v9142 = vmul.u32.u64.compose %v9138, %v9133
          %v9143 = vextract.low.u32 %v9142
          %v9144 = vextract.high.u32 %v9142
          %v9145 = vmul.u32 %v9138, %v9129
          %v9146 = vadd.s32 %v9141, %v9143
          %vm9147 = vc.u32 %v9141, %v9143
          %v9148 = vadd.s32 %v9144, 1
          %v9149 = vsel %vm9147, %v9148, %v9144
          %v9150 = vadd.s32 %v9145, %v9149
          %v9151 = vadd.s32 %v9150, 536870912
          %v9152 = vshrl.u32 %v9151, 30
          %v9153 = vshll.u32 %v9152, 30
          %v9154 = vsub.s32 %v9150, %v9153
          %vm9155 = vcmp.lt.s32.totalorder %v9154, 0
          %v9156 = vsub.s32 0, %v9154
          %v9157 = vsel %vm9155, %v9156, %v9154
          %v9158 = vclz %v9157
          %v9159 = vsub.s32 %v9158, 2
          %vm9160 = vcmp.gt.s32.totalorder 0, %v9159
          %v9161 = vsel %vm9160, 0, %v9159
          %v9162 = vsub.s32 32, %v9161
          %v9163 = vshll.u32 %v9154, %v9161
          %v9164 = vshrl.u32 %v9146, %v9162
          %v9165 = vor.u32 %v9163, %v9164
          %v9166 = vsub.s32 4294967266, %v9161
          %v9167 = vadd.s32 %v9166, 127
          %v9168 = vshll.u32 %v9167, 23
          %v9169 = vor.u32 4788187, %v9168
          %v9170 = vand.u32 2147483647, %v9169
          %v9172 = vcvt.s32.f32 %v9165
          %v9173 = vmul.f32 %v9172, %v9170
          %v9174 = vxor.u32 %v9173, 2147483648
          %v9175 = vsel %vm9092, %v9174, %v9173
          %v9176 = vsub.s32 4, %v9152
          %v9177 = vsel %vm9092, %v9176, %v9152
          %v9178 = vsel %vm9091, %v8779, %v9175
          %v9179 = vsel %vm9091, 0, %v9177
          %v9180 = vcosq.f32.pop %v9178
          %v9181 = vsinq.f32.pop %v9178
          %vm9182 = vweird.f32 %v8779
          %v9183 = vadd.s32 %v9179, 3
          %v9184 = vand.u32 %v9183, 3
          %vm9185 = vcmp.lt.s32.totalorder %v9184, 2
          %vm9186 = vcmp.eq.s32.totalorder %v9184, 0
          %v9187 = vxor.u32 %v9181, 2147483648
          %v9188 = vsel %vm9186, %v9180, %v9187
          %vm9189 = vcmp.eq.s32.totalorder %v9184, 2
          %v9190 = vxor.u32 %v9180, 2147483648
          %v9191 = vsel %vm9189, %v9190, %v9181
          %v9192 = vsel %vm9185, %v9188, %v9191
          %v9193 = vsel %vm9182, nan, %v9192
          %v9194 = vld [vmem:[#allocation4] sm:$0xff]
          %v9195 = vld [vmem:[#allocation4 + $0x8] sm:$0xff]
          %9197 = vset.pattern.permute.xlu0 0
          %9198 = vperm.xlu0 %9197, %v9194
          %v9199 = vpop.permute.xlu0 %9198
          %9202 = vset.pattern.permute.xlu0 0
          %9203 = vperm.xlu0 %9202, %v9195
          %v9204 = vpop.permute.xlu0 %9203
          %v9206 = vmul.f32 %v8882, %v9199
          %v9207 = vmul.f32 %v8985, %v9204
          %v9208 = vsub.f32 16.0, %v9206
          %v9209 = vsub.f32 16.0, %v9207
          %v9210 = vld [vmem:[#allocation5] sm:$0xff]
          %v9211 = vld [vmem:[#allocation5 + $0x8] sm:$0xff]
          %9213 = vset.pattern.permute.xlu0 0
          %9214 = vperm.xlu0 %9213, %v9210
          %v9215 = vpop.permute.xlu0 %9214
          %9218 = vset.pattern.permute.xlu0 0
          %9219 = vperm.xlu0 %9218, %v9211
          %v9220 = vpop.permute.xlu0 %9219
          %v9222 = vmul.f32 %v9089, %v9215
          %v9223 = vmul.f32 %v9193, %v9220
          %v9224 = vsub.f32 %v9208, %v9222
          %v9225 = vsub.f32 %v9209, %v9223
          %v9226 = vld [vmem:[#allocation2] sm:$0xff]
          %v9227 = vld [vmem:[#allocation2 + $0x8] sm:$0xff]
          %v9228 = vmul.f32 %v9224, 10.0
          %v9229 = vmul.f32 %v9225, 10.0
          %v9230 = vadd.f32 %v9226, %v9228
          %v9231 = vadd.f32 %v9227, %v9229
          %v9232 = vmul.f32 %v8775, %v9230
          %v9233 = vmul.f32 %v8776, %v9231
          %v9234 = vsel %vm8699, %v9232, 0.0
          %v9235 = vsel %vm8699, %v9233, 0.0
          %v9236 = vadd.f32 %v9234, %v9235
          %9237 = vadd.xlane.f32.xlu0 %v9236
          %v9238 = vpop.xlane.xlu0 %9237
          %v9239 = vrot.slane %v9238, 4
          %v9240 = vadd.f32 %v9238, %v9239
          %v9241 = vrot.slane %v9240, 2
          %v9242 = vadd.f32 %v9240, %v9241
          %v9243 = vrot.slane %v9242, 1
          %v9244 = vadd.f32 %v9242, %v9243
          %s9245 = vtos %v9244
          %v9246 = vmul.f32 %v8775, %v8773
          %v9247 = vmul.f32 %v8776, %v8774
          %v9248 = vsel %vm8699, %v9246, 0.0
          %v9249 = vsel %vm8699, %v9247, 0.0
          %v9250 = vadd.f32 %v9248, %v9249
          %9251 = vadd.xlane.f32.xlu0 %v9250
          %v9252 = vpop.xlane.xlu0 %9251
          %v9253 = vrot.slane %v9252, 4
          %v9254 = vadd.f32 %v9252, %v9253
          %v9255 = vrot.slane %v9254, 2
          %v9256 = vadd.f32 %v9254, %v9255
          %v9257 = vrot.slane %v9256, 1
          %v9258 = vadd.f32 %v9256, %v9257
          %s9259 = vtos %v9258
          %v9260 = vsel %vm8699, %v8775, 0.0
          %v9261 = vsel %vm8699, %v8776, 0.0
          %v9262 = vadd.f32 %v9260, %v9261
          %9263 = vadd.xlane.f32.xlu0 %v9262
          %v9264 = vpop.xlane.xlu0 %9263
          %v9265 = vrot.slane %v9264, 4
          %v9266 = vadd.f32 %v9264, %v9265
          %v9267 = vrot.slane %v9266, 2
          %v9268 = vadd.f32 %v9266, %v9267
          %v9269 = vrot.slane %v9268, 1
          %v9270 = vadd.f32 %v9268, %v9269
          %s9271 = vtos %v9270
          %v9272 = vmul.f32 %v8773, %v8771
          %v9273 = vmul.f32 %v8774, %v8772
          %v9274 = vsel %vm8699, %v9272, 0.0
          %v9275 = vsel %vm8699, %v9273, 0.0
          %v9276 = vadd.f32 %v9274, %v9275
          %9277 = vadd.xlane.f32.xlu0 %v9276
          %v9278 = vpop.xlane.xlu0 %9277
          %v9279 = vrot.slane %v9278, 4
          %v9280 = vadd.f32 %v9278, %v9279
          %v9281 = vrot.slane %v9280, 2
          %v9282 = vadd.f32 %v9280, %v9281
          %v9283 = vrot.slane %v9282, 1
          %v9284 = vadd.f32 %v9282, %v9283
          %s9285 = vtos %v9284
          %v9286 = vlaneseq
          %v9287 = vand.u32 %v9286, 127
          %vm9288 = vcmp.eq.s32.totalorder %v9287, 0
          %v9289 = vstv %s9245
          %v9290 = vsel %vm9288, %v9289, 0.0
          %vm9291 = vcmp.eq.s32.totalorder %v9287, 1
          %v9292 = vstv %s9259
          %v9293 = vsel %vm9291, %v9292, 0.0
          %v9294 = vadd.f32 %v9290, %v9293
          %vm9295 = vcmp.eq.s32.totalorder %v9287, 2
          %v9296 = vstv %s9271
          %v9297 = vsel %vm9295, %v9296, 0.0
          %v9298 = vadd.f32 %v9294, %v9297
          %vm9299 = vcmp.eq.s32.totalorder %v9287, 3
          %v9300 = vstv %s9285
          %v9301 = vsel %vm9299, %v9300, 0.0
          %v9302 = vadd.f32 %v9298, %v9301
          %9303 = vst [vmem:[%s315] sm:$0x1] %v9302
        $region48: #{tpu_custom_call.1} parent=39 // pred_fallthru
          _
        %s9304 = sand.u32 %s182, 1
        %s9305 = scalar_lea.sflag [#allocation7], %s9304
        %s9306 = sand.u32 %s182, 1
        %s9307 = scalar_lea.vmem [#allocation6], %s9306
        // Predicated region
        $region49: #{tpu_custom_call.1} parent=39 // pred_check
          %p9308 = pneg %p192
        $region50: #{tpu_custom_call.1} parent=39 // pred_check_branch
          %9310 = sbr.rel (%p9308) target = $region52
        $region51: #{tpu_custom_call.1} parent=39 // pred_region
          %s9311 = sadd.s32 %s24, %s25
          %s9313 = ssub.s32 16, 16
          %9314 = vsyncadd %s9305, %s9313
          %s9315 = smul.addr %s9311, 16
          %s9316 = scalar_lea.hbm %s5, %s9315
          %s9318 = sshll.u32 %s9307, 4
          %s9319 = int_to_ptr.vmem [resolvable:$true] %s9318
          %9321 = dma.vmem_to_hbm [thread:$0]  %s9319, 16, %s9316, %s9305
        $region52: #{tpu_custom_call.1} parent=39 // pred_fallthru
          _
      $region40: #{tpu_custom_call.1} parent=5 // pred_fallthru
        _
      %p9322 = scmp.le.s32.totalorder 2, %s14
      // Predicated region
      $region53: #{tpu_custom_call.1} parent=5 // pred_check
        %p9323 = pneg %p9322
      $region54: #{tpu_custom_call.1} parent=5 // pred_check_branch
        %9325 = sbr.rel (%p9323) target = $region56
      $region55: #{tpu_custom_call.1} parent=5 // pred_region
        %s9326 = ssub.s32 %s14, 2
        // Predicated region
        $region57: #{tpu_custom_call.1} parent=55 // pred_check
          %p9327 = pneg %p198
        $region58: #{tpu_custom_call.1} parent=55 // pred_check_branch
          %9329 = sbr.rel (%p9327) target = $region60
        $region59: #{tpu_custom_call.1} parent=55 // pred_region
          %s9330 = sand.u32 %s183, 1
          %s9331 = scalar_lea.sflag [#allocation7], %s9330
          %s9332 = sand.u32 %s183, 1
          %s9333 = scalar_lea.vmem [#allocation6], %s9332
          %9334 = dma.done %s9331, 16
        $region60: #{tpu_custom_call.1} parent=55 // pred_fallthru
          _
      $region56: #{tpu_custom_call.1} parent=5 // pred_fallthru
        _
    $region6: #{tpu_custom_call.1} parent=1 // loop_footer
      %s18 = sadd.s32 1, %s14
    $region7: #{tpu_custom_call.1} parent=1 // loop_footer_branch
      %13 = sbr.rel target = $region3
    $region8: #{tpu_custom_call.1} parent=1 // loop_exit
      _
    %9335 = vsyncpa [#allocation7], 1
    %s9336 = scalar_lea.sflag [#allocation7], 1
    %9337 = vsyncpa %s9336, 1

</llo_original>
